<compile_context>
chip_gen: v7x
topology: tpu7x:2x2x1
jax: 0.10.0
libtpu: 0.0.40
codegen_flags: <defaults>
</compile_context>

<pallas_src>
import functools

import jax
import jax.numpy as jnp
from jax.experimental import pallas as pl
from jax.experimental.pallas import tpu as pltpu


def cnn_encoder_kernel(x_ref, mask_ref,
                       w1_ref, b1_ref, w2_ref, b2_ref, w3_ref, b3_ref,
                       wl_ref, bl_ref, out_ref, *,
                       kernel_sizes, valid_lens, residual):
    """One batch block per grid step, channels-last.

    x_ref:    (BB, Tp, Ep)       embedded tokens, bf16
    mask_ref: (BB, Tp)           attention mask (0/1), f32
    wX_ref:   (K*Cin_p, Cout_p)  flattened conv weights (im2col layout), bf16
    bX_ref:   (1, Cout_p)        conv bias, f32
    wl_ref:   (1, Dp)            weighted-sum linear weight, f32
    bl_ref:   (1, 1)             weighted-sum linear bias, f32
    out_ref:  (BB, Dp)           pooled output, f32
    """
    BB, Tp, _ = x_ref.shape

    # Activations stay f32 (residual / tanh / exp on the VPU; rolls on the
    # native 32-bit XLU path); matmul inputs are cast to bf16 below.
    curr = x_ref[...].astype(jnp.float32)                        # [BB, Tp, C]

    # Hoisted valid-row masks: one iota, one compare per distinct conv size
    # (JAX does not CSE broadcast_in_dim, so don't rebuild these per layer).
    t_iota = jax.lax.broadcasted_iota(jnp.int32, (1, Tp, 1), 1)
    valid = {lo: t_iota < lo for lo in set(valid_lens)}

    for w_ref, b_ref, K, lout, has_res in zip(
            (w1_ref, w2_ref, w3_ref), (b1_ref, b2_ref, b3_ref),
            kernel_sizes, valid_lens, residual):
        Wf = w_ref[...]                                          # [K*Cin, Cout] bf16
        Cout = Wf.shape[1]

        # im2col without the [BB, Tp+K-1, C] zero-pad copy: view k is curr
        # rolled by -k along time (positive shift Tp-k; wrapped rows only
        # appear at t >= lout and are zeroed by `valid` below).
        views = [curr.astype(jnp.bfloat16)]
        for k in range(1, K):
            views.append(pltpu.roll(curr, Tp - k, axis=1).astype(jnp.bfloat16))
        im2col = jnp.concatenate(views, axis=-1)                 # [BB, Tp, K*Cin] bf16

        # One MXU matmul per conv layer (contraction = K*Cin).
        y = jnp.dot(im2col.reshape(BB * Tp, Wf.shape[0]), Wf,
                    preferred_element_type=jnp.float32)          # [BB*Tp, Cout]
        y = y.reshape(BB, Tp, Cout)

        # Valid rows get the bias; rows >= lout reproduce the zero rows of
        # F.pad(next_enc, (0, padding_amt)) — no concatenate needed.
        y = jnp.where(valid[lout], y + b_ref[...], 0.0)

        if has_res:                       # residual only when channels match
            y = y + curr
        curr = jnp.tanh(y)
        # nn.Dropout: identity at inference time.
        # TODO(synk): training-mode dropout (random mask) intentionally omitted.

    # ---- weighted_mean pooling ----
    # token score = curr . wl + bl   (lane reduce over D)
    scores = jnp.sum(curr * wl_ref[...], axis=-1) + bl_ref[...]  # [BB, Tp]
    scores = scores - jnp.max(scores, axis=-1, keepdims=True)    # stability only
    # Softmax normalization cancels exactly in num/den, so it is dropped; the
    # mask is applied AFTER the (unnormalized) softmax, as in the torch code.
    wgt = jnp.exp(scores) * mask_ref[...]                        # [BB, Tp]
    # VPU broadcast-multiply + sublane reduce (avoids BB M=1 MXU matmuls).
    num = jnp.sum(wgt[:, :, None] * curr, axis=1)                # [BB, Dp]
    den = jnp.sum(wgt, axis=-1, keepdims=True)                   # [BB, 1]
    # Exact divide: den is tiny and feeds every output element.
    # NOTE: an all-zero mask row gives den == 0 -> Inf/NaN, same as PyTorch.
    out_ref[...] = num / den


def cnn_encoder_forward(input_ids, attention_masks, params, *,
                        block_b=8, interpret=False):
    """params carry the original (unpadded) shapes; all layout plumbing here."""
    # Embedding gather is glue, done in plain JAX.
    emb = params["embedding"][input_ids].astype(jnp.float32)     # [B, T, E]
    B, T, E = emb.shape

    kernel_sizes = (params["w1"].shape[0], params["w2"].shape[0],
                    params["w3"].shape[0])
    assert all(K <= T for K in kernel_sizes)
    c_out = (params["w1"].shape[2], params["w2"].shape[2], params["w3"].shape[2])
    c_in = (E, c_out[0], c_out[1])
    residual = tuple(ci == co for ci, co in zip(c_in, c_out))    # from ORIGINAL shapes
    D = c_out[-1]

    LANE, SUB = 128, 8
    pad_to = lambda n, m: -(-n // m) * m

    # Output/lane dims always padded to 128 (dense MXU columns, dense stores).
    # A small embedding dim (< 128) is left unpadded — don't inflate the conv1
    # contraction — unless a layer-1 residual needs matching widths.
    c_out_p = tuple(pad_to(c, LANE) for c in c_out)
    Ep = pad_to(E, LANE) if (E >= LANE or residual[0]) else E
    c_in_p = (Ep,) + c_out_p[:-1]
    Dp = c_out_p[-1]

    # Sequence padded to a sublane multiple (copy-free reshapes / rolls); conv
    # validity keyed to the ORIGINAL T, so semantics are unchanged.  Padded
    # time positions carry zero embeddings and mask=0.
    Tp = pad_to(T, SUB)
    valid_lens = tuple(T - K + 1 for K in kernel_sizes)

    def prep_conv(w, b, cin_p, cout_p):
        K, cin, cout = w.shape
        wp = jnp.zeros((K, cin_p, cout_p), jnp.float32).at[:, :cin, :cout].set(w)
        wflat = wp.reshape(K * cin_p, cout_p).astype(jnp.bfloat16)   # im2col layout
        bp = jnp.zeros((1, cout_p), jnp.float32).at[:, :cout].set(b)
        return wflat, bp

    wf1, bp1 = prep_conv(params["w1"], params["b1"], c_in_p[0], c_out_p[0])
    wf2, bp2 = prep_conv(params["w2"], params["b2"], c_in_p[1], c_out_p[1])
    wf3, bp3 = prep_conv(params["w3"], params["b3"], c_in_p[2], c_out_p[2])
    wl_row = jnp.zeros((1, Dp), jnp.float32).at[0, :D].set(params["wl"][:, 0])
    bl = params["bl"].astype(jnp.float32).reshape(1, 1)

    # ---- batch blocking (BB sits in the sublane dim of the 2-D mask/out
    # blocks, so keep it a multiple of 8 or covering the whole padded batch) ----
    BB = max(1, min(block_b, B))
    if BB < B and BB % SUB != 0:
        BB = min(pad_to(BB, SUB), pad_to(B, SUB))
    Bp = pad_to(B, BB)
    grid_b = Bp // BB

    emb_p = (jnp.zeros((Bp, Tp, Ep), jnp.float32).at[:B, :T, :E].set(emb)
             .astype(jnp.bfloat16))
    mask_p = jnp.zeros((Bp, Tp), jnp.float32).at[:B, :T].set(
        attention_masks.astype(jnp.float32))
    mask_p = mask_p.at[B:, :T].set(1.0)        # padded batch rows: keep den > 0

    kernel = functools.partial(cnn_encoder_kernel, kernel_sizes=kernel_sizes,
                               valid_lens=valid_lens, residual=residual)

    # Constant-index operands: single-buffered (never re-DMA'd across steps).
    def const_spec(shape):
        return pl.BlockSpec(shape, lambda b: (0,) * len(shape),
                            pipeline_mode=pl.Buffered(1))

    out = pl.pallas_call(
        kernel,
        out_shape=jax.ShapeDtypeStruct((Bp, Dp), jnp.float32),
        grid_spec=pltpu.PrefetchScalarGridSpec(
            num_scalar_prefetch=0,
            grid=(grid_b,),
            in_specs=[
                # x tile: bf16 halves HBM traffic; on v5e, if the profile shows
                # exposed DMA, deepen this with pipeline_mode=pl.Buffered(3).
                pl.BlockSpec((BB, Tp, Ep), lambda b: (b, 0, 0)),       # x
                pl.BlockSpec((BB, Tp), lambda b: (b, 0)),              # mask
                const_spec(wf1.shape), const_spec(bp1.shape),          # conv1
                const_spec(wf2.shape), const_spec(bp2.shape),          # conv2
                const_spec(wf3.shape), const_spec(bp3.shape),          # conv3
                const_spec(wl_row.shape), const_spec(bl.shape),        # pooling linear
            ],
            out_specs=pl.BlockSpec((BB, Dp), lambda b: (b, 0)),
        ),
        compiler_params=pltpu.CompilerParams(
            dimension_semantics=("parallel",),
            # 48 MiB: above the 16/32 MiB scoped defaults, under v7x's 64 MiB
            # physical VMEM.  Working set at these shapes is ~1-2 MiB.
            vmem_limit_bytes=48 * 1024 * 1024),
        interpret=interpret,
    )(emb_p, mask_p, wf1, bp1, wf2, bp2, wf3, bp3, wl_row, bl)
    return out[:B, :D]                                           # [B, D]


def reference_forward(input_ids, attention_masks, params):
    """Pure-JAX f32 reference mirroring the PyTorch forward (eval mode)."""
    x = params["embedding"][input_ids].astype(jnp.float32)       # [B, T, E]
    T = x.shape[1]
    curr = x
    for w, b in ((params["w1"], params["b1"]),
                 (params["w2"], params["b2"]),
                 (params["w3"], params["b3"])):
        K = w.shape[0]
        Lout = T - K + 1
        y = jnp.zeros((x.shape[0], Lout, w.shape[2]), jnp.float32) + b[None]
        for k in range(K):
            y = y + jnp.einsum("bti,io->bto", curr[:, k:k + Lout, :], w[k])
        y = jnp.pad(y, ((0, 0), (0, T - Lout), (0, 0)))
        if curr.shape[2] == w.shape[2]:
            y = y + curr
        curr = jnp.tanh(y)
    scores = jnp.einsum("btd,do->bto", curr, params["wl"])[:, :, 0] \
        + params["bl"][0, 0]
    w_ = jax.nn.softmax(scores, axis=-1) * attention_masks.astype(jnp.float32)
    num = jnp.einsum("btd,bt->bd", curr, w_)
    den = jnp.sum(w_, axis=1, keepdims=True)
    return num / den


if __name__ == "__main__":
    # Small config consistent with the module.  Layer 2 exercises the residual
    # path (96 == 96, both padded to 128); layer 1 exercises the unpadded
    # small-Cin (E=64) contraction; layer 3 exercises channel reduction + the
    # lane-padded output (D=64 -> Dp=128).  B=16 with block_b=8 gives a
    # 2-step parallel grid and M = BB*T = 256 MXU rows per conv matmul.
    B, T = 16, 32
    E = 64
    num_filters = [96, 96, 64]
    kernel_sizes = [9, 9, 9]
    vocab = 50
    D = num_filters[-1]

    key = jax.random.PRNGKey(0)
    ks = jax.random.split(key, 12)

    emb_table = jax.random.normal(ks[0], (vocab, E), jnp.float32) * 0.5
    emb_table = emb_table.at[1].set(0.0)      # nn.Embedding padding_idx=1

    def conv_init(kw, kb, K, cin, cout):
        w = jax.random.normal(kw, (K, cin, cout), jnp.float32) / jnp.sqrt(K * cin)
        b = jax.random.normal(kb, (1, cout), jnp.float32) * 0.1
        return w, b

    w1, b1 = conv_init(ks[1], ks[2], kernel_sizes[0], E, num_filters[0])
    w2, b2 = conv_init(ks[3], ks[4], kernel_sizes[1], num_filters[0], num_filters[1])
    w3, b3 = conv_init(ks[5], ks[6], kernel_sizes[2], num_filters[1], num_filters[2])
    wl = jax.random.normal(ks[7], (D, 1), jnp.float32) / jnp.sqrt(D)
    bl = jax.random.normal(ks[8], (1, 1), jnp.float32) * 0.1

    params = dict(embedding=emb_table, w1=w1, b1=b1, w2=w2, b2=b2,
                  w3=w3, b3=b3, wl=wl, bl=bl)

    lengths = jax.random.randint(ks[10], (B,), 5, T + 1, dtype=jnp.int32)
    positions = jnp.arange(T, dtype=jnp.int32)[None, :]
    attention_masks = (positions < lengths[:, None]).astype(jnp.float32)  # [B, T]
    input_ids = jax.random.randint(ks[9], (B, T), 0, vocab, dtype=jnp.int32)
    input_ids = jnp.where(attention_masks > 0, input_ids, 1)  # pad token at masked slots

    out = cnn_encoder_forward(input_ids, attention_masks, params, block_b=8)
    out = jax.block_until_ready(out)

    ref = reference_forward(input_ids, attention_masks, params)
    assert out.shape == (B, D), out.shape
    # bf16 MXU inputs loosen the tolerance vs the f32 reference.
    assert jnp.allclose(out, ref, atol=2e-2, rtol=2e-2), \
        f"max abs diff {jnp.max(jnp.abs(out - ref))}"

    print("KERNEL_OK")
</pallas_src>

<mosaic_0001>
module attributes {stable_mosaic.version = 11 : i64} {
  func.func @cnn_encoder_kernel(%arg0: i32, %arg1: memref<8x32x64xbf16, #tpu.memory_space<vmem>>, %arg2: memref<8x32xf32, #tpu.memory_space<vmem>>, %arg3: memref<576x128xbf16, #tpu.memory_space<vmem>>, %arg4: memref<1x128xf32, #tpu.memory_space<vmem>>, %arg5: memref<1152x128xbf16, #tpu.memory_space<vmem>>, %arg6: memref<1x128xf32, #tpu.memory_space<vmem>>, %arg7: memref<1152x128xbf16, #tpu.memory_space<vmem>>, %arg8: memref<1x128xf32, #tpu.memory_space<vmem>>, %arg9: memref<1x128xf32, #tpu.memory_space<vmem>>, %arg10: memref<1x1xf32, #tpu.memory_space<vmem>>, %arg11: memref<8x128xf32, #tpu.memory_space<vmem>>) attributes {dimension_semantics = [#tpu.dimension_semantics<parallel>], iteration_bounds = array<i64: 2>, scalar_prefetch = 0 : i64, scratch_operands = 0 : i64, tpu.core_type = #tpu.core_type<tc>, window_params = [{transform_indices = @transform_0, window_bounds = array<i64: 8, 32, 64>}, {transform_indices = @transform_1, window_bounds = array<i64: 8, 32>}, {pipeline_mode = #tpu.pipeline_mode<synchronous>, transform_indices = @transform_2, window_bounds = array<i64: 576, 128>}, {pipeline_mode = #tpu.pipeline_mode<synchronous>, transform_indices = @transform_3, window_bounds = array<i64: 1, 128>}, {pipeline_mode = #tpu.pipeline_mode<synchronous>, transform_indices = @transform_4, window_bounds = array<i64: 1152, 128>}, {pipeline_mode = #tpu.pipeline_mode<synchronous>, transform_indices = @transform_5, window_bounds = array<i64: 1, 128>}, {pipeline_mode = #tpu.pipeline_mode<synchronous>, transform_indices = @transform_6, window_bounds = array<i64: 1152, 128>}, {pipeline_mode = #tpu.pipeline_mode<synchronous>, transform_indices = @transform_7, window_bounds = array<i64: 1, 128>}, {pipeline_mode = #tpu.pipeline_mode<synchronous>, transform_indices = @transform_8, window_bounds = array<i64: 1, 128>}, {pipeline_mode = #tpu.pipeline_mode<synchronous>, transform_indices = @transform_9, window_bounds = array<i64: 1, 1>}, {transform_indices = @transform_10, window_bounds = array<i64: 8, 128>}]} {
    %c0 = arith.constant 0 : index
    %c0_0 = arith.constant 0 : index
    %c0_1 = arith.constant 0 : index
    %0 = vector.load %arg1[%c0, %c0_0, %c0_1] : memref<8x32x64xbf16, #tpu.memory_space<vmem>>, vector<8x32x64xbf16>
    %1 = arith.extf %0 : vector<8x32x64xbf16> to vector<8x32x64xf32>
    %2 = tpu.iota {dimensions = array<i32: 1>} : vector<1x32x1xi32>
    %c24_i32 = arith.constant 24 : i32
    %3 = vector.broadcast %c24_i32 : i32 to vector<1x32x1xi32>
    %4 = arith.cmpi slt, %2, %3 : vector<1x32x1xi32>
    %c0_2 = arith.constant 0 : index
    %c0_3 = arith.constant 0 : index
    %5 = vector.load %arg3[%c0_2, %c0_3] : memref<576x128xbf16, #tpu.memory_space<vmem>>, vector<576x128xbf16>
    %6 = arith.truncf %1 : vector<8x32x64xf32> to vector<8x32x64xbf16>
    %c31_i32 = arith.constant 31 : i32
    %7 = tpu.dynamic_rotate %1 by %c31_i32 dim 1 : vector<8x32x64xf32>, i32 -> vector<8x32x64xf32>
    %8 = arith.truncf %7 : vector<8x32x64xf32> to vector<8x32x64xbf16>
    %c30_i32 = arith.constant 30 : i32
    %9 = tpu.dynamic_rotate %1 by %c30_i32 dim 1 : vector<8x32x64xf32>, i32 -> vector<8x32x64xf32>
    %10 = arith.truncf %9 : vector<8x32x64xf32> to vector<8x32x64xbf16>
    %c29_i32 = arith.constant 29 : i32
    %11 = tpu.dynamic_rotate %1 by %c29_i32 dim 1 : vector<8x32x64xf32>, i32 -> vector<8x32x64xf32>
    %12 = arith.truncf %11 : vector<8x32x64xf32> to vector<8x32x64xbf16>
    %c28_i32 = arith.constant 28 : i32
    %13 = tpu.dynamic_rotate %1 by %c28_i32 dim 1 : vector<8x32x64xf32>, i32 -> vector<8x32x64xf32>
    %14 = arith.truncf %13 : vector<8x32x64xf32> to vector<8x32x64xbf16>
    %c27_i32 = arith.constant 27 : i32
    %15 = tpu.dynamic_rotate %1 by %c27_i32 dim 1 : vector<8x32x64xf32>, i32 -> vector<8x32x64xf32>
    %16 = arith.truncf %15 : vector<8x32x64xf32> to vector<8x32x64xbf16>
    %c26_i32 = arith.constant 26 : i32
    %17 = tpu.dynamic_rotate %1 by %c26_i32 dim 1 : vector<8x32x64xf32>, i32 -> vector<8x32x64xf32>
    %18 = arith.truncf %17 : vector<8x32x64xf32> to vector<8x32x64xbf16>
    %c25_i32 = arith.constant 25 : i32
    %19 = tpu.dynamic_rotate %1 by %c25_i32 dim 1 : vector<8x32x64xf32>, i32 -> vector<8x32x64xf32>
    %20 = arith.truncf %19 : vector<8x32x64xf32> to vector<8x32x64xbf16>
    %c24_i32_4 = arith.constant 24 : i32
    %21 = tpu.dynamic_rotate %1 by %c24_i32_4 dim 1 : vector<8x32x64xf32>, i32 -> vector<8x32x64xf32>
    %22 = arith.truncf %21 : vector<8x32x64xf32> to vector<8x32x64xbf16>
    %23 = tpu.concatenate %6, %8, %10, %12, %14, %16, %18, %20, %22 in 2 : vector<8x32x64xbf16>, vector<8x32x64xbf16>, vector<8x32x64xbf16>, vector<8x32x64xbf16>, vector<8x32x64xbf16>, vector<8x32x64xbf16>, vector<8x32x64xbf16>, vector<8x32x64xbf16>, vector<8x32x64xbf16> -> vector<8x32x576xbf16>
    %24 = vector.shape_cast %23 : vector<8x32x576xbf16> to vector<256x576xbf16>
    %cst = arith.constant dense<0.000000e+00> : vector<256x128xf32>
    %25 = tpu.matmul %24, %5, %cst {dimension_numbers = #tpu.dot_dimension_numbers<[1], [0], [0], [1], [0, 0, 1, 1], [], []>} : vector<256x576xbf16>, vector<576x128xbf16>, vector<256x128xf32> -> vector<256x128xf32>
    %26 = vector.shape_cast %25 : vector<256x128xf32> to vector<8x32x128xf32>
    %c0_5 = arith.constant 0 : index
    %c0_6 = arith.constant 0 : index
    %27 = vector.load %arg4[%c0_5, %c0_6] : memref<1x128xf32, #tpu.memory_space<vmem>>, vector<1x128xf32>
    %28 = vector.shape_cast %27 : vector<1x128xf32> to vector<1x1x128xf32>
    %29 = vector.broadcast %28 : vector<1x1x128xf32> to vector<8x32x128xf32>
    %30 = arith.addf %26, %29 : vector<8x32x128xf32>
    %cst_7 = arith.constant 0.000000e+00 : f32
    %31 = vector.shape_cast %4 : vector<1x32x1xi1> to vector<1x32x1xi1>
    %32 = vector.broadcast %31 : vector<1x32x1xi1> to vector<8x32x128xi1>
    %33 = vector.broadcast %cst_7 : f32 to vector<8x32x128xf32>
    %34 = arith.select %32, %30, %33 : vector<8x32x128xi1>, vector<8x32x128xf32>
    %35 = math.tanh %34 : vector<8x32x128xf32>
    %c0_8 = arith.constant 0 : index
    %c0_9 = arith.constant 0 : index
    %36 = vector.load %arg5[%c0_8, %c0_9] : memref<1152x128xbf16, #tpu.memory_space<vmem>>, vector<1152x128xbf16>
    %37 = arith.truncf %35 : vector<8x32x128xf32> to vector<8x32x128xbf16>
    %c31_i32_10 = arith.constant 31 : i32
    %38 = tpu.dynamic_rotate %35 by %c31_i32_10 dim 1 : vector<8x32x128xf32>, i32 -> vector<8x32x128xf32>
    %39 = arith.truncf %38 : vector<8x32x128xf32> to vector<8x32x128xbf16>
    %c30_i32_11 = arith.constant 30 : i32
    %40 = tpu.dynamic_rotate %35 by %c30_i32_11 dim 1 : vector<8x32x128xf32>, i32 -> vector<8x32x128xf32>
    %41 = arith.truncf %40 : vector<8x32x128xf32> to vector<8x32x128xbf16>
    %c29_i32_12 = arith.constant 29 : i32
    %42 = tpu.dynamic_rotate %35 by %c29_i32_12 dim 1 : vector<8x32x128xf32>, i32 -> vector<8x32x128xf32>
    %43 = arith.truncf %42 : vector<8x32x128xf32> to vector<8x32x128xbf16>
    %c28_i32_13 = arith.constant 28 : i32
    %44 = tpu.dynamic_rotate %35 by %c28_i32_13 dim 1 : vector<8x32x128xf32>, i32 -> vector<8x32x128xf32>
    %45 = arith.truncf %44 : vector<8x32x128xf32> to vector<8x32x128xbf16>
    %c27_i32_14 = arith.constant 27 : i32
    %46 = tpu.dynamic_rotate %35 by %c27_i32_14 dim 1 : vector<8x32x128xf32>, i32 -> vector<8x32x128xf32>
    %47 = arith.truncf %46 : vector<8x32x128xf32> to vector<8x32x128xbf16>
    %c26_i32_15 = arith.constant 26 : i32
    %48 = tpu.dynamic_rotate %35 by %c26_i32_15 dim 1 : vector<8x32x128xf32>, i32 -> vector<8x32x128xf32>
    %49 = arith.truncf %48 : vector<8x32x128xf32> to vector<8x32x128xbf16>
    %c25_i32_16 = arith.constant 25 : i32
    %50 = tpu.dynamic_rotate %35 by %c25_i32_16 dim 1 : vector<8x32x128xf32>, i32 -> vector<8x32x128xf32>
    %51 = arith.truncf %50 : vector<8x32x128xf32> to vector<8x32x128xbf16>
    %c24_i32_17 = arith.constant 24 : i32
    %52 = tpu.dynamic_rotate %35 by %c24_i32_17 dim 1 : vector<8x32x128xf32>, i32 -> vector<8x32x128xf32>
    %53 = arith.truncf %52 : vector<8x32x128xf32> to vector<8x32x128xbf16>
    %54 = tpu.concatenate %37, %39, %41, %43, %45, %47, %49, %51, %53 in 2 : vector<8x32x128xbf16>, vector<8x32x128xbf16>, vector<8x32x128xbf16>, vector<8x32x128xbf16>, vector<8x32x128xbf16>, vector<8x32x128xbf16>, vector<8x32x128xbf16>, vector<8x32x128xbf16>, vector<8x32x128xbf16> -> vector<8x32x1152xbf16>
    %55 = vector.shape_cast %54 : vector<8x32x1152xbf16> to vector<256x1152xbf16>
    %cst_18 = arith.constant dense<0.000000e+00> : vector<256x128xf32>
    %56 = tpu.matmul %55, %36, %cst_18 {dimension_numbers = #tpu.dot_dimension_numbers<[1], [0], [0], [1], [0, 0, 1, 1], [], []>} : vector<256x1152xbf16>, vector<1152x128xbf16>, vector<256x128xf32> -> vector<256x128xf32>
    %57 = vector.shape_cast %56 : vector<256x128xf32> to vector<8x32x128xf32>
    %c0_19 = arith.constant 0 : index
    %c0_20 = arith.constant 0 : index
    %58 = vector.load %arg6[%c0_19, %c0_20] : memref<1x128xf32, #tpu.memory_space<vmem>>, vector<1x128xf32>
    %59 = vector.shape_cast %58 : vector<1x128xf32> to vector<1x1x128xf32>
    %60 = vector.broadcast %59 : vector<1x1x128xf32> to vector<8x32x128xf32>
    %61 = arith.addf %57, %60 : vector<8x32x128xf32>
    %cst_21 = arith.constant 0.000000e+00 : f32
    %62 = vector.shape_cast %4 : vector<1x32x1xi1> to vector<1x32x1xi1>
    %63 = vector.broadcast %62 : vector<1x32x1xi1> to vector<8x32x128xi1>
    %64 = vector.broadcast %cst_21 : f32 to vector<8x32x128xf32>
    %65 = arith.select %63, %61, %64 : vector<8x32x128xi1>, vector<8x32x128xf32>
    %66 = arith.addf %65, %35 : vector<8x32x128xf32>
    %67 = math.tanh %66 : vector<8x32x128xf32>
    %c0_22 = arith.constant 0 : index
    %c0_23 = arith.constant 0 : index
    %68 = vector.load %arg7[%c0_22, %c0_23] : memref<1152x128xbf16, #tpu.memory_space<vmem>>, vector<1152x128xbf16>
    %69 = arith.truncf %67 : vector<8x32x128xf32> to vector<8x32x128xbf16>
    %c31_i32_24 = arith.constant 31 : i32
    %70 = tpu.dynamic_rotate %67 by %c31_i32_24 dim 1 : vector<8x32x128xf32>, i32 -> vector<8x32x128xf32>
    %71 = arith.truncf %70 : vector<8x32x128xf32> to vector<8x32x128xbf16>
    %c30_i32_25 = arith.constant 30 : i32
    %72 = tpu.dynamic_rotate %67 by %c30_i32_25 dim 1 : vector<8x32x128xf32>, i32 -> vector<8x32x128xf32>
    %73 = arith.truncf %72 : vector<8x32x128xf32> to vector<8x32x128xbf16>
    %c29_i32_26 = arith.constant 29 : i32
    %74 = tpu.dynamic_rotate %67 by %c29_i32_26 dim 1 : vector<8x32x128xf32>, i32 -> vector<8x32x128xf32>
    %75 = arith.truncf %74 : vector<8x32x128xf32> to vector<8x32x128xbf16>
    %c28_i32_27 = arith.constant 28 : i32
    %76 = tpu.dynamic_rotate %67 by %c28_i32_27 dim 1 : vector<8x32x128xf32>, i32 -> vector<8x32x128xf32>
    %77 = arith.truncf %76 : vector<8x32x128xf32> to vector<8x32x128xbf16>
    %c27_i32_28 = arith.constant 27 : i32
    %78 = tpu.dynamic_rotate %67 by %c27_i32_28 dim 1 : vector<8x32x128xf32>, i32 -> vector<8x32x128xf32>
    %79 = arith.truncf %78 : vector<8x32x128xf32> to vector<8x32x128xbf16>
    %c26_i32_29 = arith.constant 26 : i32
    %80 = tpu.dynamic_rotate %67 by %c26_i32_29 dim 1 : vector<8x32x128xf32>, i32 -> vector<8x32x128xf32>
    %81 = arith.truncf %80 : vector<8x32x128xf32> to vector<8x32x128xbf16>
    %c25_i32_30 = arith.constant 25 : i32
    %82 = tpu.dynamic_rotate %67 by %c25_i32_30 dim 1 : vector<8x32x128xf32>, i32 -> vector<8x32x128xf32>
    %83 = arith.truncf %82 : vector<8x32x128xf32> to vector<8x32x128xbf16>
    %c24_i32_31 = arith.constant 24 : i32
    %84 = tpu.dynamic_rotate %67 by %c24_i32_31 dim 1 : vector<8x32x128xf32>, i32 -> vector<8x32x128xf32>
    %85 = arith.truncf %84 : vector<8x32x128xf32> to vector<8x32x128xbf16>
    %86 = tpu.concatenate %69, %71, %73, %75, %77, %79, %81, %83, %85 in 2 : vector<8x32x128xbf16>, vector<8x32x128xbf16>, vector<8x32x128xbf16>, vector<8x32x128xbf16>, vector<8x32x128xbf16>, vector<8x32x128xbf16>, vector<8x32x128xbf16>, vector<8x32x128xbf16>, vector<8x32x128xbf16> -> vector<8x32x1152xbf16>
    %87 = vector.shape_cast %86 : vector<8x32x1152xbf16> to vector<256x1152xbf16>
    %cst_32 = arith.constant dense<0.000000e+00> : vector<256x128xf32>
    %88 = tpu.matmul %87, %68, %cst_32 {dimension_numbers = #tpu.dot_dimension_numbers<[1], [0], [0], [1], [0, 0, 1, 1], [], []>} : vector<256x1152xbf16>, vector<1152x128xbf16>, vector<256x128xf32> -> vector<256x128xf32>
    %89 = vector.shape_cast %88 : vector<256x128xf32> to vector<8x32x128xf32>
    %c0_33 = arith.constant 0 : index
    %c0_34 = arith.constant 0 : index
    %90 = vector.load %arg8[%c0_33, %c0_34] : memref<1x128xf32, #tpu.memory_space<vmem>>, vector<1x128xf32>
    %91 = vector.shape_cast %90 : vector<1x128xf32> to vector<1x1x128xf32>
    %92 = vector.broadcast %91 : vector<1x1x128xf32> to vector<8x32x128xf32>
    %93 = arith.addf %89, %92 : vector<8x32x128xf32>
    %cst_35 = arith.constant 0.000000e+00 : f32
    %94 = vector.shape_cast %4 : vector<1x32x1xi1> to vector<1x32x1xi1>
    %95 = vector.broadcast %94 : vector<1x32x1xi1> to vector<8x32x128xi1>
    %96 = vector.broadcast %cst_35 : f32 to vector<8x32x128xf32>
    %97 = arith.select %95, %93, %96 : vector<8x32x128xi1>, vector<8x32x128xf32>
    %98 = math.tanh %97 : vector<8x32x128xf32>
    %c0_36 = arith.constant 0 : index
    %c0_37 = arith.constant 0 : index
    %99 = vector.load %arg9[%c0_36, %c0_37] : memref<1x128xf32, #tpu.memory_space<vmem>>, vector<1x128xf32>
    %100 = vector.shape_cast %99 : vector<1x128xf32> to vector<1x1x128xf32>
    %101 = vector.broadcast %100 : vector<1x1x128xf32> to vector<8x32x128xf32>
    %102 = arith.mulf %98, %101 : vector<8x32x128xf32>
    %cst_38 = arith.constant dense<0.000000e+00> : vector<8x32xf32>
    %103 = vector.multi_reduction <add>, %102, %cst_38 [2] : vector<8x32x128xf32> to vector<8x32xf32>
    %c0_39 = arith.constant 0 : index
    %c0_40 = arith.constant 0 : index
    %104 = vector.load %arg10[%c0_39, %c0_40] : memref<1x1xf32, #tpu.memory_space<vmem>>, vector<1x1xf32>
    %105 = vector.broadcast %104 : vector<1x1xf32> to vector<8x32xf32>
    %106 = arith.addf %103, %105 : vector<8x32xf32>
    %cst_41 = arith.constant dense<0xFF800000> : vector<8xf32>
    %107 = vector.multi_reduction <maximumf>, %106, %cst_41 [1] : vector<8x32xf32> to vector<8xf32>
    %108 = vector.shape_cast %107 : vector<8xf32> to vector<8x1xf32>
    %109 = vector.broadcast %108 : vector<8x1xf32> to vector<8x32xf32>
    %110 = arith.subf %106, %109 : vector<8x32xf32>
    %111 = math.exp %110 : vector<8x32xf32>
    %c0_42 = arith.constant 0 : index
    %c0_43 = arith.constant 0 : index
    %112 = vector.load %arg2[%c0_42, %c0_43] : memref<8x32xf32, #tpu.memory_space<vmem>>, vector<8x32xf32>
    %113 = arith.mulf %111, %112 : vector<8x32xf32>
    %114 = vector.shape_cast %113 : vector<8x32xf32> to vector<8x32x1xf32>
    %115 = vector.broadcast %114 : vector<8x32x1xf32> to vector<8x32x128xf32>
    %116 = arith.mulf %115, %98 : vector<8x32x128xf32>
    %cst_44 = arith.constant dense<0.000000e+00> : vector<8x128xf32>
    %117 = vector.multi_reduction <add>, %116, %cst_44 [1] : vector<8x32x128xf32> to vector<8x128xf32>
    %cst_45 = arith.constant dense<0.000000e+00> : vector<8xf32>
    %118 = vector.multi_reduction <add>, %113, %cst_45 [1] : vector<8x32xf32> to vector<8xf32>
    %119 = vector.shape_cast %118 : vector<8xf32> to vector<8x1xf32>
    %120 = vector.broadcast %119 : vector<8x1xf32> to vector<8x128xf32>
    %121 = arith.divf %117, %120 : vector<8x128xf32>
    %c0_46 = arith.constant 0 : index
    %c0_47 = arith.constant 0 : index
    %122 = vector.load %arg11[%c0_46, %c0_47] : memref<8x128xf32, #tpu.memory_space<vmem>>, vector<8x128xf32>
    tpu.vector_store %arg11[%c0_46, %c0_47], %121 {strides = array<i32>} : memref<8x128xf32, #tpu.memory_space<vmem>>, vector<8x128xf32>,
    return
  }
  func.func @transform_0(%arg0: i32) -> (i32, i32, i32) {
    %c0_i32 = arith.constant 0 : i32
    %c0_i32_0 = arith.constant 0 : i32
    %c0_i32_1 = arith.constant 0 : i32
    return %arg0, %c0_i32, %c0_i32_0 : i32, i32, i32
  }
  func.func @transform_1(%arg0: i32) -> (i32, i32) {
    %c0_i32 = arith.constant 0 : i32
    %c0_i32_0 = arith.constant 0 : i32
    return %arg0, %c0_i32 : i32, i32
  }
  func.func @transform_2(%arg0: i32) -> (i32, i32) {
    %c0_i32 = arith.constant 0 : i32
    %c0_i32_0 = arith.constant 0 : i32
    %c0_i32_1 = arith.constant 0 : i32
    return %c0_i32, %c0_i32_0 : i32, i32
  }
  func.func @transform_3(%arg0: i32) -> (i32, i32) {
    %c0_i32 = arith.constant 0 : i32
    %c0_i32_0 = arith.constant 0 : i32
    %c0_i32_1 = arith.constant 0 : i32
    return %c0_i32, %c0_i32_0 : i32, i32
  }
  func.func @transform_4(%arg0: i32) -> (i32, i32) {
    %c0_i32 = arith.constant 0 : i32
    %c0_i32_0 = arith.constant 0 : i32
    %c0_i32_1 = arith.constant 0 : i32
    return %c0_i32, %c0_i32_0 : i32, i32
  }
  func.func @transform_5(%arg0: i32) -> (i32, i32) {
    %c0_i32 = arith.constant 0 : i32
    %c0_i32_0 = arith.constant 0 : i32
    %c0_i32_1 = arith.constant 0 : i32
    return %c0_i32, %c0_i32_0 : i32, i32
  }
  func.func @transform_6(%arg0: i32) -> (i32, i32) {
    %c0_i32 = arith.constant 0 : i32
    %c0_i32_0 = arith.constant 0 : i32
    %c0_i32_1 = arith.constant 0 : i32
    return %c0_i32, %c0_i32_0 : i32, i32
  }
  func.func @transform_7(%arg0: i32) -> (i32, i32) {
    %c0_i32 = arith.constant 0 : i32
    %c0_i32_0 = arith.constant 0 : i32
    %c0_i32_1 = arith.constant 0 : i32
    return %c0_i32, %c0_i32_0 : i32, i32
  }
  func.func @transform_8(%arg0: i32) -> (i32, i32) {
    %c0_i32 = arith.constant 0 : i32
    %c0_i32_0 = arith.constant 0 : i32
    %c0_i32_1 = arith.constant 0 : i32
    return %c0_i32, %c0_i32_0 : i32, i32
  }
  func.func @transform_9(%arg0: i32) -> (i32, i32) {
    %c0_i32 = arith.constant 0 : i32
    %c0_i32_0 = arith.constant 0 : i32
    %c0_i32_1 = arith.constant 0 : i32
    return %c0_i32, %c0_i32_0 : i32, i32
  }
  func.func @transform_10(%arg0: i32) -> (i32, i32) {
    %c0_i32 = arith.constant 0 : i32
    %c0_i32_0 = arith.constant 0 : i32
    return %arg0, %c0_i32 : i32, i32
  }
}

</mosaic_0001>

<llo_original>
// kernel: tpu_custom_call.1
$region0: #{tpu_custom_call.1}
  #allocation0 [shape = 'u32[]', space=smem, size = 0x4, offset = 0x4, fixed_abs, tag = 'smem constant byte address 0x4 - core index']
  #allocation1 [shape = 'u32[144,128]{1,0:T(1,128)}', space=vmem, size = 0x12000, scoped, tag = 'internal scratch']
  #allocation2 [shape = 'f32[1,1]{1,0:T(1,128)S(1)}', space=vmem, size = 0x200, scoped, tag = 'scoped memory for tpu_custom_call.1']
  %s0 = inlined_call_operand.hbm [shape: bf16[16,32,64], index: 0, kind: input, shape index: {}]
  %s1 = inlined_call_operand.hbm [shape: f32[16,32], index: 1, kind: input, shape index: {}]
  %s2 = inlined_call_operand.hbm [shape: bf16[576,128], index: 2, kind: input, shape index: {}]
  %s3 = inlined_call_operand.vmem [shape: f32[1,128], index: 3, kind: input, shape index: {}]
  %s4 = inlined_call_operand.hbm [shape: bf16[1152,128], index: 4, kind: input, shape index: {}]
  %s5 = inlined_call_operand.vmem [shape: f32[1,128], index: 5, kind: input, shape index: {}]
  %s6 = inlined_call_operand.hbm [shape: bf16[1152,128], index: 6, kind: input, shape index: {}]
  %s7 = inlined_call_operand.vmem [shape: f32[1,128], index: 7, kind: input, shape index: {}]
  %s8 = inlined_call_operand.vmem [shape: f32[1,128], index: 8, kind: input, shape index: {}]
  %s9 = inlined_call_operand.<no memory space> [shape: f32[1,1], index: 9, kind: input, shape index: {}]
  %s10 = inlined_call_operand.hbm [shape: f32[16,128], index: 10, kind: output, shape index: {}]
  %s11 = sld [smem:[#allocation0]]
  $region93: #{tpu_custom_call.1} parent=0
    _
  %s13 = ssub.s32 1, %s11
  %s14 = scalar_select 0, %s13, %s11
  %v15 = vstv %s9
  %16 = vst [vmem:[#allocation2] sm:$0x1] %v15
  $region1: #{tpu_custom_call.1} parent=0
    #allocation3 [shape = 'u8[131072]{0}', space=vmem, size = 0x20000, scoped, tag = 'input window, operand 0']
    #allocation4 [shape = 's32[2]{0}', space=sflag, size = 0x8, scoped, tag = 'scoped memory for tpu_custom_call.1']
    #allocation5 [shape = 's32[2]{0}', space=sflag, size = 0x8, scoped, tag = 'scoped memory for tpu_custom_call.1']
    #allocation6 [shape = 'u8[8192]{0}', space=vmem, size = 0x2000, scoped, tag = 'input window, operand 1']
    #allocation7 [shape = 's32[2]{0}', space=sflag, size = 0x8, scoped, tag = 'scoped memory for tpu_custom_call.1']
    #allocation8 [shape = 'u8[147456]{0}', space=vmem, size = 0x24000, scoped, tag = 'input window, operand 2, single buffered']
    #allocation9 [shape = 'u8[294912]{0}', space=vmem, size = 0x48000, scoped, tag = 'input window, operand 4, single buffered']
    #allocation10 [shape = 's32[1]{0}', space=sflag, size = 0x4, scoped, tag = 'scoped memory for tpu_custom_call.1']
    #allocation11 [shape = 'u8[294912]{0}', space=vmem, size = 0x48000, scoped, tag = 'input window, operand 6, single buffered']
    #allocation12 [shape = 'u8[8192]{0}', space=vmem, size = 0x2000, scoped, tag = 'output window, operand 0']
    %17 = vsyncpa [#allocation4], 0
    %s18 = scalar_lea.sflag [#allocation4], 1
    %19 = vsyncpa %s18, 0
    %20 = vsyncpa [#allocation7], 0
    %s21 = scalar_lea.sflag [#allocation7], 1
    %22 = vsyncpa %s21, 0
    %23 = vsyncpa [#allocation10], 0
    %24 = vsyncpa [#allocation5], 0
    %s25 = scalar_lea.sflag [#allocation5], 1
    %26 = vsyncpa %s25, 0
    loop: start=0, step=1, limit=4
    $region2: #{tpu_custom_call.1} parent=1 // loop_pre_header
      _
    $region3: #{tpu_custom_call.1} parent=1 // loop_header
      %s28 = sphi 0, %s32
      %p29 = scmp.ge.s32.totalorder %s28, 4
      %s38 = sphi 0, %s40
      %s41 = sphi 0, %s38
      %s42 = sphi 0, %s41
      %s58 = sphi 0, %s42
      %s64 = sphi 0, %s66
      %s67 = sphi 0, %s64
      %s68 = sphi 0, %s67
      %s84 = sphi 0, %s68
      %s88 = sphi 0, %s88
      %s90 = sphi 0, %s88
      %s91 = sphi 0, %s90
      %s105 = sphi 0, %s91
      %s109 = sphi 0, %s109
      %s111 = sphi 0, %s109
      %s112 = sphi 0, %s111
      %s126 = sphi 0, %s112
      %s130 = sphi 0, %s130
      %s132 = sphi 0, %s130
      %s133 = sphi 0, %s132
      %s147 = sphi 0, %s133
      %s151 = sphi 0, %s151
      %s153 = sphi 0, %s151
      %s154 = sphi 0, %s153
      %s168 = sphi 0, %s154
      %s172 = sphi 0, %s172
      %s174 = sphi 0, %s172
      %s175 = sphi 0, %s174
      %s189 = sphi 0, %s175
      %s193 = sphi 0, %s193
      %s195 = sphi 0, %s193
      %s196 = sphi 0, %s195
      %s210 = sphi 0, %s196
      %s214 = sphi 0, %s214
      %s216 = sphi 0, %s214
      %s217 = sphi 0, %s216
      %s231 = sphi 0, %s217
      %s235 = sphi 0, %s235
      %s237 = sphi 0, %s235
      %s238 = sphi 0, %s237
      %s252 = sphi 0, %s238
      %s258 = sphi 0, %s260
      %s261 = sphi 0, %s258
      %s262 = sphi 0, %s261
      %s278 = sphi 0, %s262
    $region4: #{tpu_custom_call.1} parent=1 // loop_header_branch
      %31 = sbr.rel (%p29) target = $region8
    $region5: #{tpu_custom_call.1} parent=1 // loop_body
      %s33 = ssub.s32 %s28, 1
      %s34 = ssub.s32 %s28, 2
      %s35 = sadd.s32 %s28, 1
      %s36 = ssub.s32 %s28, %s35
      %p37 = scmp.eq.s32.totalorder %s36, 0
      %s39 = sadd.s32 %s38, 1
      %s40 = scalar_select %p37, %s38, %s39
      %p43 = pneg %p37
      %p44 = scmp.eq.s32.totalorder %s28, 1
      %p45 = por %p43, %p44
      %p46 = scmp.ne.s32.totalorder %s38, %s41
      %p47 = scmp.eq.s32.totalorder %s28, 0
      %p48 = por %p46, %p47
      %p49 = scmp.ne.s32.totalorder %s38, %s41
      %p50 = scmp.eq.s32.totalorder %s33, 1
      %p51 = por %p49, %p50
      %p52 = scmp.ne.s32.totalorder %s41, %s42
      %p53 = scmp.eq.s32.totalorder %s33, 0
      %p54 = por %p52, %p53
      %p55 = scmp.ne.s32.totalorder %s41, %s42
      %p56 = scmp.eq.s32.totalorder %s34, 1
      %p57 = por %p55, %p56
      %p59 = scmp.ne.s32.totalorder %s42, %s58
      %p60 = scmp.eq.s32.totalorder %s34, 0
      %p61 = por %p59, %p60
      %s62 = ssub.s32 %s28, %s35
      %p63 = scmp.eq.s32.totalorder %s62, 0
      %s65 = sadd.s32 %s64, 1
      %s66 = scalar_select %p63, %s64, %s65
      %p69 = pneg %p63
      %p70 = scmp.eq.s32.totalorder %s28, 1
      %p71 = por %p69, %p70
      %p72 = scmp.ne.s32.totalorder %s64, %s67
      %p73 = scmp.eq.s32.totalorder %s28, 0
      %p74 = por %p72, %p73
      %p75 = scmp.ne.s32.totalorder %s64, %s67
      %p76 = scmp.eq.s32.totalorder %s33, 1
      %p77 = por %p75, %p76
      %p78 = scmp.ne.s32.totalorder %s67, %s68
      %p79 = scmp.eq.s32.totalorder %s33, 0
      %p80 = por %p78, %p79
      %p81 = scmp.ne.s32.totalorder %s67, %s68
      %p82 = scmp.eq.s32.totalorder %s34, 1
      %p83 = por %p81, %p82
      %p85 = scmp.ne.s32.totalorder %s68, %s84
      %p86 = scmp.eq.s32.totalorder %s34, 0
      %p87 = por %p85, %p86
      %s89 = sadd.s32 %s88, 1
      %p92 = scmp.eq.s32.totalorder %s28, 1
      %p93 = scmp.ne.s32.totalorder %s88, %s90
      %p94 = scmp.eq.s32.totalorder %s28, 0
      %p95 = por %p93, %p94
      %p96 = scmp.ne.s32.totalorder %s88, %s90
      %p97 = scmp.eq.s32.totalorder %s33, 1
      %p98 = por %p96, %p97
      %p99 = scmp.ne.s32.totalorder %s90, %s91
      %p100 = scmp.eq.s32.totalorder %s33, 0
      %p101 = por %p99, %p100
      %p102 = scmp.ne.s32.totalorder %s90, %s91
      %p103 = scmp.eq.s32.totalorder %s34, 1
      %p104 = por %p102, %p103
      %p106 = scmp.ne.s32.totalorder %s91, %s105
      %p107 = scmp.eq.s32.totalorder %s34, 0
      %p108 = por %p106, %p107
      %s110 = sadd.s32 %s109, 1
      %p113 = scmp.eq.s32.totalorder %s28, 1
      %p114 = scmp.ne.s32.totalorder %s109, %s111
      %p115 = scmp.eq.s32.totalorder %s28, 0
      %p116 = por %p114, %p115
      %p117 = scmp.ne.s32.totalorder %s109, %s111
      %p118 = scmp.eq.s32.totalorder %s33, 1
      %p119 = por %p117, %p118
      %p120 = scmp.ne.s32.totalorder %s111, %s112
      %p121 = scmp.eq.s32.totalorder %s33, 0
      %p122 = por %p120, %p121
      %p123 = scmp.ne.s32.totalorder %s111, %s112
      %p124 = scmp.eq.s32.totalorder %s34, 1
      %p125 = por %p123, %p124
      %p127 = scmp.ne.s32.totalorder %s112, %s126
      %p128 = scmp.eq.s32.totalorder %s34, 0
      %p129 = por %p127, %p128
      %s131 = sadd.s32 %s130, 1
      %p134 = scmp.eq.s32.totalorder %s28, 1
      %p135 = scmp.ne.s32.totalorder %s130, %s132
      %p136 = scmp.eq.s32.totalorder %s28, 0
      %p137 = por %p135, %p136
      %p138 = scmp.ne.s32.totalorder %s130, %s132
      %p139 = scmp.eq.s32.totalorder %s33, 1
      %p140 = por %p138, %p139
      %p141 = scmp.ne.s32.totalorder %s132, %s133
      %p142 = scmp.eq.s32.totalorder %s33, 0
      %p143 = por %p141, %p142
      %p144 = scmp.ne.s32.totalorder %s132, %s133
      %p145 = scmp.eq.s32.totalorder %s34, 1
      %p146 = por %p144, %p145
      %p148 = scmp.ne.s32.totalorder %s133, %s147
      %p149 = scmp.eq.s32.totalorder %s34, 0
      %p150 = por %p148, %p149
      %s152 = sadd.s32 %s151, 1
      %p155 = scmp.eq.s32.totalorder %s28, 1
      %p156 = scmp.ne.s32.totalorder %s151, %s153
      %p157 = scmp.eq.s32.totalorder %s28, 0
      %p158 = por %p156, %p157
      %p159 = scmp.ne.s32.totalorder %s151, %s153
      %p160 = scmp.eq.s32.totalorder %s33, 1
      %p161 = por %p159, %p160
      %p162 = scmp.ne.s32.totalorder %s153, %s154
      %p163 = scmp.eq.s32.totalorder %s33, 0
      %p164 = por %p162, %p163
      %p165 = scmp.ne.s32.totalorder %s153, %s154
      %p166 = scmp.eq.s32.totalorder %s34, 1
      %p167 = por %p165, %p166
      %p169 = scmp.ne.s32.totalorder %s154, %s168
      %p170 = scmp.eq.s32.totalorder %s34, 0
      %p171 = por %p169, %p170
      %s173 = sadd.s32 %s172, 1
      %p176 = scmp.eq.s32.totalorder %s28, 1
      %p177 = scmp.ne.s32.totalorder %s172, %s174
      %p178 = scmp.eq.s32.totalorder %s28, 0
      %p179 = por %p177, %p178
      %p180 = scmp.ne.s32.totalorder %s172, %s174
      %p181 = scmp.eq.s32.totalorder %s33, 1
      %p182 = por %p180, %p181
      %p183 = scmp.ne.s32.totalorder %s174, %s175
      %p184 = scmp.eq.s32.totalorder %s33, 0
      %p185 = por %p183, %p184
      %p186 = scmp.ne.s32.totalorder %s174, %s175
      %p187 = scmp.eq.s32.totalorder %s34, 1
      %p188 = por %p186, %p187
      %p190 = scmp.ne.s32.totalorder %s175, %s189
      %p191 = scmp.eq.s32.totalorder %s34, 0
      %p192 = por %p190, %p191
      %s194 = sadd.s32 %s193, 1
      %p197 = scmp.eq.s32.totalorder %s28, 1
      %p198 = scmp.ne.s32.totalorder %s193, %s195
      %p199 = scmp.eq.s32.totalorder %s28, 0
      %p200 = por %p198, %p199
      %p201 = scmp.ne.s32.totalorder %s193, %s195
      %p202 = scmp.eq.s32.totalorder %s33, 1
      %p203 = por %p201, %p202
      %p204 = scmp.ne.s32.totalorder %s195, %s196
      %p205 = scmp.eq.s32.totalorder %s33, 0
      %p206 = por %p204, %p205
      %p207 = scmp.ne.s32.totalorder %s195, %s196
      %p208 = scmp.eq.s32.totalorder %s34, 1
      %p209 = por %p207, %p208
      %p211 = scmp.ne.s32.totalorder %s196, %s210
      %p212 = scmp.eq.s32.totalorder %s34, 0
      %p213 = por %p211, %p212
      %s215 = sadd.s32 %s214, 1
      %p218 = scmp.eq.s32.totalorder %s28, 1
      %p219 = scmp.ne.s32.totalorder %s214, %s216
      %p220 = scmp.eq.s32.totalorder %s28, 0
      %p221 = por %p219, %p220
      %p222 = scmp.ne.s32.totalorder %s214, %s216
      %p223 = scmp.eq.s32.totalorder %s33, 1
      %p224 = por %p222, %p223
      %p225 = scmp.ne.s32.totalorder %s216, %s217
      %p226 = scmp.eq.s32.totalorder %s33, 0
      %p227 = por %p225, %p226
      %p228 = scmp.ne.s32.totalorder %s216, %s217
      %p229 = scmp.eq.s32.totalorder %s34, 1
      %p230 = por %p228, %p229
      %p232 = scmp.ne.s32.totalorder %s217, %s231
      %p233 = scmp.eq.s32.totalorder %s34, 0
      %p234 = por %p232, %p233
      %s236 = sadd.s32 %s235, 1
      %p239 = scmp.eq.s32.totalorder %s28, 1
      %p240 = scmp.ne.s32.totalorder %s235, %s237
      %p241 = scmp.eq.s32.totalorder %s28, 0
      %p242 = por %p240, %p241
      %p243 = scmp.ne.s32.totalorder %s235, %s237
      %p244 = scmp.eq.s32.totalorder %s33, 1
      %p245 = por %p243, %p244
      %p246 = scmp.ne.s32.totalorder %s237, %s238
      %p247 = scmp.eq.s32.totalorder %s33, 0
      %p248 = por %p246, %p247
      %p249 = scmp.ne.s32.totalorder %s237, %s238
      %p250 = scmp.eq.s32.totalorder %s34, 1
      %p251 = por %p249, %p250
      %p253 = scmp.ne.s32.totalorder %s238, %s252
      %p254 = scmp.eq.s32.totalorder %s34, 0
      %p255 = por %p253, %p254
      %s256 = ssub.s32 %s28, %s35
      %p257 = scmp.eq.s32.totalorder %s256, 0
      %s259 = sadd.s32 %s258, 1
      %s260 = scalar_select %p257, %s258, %s259
      %p263 = pneg %p257
      %p264 = scmp.eq.s32.totalorder %s28, 1
      %p265 = por %p263, %p264
      %p266 = scmp.ne.s32.totalorder %s258, %s261
      %p267 = scmp.eq.s32.totalorder %s28, 0
      %p268 = por %p266, %p267
      %p269 = scmp.ne.s32.totalorder %s258, %s261
      %p270 = scmp.eq.s32.totalorder %s33, 1
      %p271 = por %p269, %p270
      %p272 = scmp.ne.s32.totalorder %s261, %s262
      %p273 = scmp.eq.s32.totalorder %s33, 0
      %p274 = por %p272, %p273
      %p275 = scmp.ne.s32.totalorder %s261, %s262
      %p276 = scmp.eq.s32.totalorder %s34, 1
      %p277 = por %p275, %p276
      %p279 = scmp.ne.s32.totalorder %s262, %s278
      %p280 = scmp.eq.s32.totalorder %s34, 0
      %p281 = por %p279, %p280
      %p282 = scmp.le.s32.totalorder 1, %s28
      %p283 = scmp.lt.s32.totalorder %s28, 3
      %p284 = pnand %p282, %p283
      %p285 = pneg %p284
      // Predicated region
      $region9: #{tpu_custom_call.1} parent=5 // pred_check
        _
      $region10: #{tpu_custom_call.1} parent=5 // pred_check_branch
        %287 = sbr.rel (%p284) target = $region12
      $region11: #{tpu_custom_call.1} parent=5 // pred_region
        %s288 = ssub.s32 %s28, 1
        // Predicated region
        $region13: #{tpu_custom_call.1} parent=11 // pred_check
          %p289 = pneg %p101
        $region14: #{tpu_custom_call.1} parent=11 // pred_check_branch
          %291 = sbr.rel (%p289) target = $region16
        $region15: #{tpu_custom_call.1} parent=11 // pred_region
          %s293 = ssub.s32 4608, 4608
          %294 = vsyncadd [#allocation7], %s293
          %s295 = sshll.u32 [#allocation8], 4
          %s296 = int_to_ptr.vmem [resolvable:$true] %s295
          %301 = dma.hbm_to_vmem [thread:$0]  %s2, 4608, %s296, [#allocation7], 64, 64, 4
        $region16: #{tpu_custom_call.1} parent=11 // pred_fallthru
          _
        // Predicated region
        $region17: #{tpu_custom_call.1} parent=11 // pred_check
          %p302 = pneg %p122
        $region18: #{tpu_custom_call.1} parent=11 // pred_check_branch
          %304 = sbr.rel (%p302) target = $region20
        $region19: #{tpu_custom_call.1} parent=11 // pred_region
          _
        $region20: #{tpu_custom_call.1} parent=11 // pred_fallthru
          _
        // Predicated region
        $region21: #{tpu_custom_call.1} parent=11 // pred_check
          %p305 = pneg %p143
        $region22: #{tpu_custom_call.1} parent=11 // pred_check_branch
          %307 = sbr.rel (%p305) target = $region24
        $region23: #{tpu_custom_call.1} parent=11 // pred_region
          %s309 = ssub.s32 9216, 9216
          %310 = vsyncadd [#allocation10], %s309
          %s311 = sshll.u32 [#allocation9], 4
          %s312 = int_to_ptr.vmem [resolvable:$true] %s311
          %317 = dma.hbm_to_vmem [thread:$0]  %s4, 9216, %s312, [#allocation10], 64, 64, 4
        $region24: #{tpu_custom_call.1} parent=11 // pred_fallthru
          _
        // Predicated region
        $region25: #{tpu_custom_call.1} parent=11 // pred_check
          %p318 = pneg %p164
        $region26: #{tpu_custom_call.1} parent=11 // pred_check_branch
          %320 = sbr.rel (%p318) target = $region28
        $region27: #{tpu_custom_call.1} parent=11 // pred_region
          _
        $region28: #{tpu_custom_call.1} parent=11 // pred_fallthru
          _
        // Predicated region
        $region29: #{tpu_custom_call.1} parent=11 // pred_check
          %p321 = pneg %p185
        $region30: #{tpu_custom_call.1} parent=11 // pred_check_branch
          %323 = sbr.rel (%p321) target = $region32
        $region31: #{tpu_custom_call.1} parent=11 // pred_region
          %s325 = ssub.s32 9216, 9216
          %326 = vsyncadd [#allocation10], %s325
          %s327 = sshll.u32 [#allocation11], 4
          %s328 = int_to_ptr.vmem [resolvable:$true] %s327
          %333 = dma.hbm_to_vmem [thread:$0]  %s6, 9216, %s328, [#allocation10], 64, 64, 4
        $region32: #{tpu_custom_call.1} parent=11 // pred_fallthru
          _
        // Predicated region
        $region33: #{tpu_custom_call.1} parent=11 // pred_check
          %p334 = pneg %p206
        $region34: #{tpu_custom_call.1} parent=11 // pred_check_branch
          %336 = sbr.rel (%p334) target = $region36
        $region35: #{tpu_custom_call.1} parent=11 // pred_region
          _
        $region36: #{tpu_custom_call.1} parent=11 // pred_fallthru
          _
        // Predicated region
        $region37: #{tpu_custom_call.1} parent=11 // pred_check
          %p337 = pneg %p227
        $region38: #{tpu_custom_call.1} parent=11 // pred_check_branch
          %339 = sbr.rel (%p337) target = $region40
        $region39: #{tpu_custom_call.1} parent=11 // pred_region
          _
        $region40: #{tpu_custom_call.1} parent=11 // pred_fallthru
          _
        // Predicated region
        $region41: #{tpu_custom_call.1} parent=11 // pred_check
          %p340 = pneg %p248
        $region42: #{tpu_custom_call.1} parent=11 // pred_check_branch
          %342 = sbr.rel (%p340) target = $region44
        $region43: #{tpu_custom_call.1} parent=11 // pred_region
          _
        $region44: #{tpu_custom_call.1} parent=11 // pred_fallthru
          _
      $region12: #{tpu_custom_call.1} parent=5 // pred_fallthru
        _
      %p343 = scmp.lt.s32.totalorder %s28, 2
      // Predicated region
      $region45: #{tpu_custom_call.1} parent=5 // pred_check
        %p344 = pneg %p343
      $region46: #{tpu_custom_call.1} parent=5 // pred_check_branch
        %346 = sbr.rel (%p344) target = $region48
      $region47: #{tpu_custom_call.1} parent=5 // pred_region
        // Predicated region
        $region49: #{tpu_custom_call.1} parent=47 // pred_check
          %p347 = pneg %p48
        $region50: #{tpu_custom_call.1} parent=47 // pred_check_branch
          %349 = sbr.rel (%p347) target = $region52
        $region51: #{tpu_custom_call.1} parent=47 // pred_region
          %s350 = sand.u32 %s38, 1
          %s351 = scalar_lea.sflag [#allocation4], %s350
          %s352 = sand.u32 %s38, 1
          %s353 = smul.addr %s352, 128
          %s354 = scalar_lea.vmem [#allocation3], %s353
          %s355 = smul.u32 8, %s28
          %s357 = ssub.s32 2048, 2048
          %358 = vsyncadd %s351, %s357
          %s359 = smul.addr %s355, 4
          %s360 = smul.addr %s359, 64
          %s361 = scalar_lea.hbm %s0, %s360
          %s362 = sshll.u32 %s354, 4
          %s363 = int_to_ptr.vmem [resolvable:$true] %s362
          %368 = dma.hbm_to_vmem [thread:$0]  %s361, 2048, %s363, %s351, 64, 64, 4
        $region52: #{tpu_custom_call.1} parent=47 // pred_fallthru
          _
        // Predicated region
        $region53: #{tpu_custom_call.1} parent=47 // pred_check
          %p369 = pneg %p74
        $region54: #{tpu_custom_call.1} parent=47 // pred_check_branch
          %371 = sbr.rel (%p369) target = $region56
        $region55: #{tpu_custom_call.1} parent=47 // pred_region
          %s372 = sand.u32 %s28, 1
          %s373 = scalar_lea.sflag [#allocation7], %s372
          %s374 = sand.u32 %s64, 1
          %s375 = smul.addr %s374, 8
          %s376 = scalar_lea.vmem [#allocation6], %s375
          %s378 = ssub.s32 128, 128
          %379 = vsyncadd %s373, %s378
          %s380 = smul.addr %s28, 128
          %s381 = scalar_lea.hbm %s1, %s380
          %s383 = sshll.u32 %s376, 4
          %s384 = int_to_ptr.vmem [resolvable:$true] %s383
          %386 = dma.hbm_to_vmem [thread:$0]  %s381, 128, %s384, %s373
        $region56: #{tpu_custom_call.1} parent=47 // pred_fallthru
          _
      $region48: #{tpu_custom_call.1} parent=5 // pred_fallthru
        _
      %p387 = scmp.le.s32.totalorder 1, %s28
      %p388 = scmp.lt.s32.totalorder %s28, 3
      %p389 = pnand %p387, %p388
      %p390 = pneg %p389
      // Predicated region
      $region57: #{tpu_custom_call.1} parent=5 // pred_check
        _
      $region58: #{tpu_custom_call.1} parent=5 // pred_check_branch
        %392 = sbr.rel (%p389) target = $region60
      $region59: #{tpu_custom_call.1} parent=5 // pred_region
        %s393 = ssub.s32 %s28, 1
        %s394 = sand.u32 %s41, 1
        %s395 = scalar_lea.sflag [#allocation4], %s394
        %s396 = sand.u32 %s41, 1
        %s397 = smul.addr %s396, 128
        %s398 = scalar_lea.vmem [#allocation3], %s397
        // Predicated region
        $region61: #{tpu_custom_call.1} parent=59 // pred_check
          %p399 = pneg %p54
        $region62: #{tpu_custom_call.1} parent=59 // pred_check_branch
          %401 = sbr.rel (%p399) target = $region64
        $region63: #{tpu_custom_call.1} parent=59 // pred_region
          %402 = dma.done %s395, 2048
        $region64: #{tpu_custom_call.1} parent=59 // pred_fallthru
          _
        %s403 = sand.u32 %s33, 1
        %s404 = scalar_lea.sflag [#allocation7], %s403
        %s405 = sand.u32 %s67, 1
        %s406 = smul.addr %s405, 8
        %s407 = scalar_lea.vmem [#allocation6], %s406
        // Predicated region
        $region65: #{tpu_custom_call.1} parent=59 // pred_check
          %p408 = pneg %p80
        $region66: #{tpu_custom_call.1} parent=59 // pred_check_branch
          %410 = sbr.rel (%p408) target = $region68
        $region67: #{tpu_custom_call.1} parent=59 // pred_region
          %411 = dma.done %s404, 128
        $region68: #{tpu_custom_call.1} parent=59 // pred_fallthru
          _
        // Predicated region
        $region69: #{tpu_custom_call.1} parent=59 // pred_check
          %p412 = pneg %p101
        $region70: #{tpu_custom_call.1} parent=59 // pred_check_branch
          %414 = sbr.rel (%p412) target = $region72
        $region71: #{tpu_custom_call.1} parent=59 // pred_region
          %415 = dma.done [#allocation7], 4608
        $region72: #{tpu_custom_call.1} parent=59 // pred_fallthru
          _
        // Predicated region
        $region73: #{tpu_custom_call.1} parent=59 // pred_check
          %p416 = pneg %p143
        $region74: #{tpu_custom_call.1} parent=59 // pred_check_branch
          %418 = sbr.rel (%p416) target = $region76
        $region75: #{tpu_custom_call.1} parent=59 // pred_region
          %419 = dma.done [#allocation10], 9216
        $region76: #{tpu_custom_call.1} parent=59 // pred_fallthru
          _
        // Predicated region
        $region77: #{tpu_custom_call.1} parent=59 // pred_check
          %p420 = pneg %p185
        $region78: #{tpu_custom_call.1} parent=59 // pred_check_branch
          %422 = sbr.rel (%p420) target = $region80
        $region79: #{tpu_custom_call.1} parent=59 // pred_region
          %423 = dma.done [#allocation10], 9216
        $region80: #{tpu_custom_call.1} parent=59 // pred_fallthru
          _
        %s424 = sand.u32 %s41, 1
        %s425 = scalar_lea.sflag [#allocation4], %s424
        %s426 = sand.u32 %s41, 1
        %s427 = smul.addr %s426, 128
        %s428 = scalar_lea.vmem [#allocation3], %s427
        %p429 = pneg %p54
        %p430 = pneg %p51
        %s431 = sand.u32 %s33, 1
        %s432 = scalar_lea.sflag [#allocation7], %s431
        %s433 = sand.u32 %s67, 1
        %s434 = smul.addr %s433, 8
        %s435 = scalar_lea.vmem [#allocation6], %s434
        %p436 = pneg %p80
        %p437 = pneg %p77
        %p438 = pneg %p101
        %p439 = pneg %p98
        %p440 = pneg %p122
        %p441 = pneg %p119
        %p442 = pneg %p143
        %p443 = pneg %p140
        %p444 = pneg %p164
        %p445 = pneg %p161
        %p446 = pneg %p185
        %p447 = pneg %p182
        %p448 = pneg %p206
        %p449 = pneg %p203
        %p450 = pneg %p227
        %p451 = pneg %p224
        %p452 = pneg %p248
        %p453 = pneg %p245
        %p454 = pneg %p274
        %p455 = pneg %p271
        %s456 = sand.u32 %s261, 1
        %s457 = scalar_lea.sflag [#allocation5], %s456
        %s458 = sand.u32 %s261, 1
        %s459 = smul.addr %s458, 8
        %s460 = scalar_lea.vmem [#allocation12], %s459
        %s461 = smul.u32 8, %s33
        %v463 = vld [vmem:[%s398] sm:$0xf]
        %v464 = vld [vmem:[%s398 + $0x4] sm:$0xf]
        %v465 = vld [vmem:[%s398 + $0x8] sm:$0xf]
        %v466 = vld [vmem:[%s398 + $0xc] sm:$0xf]
        %v467 = vld [vmem:[%s398 + $0x10] sm:$0xf]
        %v468 = vld [vmem:[%s398 + $0x14] sm:$0xf]
        %v469 = vld [vmem:[%s398 + $0x18] sm:$0xf]
        %v470 = vld [vmem:[%s398 + $0x1c] sm:$0xf]
        %v471 = vld [vmem:[%s398 + $0x20] sm:$0xf]
        %v472 = vld [vmem:[%s398 + $0x24] sm:$0xf]
        %v473 = vld [vmem:[%s398 + $0x28] sm:$0xf]
        %v474 = vld [vmem:[%s398 + $0x2c] sm:$0xf]
        %v475 = vld [vmem:[%s398 + $0x30] sm:$0xf]
        %v476 = vld [vmem:[%s398 + $0x34] sm:$0xf]
        %v477 = vld [vmem:[%s398 + $0x38] sm:$0xf]
        %v478 = vld [vmem:[%s398 + $0x3c] sm:$0xf]
        %v479 = vld [vmem:[%s398 + $0x40] sm:$0xf]
        %v480 = vld [vmem:[%s398 + $0x44] sm:$0xf]
        %v481 = vld [vmem:[%s398 + $0x48] sm:$0xf]
        %v482 = vld [vmem:[%s398 + $0x4c] sm:$0xf]
        %v483 = vld [vmem:[%s398 + $0x50] sm:$0xf]
        %v484 = vld [vmem:[%s398 + $0x54] sm:$0xf]
        %v485 = vld [vmem:[%s398 + $0x58] sm:$0xf]
        %v486 = vld [vmem:[%s398 + $0x5c] sm:$0xf]
        %v487 = vld [vmem:[%s398 + $0x60] sm:$0xf]
        %v488 = vld [vmem:[%s398 + $0x64] sm:$0xf]
        %v489 = vld [vmem:[%s398 + $0x68] sm:$0xf]
        %v490 = vld [vmem:[%s398 + $0x6c] sm:$0xf]
        %v491 = vld [vmem:[%s398 + $0x70] sm:$0xf]
        %v492 = vld [vmem:[%s398 + $0x74] sm:$0xf]
        %v493 = vld [vmem:[%s398 + $0x78] sm:$0xf]
        %v494 = vld [vmem:[%s398 + $0x7c] sm:$0xf]
        %v495 = vunpack.c.l.bf16 %v463
        %v496 = vunpack.c.l.bf16 %v464
        %v497 = vunpack.c.l.bf16 %v465
        %v498 = vunpack.c.l.bf16 %v466
        %v499 = vunpack.c.l.bf16 %v467
        %v500 = vunpack.c.l.bf16 %v468
        %v501 = vunpack.c.l.bf16 %v469
        %v502 = vunpack.c.l.bf16 %v470
        %v503 = vunpack.c.l.bf16 %v471
        %v504 = vunpack.c.l.bf16 %v472
        %v505 = vunpack.c.l.bf16 %v473
        %v506 = vunpack.c.l.bf16 %v474
        %v507 = vunpack.c.l.bf16 %v475
        %v508 = vunpack.c.l.bf16 %v476
        %v509 = vunpack.c.l.bf16 %v477
        %v510 = vunpack.c.l.bf16 %v478
        %v511 = vunpack.c.l.bf16 %v479
        %v512 = vunpack.c.l.bf16 %v480
        %v513 = vunpack.c.l.bf16 %v481
        %v514 = vunpack.c.l.bf16 %v482
        %v515 = vunpack.c.l.bf16 %v483
        %v516 = vunpack.c.l.bf16 %v484
        %v517 = vunpack.c.l.bf16 %v485
        %v518 = vunpack.c.l.bf16 %v486
        %v519 = vunpack.c.l.bf16 %v487
        %v520 = vunpack.c.l.bf16 %v488
        %v521 = vunpack.c.l.bf16 %v489
        %v522 = vunpack.c.l.bf16 %v490
        %v523 = vunpack.c.l.bf16 %v491
        %v524 = vunpack.c.l.bf16 %v492
        %v525 = vunpack.c.l.bf16 %v493
        %v526 = vunpack.c.l.bf16 %v494
        %v527 = vlaneseq
        %v528 = vshrl.u32 %v527, 7
        %v529 = vadd.s32 %v528, 8
        %v530 = vadd.s32 %v528, 16
        %v531 = vadd.s32 %v528, 24
        %vm532 = vcmp.lt.s32.totalorder %v528, 24
        %vm533 = vcmp.lt.s32.totalorder %v529, 24
        %vm534 = vcmp.lt.s32.totalorder %v530, 24
        %vm535 = vcmp.lt.s32.totalorder %v531, 24
        %v536 = vld [vmem:[#allocation8] sm:$0xf]
        %v537 = vld [vmem:[#allocation8 + $0x4] sm:$0xf]
        %v538 = vld [vmem:[#allocation8 + $0x8] sm:$0xf]
        %v539 = vld [vmem:[#allocation8 + $0xc] sm:$0xf]
        %v540 = vld [vmem:[#allocation8 + $0x10] sm:$0xf]
        %v541 = vld [vmem:[#allocation8 + $0x14] sm:$0xf]
        %v542 = vld [vmem:[#allocation8 + $0x18] sm:$0xf]
        %v543 = vld [vmem:[#allocation8 + $0x1c] sm:$0xf]
        %v544 = vld [vmem:[#allocation8 + $0x20] sm:$0xf]
        %v545 = vld [vmem:[#allocation8 + $0x24] sm:$0xf]
        %v546 = vld [vmem:[#allocation8 + $0x28] sm:$0xf]
        %v547 = vld [vmem:[#allocation8 + $0x2c] sm:$0xf]
        %v548 = vld [vmem:[#allocation8 + $0x30] sm:$0xf]
        %v549 = vld [vmem:[#allocation8 + $0x34] sm:$0xf]
        %v550 = vld [vmem:[#allocation8 + $0x38] sm:$0xf]
        %v551 = vld [vmem:[#allocation8 + $0x3c] sm:$0xf]
        %v552 = vld [vmem:[#allocation8 + $0x40] sm:$0xf]
        %v553 = vld [vmem:[#allocation8 + $0x44] sm:$0xf]
        %v554 = vld [vmem:[#allocation8 + $0x48] sm:$0xf]
        %v555 = vld [vmem:[#allocation8 + $0x4c] sm:$0xf]
        %v556 = vld [vmem:[#allocation8 + $0x50] sm:$0xf]
        %v557 = vld [vmem:[#allocation8 + $0x54] sm:$0xf]
        %v558 = vld [vmem:[#allocation8 + $0x58] sm:$0xf]
        %v559 = vld [vmem:[#allocation8 + $0x5c] sm:$0xf]
        %v560 = vld [vmem:[#allocation8 + $0x60] sm:$0xf]
        %v561 = vld [vmem:[#allocation8 + $0x64] sm:$0xf]
        %v562 = vld [vmem:[#allocation8 + $0x68] sm:$0xf]
        %v563 = vld [vmem:[#allocation8 + $0x6c] sm:$0xf]
        %v564 = vld [vmem:[#allocation8 + $0x70] sm:$0xf]
        %v565 = vld [vmem:[#allocation8 + $0x74] sm:$0xf]
        %v566 = vld [vmem:[#allocation8 + $0x78] sm:$0xf]
        %v567 = vld [vmem:[#allocation8 + $0x7c] sm:$0xf]
        %v568 = vld [vmem:[#allocation8 + $0x80] sm:$0xf]
        %v569 = vld [vmem:[#allocation8 + $0x84] sm:$0xf]
        %v570 = vld [vmem:[#allocation8 + $0x88] sm:$0xf]
        %v571 = vld [vmem:[#allocation8 + $0x8c] sm:$0xf]
        %v572 = vld [vmem:[#allocation8 + $0x90] sm:$0xf]
        %v573 = vld [vmem:[#allocation8 + $0x94] sm:$0xf]
        %v574 = vld [vmem:[#allocation8 + $0x98] sm:$0xf]
        %v575 = vld [vmem:[#allocation8 + $0x9c] sm:$0xf]
        %v576 = vld [vmem:[#allocation8 + $0xa0] sm:$0xf]
        %v577 = vld [vmem:[#allocation8 + $0xa4] sm:$0xf]
        %v578 = vld [vmem:[#allocation8 + $0xa8] sm:$0xf]
        %v579 = vld [vmem:[#allocation8 + $0xac] sm:$0xf]
        %v580 = vld [vmem:[#allocation8 + $0xb0] sm:$0xf]
        %v581 = vld [vmem:[#allocation8 + $0xb4] sm:$0xf]
        %v582 = vld [vmem:[#allocation8 + $0xb8] sm:$0xf]
        %v583 = vld [vmem:[#allocation8 + $0xbc] sm:$0xf]
        %v584 = vld [vmem:[#allocation8 + $0xc0] sm:$0xf]
        %v585 = vld [vmem:[#allocation8 + $0xc4] sm:$0xf]
        %v586 = vld [vmem:[#allocation8 + $0xc8] sm:$0xf]
        %v587 = vld [vmem:[#allocation8 + $0xcc] sm:$0xf]
        %v588 = vld [vmem:[#allocation8 + $0xd0] sm:$0xf]
        %v589 = vld [vmem:[#allocation8 + $0xd4] sm:$0xf]
        %v590 = vld [vmem:[#allocation8 + $0xd8] sm:$0xf]
        %v591 = vld [vmem:[#allocation8 + $0xdc] sm:$0xf]
        %v592 = vld [vmem:[#allocation8 + $0xe0] sm:$0xf]
        %v593 = vld [vmem:[#allocation8 + $0xe4] sm:$0xf]
        %v594 = vld [vmem:[#allocation8 + $0xe8] sm:$0xf]
        %v595 = vld [vmem:[#allocation8 + $0xec] sm:$0xf]
        %v596 = vld [vmem:[#allocation8 + $0xf0] sm:$0xf]
        %v597 = vld [vmem:[#allocation8 + $0xf4] sm:$0xf]
        %v598 = vld [vmem:[#allocation8 + $0xf8] sm:$0xf]
        %v599 = vld [vmem:[#allocation8 + $0xfc] sm:$0xf]
        %v600 = vld [vmem:[#allocation8 + $0x100] sm:$0xf]
        %v601 = vld [vmem:[#allocation8 + $0x104] sm:$0xf]
        %v602 = vld [vmem:[#allocation8 + $0x108] sm:$0xf]
        %v603 = vld [vmem:[#allocation8 + $0x10c] sm:$0xf]
        %v604 = vld [vmem:[#allocation8 + $0x110] sm:$0xf]
        %v605 = vld [vmem:[#allocation8 + $0x114] sm:$0xf]
        %v606 = vld [vmem:[#allocation8 + $0x118] sm:$0xf]
        %v607 = vld [vmem:[#allocation8 + $0x11c] sm:$0xf]
        %v608 = vrot.slane %v495, 1
        %v609 = vrot.slane %v499, 1
        %v610 = vrot.slane %v503, 1
        %v611 = vrot.slane %v507, 1
        %v612 = vrot.slane %v511, 1
        %v613 = vrot.slane %v515, 1
        %v614 = vrot.slane %v519, 1
        %v615 = vrot.slane %v523, 1
        %v616 = vrot.slane %v496, 1
        %v617 = vrot.slane %v500, 1
        %v618 = vrot.slane %v504, 1
        %v619 = vrot.slane %v508, 1
        %v620 = vrot.slane %v512, 1
        %v621 = vrot.slane %v516, 1
        %v622 = vrot.slane %v520, 1
        %v623 = vrot.slane %v524, 1
        %v624 = vrot.slane %v497, 1
        %v625 = vrot.slane %v501, 1
        %v626 = vrot.slane %v505, 1
        %v627 = vrot.slane %v509, 1
        %v628 = vrot.slane %v513, 1
        %v629 = vrot.slane %v517, 1
        %v630 = vrot.slane %v521, 1
        %v631 = vrot.slane %v525, 1
        %v632 = vrot.slane %v498, 1
        %v633 = vrot.slane %v502, 1
        %v634 = vrot.slane %v506, 1
        %v635 = vrot.slane %v510, 1
        %v636 = vrot.slane %v514, 1
        %v637 = vrot.slane %v518, 1
        %v638 = vrot.slane %v522, 1
        %v639 = vrot.slane %v526, 1
        %vm640 = vcmp.lt.s32.totalorder %v528, 7
        %v641 = vsel %vm640, %v624, %v632
        %v642 = vsel %vm640, %v625, %v633
        %v643 = vsel %vm640, %v626, %v634
        %v644 = vsel %vm640, %v627, %v635
        %v645 = vsel %vm640, %v628, %v636
        %v646 = vsel %vm640, %v629, %v637
        %v647 = vsel %vm640, %v630, %v638
        %v648 = vsel %vm640, %v631, %v639
        %v649 = vsel %vm640, %v616, %v624
        %v650 = vsel %vm640, %v617, %v625
        %v651 = vsel %vm640, %v618, %v626
        %v652 = vsel %vm640, %v619, %v627
        %v653 = vsel %vm640, %v620, %v628
        %v654 = vsel %vm640, %v621, %v629
        %v655 = vsel %vm640, %v622, %v630
        %v656 = vsel %vm640, %v623, %v631
        %v657 = vsel %vm640, %v608, %v616
        %v658 = vsel %vm640, %v609, %v617
        %v659 = vsel %vm640, %v610, %v618
        %v660 = vsel %vm640, %v611, %v619
        %v661 = vsel %vm640, %v612, %v620
        %v662 = vsel %vm640, %v613, %v621
        %v663 = vsel %vm640, %v614, %v622
        %v664 = vsel %vm640, %v615, %v623
        %v665 = vsel %vm640, %v632, %v608
        %v666 = vsel %vm640, %v633, %v609
        %v667 = vsel %vm640, %v634, %v610
        %v668 = vsel %vm640, %v635, %v611
        %v669 = vsel %vm640, %v636, %v612
        %v670 = vsel %vm640, %v637, %v613
        %v671 = vsel %vm640, %v638, %v614
        %v672 = vsel %vm640, %v639, %v615
        %v673 = vpack.c.bf16 %v649, %v657
        %v674 = vpack.c.bf16 %v665, %v641
        %v675 = vpack.c.bf16 %v650, %v658
        %v676 = vpack.c.bf16 %v666, %v642
        %v677 = vpack.c.bf16 %v651, %v659
        %v678 = vpack.c.bf16 %v667, %v643
        %v679 = vpack.c.bf16 %v652, %v660
        %v680 = vpack.c.bf16 %v668, %v644
        %v681 = vpack.c.bf16 %v653, %v661
        %v682 = vpack.c.bf16 %v669, %v645
        %v683 = vpack.c.bf16 %v654, %v662
        %v684 = vpack.c.bf16 %v670, %v646
        %v685 = vpack.c.bf16 %v655, %v663
        %v686 = vpack.c.bf16 %v671, %v647
        %v687 = vpack.c.bf16 %v656, %v664
        %v688 = vpack.c.bf16 %v672, %v648
        %v689 = vrot.slane %v495, 2
        %v690 = vrot.slane %v499, 2
        %v691 = vrot.slane %v503, 2
        %v692 = vrot.slane %v507, 2
        %v693 = vrot.slane %v511, 2
        %v694 = vrot.slane %v515, 2
        %v695 = vrot.slane %v519, 2
        %v696 = vrot.slane %v523, 2
        %v697 = vrot.slane %v496, 2
        %v698 = vrot.slane %v500, 2
        %v699 = vrot.slane %v504, 2
        %v700 = vrot.slane %v508, 2
        %v701 = vrot.slane %v512, 2
        %v702 = vrot.slane %v516, 2
        %v703 = vrot.slane %v520, 2
        %v704 = vrot.slane %v524, 2
        %v705 = vrot.slane %v497, 2
        %v706 = vrot.slane %v501, 2
        %v707 = vrot.slane %v505, 2
        %v708 = vrot.slane %v509, 2
        %v709 = vrot.slane %v513, 2
        %v710 = vrot.slane %v517, 2
        %v711 = vrot.slane %v521, 2
        %v712 = vrot.slane %v525, 2
        %v713 = vrot.slane %v498, 2
        %v714 = vrot.slane %v502, 2
        %v715 = vrot.slane %v506, 2
        %v716 = vrot.slane %v510, 2
        %v717 = vrot.slane %v514, 2
        %v718 = vrot.slane %v518, 2
        %v719 = vrot.slane %v522, 2
        %v720 = vrot.slane %v526, 2
        %vm721 = vcmp.lt.s32.totalorder %v528, 6
        %v722 = vsel %vm721, %v705, %v713
        %v723 = vsel %vm721, %v706, %v714
        %v724 = vsel %vm721, %v707, %v715
        %v725 = vsel %vm721, %v708, %v716
        %v726 = vsel %vm721, %v709, %v717
        %v727 = vsel %vm721, %v710, %v718
        %v728 = vsel %vm721, %v711, %v719
        %v729 = vsel %vm721, %v712, %v720
        %v730 = vsel %vm721, %v697, %v705
        %v731 = vsel %vm721, %v698, %v706
        %v732 = vsel %vm721, %v699, %v707
        %v733 = vsel %vm721, %v700, %v708
        %v734 = vsel %vm721, %v701, %v709
        %v735 = vsel %vm721, %v702, %v710
        %v736 = vsel %vm721, %v703, %v711
        %v737 = vsel %vm721, %v704, %v712
        %v738 = vsel %vm721, %v689, %v697
        %v739 = vsel %vm721, %v690, %v698
        %v740 = vsel %vm721, %v691, %v699
        %v741 = vsel %vm721, %v692, %v700
        %v742 = vsel %vm721, %v693, %v701
        %v743 = vsel %vm721, %v694, %v702
        %v744 = vsel %vm721, %v695, %v703
        %v745 = vsel %vm721, %v696, %v704
        %v746 = vsel %vm721, %v713, %v689
        %v747 = vsel %vm721, %v714, %v690
        %v748 = vsel %vm721, %v715, %v691
        %v749 = vsel %vm721, %v716, %v692
        %v750 = vsel %vm721, %v717, %v693
        %v751 = vsel %vm721, %v718, %v694
        %v752 = vsel %vm721, %v719, %v695
        %v753 = vsel %vm721, %v720, %v696
        %v754 = vpack.c.bf16 %v730, %v738
        %v755 = vpack.c.bf16 %v746, %v722
        %v756 = vpack.c.bf16 %v731, %v739
        %v757 = vpack.c.bf16 %v747, %v723
        %v758 = vpack.c.bf16 %v732, %v740
        %v759 = vpack.c.bf16 %v748, %v724
        %v760 = vpack.c.bf16 %v733, %v741
        %v761 = vpack.c.bf16 %v749, %v725
        %v762 = vpack.c.bf16 %v734, %v742
        %v763 = vpack.c.bf16 %v750, %v726
        %v764 = vpack.c.bf16 %v735, %v743
        %v765 = vpack.c.bf16 %v751, %v727
        %v766 = vpack.c.bf16 %v736, %v744
        %v767 = vpack.c.bf16 %v752, %v728
        %v768 = vpack.c.bf16 %v737, %v745
        %v769 = vpack.c.bf16 %v753, %v729
        %v770 = vrot.slane %v495, 3
        %v771 = vrot.slane %v499, 3
        %v772 = vrot.slane %v503, 3
        %v773 = vrot.slane %v507, 3
        %v774 = vrot.slane %v511, 3
        %v775 = vrot.slane %v515, 3
        %v776 = vrot.slane %v519, 3
        %v777 = vrot.slane %v523, 3
        %v778 = vrot.slane %v496, 3
        %v779 = vrot.slane %v500, 3
        %v780 = vrot.slane %v504, 3
        %v781 = vrot.slane %v508, 3
        %v782 = vrot.slane %v512, 3
        %v783 = vrot.slane %v516, 3
        %v784 = vrot.slane %v520, 3
        %v785 = vrot.slane %v524, 3
        %v786 = vrot.slane %v497, 3
        %v787 = vrot.slane %v501, 3
        %v788 = vrot.slane %v505, 3
        %v789 = vrot.slane %v509, 3
        %v790 = vrot.slane %v513, 3
        %v791 = vrot.slane %v517, 3
        %v792 = vrot.slane %v521, 3
        %v793 = vrot.slane %v525, 3
        %v794 = vrot.slane %v498, 3
        %v795 = vrot.slane %v502, 3
        %v796 = vrot.slane %v506, 3
        %v797 = vrot.slane %v510, 3
        %v798 = vrot.slane %v514, 3
        %v799 = vrot.slane %v518, 3
        %v800 = vrot.slane %v522, 3
        %v801 = vrot.slane %v526, 3
        %vm802 = vcmp.lt.s32.totalorder %v528, 5
        %v803 = vsel %vm802, %v786, %v794
        %v804 = vsel %vm802, %v787, %v795
        %v805 = vsel %vm802, %v788, %v796
        %v806 = vsel %vm802, %v789, %v797
        %v807 = vsel %vm802, %v790, %v798
        %v808 = vsel %vm802, %v791, %v799
        %v809 = vsel %vm802, %v792, %v800
        %v810 = vsel %vm802, %v793, %v801
        %v811 = vsel %vm802, %v778, %v786
        %v812 = vsel %vm802, %v779, %v787
        %v813 = vsel %vm802, %v780, %v788
        %v814 = vsel %vm802, %v781, %v789
        %v815 = vsel %vm802, %v782, %v790
        %v816 = vsel %vm802, %v783, %v791
        %v817 = vsel %vm802, %v784, %v792
        %v818 = vsel %vm802, %v785, %v793
        %v819 = vsel %vm802, %v770, %v778
        %v820 = vsel %vm802, %v771, %v779
        %v821 = vsel %vm802, %v772, %v780
        %v822 = vsel %vm802, %v773, %v781
        %v823 = vsel %vm802, %v774, %v782
        %v824 = vsel %vm802, %v775, %v783
        %v825 = vsel %vm802, %v776, %v784
        %v826 = vsel %vm802, %v777, %v785
        %v827 = vsel %vm802, %v794, %v770
        %v828 = vsel %vm802, %v795, %v771
        %v829 = vsel %vm802, %v796, %v772
        %v830 = vsel %vm802, %v797, %v773
        %v831 = vsel %vm802, %v798, %v774
        %v832 = vsel %vm802, %v799, %v775
        %v833 = vsel %vm802, %v800, %v776
        %v834 = vsel %vm802, %v801, %v777
        %v835 = vpack.c.bf16 %v811, %v819
        %v836 = vpack.c.bf16 %v827, %v803
        %v837 = vpack.c.bf16 %v812, %v820
        %v838 = vpack.c.bf16 %v828, %v804
        %v839 = vpack.c.bf16 %v813, %v821
        %v840 = vpack.c.bf16 %v829, %v805
        %v841 = vpack.c.bf16 %v814, %v822
        %v842 = vpack.c.bf16 %v830, %v806
        %v843 = vpack.c.bf16 %v815, %v823
        %v844 = vpack.c.bf16 %v831, %v807
        %v845 = vpack.c.bf16 %v816, %v824
        %v846 = vpack.c.bf16 %v832, %v808
        %v847 = vpack.c.bf16 %v817, %v825
        %v848 = vpack.c.bf16 %v833, %v809
        %v849 = vpack.c.bf16 %v818, %v826
        %v850 = vpack.c.bf16 %v834, %v810
        %v851 = vrot.slane %v495, 4
        %v852 = vrot.slane %v499, 4
        %v853 = vrot.slane %v503, 4
        %v854 = vrot.slane %v507, 4
        %v855 = vrot.slane %v511, 4
        %v856 = vrot.slane %v515, 4
        %v857 = vrot.slane %v519, 4
        %v858 = vrot.slane %v523, 4
        %v859 = vrot.slane %v496, 4
        %v860 = vrot.slane %v500, 4
        %v861 = vrot.slane %v504, 4
        %v862 = vrot.slane %v508, 4
        %v863 = vrot.slane %v512, 4
        %v864 = vrot.slane %v516, 4
        %v865 = vrot.slane %v520, 4
        %v866 = vrot.slane %v524, 4
        %v867 = vrot.slane %v497, 4
        %v868 = vrot.slane %v501, 4
        %v869 = vrot.slane %v505, 4
        %v870 = vrot.slane %v509, 4
        %v871 = vrot.slane %v513, 4
        %v872 = vrot.slane %v517, 4
        %v873 = vrot.slane %v521, 4
        %v874 = vrot.slane %v525, 4
        %v875 = vrot.slane %v498, 4
        %v876 = vrot.slane %v502, 4
        %v877 = vrot.slane %v506, 4
        %v878 = vrot.slane %v510, 4
        %v879 = vrot.slane %v514, 4
        %v880 = vrot.slane %v518, 4
        %v881 = vrot.slane %v522, 4
        %v882 = vrot.slane %v526, 4
        %vm883 = vcmp.lt.s32.totalorder %v528, 4
        %v884 = vsel %vm883, %v867, %v875
        %v885 = vsel %vm883, %v868, %v876
        %v886 = vsel %vm883, %v869, %v877
        %v887 = vsel %vm883, %v870, %v878
        %v888 = vsel %vm883, %v871, %v879
        %v889 = vsel %vm883, %v872, %v880
        %v890 = vsel %vm883, %v873, %v881
        %v891 = vsel %vm883, %v874, %v882
        %v892 = vsel %vm883, %v859, %v867
        %v893 = vsel %vm883, %v860, %v868
        %v894 = vsel %vm883, %v861, %v869
        %v895 = vsel %vm883, %v862, %v870
        %v896 = vsel %vm883, %v863, %v871
        %v897 = vsel %vm883, %v864, %v872
        %v898 = vsel %vm883, %v865, %v873
        %v899 = vsel %vm883, %v866, %v874
        %v900 = vsel %vm883, %v851, %v859
        %v901 = vsel %vm883, %v852, %v860
        %v902 = vsel %vm883, %v853, %v861
        %v903 = vsel %vm883, %v854, %v862
        %v904 = vsel %vm883, %v855, %v863
        %v905 = vsel %vm883, %v856, %v864
        %v906 = vsel %vm883, %v857, %v865
        %v907 = vsel %vm883, %v858, %v866
        %v908 = vsel %vm883, %v875, %v851
        %v909 = vsel %vm883, %v876, %v852
        %v910 = vsel %vm883, %v877, %v853
        %v911 = vsel %vm883, %v878, %v854
        %v912 = vsel %vm883, %v879, %v855
        %v913 = vsel %vm883, %v880, %v856
        %v914 = vsel %vm883, %v881, %v857
        %v915 = vsel %vm883, %v882, %v858
        %v916 = vpack.c.bf16 %v892, %v900
        %v917 = vpack.c.bf16 %v908, %v884
        %v918 = vpack.c.bf16 %v893, %v901
        %v919 = vpack.c.bf16 %v909, %v885
        %v920 = vpack.c.bf16 %v894, %v902
        %v921 = vpack.c.bf16 %v910, %v886
        %v922 = vpack.c.bf16 %v895, %v903
        %v923 = vpack.c.bf16 %v911, %v887
        %v924 = vpack.c.bf16 %v896, %v904
        %v925 = vpack.c.bf16 %v912, %v888
        %v926 = vpack.c.bf16 %v897, %v905
        %v927 = vpack.c.bf16 %v913, %v889
        %v928 = vpack.c.bf16 %v898, %v906
        %v929 = vpack.c.bf16 %v914, %v890
        %v930 = vpack.c.bf16 %v899, %v907
        %v931 = vpack.c.bf16 %v915, %v891
        %v932 = vrot.slane %v495, 5
        %v933 = vrot.slane %v499, 5
        %v934 = vrot.slane %v503, 5
        %v935 = vrot.slane %v507, 5
        %v936 = vrot.slane %v511, 5
        %v937 = vrot.slane %v515, 5
        %v938 = vrot.slane %v519, 5
        %v939 = vrot.slane %v523, 5
        %v940 = vrot.slane %v496, 5
        %v941 = vrot.slane %v500, 5
        %v942 = vrot.slane %v504, 5
        %v943 = vrot.slane %v508, 5
        %v944 = vrot.slane %v512, 5
        %v945 = vrot.slane %v516, 5
        %v946 = vrot.slane %v520, 5
        %v947 = vrot.slane %v524, 5
        %v948 = vrot.slane %v497, 5
        %v949 = vrot.slane %v501, 5
        %v950 = vrot.slane %v505, 5
        %v951 = vrot.slane %v509, 5
        %v952 = vrot.slane %v513, 5
        %v953 = vrot.slane %v517, 5
        %v954 = vrot.slane %v521, 5
        %v955 = vrot.slane %v525, 5
        %v956 = vrot.slane %v498, 5
        %v957 = vrot.slane %v502, 5
        %v958 = vrot.slane %v506, 5
        %v959 = vrot.slane %v510, 5
        %v960 = vrot.slane %v514, 5
        %v961 = vrot.slane %v518, 5
        %v962 = vrot.slane %v522, 5
        %v963 = vrot.slane %v526, 5
        %vm964 = vcmp.lt.s32.totalorder %v528, 3
        %v965 = vsel %vm964, %v948, %v956
        %v966 = vsel %vm964, %v949, %v957
        %v967 = vsel %vm964, %v950, %v958
        %v968 = vsel %vm964, %v951, %v959
        %v969 = vsel %vm964, %v952, %v960
        %v970 = vsel %vm964, %v953, %v961
        %v971 = vsel %vm964, %v954, %v962
        %v972 = vsel %vm964, %v955, %v963
        %v973 = vsel %vm964, %v940, %v948
        %v974 = vsel %vm964, %v941, %v949
        %v975 = vsel %vm964, %v942, %v950
        %v976 = vsel %vm964, %v943, %v951
        %v977 = vsel %vm964, %v944, %v952
        %v978 = vsel %vm964, %v945, %v953
        %v979 = vsel %vm964, %v946, %v954
        %v980 = vsel %vm964, %v947, %v955
        %v981 = vsel %vm964, %v932, %v940
        %v982 = vsel %vm964, %v933, %v941
        %v983 = vsel %vm964, %v934, %v942
        %v984 = vsel %vm964, %v935, %v943
        %v985 = vsel %vm964, %v936, %v944
        %v986 = vsel %vm964, %v937, %v945
        %v987 = vsel %vm964, %v938, %v946
        %v988 = vsel %vm964, %v939, %v947
        %v989 = vsel %vm964, %v956, %v932
        %v990 = vsel %vm964, %v957, %v933
        %v991 = vsel %vm964, %v958, %v934
        %v992 = vsel %vm964, %v959, %v935
        %v993 = vsel %vm964, %v960, %v936
        %v994 = vsel %vm964, %v961, %v937
        %v995 = vsel %vm964, %v962, %v938
        %v996 = vsel %vm964, %v963, %v939
        %v997 = vpack.c.bf16 %v973, %v981
        %v998 = vpack.c.bf16 %v989, %v965
        %v999 = vpack.c.bf16 %v974, %v982
        %v1000 = vpack.c.bf16 %v990, %v966
        %v1001 = vpack.c.bf16 %v975, %v983
        %v1002 = vpack.c.bf16 %v991, %v967
        %v1003 = vpack.c.bf16 %v976, %v984
        %v1004 = vpack.c.bf16 %v992, %v968
        %v1005 = vpack.c.bf16 %v977, %v985
        %v1006 = vpack.c.bf16 %v993, %v969
        %v1007 = vpack.c.bf16 %v978, %v986
        %v1008 = vpack.c.bf16 %v994, %v970
        %v1009 = vpack.c.bf16 %v979, %v987
        %v1010 = vpack.c.bf16 %v995, %v971
        %v1011 = vpack.c.bf16 %v980, %v988
        %v1012 = vpack.c.bf16 %v996, %v972
        %v1013 = vrot.slane %v495, 6
        %v1014 = vrot.slane %v499, 6
        %v1015 = vrot.slane %v503, 6
        %v1016 = vrot.slane %v507, 6
        %v1017 = vrot.slane %v511, 6
        %v1018 = vrot.slane %v515, 6
        %v1019 = vrot.slane %v519, 6
        %v1020 = vrot.slane %v523, 6
        %v1021 = vrot.slane %v496, 6
        %v1022 = vrot.slane %v500, 6
        %v1023 = vrot.slane %v504, 6
        %v1024 = vrot.slane %v508, 6
        %v1025 = vrot.slane %v512, 6
        %v1026 = vrot.slane %v516, 6
        %v1027 = vrot.slane %v520, 6
        %v1028 = vrot.slane %v524, 6
        %v1029 = vrot.slane %v497, 6
        %v1030 = vrot.slane %v501, 6
        %v1031 = vrot.slane %v505, 6
        %v1032 = vrot.slane %v509, 6
        %v1033 = vrot.slane %v513, 6
        %v1034 = vrot.slane %v517, 6
        %v1035 = vrot.slane %v521, 6
        %v1036 = vrot.slane %v525, 6
        %v1037 = vrot.slane %v498, 6
        %v1038 = vrot.slane %v502, 6
        %v1039 = vrot.slane %v506, 6
        %v1040 = vrot.slane %v510, 6
        %v1041 = vrot.slane %v514, 6
        %v1042 = vrot.slane %v518, 6
        %v1043 = vrot.slane %v522, 6
        %v1044 = vrot.slane %v526, 6
        %vm1045 = vcmp.lt.s32.totalorder %v528, 2
        %v1046 = vsel %vm1045, %v1029, %v1037
        %v1047 = vsel %vm1045, %v1030, %v1038
        %v1048 = vsel %vm1045, %v1031, %v1039
        %v1049 = vsel %vm1045, %v1032, %v1040
        %v1050 = vsel %vm1045, %v1033, %v1041
        %v1051 = vsel %vm1045, %v1034, %v1042
        %v1052 = vsel %vm1045, %v1035, %v1043
        %v1053 = vsel %vm1045, %v1036, %v1044
        %v1054 = vsel %vm1045, %v1021, %v1029
        %v1055 = vsel %vm1045, %v1022, %v1030
        %v1056 = vsel %vm1045, %v1023, %v1031
        %v1057 = vsel %vm1045, %v1024, %v1032
        %v1058 = vsel %vm1045, %v1025, %v1033
        %v1059 = vsel %vm1045, %v1026, %v1034
        %v1060 = vsel %vm1045, %v1027, %v1035
        %v1061 = vsel %vm1045, %v1028, %v1036
        %v1062 = vsel %vm1045, %v1013, %v1021
        %v1063 = vsel %vm1045, %v1014, %v1022
        %v1064 = vsel %vm1045, %v1015, %v1023
        %v1065 = vsel %vm1045, %v1016, %v1024
        %v1066 = vsel %vm1045, %v1017, %v1025
        %v1067 = vsel %vm1045, %v1018, %v1026
        %v1068 = vsel %vm1045, %v1019, %v1027
        %v1069 = vsel %vm1045, %v1020, %v1028
        %v1070 = vsel %vm1045, %v1037, %v1013
        %v1071 = vsel %vm1045, %v1038, %v1014
        %v1072 = vsel %vm1045, %v1039, %v1015
        %v1073 = vsel %vm1045, %v1040, %v1016
        %v1074 = vsel %vm1045, %v1041, %v1017
        %v1075 = vsel %vm1045, %v1042, %v1018
        %v1076 = vsel %vm1045, %v1043, %v1019
        %v1077 = vsel %vm1045, %v1044, %v1020
        %v1078 = vpack.c.bf16 %v1054, %v1062
        %v1079 = vpack.c.bf16 %v1070, %v1046
        %v1080 = vpack.c.bf16 %v1055, %v1063
        %v1081 = vpack.c.bf16 %v1071, %v1047
        %v1082 = vpack.c.bf16 %v1056, %v1064
        %v1083 = vpack.c.bf16 %v1072, %v1048
        %v1084 = vpack.c.bf16 %v1057, %v1065
        %v1085 = vpack.c.bf16 %v1073, %v1049
        %v1086 = vpack.c.bf16 %v1058, %v1066
        %v1087 = vpack.c.bf16 %v1074, %v1050
        %v1088 = vpack.c.bf16 %v1059, %v1067
        %v1089 = vpack.c.bf16 %v1075, %v1051
        %v1090 = vpack.c.bf16 %v1060, %v1068
        %v1091 = vpack.c.bf16 %v1076, %v1052
        %v1092 = vpack.c.bf16 %v1061, %v1069
        %v1093 = vpack.c.bf16 %v1077, %v1053
        %v1094 = vrot.slane %v495, 7
        %v1095 = vrot.slane %v499, 7
        %v1096 = vrot.slane %v503, 7
        %v1097 = vrot.slane %v507, 7
        %v1098 = vrot.slane %v511, 7
        %v1099 = vrot.slane %v515, 7
        %v1100 = vrot.slane %v519, 7
        %v1101 = vrot.slane %v523, 7
        %v1102 = vrot.slane %v496, 7
        %v1103 = vrot.slane %v500, 7
        %v1104 = vrot.slane %v504, 7
        %v1105 = vrot.slane %v508, 7
        %v1106 = vrot.slane %v512, 7
        %v1107 = vrot.slane %v516, 7
        %v1108 = vrot.slane %v520, 7
        %v1109 = vrot.slane %v524, 7
        %v1110 = vrot.slane %v497, 7
        %v1111 = vrot.slane %v501, 7
        %v1112 = vrot.slane %v505, 7
        %v1113 = vrot.slane %v509, 7
        %v1114 = vrot.slane %v513, 7
        %v1115 = vrot.slane %v517, 7
        %v1116 = vrot.slane %v521, 7
        %v1117 = vrot.slane %v525, 7
        %v1118 = vrot.slane %v498, 7
        %v1119 = vrot.slane %v502, 7
        %v1120 = vrot.slane %v506, 7
        %v1121 = vrot.slane %v510, 7
        %v1122 = vrot.slane %v514, 7
        %v1123 = vrot.slane %v518, 7
        %v1124 = vrot.slane %v522, 7
        %v1125 = vrot.slane %v526, 7
        %vm1126 = vcmp.lt.s32.totalorder %v528, 1
        %v1127 = vsel %vm1126, %v1110, %v1118
        %v1128 = vsel %vm1126, %v1111, %v1119
        %v1129 = vsel %vm1126, %v1112, %v1120
        %v1130 = vsel %vm1126, %v1113, %v1121
        %v1131 = vsel %vm1126, %v1114, %v1122
        %v1132 = vsel %vm1126, %v1115, %v1123
        %v1133 = vsel %vm1126, %v1116, %v1124
        %v1134 = vsel %vm1126, %v1117, %v1125
        %v1135 = vsel %vm1126, %v1102, %v1110
        %v1136 = vsel %vm1126, %v1103, %v1111
        %v1137 = vsel %vm1126, %v1104, %v1112
        %v1138 = vsel %vm1126, %v1105, %v1113
        %v1139 = vsel %vm1126, %v1106, %v1114
        %v1140 = vsel %vm1126, %v1107, %v1115
        %v1141 = vsel %vm1126, %v1108, %v1116
        %v1142 = vsel %vm1126, %v1109, %v1117
        %v1143 = vsel %vm1126, %v1094, %v1102
        %v1144 = vsel %vm1126, %v1095, %v1103
        %v1145 = vsel %vm1126, %v1096, %v1104
        %v1146 = vsel %vm1126, %v1097, %v1105
        %v1147 = vsel %vm1126, %v1098, %v1106
        %v1148 = vsel %vm1126, %v1099, %v1107
        %v1149 = vsel %vm1126, %v1100, %v1108
        %v1150 = vsel %vm1126, %v1101, %v1109
        %v1151 = vsel %vm1126, %v1118, %v1094
        %v1152 = vsel %vm1126, %v1119, %v1095
        %v1153 = vsel %vm1126, %v1120, %v1096
        %v1154 = vsel %vm1126, %v1121, %v1097
        %v1155 = vsel %vm1126, %v1122, %v1098
        %v1156 = vsel %vm1126, %v1123, %v1099
        %v1157 = vsel %vm1126, %v1124, %v1100
        %v1158 = vsel %vm1126, %v1125, %v1101
        %v1159 = vpack.c.bf16 %v1135, %v1143
        %v1160 = vpack.c.bf16 %v1151, %v1127
        %v1161 = vpack.c.bf16 %v1136, %v1144
        %v1162 = vpack.c.bf16 %v1152, %v1128
        %v1163 = vpack.c.bf16 %v1137, %v1145
        %v1164 = vpack.c.bf16 %v1153, %v1129
        %v1165 = vpack.c.bf16 %v1138, %v1146
        %v1166 = vpack.c.bf16 %v1154, %v1130
        %v1167 = vpack.c.bf16 %v1139, %v1147
        %v1168 = vpack.c.bf16 %v1155, %v1131
        %v1169 = vpack.c.bf16 %v1140, %v1148
        %v1170 = vpack.c.bf16 %v1156, %v1132
        %v1171 = vpack.c.bf16 %v1141, %v1149
        %v1172 = vpack.c.bf16 %v1157, %v1133
        %v1173 = vpack.c.bf16 %v1142, %v1150
        %v1174 = vpack.c.bf16 %v1158, %v1134
        %v1175 = vpack.c.bf16 %v497, %v496
        %v1176 = vpack.c.bf16 %v495, %v498
        %v1177 = vpack.c.bf16 %v501, %v500
        %v1178 = vpack.c.bf16 %v499, %v502
        %v1179 = vpack.c.bf16 %v505, %v504
        %v1180 = vpack.c.bf16 %v503, %v506
        %v1181 = vpack.c.bf16 %v509, %v508
        %v1182 = vpack.c.bf16 %v507, %v510
        %v1183 = vpack.c.bf16 %v513, %v512
        %v1184 = vpack.c.bf16 %v511, %v514
        %v1185 = vpack.c.bf16 %v517, %v516
        %v1186 = vpack.c.bf16 %v515, %v518
        %v1187 = vpack.c.bf16 %v521, %v520
        %v1188 = vpack.c.bf16 %v519, %v522
        %v1189 = vpack.c.bf16 %v525, %v524
        %v1190 = vpack.c.bf16 %v523, %v526
        %v1223 = vunpack.c.l.b16 %v463
        %v1224 = vunpack.c.l.b16 %v464
        %v1225 = vunpack.c.l.b16 %v465
        %v1226 = vunpack.c.l.b16 %v466
        %v1227 = vunpack.c.l.b16 %v467
        %v1228 = vunpack.c.l.b16 %v468
        %v1229 = vunpack.c.l.b16 %v469
        %v1230 = vunpack.c.l.b16 %v470
        %v1231 = vunpack.c.l.b16 %v471
        %v1232 = vunpack.c.l.b16 %v472
        %v1233 = vunpack.c.l.b16 %v473
        %v1234 = vunpack.c.l.b16 %v474
        %v1235 = vunpack.c.l.b16 %v475
        %v1236 = vunpack.c.l.b16 %v476
        %v1237 = vunpack.c.l.b16 %v477
        %v1238 = vunpack.c.l.b16 %v478
        %v1239 = vunpack.c.l.b16 %v479
        %v1240 = vunpack.c.l.b16 %v480
        %v1241 = vunpack.c.l.b16 %v481
        %v1242 = vunpack.c.l.b16 %v482
        %v1243 = vunpack.c.l.b16 %v483
        %v1244 = vunpack.c.l.b16 %v484
        %v1245 = vunpack.c.l.b16 %v485
        %v1246 = vunpack.c.l.b16 %v486
        %v1247 = vunpack.c.l.b16 %v487
        %v1248 = vunpack.c.l.b16 %v488
        %v1249 = vunpack.c.l.b16 %v489
        %v1250 = vunpack.c.l.b16 %v490
        %v1251 = vunpack.c.l.b16 %v491
        %v1252 = vunpack.c.l.b16 %v492
        %v1253 = vunpack.c.l.b16 %v493
        %v1254 = vunpack.c.l.b16 %v494
        %v1255 = vpack.c.b16 %v1224, %v1223
        %v1256 = vpack.c.b16 %v1226, %v1225
        %v1257 = vpack.c.b16 %v1228, %v1227
        %v1258 = vpack.c.b16 %v1230, %v1229
        %v1259 = vpack.c.b16 %v1232, %v1231
        %v1260 = vpack.c.b16 %v1234, %v1233
        %v1261 = vpack.c.b16 %v1236, %v1235
        %v1262 = vpack.c.b16 %v1238, %v1237
        %v1263 = vpack.c.b16 %v1240, %v1239
        %v1264 = vpack.c.b16 %v1242, %v1241
        %v1265 = vpack.c.b16 %v1244, %v1243
        %v1266 = vpack.c.b16 %v1246, %v1245
        %v1267 = vpack.c.b16 %v1248, %v1247
        %v1268 = vpack.c.b16 %v1250, %v1249
        %v1269 = vpack.c.b16 %v1252, %v1251
        %v1270 = vpack.c.b16 %v1254, %v1253
        %1287 = vrot.lane.b32.xlu0 %v673, 64
        %v1288 = vpop.permute.xlu0 %1287
        %1289 = vrot.lane.b32.xlu0 %v674, 64
        %v1290 = vpop.permute.xlu0 %1289
        %1291 = vrot.lane.b32.xlu0 %v675, 64
        %v1292 = vpop.permute.xlu0 %1291
        %1293 = vrot.lane.b32.xlu0 %v676, 64
        %v1294 = vpop.permute.xlu0 %1293
        %1295 = vrot.lane.b32.xlu0 %v677, 64
        %v1296 = vpop.permute.xlu0 %1295
        %1297 = vrot.lane.b32.xlu0 %v678, 64
        %v1298 = vpop.permute.xlu0 %1297
        %1299 = vrot.lane.b32.xlu0 %v679, 64
        %v1300 = vpop.permute.xlu0 %1299
        %1301 = vrot.lane.b32.xlu0 %v680, 64
        %v1302 = vpop.permute.xlu0 %1301
        %1303 = vrot.lane.b32.xlu0 %v681, 64
        %v1304 = vpop.permute.xlu0 %1303
        %1305 = vrot.lane.b32.xlu0 %v682, 64
        %v1306 = vpop.permute.xlu0 %1305
        %1307 = vrot.lane.b32.xlu0 %v683, 64
        %v1308 = vpop.permute.xlu0 %1307
        %1309 = vrot.lane.b32.xlu0 %v684, 64
        %v1310 = vpop.permute.xlu0 %1309
        %1311 = vrot.lane.b32.xlu0 %v685, 64
        %v1312 = vpop.permute.xlu0 %1311
        %1313 = vrot.lane.b32.xlu0 %v686, 64
        %v1314 = vpop.permute.xlu0 %1313
        %1315 = vrot.lane.b32.xlu0 %v687, 64
        %v1316 = vpop.permute.xlu0 %1315
        %1317 = vrot.lane.b32.xlu0 %v688, 64
        %v1318 = vpop.permute.xlu0 %1317
        %1335 = vrot.lane.b32.xlu0 %v835, 64
        %v1336 = vpop.permute.xlu0 %1335
        %1337 = vrot.lane.b32.xlu0 %v836, 64
        %v1338 = vpop.permute.xlu0 %1337
        %1339 = vrot.lane.b32.xlu0 %v837, 64
        %v1340 = vpop.permute.xlu0 %1339
        %1341 = vrot.lane.b32.xlu0 %v838, 64
        %v1342 = vpop.permute.xlu0 %1341
        %1343 = vrot.lane.b32.xlu0 %v839, 64
        %v1344 = vpop.permute.xlu0 %1343
        %1345 = vrot.lane.b32.xlu0 %v840, 64
        %v1346 = vpop.permute.xlu0 %1345
        %1347 = vrot.lane.b32.xlu0 %v841, 64
        %v1348 = vpop.permute.xlu0 %1347
        %1349 = vrot.lane.b32.xlu0 %v842, 64
        %v1350 = vpop.permute.xlu0 %1349
        %1351 = vrot.lane.b32.xlu0 %v843, 64
        %v1352 = vpop.permute.xlu0 %1351
        %1353 = vrot.lane.b32.xlu0 %v844, 64
        %v1354 = vpop.permute.xlu0 %1353
        %1355 = vrot.lane.b32.xlu0 %v845, 64
        %v1356 = vpop.permute.xlu0 %1355
        %1357 = vrot.lane.b32.xlu0 %v846, 64
        %v1358 = vpop.permute.xlu0 %1357
        %1359 = vrot.lane.b32.xlu0 %v847, 64
        %v1360 = vpop.permute.xlu0 %1359
        %1361 = vrot.lane.b32.xlu0 %v848, 64
        %v1362 = vpop.permute.xlu0 %1361
        %1363 = vrot.lane.b32.xlu0 %v849, 64
        %v1364 = vpop.permute.xlu0 %1363
        %1365 = vrot.lane.b32.xlu0 %v850, 64
        %v1366 = vpop.permute.xlu0 %1365
        %1383 = vrot.lane.b32.xlu0 %v997, 64
        %v1384 = vpop.permute.xlu0 %1383
        %1385 = vrot.lane.b32.xlu0 %v998, 64
        %v1386 = vpop.permute.xlu0 %1385
        %1387 = vrot.lane.b32.xlu0 %v999, 64
        %v1388 = vpop.permute.xlu0 %1387
        %1389 = vrot.lane.b32.xlu0 %v1000, 64
        %v1390 = vpop.permute.xlu0 %1389
        %1391 = vrot.lane.b32.xlu0 %v1001, 64
        %v1392 = vpop.permute.xlu0 %1391
        %1393 = vrot.lane.b32.xlu0 %v1002, 64
        %v1394 = vpop.permute.xlu0 %1393
        %1395 = vrot.lane.b32.xlu0 %v1003, 64
        %v1396 = vpop.permute.xlu0 %1395
        %1397 = vrot.lane.b32.xlu0 %v1004, 64
        %v1398 = vpop.permute.xlu0 %1397
        %1399 = vrot.lane.b32.xlu0 %v1005, 64
        %v1400 = vpop.permute.xlu0 %1399
        %1401 = vrot.lane.b32.xlu0 %v1006, 64
        %v1402 = vpop.permute.xlu0 %1401
        %1403 = vrot.lane.b32.xlu0 %v1007, 64
        %v1404 = vpop.permute.xlu0 %1403
        %1405 = vrot.lane.b32.xlu0 %v1008, 64
        %v1406 = vpop.permute.xlu0 %1405
        %1407 = vrot.lane.b32.xlu0 %v1009, 64
        %v1408 = vpop.permute.xlu0 %1407
        %1409 = vrot.lane.b32.xlu0 %v1010, 64
        %v1410 = vpop.permute.xlu0 %1409
        %1411 = vrot.lane.b32.xlu0 %v1011, 64
        %v1412 = vpop.permute.xlu0 %1411
        %1413 = vrot.lane.b32.xlu0 %v1012, 64
        %v1414 = vpop.permute.xlu0 %1413
        %1431 = vrot.lane.b32.xlu0 %v1159, 64
        %v1432 = vpop.permute.xlu0 %1431
        %1433 = vrot.lane.b32.xlu0 %v1160, 64
        %v1434 = vpop.permute.xlu0 %1433
        %1435 = vrot.lane.b32.xlu0 %v1161, 64
        %v1436 = vpop.permute.xlu0 %1435
        %1437 = vrot.lane.b32.xlu0 %v1162, 64
        %v1438 = vpop.permute.xlu0 %1437
        %1439 = vrot.lane.b32.xlu0 %v1163, 64
        %v1440 = vpop.permute.xlu0 %1439
        %1441 = vrot.lane.b32.xlu0 %v1164, 64
        %v1442 = vpop.permute.xlu0 %1441
        %1443 = vrot.lane.b32.xlu0 %v1165, 64
        %v1444 = vpop.permute.xlu0 %1443
        %1445 = vrot.lane.b32.xlu0 %v1166, 64
        %v1446 = vpop.permute.xlu0 %1445
        %1447 = vrot.lane.b32.xlu0 %v1167, 64
        %v1448 = vpop.permute.xlu0 %1447
        %1449 = vrot.lane.b32.xlu0 %v1168, 64
        %v1450 = vpop.permute.xlu0 %1449
        %1451 = vrot.lane.b32.xlu0 %v1169, 64
        %v1452 = vpop.permute.xlu0 %1451
        %1453 = vrot.lane.b32.xlu0 %v1170, 64
        %v1454 = vpop.permute.xlu0 %1453
        %1455 = vrot.lane.b32.xlu0 %v1171, 64
        %v1456 = vpop.permute.xlu0 %1455
        %1457 = vrot.lane.b32.xlu0 %v1172, 64
        %v1458 = vpop.permute.xlu0 %1457
        %1459 = vrot.lane.b32.xlu0 %v1173, 64
        %v1460 = vpop.permute.xlu0 %1459
        %1461 = vrot.lane.b32.xlu0 %v1174, 64
        %v1462 = vpop.permute.xlu0 %1461
        %vm1463 = vcmask 523264
        %v1466 = vsel %vm1463, %v1255, %v1288
        %v1470 = vsel %vm1463, %v1256, %v1290
        %v1474 = vsel %vm1463, %v1257, %v1292
        %v1478 = vsel %vm1463, %v1258, %v1294
        %v1482 = vsel %vm1463, %v1259, %v1296
        %v1486 = vsel %vm1463, %v1260, %v1298
        %v1490 = vsel %vm1463, %v1261, %v1300
        %v1494 = vsel %vm1463, %v1262, %v1302
        %v1498 = vsel %vm1463, %v1263, %v1304
        %v1502 = vsel %vm1463, %v1264, %v1306
        %v1506 = vsel %vm1463, %v1265, %v1308
        %v1510 = vsel %vm1463, %v1266, %v1310
        %v1514 = vsel %vm1463, %v1267, %v1312
        %v1518 = vsel %vm1463, %v1268, %v1314
        %v1522 = vsel %vm1463, %v1269, %v1316
        %v1526 = vsel %vm1463, %v1270, %v1318
        %v1530 = vsel %vm1463, %v754, %v1336
        %v1534 = vsel %vm1463, %v755, %v1338
        %v1538 = vsel %vm1463, %v756, %v1340
        %v1542 = vsel %vm1463, %v757, %v1342
        %v1546 = vsel %vm1463, %v758, %v1344
        %v1550 = vsel %vm1463, %v759, %v1346
        %v1554 = vsel %vm1463, %v760, %v1348
        %v1558 = vsel %vm1463, %v761, %v1350
        %v1562 = vsel %vm1463, %v762, %v1352
        %v1566 = vsel %vm1463, %v763, %v1354
        %v1570 = vsel %vm1463, %v764, %v1356
        %v1574 = vsel %vm1463, %v765, %v1358
        %v1578 = vsel %vm1463, %v766, %v1360
        %v1582 = vsel %vm1463, %v767, %v1362
        %v1586 = vsel %vm1463, %v768, %v1364
        %v1590 = vsel %vm1463, %v769, %v1366
        %v1594 = vsel %vm1463, %v916, %v1384
        %v1598 = vsel %vm1463, %v917, %v1386
        %v1602 = vsel %vm1463, %v918, %v1388
        %v1606 = vsel %vm1463, %v919, %v1390
        %v1610 = vsel %vm1463, %v920, %v1392
        %v1614 = vsel %vm1463, %v921, %v1394
        %v1618 = vsel %vm1463, %v922, %v1396
        %v1622 = vsel %vm1463, %v923, %v1398
        %v1626 = vsel %vm1463, %v924, %v1400
        %v1630 = vsel %vm1463, %v925, %v1402
        %v1634 = vsel %vm1463, %v926, %v1404
        %v1638 = vsel %vm1463, %v927, %v1406
        %v1642 = vsel %vm1463, %v928, %v1408
        %v1646 = vsel %vm1463, %v929, %v1410
        %v1650 = vsel %vm1463, %v930, %v1412
        %v1654 = vsel %vm1463, %v931, %v1414
        %v1658 = vsel %vm1463, %v1078, %v1432
        %v1662 = vsel %vm1463, %v1079, %v1434
        %v1666 = vsel %vm1463, %v1080, %v1436
        %v1670 = vsel %vm1463, %v1081, %v1438
        %v1674 = vsel %vm1463, %v1082, %v1440
        %v1678 = vsel %vm1463, %v1083, %v1442
        %v1682 = vsel %vm1463, %v1084, %v1444
        %v1686 = vsel %vm1463, %v1085, %v1446
        %v1690 = vsel %vm1463, %v1086, %v1448
        %v1694 = vsel %vm1463, %v1087, %v1450
        %v1698 = vsel %vm1463, %v1088, %v1452
        %v1702 = vsel %vm1463, %v1089, %v1454
        %v1706 = vsel %vm1463, %v1090, %v1456
        %v1710 = vsel %vm1463, %v1091, %v1458
        %v1714 = vsel %vm1463, %v1092, %v1460
        %v1718 = vsel %vm1463, %v1093, %v1462
        %v1792 = vunpack.c.l.b16 %v536
        %v1793 = vunpack.c.l.b16 %v537
        %v1794 = vunpack.c.l.b16 %v538
        %v1795 = vunpack.c.l.b16 %v539
        %v1796 = vunpack.c.l.b16 %v540
        %v1797 = vunpack.c.l.b16 %v541
        %v1798 = vunpack.c.l.b16 %v542
        %v1799 = vunpack.c.l.b16 %v543
        %v1800 = vunpack.c.l.b16 %v544
        %v1801 = vunpack.c.l.b16 %v545
        %v1802 = vunpack.c.l.b16 %v546
        %v1803 = vunpack.c.l.b16 %v547
        %v1804 = vunpack.c.l.b16 %v548
        %v1805 = vunpack.c.l.b16 %v549
        %v1806 = vunpack.c.l.b16 %v550
        %v1807 = vunpack.c.l.b16 %v551
        %v1808 = vunpack.c.l.b16 %v552
        %v1809 = vunpack.c.l.b16 %v553
        %v1810 = vunpack.c.l.b16 %v554
        %v1811 = vunpack.c.l.b16 %v555
        %v1812 = vunpack.c.l.b16 %v556
        %v1813 = vunpack.c.l.b16 %v557
        %v1814 = vunpack.c.l.b16 %v558
        %v1815 = vunpack.c.l.b16 %v559
        %v1816 = vunpack.c.l.b16 %v560
        %v1817 = vunpack.c.l.b16 %v561
        %v1818 = vunpack.c.l.b16 %v562
        %v1819 = vunpack.c.l.b16 %v563
        %v1820 = vunpack.c.l.b16 %v564
        %v1821 = vunpack.c.l.b16 %v565
        %v1822 = vunpack.c.l.b16 %v566
        %v1823 = vunpack.c.l.b16 %v567
        %v1824 = vunpack.c.l.b16 %v568
        %v1825 = vunpack.c.l.b16 %v569
        %v1826 = vunpack.c.l.b16 %v570
        %v1827 = vunpack.c.l.b16 %v571
        %v1828 = vunpack.c.l.b16 %v572
        %v1829 = vunpack.c.l.b16 %v573
        %v1830 = vunpack.c.l.b16 %v574
        %v1831 = vunpack.c.l.b16 %v575
        %v1832 = vunpack.c.l.b16 %v576
        %v1833 = vunpack.c.l.b16 %v577
        %v1834 = vunpack.c.l.b16 %v578
        %v1835 = vunpack.c.l.b16 %v579
        %v1836 = vunpack.c.l.b16 %v580
        %v1837 = vunpack.c.l.b16 %v581
        %v1838 = vunpack.c.l.b16 %v582
        %v1839 = vunpack.c.l.b16 %v583
        %v1840 = vunpack.c.l.b16 %v584
        %v1841 = vunpack.c.l.b16 %v585
        %v1842 = vunpack.c.l.b16 %v586
        %v1843 = vunpack.c.l.b16 %v587
        %v1844 = vunpack.c.l.b16 %v588
        %v1845 = vunpack.c.l.b16 %v589
        %v1846 = vunpack.c.l.b16 %v590
        %v1847 = vunpack.c.l.b16 %v591
        %v1848 = vunpack.c.l.b16 %v592
        %v1849 = vunpack.c.l.b16 %v593
        %v1850 = vunpack.c.l.b16 %v594
        %v1851 = vunpack.c.l.b16 %v595
        %v1852 = vunpack.c.l.b16 %v596
        %v1853 = vunpack.c.l.b16 %v597
        %v1854 = vunpack.c.l.b16 %v598
        %v1855 = vunpack.c.l.b16 %v599
        %v1856 = vunpack.c.l.b16 %v600
        %v1857 = vunpack.c.l.b16 %v601
        %v1858 = vunpack.c.l.b16 %v602
        %v1859 = vunpack.c.l.b16 %v603
        %v1860 = vunpack.c.l.b16 %v604
        %v1861 = vunpack.c.l.b16 %v605
        %v1862 = vunpack.c.l.b16 %v606
        %v1863 = vunpack.c.l.b16 %v607
        %v1864 = vpack.c.b16 %v1793, %v1792
        %v1865 = vpack.c.b16 %v1795, %v1794
        %v1866 = vpack.c.b16 %v1797, %v1796
        %v1867 = vpack.c.b16 %v1799, %v1798
        %v1868 = vpack.c.b16 %v1801, %v1800
        %v1869 = vpack.c.b16 %v1803, %v1802
        %v1870 = vpack.c.b16 %v1805, %v1804
        %v1871 = vpack.c.b16 %v1807, %v1806
        %v1872 = vpack.c.b16 %v1809, %v1808
        %v1873 = vpack.c.b16 %v1811, %v1810
        %v1874 = vpack.c.b16 %v1813, %v1812
        %v1875 = vpack.c.b16 %v1815, %v1814
        %v1876 = vpack.c.b16 %v1817, %v1816
        %v1877 = vpack.c.b16 %v1819, %v1818
        %v1878 = vpack.c.b16 %v1821, %v1820
        %v1879 = vpack.c.b16 %v1823, %v1822
        %v1880 = vpack.c.b16 %v1825, %v1824
        %v1881 = vpack.c.b16 %v1827, %v1826
        %v1882 = vpack.c.b16 %v1829, %v1828
        %v1883 = vpack.c.b16 %v1831, %v1830
        %v1884 = vpack.c.b16 %v1833, %v1832
        %v1885 = vpack.c.b16 %v1835, %v1834
        %v1886 = vpack.c.b16 %v1837, %v1836
        %v1887 = vpack.c.b16 %v1839, %v1838
        %v1888 = vpack.c.b16 %v1841, %v1840
        %v1889 = vpack.c.b16 %v1843, %v1842
        %v1890 = vpack.c.b16 %v1845, %v1844
        %v1891 = vpack.c.b16 %v1847, %v1846
        %v1892 = vpack.c.b16 %v1849, %v1848
        %v1893 = vpack.c.b16 %v1851, %v1850
        %v1894 = vpack.c.b16 %v1853, %v1852
        %v1895 = vpack.c.b16 %v1855, %v1854
        %v1896 = vpack.c.b16 %v1857, %v1856
        %v1897 = vpack.c.b16 %v1859, %v1858
        %v1898 = vpack.c.b16 %v1861, %v1860
        %v1899 = vpack.c.b16 %v1863, %v1862
        %v1937 = vsel %vm1463, %v1175, 0
        %v1940 = vsel %vm1463, %v1176, 0
        %v1943 = vsel %vm1463, %v1177, 0
        %v1946 = vsel %vm1463, %v1178, 0
        %v1949 = vsel %vm1463, %v1179, 0
        %v1952 = vsel %vm1463, %v1180, 0
        %v1955 = vsel %vm1463, %v1181, 0
        %v1958 = vsel %vm1463, %v1182, 0
        %v1961 = vsel %vm1463, %v1183, 0
        %v1964 = vsel %vm1463, %v1184, 0
        %v1967 = vsel %vm1463, %v1185, 0
        %v1970 = vsel %vm1463, %v1186, 0
        %v1973 = vsel %vm1463, %v1187, 0
        %v1976 = vsel %vm1463, %v1188, 0
        %v1979 = vsel %vm1463, %v1189, 0
        %v1982 = vsel %vm1463, %v1190, 0
        %1984 = vmatprep.subr.bf16.mxu0 0
        %1985 = vmatpush1.bf16.msra.mxu0 %v1864
        %1986 = vmatprep.subr.bf16.mxu0 0
        %1987 = vmatpush1.bf16.msra.mxu0 %v1865
        %1988 = vmatprep.subr.bf16.mxu0 0
        %1989 = vmatpush1.bf16.msra.mxu0 %v1866
        %1990 = vmatprep.subr.bf16.mxu0 0
        %1991 = vmatpush1.bf16.msra.mxu0 %v1867
        %1992 = vmatprep.subr.bf16.mxu0 0
        %1993 = vmatpush1.bf16.msra.mxu0 %v1868
        %1994 = vmatprep.subr.bf16.mxu0 0
        %1995 = vmatpush1.bf16.msra.mxu0 %v1869
        %1996 = vmatprep.subr.bf16.mxu0 0
        %1997 = vmatpush1.bf16.msra.mxu0 %v1870
        %1998 = vmatprep.subr.bf16.mxu0 0
        %1999 = vmatpush1.bf16.msra.mxu0 %v1871
        %2000 = vmatprep.subr.bf16.mxu0 0
        %2001 = vmatpush1.bf16.msra.mxu0 %v1872
        %2002 = vmatprep.subr.bf16.mxu0 0
        %2003 = vmatpush1.bf16.msra.mxu0 %v1873
        %2004 = vmatprep.subr.bf16.mxu0 0
        %2005 = vmatpush1.bf16.msra.mxu0 %v1874
        %2006 = vmatprep.subr.bf16.mxu0 0
        %2007 = vmatpush1.bf16.msra.mxu0 %v1875
        %2008 = vmatprep.subr.bf16.mxu0 0
        %2009 = vmatpush1.bf16.msra.mxu0 %v1876
        %2010 = vmatprep.subr.bf16.mxu0 0
        %2011 = vmatpush1.bf16.msra.mxu0 %v1877
        %2012 = vmatprep.subr.bf16.mxu0 0
        %2013 = vmatpush1.bf16.msra.mxu0 %v1878
        %2014 = vmatprep.subr.bf16.mxu0 0
        %2015 = vmatpush1.bf16.msra.mxu0 %v1879
        %2016 = vmatprep.mubr.bf16.mxu0 %v1530
        %2017 = vmatmul.mubr.bf16.gmra.mrb[0].mxu0 %v1466
        %v2018 = vpop.f32.mrb[0].mxu0
        %v2019 = vadd.f32 0.0, %v2018
        %v2020 = vpop.f32.mrb[0].mxu0
        %v2021 = vpop.f32.mrb[0].mxu0
        %v2022 = vadd.f32 0.0, %v2021
        %v2023 = vpop.f32.mrb[0].mxu0
        %2024 = vmatprep.mubr.bf16.mxu0 %v1534
        %2025 = vmatmul.mubr.bf16.gmra.mrb[0].mxu0 %v1470
        %v2026 = vpop.f32.mrb[0].mxu0
        %v2027 = vadd.f32 0.0, %v2026
        %v2028 = vpop.f32.mrb[0].mxu0
        %v2029 = vpop.f32.mrb[0].mxu0
        %v2030 = vadd.f32 0.0, %v2029
        %v2031 = vpop.f32.mrb[0].mxu0
        %2032 = vmatprep.mubr.bf16.mxu0 %v1538
        %2033 = vmatmul.mubr.bf16.gmra.mrb[0].mxu0 %v1474
        %v2034 = vpop.f32.mrb[0].mxu0
        %v2035 = vadd.f32 0.0, %v2034
        %v2036 = vpop.f32.mrb[0].mxu0
        %v2037 = vpop.f32.mrb[0].mxu0
        %v2038 = vadd.f32 0.0, %v2037
        %v2039 = vpop.f32.mrb[0].mxu0
        %2040 = vmatprep.mubr.bf16.mxu0 %v1542
        %2041 = vmatmul.mubr.bf16.gmra.mrb[0].mxu0 %v1478
        %v2042 = vpop.f32.mrb[0].mxu0
        %v2043 = vadd.f32 0.0, %v2042
        %v2044 = vpop.f32.mrb[0].mxu0
        %v2045 = vpop.f32.mrb[0].mxu0
        %v2046 = vadd.f32 0.0, %v2045
        %v2047 = vpop.f32.mrb[0].mxu0
        %2048 = vmatprep.mubr.bf16.mxu0 %v1546
        %2049 = vmatmul.mubr.bf16.gmra.mrb[0].mxu0 %v1482
        %v2050 = vpop.f32.mrb[0].mxu0
        %v2051 = vadd.f32 0.0, %v2050
        %v2052 = vpop.f32.mrb[0].mxu0
        %v2053 = vpop.f32.mrb[0].mxu0
        %v2054 = vadd.f32 0.0, %v2053
        %v2055 = vpop.f32.mrb[0].mxu0
        %2056 = vmatprep.mubr.bf16.mxu0 %v1550
        %2057 = vmatmul.mubr.bf16.gmra.mrb[0].mxu0 %v1486
        %v2058 = vpop.f32.mrb[0].mxu0
        %v2059 = vadd.f32 0.0, %v2058
        %v2060 = vpop.f32.mrb[0].mxu0
        %v2061 = vpop.f32.mrb[0].mxu0
        %v2062 = vadd.f32 0.0, %v2061
        %v2063 = vpop.f32.mrb[0].mxu0
        %2064 = vmatprep.mubr.bf16.mxu0 %v1554
        %2065 = vmatmul.mubr.bf16.gmra.mrb[0].mxu0 %v1490
        %v2066 = vpop.f32.mrb[0].mxu0
        %v2067 = vadd.f32 0.0, %v2066
        %v2068 = vpop.f32.mrb[0].mxu0
        %v2069 = vpop.f32.mrb[0].mxu0
        %v2070 = vadd.f32 0.0, %v2069
        %v2071 = vpop.f32.mrb[0].mxu0
        %2072 = vmatprep.mubr.bf16.mxu0 %v1558
        %2073 = vmatmul.mubr.bf16.gmra.mrb[0].mxu0 %v1494
        %v2074 = vpop.f32.mrb[0].mxu0
        %v2075 = vadd.f32 0.0, %v2074
        %v2076 = vpop.f32.mrb[0].mxu0
        %v2077 = vpop.f32.mrb[0].mxu0
        %v2078 = vadd.f32 0.0, %v2077
        %v2079 = vpop.f32.mrb[0].mxu0
        %2080 = vmatprep.mubr.bf16.mxu0 %v1562
        %2081 = vmatmul.mubr.bf16.gmra.mrb[0].mxu0 %v1498
        %v2082 = vpop.f32.mrb[0].mxu0
        %v2083 = vadd.f32 0.0, %v2082
        %v2084 = vpop.f32.mrb[0].mxu0
        %v2085 = vpop.f32.mrb[0].mxu0
        %v2086 = vadd.f32 0.0, %v2085
        %v2087 = vpop.f32.mrb[0].mxu0
        %2088 = vmatprep.mubr.bf16.mxu0 %v1566
        %2089 = vmatmul.mubr.bf16.gmra.mrb[0].mxu0 %v1502
        %v2090 = vpop.f32.mrb[0].mxu0
        %v2091 = vadd.f32 0.0, %v2090
        %v2092 = vpop.f32.mrb[0].mxu0
        %v2093 = vpop.f32.mrb[0].mxu0
        %v2094 = vadd.f32 0.0, %v2093
        %v2095 = vpop.f32.mrb[0].mxu0
        %2096 = vmatprep.mubr.bf16.mxu0 %v1570
        %2097 = vmatmul.mubr.bf16.gmra.mrb[0].mxu0 %v1506
        %v2098 = vpop.f32.mrb[0].mxu0
        %v2099 = vadd.f32 0.0, %v2098
        %v2100 = vpop.f32.mrb[0].mxu0
        %v2101 = vpop.f32.mrb[0].mxu0
        %v2102 = vadd.f32 0.0, %v2101
        %v2103 = vpop.f32.mrb[0].mxu0
        %2104 = vmatprep.mubr.bf16.mxu0 %v1574
        %2105 = vmatmul.mubr.bf16.gmra.mrb[0].mxu0 %v1510
        %v2106 = vpop.f32.mrb[0].mxu0
        %v2107 = vadd.f32 0.0, %v2106
        %v2108 = vpop.f32.mrb[0].mxu0
        %v2109 = vpop.f32.mrb[0].mxu0
        %v2110 = vadd.f32 0.0, %v2109
        %v2111 = vpop.f32.mrb[0].mxu0
        %2112 = vmatprep.mubr.bf16.mxu0 %v1578
        %2113 = vmatmul.mubr.bf16.gmra.mrb[0].mxu0 %v1514
        %v2114 = vpop.f32.mrb[0].mxu0
        %v2115 = vadd.f32 0.0, %v2114
        %v2116 = vpop.f32.mrb[0].mxu0
        %v2117 = vpop.f32.mrb[0].mxu0
        %v2118 = vadd.f32 0.0, %v2117
        %v2119 = vpop.f32.mrb[0].mxu0
        %2120 = vmatprep.mubr.bf16.mxu0 %v1582
        %2121 = vmatmul.mubr.bf16.gmra.mrb[0].mxu0 %v1518
        %v2122 = vpop.f32.mrb[0].mxu0
        %v2123 = vadd.f32 0.0, %v2122
        %v2124 = vpop.f32.mrb[0].mxu0
        %v2125 = vpop.f32.mrb[0].mxu0
        %v2126 = vadd.f32 0.0, %v2125
        %v2127 = vpop.f32.mrb[0].mxu0
        %2128 = vmatprep.mubr.bf16.mxu0 %v1586
        %2129 = vmatmul.mubr.bf16.gmra.mrb[0].mxu0 %v1522
        %v2130 = vpop.f32.mrb[0].mxu0
        %v2131 = vadd.f32 0.0, %v2130
        %v2132 = vpop.f32.mrb[0].mxu0
        %v2133 = vpop.f32.mrb[0].mxu0
        %v2134 = vadd.f32 0.0, %v2133
        %v2135 = vpop.f32.mrb[0].mxu0
        %2136 = vmatprep.mubr.bf16.mxu0 %v1590
        %2137 = vmatmul.mubr.bf16.gmra.mrb[0].mxu0 %v1526
        %v2138 = vpop.f32.mrb[0].mxu0
        %v2139 = vadd.f32 0.0, %v2138
        %v2140 = vpop.f32.mrb[0].mxu0
        %v2141 = vpop.f32.mrb[0].mxu0
        %v2142 = vadd.f32 0.0, %v2141
        %v2143 = vpop.f32.mrb[0].mxu0
        %2144 = vdwg.mxu0
        %2145 = vmatprep.subr.bf16.mxu0 0
        %2146 = vmatpush1.bf16.msra.mxu0 %v1880
        %2147 = vmatprep.subr.bf16.mxu0 0
        %2148 = vmatpush1.bf16.msra.mxu0 %v1881
        %2149 = vmatprep.subr.bf16.mxu0 0
        %2150 = vmatpush1.bf16.msra.mxu0 %v1882
        %2151 = vmatprep.subr.bf16.mxu0 0
        %2152 = vmatpush1.bf16.msra.mxu0 %v1883
        %2153 = vmatprep.subr.bf16.mxu0 0
        %2154 = vmatpush1.bf16.msra.mxu0 %v1884
        %2155 = vmatprep.subr.bf16.mxu0 0
        %2156 = vmatpush1.bf16.msra.mxu0 %v1885
        %2157 = vmatprep.subr.bf16.mxu0 0
        %2158 = vmatpush1.bf16.msra.mxu0 %v1886
        %2159 = vmatprep.subr.bf16.mxu0 0
        %2160 = vmatpush1.bf16.msra.mxu0 %v1887
        %2161 = vmatprep.subr.bf16.mxu0 0
        %2162 = vmatpush1.bf16.msra.mxu0 %v1888
        %2163 = vmatprep.subr.bf16.mxu0 0
        %2164 = vmatpush1.bf16.msra.mxu0 %v1889
        %2165 = vmatprep.subr.bf16.mxu0 0
        %2166 = vmatpush1.bf16.msra.mxu0 %v1890
        %2167 = vmatprep.subr.bf16.mxu0 0
        %2168 = vmatpush1.bf16.msra.mxu0 %v1891
        %2169 = vmatprep.subr.bf16.mxu0 0
        %2170 = vmatpush1.bf16.msra.mxu0 %v1892
        %2171 = vmatprep.subr.bf16.mxu0 0
        %2172 = vmatpush1.bf16.msra.mxu0 %v1893
        %2173 = vmatprep.subr.bf16.mxu0 0
        %2174 = vmatpush1.bf16.msra.mxu0 %v1894
        %2175 = vmatprep.subr.bf16.mxu0 0
        %2176 = vmatpush1.bf16.msra.mxu0 %v1895
        %2177 = vmatprep.mubr.bf16.mxu0 %v1658
        %2178 = vmatmul.mubr.bf16.gmra.mrb[0].mxu0 %v1594
        %v2179 = vpop.f32.mrb[0].mxu0
        %v2180 = vadd.f32 %v2019, %v2179
        %v2181 = vpop.f32.mrb[0].mxu0
        %v2182 = vpop.f32.mrb[0].mxu0
        %v2183 = vadd.f32 %v2022, %v2182
        %v2184 = vpop.f32.mrb[0].mxu0
        %2185 = vmatprep.mubr.bf16.mxu0 %v1662
        %2186 = vmatmul.mubr.bf16.gmra.mrb[0].mxu0 %v1598
        %v2187 = vpop.f32.mrb[0].mxu0
        %v2188 = vadd.f32 %v2027, %v2187
        %v2189 = vpop.f32.mrb[0].mxu0
        %v2190 = vpop.f32.mrb[0].mxu0
        %v2191 = vadd.f32 %v2030, %v2190
        %v2192 = vpop.f32.mrb[0].mxu0
        %2193 = vmatprep.mubr.bf16.mxu0 %v1666
        %2194 = vmatmul.mubr.bf16.gmra.mrb[0].mxu0 %v1602
        %v2195 = vpop.f32.mrb[0].mxu0
        %v2196 = vadd.f32 %v2035, %v2195
        %v2197 = vpop.f32.mrb[0].mxu0
        %v2198 = vpop.f32.mrb[0].mxu0
        %v2199 = vadd.f32 %v2038, %v2198
        %v2200 = vpop.f32.mrb[0].mxu0
        %2201 = vmatprep.mubr.bf16.mxu0 %v1670
        %2202 = vmatmul.mubr.bf16.gmra.mrb[0].mxu0 %v1606
        %v2203 = vpop.f32.mrb[0].mxu0
        %v2204 = vadd.f32 %v2043, %v2203
        %v2205 = vpop.f32.mrb[0].mxu0
        %v2206 = vpop.f32.mrb[0].mxu0
        %v2207 = vadd.f32 %v2046, %v2206
        %v2208 = vpop.f32.mrb[0].mxu0
        %2209 = vmatprep.mubr.bf16.mxu0 %v1674
        %2210 = vmatmul.mubr.bf16.gmra.mrb[0].mxu0 %v1610
        %v2211 = vpop.f32.mrb[0].mxu0
        %v2212 = vadd.f32 %v2051, %v2211
        %v2213 = vpop.f32.mrb[0].mxu0
        %v2214 = vpop.f32.mrb[0].mxu0
        %v2215 = vadd.f32 %v2054, %v2214
        %v2216 = vpop.f32.mrb[0].mxu0
        %2217 = vmatprep.mubr.bf16.mxu0 %v1678
        %2218 = vmatmul.mubr.bf16.gmra.mrb[0].mxu0 %v1614
        %v2219 = vpop.f32.mrb[0].mxu0
        %v2220 = vadd.f32 %v2059, %v2219
        %v2221 = vpop.f32.mrb[0].mxu0
        %v2222 = vpop.f32.mrb[0].mxu0
        %v2223 = vadd.f32 %v2062, %v2222
        %v2224 = vpop.f32.mrb[0].mxu0
        %2225 = vmatprep.mubr.bf16.mxu0 %v1682
        %2226 = vmatmul.mubr.bf16.gmra.mrb[0].mxu0 %v1618
        %v2227 = vpop.f32.mrb[0].mxu0
        %v2228 = vadd.f32 %v2067, %v2227
        %v2229 = vpop.f32.mrb[0].mxu0
        %v2230 = vpop.f32.mrb[0].mxu0
        %v2231 = vadd.f32 %v2070, %v2230
        %v2232 = vpop.f32.mrb[0].mxu0
        %2233 = vmatprep.mubr.bf16.mxu0 %v1686
        %2234 = vmatmul.mubr.bf16.gmra.mrb[0].mxu0 %v1622
        %v2235 = vpop.f32.mrb[0].mxu0
        %v2236 = vadd.f32 %v2075, %v2235
        %v2237 = vpop.f32.mrb[0].mxu0
        %v2238 = vpop.f32.mrb[0].mxu0
        %v2239 = vadd.f32 %v2078, %v2238
        %v2240 = vpop.f32.mrb[0].mxu0
        %2241 = vmatprep.mubr.bf16.mxu0 %v1690
        %2242 = vmatmul.mubr.bf16.gmra.mrb[0].mxu0 %v1626
        %v2243 = vpop.f32.mrb[0].mxu0
        %v2244 = vadd.f32 %v2083, %v2243
        %v2245 = vpop.f32.mrb[0].mxu0
        %v2246 = vpop.f32.mrb[0].mxu0
        %v2247 = vadd.f32 %v2086, %v2246
        %v2248 = vpop.f32.mrb[0].mxu0
        %2249 = vmatprep.mubr.bf16.mxu0 %v1694
        %2250 = vmatmul.mubr.bf16.gmra.mrb[0].mxu0 %v1630
        %v2251 = vpop.f32.mrb[0].mxu0
        %v2252 = vadd.f32 %v2091, %v2251
        %v2253 = vpop.f32.mrb[0].mxu0
        %v2254 = vpop.f32.mrb[0].mxu0
        %v2255 = vadd.f32 %v2094, %v2254
        %v2256 = vpop.f32.mrb[0].mxu0
        %2257 = vmatprep.mubr.bf16.mxu0 %v1698
        %2258 = vmatmul.mubr.bf16.gmra.mrb[0].mxu0 %v1634
        %v2259 = vpop.f32.mrb[0].mxu0
        %v2260 = vadd.f32 %v2099, %v2259
        %v2261 = vpop.f32.mrb[0].mxu0
        %v2262 = vpop.f32.mrb[0].mxu0
        %v2263 = vadd.f32 %v2102, %v2262
        %v2264 = vpop.f32.mrb[0].mxu0
        %2265 = vmatprep.mubr.bf16.mxu0 %v1702
        %2266 = vmatmul.mubr.bf16.gmra.mrb[0].mxu0 %v1638
        %v2267 = vpop.f32.mrb[0].mxu0
        %v2268 = vadd.f32 %v2107, %v2267
        %v2269 = vpop.f32.mrb[0].mxu0
        %v2270 = vpop.f32.mrb[0].mxu0
        %v2271 = vadd.f32 %v2110, %v2270
        %v2272 = vpop.f32.mrb[0].mxu0
        %2273 = vmatprep.mubr.bf16.mxu0 %v1706
        %2274 = vmatmul.mubr.bf16.gmra.mrb[0].mxu0 %v1642
        %v2275 = vpop.f32.mrb[0].mxu0
        %v2276 = vadd.f32 %v2115, %v2275
        %v2277 = vpop.f32.mrb[0].mxu0
        %v2278 = vpop.f32.mrb[0].mxu0
        %v2279 = vadd.f32 %v2118, %v2278
        %v2280 = vpop.f32.mrb[0].mxu0
        %2281 = vmatprep.mubr.bf16.mxu0 %v1710
        %2282 = vmatmul.mubr.bf16.gmra.mrb[0].mxu0 %v1646
        %v2283 = vpop.f32.mrb[0].mxu0
        %v2284 = vadd.f32 %v2123, %v2283
        %v2285 = vpop.f32.mrb[0].mxu0
        %v2286 = vpop.f32.mrb[0].mxu0
        %v2287 = vadd.f32 %v2126, %v2286
        %v2288 = vpop.f32.mrb[0].mxu0
        %2289 = vmatprep.mubr.bf16.mxu0 %v1714
        %2290 = vmatmul.mubr.bf16.gmra.mrb[0].mxu0 %v1650
        %v2291 = vpop.f32.mrb[0].mxu0
        %v2292 = vadd.f32 %v2131, %v2291
        %v2293 = vpop.f32.mrb[0].mxu0
        %v2294 = vpop.f32.mrb[0].mxu0
        %v2295 = vadd.f32 %v2134, %v2294
        %v2296 = vpop.f32.mrb[0].mxu0
        %2297 = vmatprep.mubr.bf16.mxu0 %v1718
        %2298 = vmatmul.mubr.bf16.gmra.mrb[0].mxu0 %v1654
        %v2299 = vpop.f32.mrb[0].mxu0
        %v2300 = vadd.f32 %v2139, %v2299
        %v2301 = vpop.f32.mrb[0].mxu0
        %v2302 = vpop.f32.mrb[0].mxu0
        %v2303 = vadd.f32 %v2142, %v2302
        %v2304 = vpop.f32.mrb[0].mxu0
        %2305 = vdwg.mxu0
        %2306 = vmatprep.subr.bf16.mxu0 0
        %2307 = vmatpush1.bf16.msra.mxu0 %v1896
        %2308 = vmatprep.subr.bf16.mxu0 0
        %2309 = vmatpush1.bf16.msra.mxu0 %v1897
        %2310 = vmatprep.subr.bf16.mxu0 0
        %2311 = vmatpush1.bf16.msra.mxu0 %v1898
        %2312 = vmatprep.subr.bf16.mxu0 0
        %2313 = vmatpush1.bf16.msra.mxu0 %v1899
        %2314 = vmatprep.subr.bf16.mxu0 0
        %2315 = vmatpush1.bf16.msra.mxu0 0
        %2316 = vmatprep.subr.bf16.mxu0 0
        %2317 = vmatpush1.bf16.msra.mxu0 0
        %2318 = vmatprep.subr.bf16.mxu0 0
        %2319 = vmatpush1.bf16.msra.mxu0 0
        %2320 = vmatprep.subr.bf16.mxu0 0
        %2321 = vmatpush1.bf16.msra.mxu0 0
        %2322 = vmatprep.subr.bf16.mxu0 0
        %2323 = vmatpush1.bf16.msra.mxu0 0
        %2324 = vmatprep.subr.bf16.mxu0 0
        %2325 = vmatpush1.bf16.msra.mxu0 0
        %2326 = vmatprep.subr.bf16.mxu0 0
        %2327 = vmatpush1.bf16.msra.mxu0 0
        %2328 = vmatprep.subr.bf16.mxu0 0
        %2329 = vmatpush1.bf16.msra.mxu0 0
        %2330 = vmatprep.subr.bf16.mxu0 0
        %2331 = vmatpush1.bf16.msra.mxu0 0
        %2332 = vmatprep.subr.bf16.mxu0 0
        %2333 = vmatpush1.bf16.msra.mxu0 0
        %2334 = vmatprep.subr.bf16.mxu0 0
        %2335 = vmatpush1.bf16.msra.mxu0 0
        %2336 = vmatprep.subr.bf16.mxu0 0
        %2337 = vmatpush1.bf16.msra.mxu0 0
        %2338 = vmatprep.mubr.bf16.mxu0 0
        %2339 = vmatmul.mubr.bf16.gmra.mrb[0].mxu0 %v1937
        %v2340 = vpop.f32.mrb[0].mxu0
        %v2341 = vadd.f32 %v2180, %v2340
        %v2342 = vpop.f32.mrb[0].mxu0
        %v2343 = vpop.f32.mrb[0].mxu0
        %v2344 = vadd.f32 %v2183, %v2343
        %v2345 = vpop.f32.mrb[0].mxu0
        %2346 = vmatprep.mubr.bf16.mxu0 0
        %2347 = vmatmul.mubr.bf16.gmra.mrb[0].mxu0 %v1940
        %v2348 = vpop.f32.mrb[0].mxu0
        %v2349 = vadd.f32 %v2188, %v2348
        %v2350 = vpop.f32.mrb[0].mxu0
        %v2351 = vpop.f32.mrb[0].mxu0
        %v2352 = vadd.f32 %v2191, %v2351
        %v2353 = vpop.f32.mrb[0].mxu0
        %2354 = vmatprep.mubr.bf16.mxu0 0
        %2355 = vmatmul.mubr.bf16.gmra.mrb[0].mxu0 %v1943
        %v2356 = vpop.f32.mrb[0].mxu0
        %v2357 = vadd.f32 %v2196, %v2356
        %v2358 = vpop.f32.mrb[0].mxu0
        %v2359 = vpop.f32.mrb[0].mxu0
        %v2360 = vadd.f32 %v2199, %v2359
        %v2361 = vpop.f32.mrb[0].mxu0
        %2362 = vmatprep.mubr.bf16.mxu0 0
        %2363 = vmatmul.mubr.bf16.gmra.mrb[0].mxu0 %v1946
        %v2364 = vpop.f32.mrb[0].mxu0
        %v2365 = vadd.f32 %v2204, %v2364
        %v2366 = vpop.f32.mrb[0].mxu0
        %v2367 = vpop.f32.mrb[0].mxu0
        %v2368 = vadd.f32 %v2207, %v2367
        %v2369 = vpop.f32.mrb[0].mxu0
        %2370 = vmatprep.mubr.bf16.mxu0 0
        %2371 = vmatmul.mubr.bf16.gmra.mrb[0].mxu0 %v1949
        %v2372 = vpop.f32.mrb[0].mxu0
        %v2373 = vadd.f32 %v2212, %v2372
        %v2374 = vpop.f32.mrb[0].mxu0
        %v2375 = vpop.f32.mrb[0].mxu0
        %v2376 = vadd.f32 %v2215, %v2375
        %v2377 = vpop.f32.mrb[0].mxu0
        %2378 = vmatprep.mubr.bf16.mxu0 0
        %2379 = vmatmul.mubr.bf16.gmra.mrb[0].mxu0 %v1952
        %v2380 = vpop.f32.mrb[0].mxu0
        %v2381 = vadd.f32 %v2220, %v2380
        %v2382 = vpop.f32.mrb[0].mxu0
        %v2383 = vpop.f32.mrb[0].mxu0
        %v2384 = vadd.f32 %v2223, %v2383
        %v2385 = vpop.f32.mrb[0].mxu0
        %2386 = vmatprep.mubr.bf16.mxu0 0
        %2387 = vmatmul.mubr.bf16.gmra.mrb[0].mxu0 %v1955
        %v2388 = vpop.f32.mrb[0].mxu0
        %v2389 = vadd.f32 %v2228, %v2388
        %v2390 = vpop.f32.mrb[0].mxu0
        %v2391 = vpop.f32.mrb[0].mxu0
        %v2392 = vadd.f32 %v2231, %v2391
        %v2393 = vpop.f32.mrb[0].mxu0
        %2394 = vmatprep.mubr.bf16.mxu0 0
        %2395 = vmatmul.mubr.bf16.gmra.mrb[0].mxu0 %v1958
        %v2396 = vpop.f32.mrb[0].mxu0
        %v2397 = vadd.f32 %v2236, %v2396
        %v2398 = vpop.f32.mrb[0].mxu0
        %v2399 = vpop.f32.mrb[0].mxu0
        %v2400 = vadd.f32 %v2239, %v2399
        %v2401 = vpop.f32.mrb[0].mxu0
        %2402 = vmatprep.mubr.bf16.mxu0 0
        %2403 = vmatmul.mubr.bf16.gmra.mrb[0].mxu0 %v1961
        %v2404 = vpop.f32.mrb[0].mxu0
        %v2405 = vadd.f32 %v2244, %v2404
        %v2406 = vpop.f32.mrb[0].mxu0
        %v2407 = vpop.f32.mrb[0].mxu0
        %v2408 = vadd.f32 %v2247, %v2407
        %v2409 = vpop.f32.mrb[0].mxu0
        %2410 = vmatprep.mubr.bf16.mxu0 0
        %2411 = vmatmul.mubr.bf16.gmra.mrb[0].mxu0 %v1964
        %v2412 = vpop.f32.mrb[0].mxu0
        %v2413 = vadd.f32 %v2252, %v2412
        %v2414 = vpop.f32.mrb[0].mxu0
        %v2415 = vpop.f32.mrb[0].mxu0
        %v2416 = vadd.f32 %v2255, %v2415
        %v2417 = vpop.f32.mrb[0].mxu0
        %2418 = vmatprep.mubr.bf16.mxu0 0
        %2419 = vmatmul.mubr.bf16.gmra.mrb[0].mxu0 %v1967
        %v2420 = vpop.f32.mrb[0].mxu0
        %v2421 = vadd.f32 %v2260, %v2420
        %v2422 = vpop.f32.mrb[0].mxu0
        %v2423 = vpop.f32.mrb[0].mxu0
        %v2424 = vadd.f32 %v2263, %v2423
        %v2425 = vpop.f32.mrb[0].mxu0
        %2426 = vmatprep.mubr.bf16.mxu0 0
        %2427 = vmatmul.mubr.bf16.gmra.mrb[0].mxu0 %v1970
        %v2428 = vpop.f32.mrb[0].mxu0
        %v2429 = vadd.f32 %v2268, %v2428
        %v2430 = vpop.f32.mrb[0].mxu0
        %v2431 = vpop.f32.mrb[0].mxu0
        %v2432 = vadd.f32 %v2271, %v2431
        %v2433 = vpop.f32.mrb[0].mxu0
        %2434 = vmatprep.mubr.bf16.mxu0 0
        %2435 = vmatmul.mubr.bf16.gmra.mrb[0].mxu0 %v1973
        %v2436 = vpop.f32.mrb[0].mxu0
        %v2437 = vadd.f32 %v2276, %v2436
        %v2438 = vpop.f32.mrb[0].mxu0
        %v2439 = vpop.f32.mrb[0].mxu0
        %v2440 = vadd.f32 %v2279, %v2439
        %v2441 = vpop.f32.mrb[0].mxu0
        %2442 = vmatprep.mubr.bf16.mxu0 0
        %2443 = vmatmul.mubr.bf16.gmra.mrb[0].mxu0 %v1976
        %v2444 = vpop.f32.mrb[0].mxu0
        %v2445 = vadd.f32 %v2284, %v2444
        %v2446 = vpop.f32.mrb[0].mxu0
        %v2447 = vpop.f32.mrb[0].mxu0
        %v2448 = vadd.f32 %v2287, %v2447
        %v2449 = vpop.f32.mrb[0].mxu0
        %2450 = vmatprep.mubr.bf16.mxu0 0
        %2451 = vmatmul.mubr.bf16.gmra.mrb[0].mxu0 %v1979
        %v2452 = vpop.f32.mrb[0].mxu0
        %v2453 = vadd.f32 %v2292, %v2452
        %v2454 = vpop.f32.mrb[0].mxu0
        %v2455 = vpop.f32.mrb[0].mxu0
        %v2456 = vadd.f32 %v2295, %v2455
        %v2457 = vpop.f32.mrb[0].mxu0
        %2458 = vmatprep.mubr.bf16.mxu0 0
        %2459 = vmatmul.mubr.bf16.gmra.mrb[0].mxu0 %v1982
        %v2460 = vpop.f32.mrb[0].mxu0
        %v2461 = vadd.f32 %v2300, %v2460
        %v2462 = vpop.f32.mrb[0].mxu0
        %v2463 = vpop.f32.mrb[0].mxu0
        %v2464 = vadd.f32 %v2303, %v2463
        %v2465 = vpop.f32.mrb[0].mxu0
        %2466 = vdwg.mxu0
        %v2467 = vld [vmem:[%s3] sm:$0x1]
        %v2469 = vlaneseq
        %v2470 = vshrl.u32 %v2469, 7
        %v2471 = vsub.s32 0, %v2470
        %v2472 = vrot.slane %v2467, %v2471
        %v2474 = vadd.f32 %v2341, %v2472
        %v2475 = vadd.f32 %v2344, %v2472
        %v2476 = vadd.f32 %v2349, %v2472
        %v2477 = vadd.f32 %v2352, %v2472
        %v2478 = vadd.f32 %v2357, %v2472
        %v2479 = vadd.f32 %v2360, %v2472
        %v2480 = vadd.f32 %v2365, %v2472
        %v2481 = vadd.f32 %v2368, %v2472
        %v2482 = vadd.f32 %v2373, %v2472
        %v2483 = vadd.f32 %v2376, %v2472
        %v2484 = vadd.f32 %v2381, %v2472
        %v2485 = vadd.f32 %v2384, %v2472
        %v2486 = vadd.f32 %v2389, %v2472
        %v2487 = vadd.f32 %v2392, %v2472
        %v2488 = vadd.f32 %v2397, %v2472
        %v2489 = vadd.f32 %v2400, %v2472
        %v2490 = vadd.f32 %v2405, %v2472
        %v2491 = vadd.f32 %v2408, %v2472
        %v2492 = vadd.f32 %v2413, %v2472
        %v2493 = vadd.f32 %v2416, %v2472
        %v2494 = vadd.f32 %v2421, %v2472
        %v2495 = vadd.f32 %v2424, %v2472
        %v2496 = vadd.f32 %v2429, %v2472
        %v2497 = vadd.f32 %v2432, %v2472
        %v2498 = vadd.f32 %v2437, %v2472
        %v2499 = vadd.f32 %v2440, %v2472
        %v2500 = vadd.f32 %v2445, %v2472
        %v2501 = vadd.f32 %v2448, %v2472
        %v2502 = vadd.f32 %v2453, %v2472
        %v2503 = vadd.f32 %v2456, %v2472
        %v2504 = vadd.f32 %v2461, %v2472
        %v2505 = vadd.f32 %v2464, %v2472
        %v2506 = vsel %vm532, 1, 0
        %v2507 = vsel %vm533, 1, 0
        %v2508 = vsel %vm534, 1, 0
        %v2509 = vsel %vm535, 1, 0
        %vm2510 = vcmp.eq.s32.totalorder %v2506, 1
        %vm2511 = vcmp.eq.s32.totalorder %v2507, 1
        %vm2512 = vcmp.eq.s32.totalorder %v2508, 1
        %vm2513 = vcmp.eq.s32.totalorder %v2509, 1
        %v2514 = vsel %vm2510, %v2474, 0.0
        %v2515 = vsel %vm2511, %v2475, 0.0
        %v2516 = vsel %vm2512, %v2476, 0.0
        %v2517 = vsel %vm2513, %v2477, 0.0
        %v2518 = vsel %vm2510, %v2478, 0.0
        %v2519 = vsel %vm2511, %v2479, 0.0
        %v2520 = vsel %vm2512, %v2480, 0.0
        %v2521 = vsel %vm2513, %v2481, 0.0
        %v2522 = vsel %vm2510, %v2482, 0.0
        %v2523 = vsel %vm2511, %v2483, 0.0
        %v2524 = vsel %vm2512, %v2484, 0.0
        %v2525 = vsel %vm2513, %v2485, 0.0
        %v2526 = vsel %vm2510, %v2486, 0.0
        %v2527 = vsel %vm2511, %v2487, 0.0
        %v2528 = vsel %vm2512, %v2488, 0.0
        %v2529 = vsel %vm2513, %v2489, 0.0
        %v2530 = vsel %vm2510, %v2490, 0.0
        %v2531 = vsel %vm2511, %v2491, 0.0
        %v2532 = vsel %vm2512, %v2492, 0.0
        %v2533 = vsel %vm2513, %v2493, 0.0
        %v2534 = vsel %vm2510, %v2494, 0.0
        %v2535 = vsel %vm2511, %v2495, 0.0
        %v2536 = vsel %vm2512, %v2496, 0.0
        %v2537 = vsel %vm2513, %v2497, 0.0
        %v2538 = vsel %vm2510, %v2498, 0.0
        %v2539 = vsel %vm2511, %v2499, 0.0
        %v2540 = vsel %vm2512, %v2500, 0.0
        %v2541 = vsel %vm2513, %v2501, 0.0
        %v2542 = vsel %vm2510, %v2502, 0.0
        %v2543 = vsel %vm2511, %v2503, 0.0
        %v2544 = vsel %vm2512, %v2504, 0.0
        %v2545 = vsel %vm2513, %v2505, 0.0
        %v2546 = vtanh.pop %v2514
        %v2547 = vtanh.pop %v2515
        %v2548 = vtanh.pop %v2516
        %v2549 = vtanh.pop %v2517
        %v2550 = vtanh.pop %v2518
        %v2551 = vtanh.pop %v2519
        %v2552 = vtanh.pop %v2520
        %v2553 = vtanh.pop %v2521
        %v2554 = vtanh.pop %v2522
        %v2555 = vtanh.pop %v2523
        %v2556 = vtanh.pop %v2524
        %v2557 = vtanh.pop %v2525
        %v2558 = vtanh.pop %v2526
        %v2559 = vtanh.pop %v2527
        %v2560 = vtanh.pop %v2528
        %v2561 = vtanh.pop %v2529
        %v2562 = vtanh.pop %v2530
        %v2563 = vtanh.pop %v2531
        %v2564 = vtanh.pop %v2532
        %v2565 = vtanh.pop %v2533
        %v2566 = vtanh.pop %v2534
        %v2567 = vtanh.pop %v2535
        %v2568 = vtanh.pop %v2536
        %v2569 = vtanh.pop %v2537
        %v2570 = vtanh.pop %v2538
        %v2571 = vtanh.pop %v2539
        %v2572 = vtanh.pop %v2540
        %v2573 = vtanh.pop %v2541
        %v2574 = vtanh.pop %v2542
        %v2575 = vtanh.pop %v2543
        %v2576 = vtanh.pop %v2544
        %v2577 = vtanh.pop %v2545
        %v2578 = vld [vmem:[#allocation9] sm:$0xf]
        %v2579 = vld [vmem:[#allocation9 + $0x4] sm:$0xf]
        %v2580 = vld [vmem:[#allocation9 + $0x8] sm:$0xf]
        %v2581 = vld [vmem:[#allocation9 + $0xc] sm:$0xf]
        %v2582 = vld [vmem:[#allocation9 + $0x10] sm:$0xf]
        %v2583 = vld [vmem:[#allocation9 + $0x14] sm:$0xf]
        %v2584 = vld [vmem:[#allocation9 + $0x18] sm:$0xf]
        %v2585 = vld [vmem:[#allocation9 + $0x1c] sm:$0xf]
        %v2586 = vld [vmem:[#allocation9 + $0x20] sm:$0xf]
        %v2587 = vld [vmem:[#allocation9 + $0x24] sm:$0xf]
        %v2588 = vld [vmem:[#allocation9 + $0x28] sm:$0xf]
        %v2589 = vld [vmem:[#allocation9 + $0x2c] sm:$0xf]
        %v2590 = vld [vmem:[#allocation9 + $0x30] sm:$0xf]
        %v2591 = vld [vmem:[#allocation9 + $0x34] sm:$0xf]
        %v2592 = vld [vmem:[#allocation9 + $0x38] sm:$0xf]
        %v2593 = vld [vmem:[#allocation9 + $0x3c] sm:$0xf]
        %v2594 = vld [vmem:[#allocation9 + $0x40] sm:$0xf]
        %v2595 = vld [vmem:[#allocation9 + $0x44] sm:$0xf]
        %v2596 = vld [vmem:[#allocation9 + $0x48] sm:$0xf]
        %v2597 = vld [vmem:[#allocation9 + $0x4c] sm:$0xf]
        %v2598 = vld [vmem:[#allocation9 + $0x50] sm:$0xf]
        %v2599 = vld [vmem:[#allocation9 + $0x54] sm:$0xf]
        %v2600 = vld [vmem:[#allocation9 + $0x58] sm:$0xf]
        %v2601 = vld [vmem:[#allocation9 + $0x5c] sm:$0xf]
        %v2602 = vld [vmem:[#allocation9 + $0x60] sm:$0xf]
        %v2603 = vld [vmem:[#allocation9 + $0x64] sm:$0xf]
        %v2604 = vld [vmem:[#allocation9 + $0x68] sm:$0xf]
        %v2605 = vld [vmem:[#allocation9 + $0x6c] sm:$0xf]
        %v2606 = vld [vmem:[#allocation9 + $0x70] sm:$0xf]
        %v2607 = vld [vmem:[#allocation9 + $0x74] sm:$0xf]
        %v2608 = vld [vmem:[#allocation9 + $0x78] sm:$0xf]
        %v2609 = vld [vmem:[#allocation9 + $0x7c] sm:$0xf]
        %v2610 = vld [vmem:[#allocation9 + $0x80] sm:$0xf]
        %v2611 = vld [vmem:[#allocation9 + $0x84] sm:$0xf]
        %v2612 = vld [vmem:[#allocation9 + $0x88] sm:$0xf]
        %v2613 = vld [vmem:[#allocation9 + $0x8c] sm:$0xf]
        %v2614 = vld [vmem:[#allocation9 + $0x90] sm:$0xf]
        %v2615 = vld [vmem:[#allocation9 + $0x94] sm:$0xf]
        %v2616 = vld [vmem:[#allocation9 + $0x98] sm:$0xf]
        %v2617 = vld [vmem:[#allocation9 + $0x9c] sm:$0xf]
        %v2618 = vld [vmem:[#allocation9 + $0xa0] sm:$0xf]
        %v2619 = vld [vmem:[#allocation9 + $0xa4] sm:$0xf]
        %v2620 = vld [vmem:[#allocation9 + $0xa8] sm:$0xf]
        %v2621 = vld [vmem:[#allocation9 + $0xac] sm:$0xf]
        %v2622 = vld [vmem:[#allocation9 + $0xb0] sm:$0xf]
        %v2623 = vld [vmem:[#allocation9 + $0xb4] sm:$0xf]
        %v2624 = vld [vmem:[#allocation9 + $0xb8] sm:$0xf]
        %v2625 = vld [vmem:[#allocation9 + $0xbc] sm:$0xf]
        %v2626 = vld [vmem:[#allocation9 + $0xc0] sm:$0xf]
        %v2627 = vld [vmem:[#allocation9 + $0xc4] sm:$0xf]
        %v2628 = vld [vmem:[#allocation9 + $0xc8] sm:$0xf]
        %v2629 = vld [vmem:[#allocation9 + $0xcc] sm:$0xf]
        %v2630 = vld [vmem:[#allocation9 + $0xd0] sm:$0xf]
        %v2631 = vld [vmem:[#allocation9 + $0xd4] sm:$0xf]
        %v2632 = vld [vmem:[#allocation9 + $0xd8] sm:$0xf]
        %v2633 = vld [vmem:[#allocation9 + $0xdc] sm:$0xf]
        %v2634 = vld [vmem:[#allocation9 + $0xe0] sm:$0xf]
        %v2635 = vld [vmem:[#allocation9 + $0xe4] sm:$0xf]
        %v2636 = vld [vmem:[#allocation9 + $0xe8] sm:$0xf]
        %v2637 = vld [vmem:[#allocation9 + $0xec] sm:$0xf]
        %v2638 = vld [vmem:[#allocation9 + $0xf0] sm:$0xf]
        %v2639 = vld [vmem:[#allocation9 + $0xf4] sm:$0xf]
        %v2640 = vld [vmem:[#allocation9 + $0xf8] sm:$0xf]
        %v2641 = vld [vmem:[#allocation9 + $0xfc] sm:$0xf]
        %v2642 = vld [vmem:[#allocation9 + $0x100] sm:$0xf]
        %v2643 = vld [vmem:[#allocation9 + $0x104] sm:$0xf]
        %v2644 = vld [vmem:[#allocation9 + $0x108] sm:$0xf]
        %v2645 = vld [vmem:[#allocation9 + $0x10c] sm:$0xf]
        %v2646 = vld [vmem:[#allocation9 + $0x110] sm:$0xf]
        %v2647 = vld [vmem:[#allocation9 + $0x114] sm:$0xf]
        %v2648 = vld [vmem:[#allocation9 + $0x118] sm:$0xf]
        %v2649 = vld [vmem:[#allocation9 + $0x11c] sm:$0xf]
        %v2650 = vld [vmem:[#allocation9 + $0x120] sm:$0xf]
        %v2651 = vld [vmem:[#allocation9 + $0x124] sm:$0xf]
        %v2652 = vld [vmem:[#allocation9 + $0x128] sm:$0xf]
        %v2653 = vld [vmem:[#allocation9 + $0x12c] sm:$0xf]
        %v2654 = vld [vmem:[#allocation9 + $0x130] sm:$0xf]
        %v2655 = vld [vmem:[#allocation9 + $0x134] sm:$0xf]
        %v2656 = vld [vmem:[#allocation9 + $0x138] sm:$0xf]
        %v2657 = vld [vmem:[#allocation9 + $0x13c] sm:$0xf]
        %v2658 = vld [vmem:[#allocation9 + $0x140] sm:$0xf]
        %v2659 = vld [vmem:[#allocation9 + $0x144] sm:$0xf]
        %v2660 = vld [vmem:[#allocation9 + $0x148] sm:$0xf]
        %v2661 = vld [vmem:[#allocation9 + $0x14c] sm:$0xf]
        %v2662 = vld [vmem:[#allocation9 + $0x150] sm:$0xf]
        %v2663 = vld [vmem:[#allocation9 + $0x154] sm:$0xf]
        %v2664 = vld [vmem:[#allocation9 + $0x158] sm:$0xf]
        %v2665 = vld [vmem:[#allocation9 + $0x15c] sm:$0xf]
        %v2666 = vld [vmem:[#allocation9 + $0x160] sm:$0xf]
        %v2667 = vld [vmem:[#allocation9 + $0x164] sm:$0xf]
        %v2668 = vld [vmem:[#allocation9 + $0x168] sm:$0xf]
        %v2669 = vld [vmem:[#allocation9 + $0x16c] sm:$0xf]
        %v2670 = vld [vmem:[#allocation9 + $0x170] sm:$0xf]
        %v2671 = vld [vmem:[#allocation9 + $0x174] sm:$0xf]
        %v2672 = vld [vmem:[#allocation9 + $0x178] sm:$0xf]
        %v2673 = vld [vmem:[#allocation9 + $0x17c] sm:$0xf]
        %v2674 = vld [vmem:[#allocation9 + $0x180] sm:$0xf]
        %v2675 = vld [vmem:[#allocation9 + $0x184] sm:$0xf]
        %v2676 = vld [vmem:[#allocation9 + $0x188] sm:$0xf]
        %v2677 = vld [vmem:[#allocation9 + $0x18c] sm:$0xf]
        %v2678 = vld [vmem:[#allocation9 + $0x190] sm:$0xf]
        %v2679 = vld [vmem:[#allocation9 + $0x194] sm:$0xf]
        %v2680 = vld [vmem:[#allocation9 + $0x198] sm:$0xf]
        %v2681 = vld [vmem:[#allocation9 + $0x19c] sm:$0xf]
        %v2682 = vld [vmem:[#allocation9 + $0x1a0] sm:$0xf]
        %v2683 = vld [vmem:[#allocation9 + $0x1a4] sm:$0xf]
        %v2684 = vld [vmem:[#allocation9 + $0x1a8] sm:$0xf]
        %v2685 = vld [vmem:[#allocation9 + $0x1ac] sm:$0xf]
        %v2686 = vld [vmem:[#allocation9 + $0x1b0] sm:$0xf]
        %v2687 = vld [vmem:[#allocation9 + $0x1b4] sm:$0xf]
        %v2688 = vld [vmem:[#allocation9 + $0x1b8] sm:$0xf]
        %v2689 = vld [vmem:[#allocation9 + $0x1bc] sm:$0xf]
        %v2690 = vld [vmem:[#allocation9 + $0x1c0] sm:$0xf]
        %v2691 = vld [vmem:[#allocation9 + $0x1c4] sm:$0xf]
        %v2692 = vld [vmem:[#allocation9 + $0x1c8] sm:$0xf]
        %v2693 = vld [vmem:[#allocation9 + $0x1cc] sm:$0xf]
        %v2694 = vld [vmem:[#allocation9 + $0x1d0] sm:$0xf]
        %v2695 = vld [vmem:[#allocation9 + $0x1d4] sm:$0xf]
        %v2696 = vld [vmem:[#allocation9 + $0x1d8] sm:$0xf]
        %v2697 = vld [vmem:[#allocation9 + $0x1dc] sm:$0xf]
        %v2698 = vld [vmem:[#allocation9 + $0x1e0] sm:$0xf]
        %v2699 = vld [vmem:[#allocation9 + $0x1e4] sm:$0xf]
        %v2700 = vld [vmem:[#allocation9 + $0x1e8] sm:$0xf]
        %v2701 = vld [vmem:[#allocation9 + $0x1ec] sm:$0xf]
        %v2702 = vld [vmem:[#allocation9 + $0x1f0] sm:$0xf]
        %v2703 = vld [vmem:[#allocation9 + $0x1f4] sm:$0xf]
        %v2704 = vld [vmem:[#allocation9 + $0x1f8] sm:$0xf]
        %v2705 = vld [vmem:[#allocation9 + $0x1fc] sm:$0xf]
        %v2706 = vld [vmem:[#allocation9 + $0x200] sm:$0xf]
        %v2707 = vld [vmem:[#allocation9 + $0x204] sm:$0xf]
        %v2708 = vld [vmem:[#allocation9 + $0x208] sm:$0xf]
        %v2709 = vld [vmem:[#allocation9 + $0x20c] sm:$0xf]
        %v2710 = vld [vmem:[#allocation9 + $0x210] sm:$0xf]
        %v2711 = vld [vmem:[#allocation9 + $0x214] sm:$0xf]
        %v2712 = vld [vmem:[#allocation9 + $0x218] sm:$0xf]
        %v2713 = vld [vmem:[#allocation9 + $0x21c] sm:$0xf]
        %v2714 = vld [vmem:[#allocation9 + $0x220] sm:$0xf]
        %v2715 = vld [vmem:[#allocation9 + $0x224] sm:$0xf]
        %v2716 = vld [vmem:[#allocation9 + $0x228] sm:$0xf]
        %v2717 = vld [vmem:[#allocation9 + $0x22c] sm:$0xf]
        %v2718 = vld [vmem:[#allocation9 + $0x230] sm:$0xf]
        %v2719 = vld [vmem:[#allocation9 + $0x234] sm:$0xf]
        %v2720 = vld [vmem:[#allocation9 + $0x238] sm:$0xf]
        %v2721 = vld [vmem:[#allocation9 + $0x23c] sm:$0xf]
        %v2722 = vpack.c.bf16 %v2547, %v2546
        %v2723 = vpack.c.bf16 %v2549, %v2548
        %v2724 = vpack.c.bf16 %v2551, %v2550
        %v2725 = vpack.c.bf16 %v2553, %v2552
        %v2726 = vpack.c.bf16 %v2555, %v2554
        %v2727 = vpack.c.bf16 %v2557, %v2556
        %v2728 = vpack.c.bf16 %v2559, %v2558
        %v2729 = vpack.c.bf16 %v2561, %v2560
        %v2730 = vpack.c.bf16 %v2563, %v2562
        %v2731 = vpack.c.bf16 %v2565, %v2564
        %v2732 = vpack.c.bf16 %v2567, %v2566
        %v2733 = vpack.c.bf16 %v2569, %v2568
        %v2734 = vpack.c.bf16 %v2571, %v2570
        %v2735 = vpack.c.bf16 %v2573, %v2572
        %v2736 = vpack.c.bf16 %v2575, %v2574
        %v2737 = vpack.c.bf16 %v2577, %v2576
        %v2738 = vrot.slane %v2546, 1
        %v2739 = vrot.slane %v2550, 1
        %v2740 = vrot.slane %v2554, 1
        %v2741 = vrot.slane %v2558, 1
        %v2742 = vrot.slane %v2562, 1
        %v2743 = vrot.slane %v2566, 1
        %v2744 = vrot.slane %v2570, 1
        %v2745 = vrot.slane %v2574, 1
        %v2746 = vrot.slane %v2547, 1
        %v2747 = vrot.slane %v2551, 1
        %v2748 = vrot.slane %v2555, 1
        %v2749 = vrot.slane %v2559, 1
        %v2750 = vrot.slane %v2563, 1
        %v2751 = vrot.slane %v2567, 1
        %v2752 = vrot.slane %v2571, 1
        %v2753 = vrot.slane %v2575, 1
        %v2754 = vrot.slane %v2548, 1
        %v2755 = vrot.slane %v2552, 1
        %v2756 = vrot.slane %v2556, 1
        %v2757 = vrot.slane %v2560, 1
        %v2758 = vrot.slane %v2564, 1
        %v2759 = vrot.slane %v2568, 1
        %v2760 = vrot.slane %v2572, 1
        %v2761 = vrot.slane %v2576, 1
        %v2762 = vrot.slane %v2549, 1
        %v2763 = vrot.slane %v2553, 1
        %v2764 = vrot.slane %v2557, 1
        %v2765 = vrot.slane %v2561, 1
        %v2766 = vrot.slane %v2565, 1
        %v2767 = vrot.slane %v2569, 1
        %v2768 = vrot.slane %v2573, 1
        %v2769 = vrot.slane %v2577, 1
        %v2770 = vsel %vm640, %v2754, %v2762
        %v2771 = vsel %vm640, %v2755, %v2763
        %v2772 = vsel %vm640, %v2756, %v2764
        %v2773 = vsel %vm640, %v2757, %v2765
        %v2774 = vsel %vm640, %v2758, %v2766
        %v2775 = vsel %vm640, %v2759, %v2767
        %v2776 = vsel %vm640, %v2760, %v2768
        %v2777 = vsel %vm640, %v2761, %v2769
        %v2778 = vsel %vm640, %v2746, %v2754
        %v2779 = vsel %vm640, %v2747, %v2755
        %v2780 = vsel %vm640, %v2748, %v2756
        %v2781 = vsel %vm640, %v2749, %v2757
        %v2782 = vsel %vm640, %v2750, %v2758
        %v2783 = vsel %vm640, %v2751, %v2759
        %v2784 = vsel %vm640, %v2752, %v2760
        %v2785 = vsel %vm640, %v2753, %v2761
        %v2786 = vsel %vm640, %v2738, %v2746
        %v2787 = vsel %vm640, %v2739, %v2747
        %v2788 = vsel %vm640, %v2740, %v2748
        %v2789 = vsel %vm640, %v2741, %v2749
        %v2790 = vsel %vm640, %v2742, %v2750
        %v2791 = vsel %vm640, %v2743, %v2751
        %v2792 = vsel %vm640, %v2744, %v2752
        %v2793 = vsel %vm640, %v2745, %v2753
        %v2794 = vsel %vm640, %v2762, %v2738
        %v2795 = vsel %vm640, %v2763, %v2739
        %v2796 = vsel %vm640, %v2764, %v2740
        %v2797 = vsel %vm640, %v2765, %v2741
        %v2798 = vsel %vm640, %v2766, %v2742
        %v2799 = vsel %vm640, %v2767, %v2743
        %v2800 = vsel %vm640, %v2768, %v2744
        %v2801 = vsel %vm640, %v2769, %v2745
        %v2802 = vpack.c.bf16 %v2778, %v2786
        %v2803 = vpack.c.bf16 %v2794, %v2770
        %v2804 = vpack.c.bf16 %v2779, %v2787
        %v2805 = vpack.c.bf16 %v2795, %v2771
        %v2806 = vpack.c.bf16 %v2780, %v2788
        %v2807 = vpack.c.bf16 %v2796, %v2772
        %v2808 = vpack.c.bf16 %v2781, %v2789
        %v2809 = vpack.c.bf16 %v2797, %v2773
        %v2810 = vpack.c.bf16 %v2782, %v2790
        %v2811 = vpack.c.bf16 %v2798, %v2774
        %v2812 = vpack.c.bf16 %v2783, %v2791
        %v2813 = vpack.c.bf16 %v2799, %v2775
        %v2814 = vpack.c.bf16 %v2784, %v2792
        %v2815 = vpack.c.bf16 %v2800, %v2776
        %v2816 = vpack.c.bf16 %v2785, %v2793
        %v2817 = vpack.c.bf16 %v2801, %v2777
        %v2818 = vrot.slane %v2546, 2
        %v2819 = vrot.slane %v2550, 2
        %v2820 = vrot.slane %v2554, 2
        %v2821 = vrot.slane %v2558, 2
        %v2822 = vrot.slane %v2562, 2
        %v2823 = vrot.slane %v2566, 2
        %v2824 = vrot.slane %v2570, 2
        %v2825 = vrot.slane %v2574, 2
        %v2826 = vrot.slane %v2547, 2
        %v2827 = vrot.slane %v2551, 2
        %v2828 = vrot.slane %v2555, 2
        %v2829 = vrot.slane %v2559, 2
        %v2830 = vrot.slane %v2563, 2
        %v2831 = vrot.slane %v2567, 2
        %v2832 = vrot.slane %v2571, 2
        %v2833 = vrot.slane %v2575, 2
        %v2834 = vrot.slane %v2548, 2
        %v2835 = vrot.slane %v2552, 2
        %v2836 = vrot.slane %v2556, 2
        %v2837 = vrot.slane %v2560, 2
        %v2838 = vrot.slane %v2564, 2
        %v2839 = vrot.slane %v2568, 2
        %v2840 = vrot.slane %v2572, 2
        %v2841 = vrot.slane %v2576, 2
        %v2842 = vrot.slane %v2549, 2
        %v2843 = vrot.slane %v2553, 2
        %v2844 = vrot.slane %v2557, 2
        %v2845 = vrot.slane %v2561, 2
        %v2846 = vrot.slane %v2565, 2
        %v2847 = vrot.slane %v2569, 2
        %v2848 = vrot.slane %v2573, 2
        %v2849 = vrot.slane %v2577, 2
        %v2850 = vsel %vm721, %v2834, %v2842
        %v2851 = vsel %vm721, %v2835, %v2843
        %v2852 = vsel %vm721, %v2836, %v2844
        %v2853 = vsel %vm721, %v2837, %v2845
        %v2854 = vsel %vm721, %v2838, %v2846
        %v2855 = vsel %vm721, %v2839, %v2847
        %v2856 = vsel %vm721, %v2840, %v2848
        %v2857 = vsel %vm721, %v2841, %v2849
        %v2858 = vsel %vm721, %v2826, %v2834
        %v2859 = vsel %vm721, %v2827, %v2835
        %v2860 = vsel %vm721, %v2828, %v2836
        %v2861 = vsel %vm721, %v2829, %v2837
        %v2862 = vsel %vm721, %v2830, %v2838
        %v2863 = vsel %vm721, %v2831, %v2839
        %v2864 = vsel %vm721, %v2832, %v2840
        %v2865 = vsel %vm721, %v2833, %v2841
        %v2866 = vsel %vm721, %v2818, %v2826
        %v2867 = vsel %vm721, %v2819, %v2827
        %v2868 = vsel %vm721, %v2820, %v2828
        %v2869 = vsel %vm721, %v2821, %v2829
        %v2870 = vsel %vm721, %v2822, %v2830
        %v2871 = vsel %vm721, %v2823, %v2831
        %v2872 = vsel %vm721, %v2824, %v2832
        %v2873 = vsel %vm721, %v2825, %v2833
        %v2874 = vsel %vm721, %v2842, %v2818
        %v2875 = vsel %vm721, %v2843, %v2819
        %v2876 = vsel %vm721, %v2844, %v2820
        %v2877 = vsel %vm721, %v2845, %v2821
        %v2878 = vsel %vm721, %v2846, %v2822
        %v2879 = vsel %vm721, %v2847, %v2823
        %v2880 = vsel %vm721, %v2848, %v2824
        %v2881 = vsel %vm721, %v2849, %v2825
        %v2882 = vpack.c.bf16 %v2858, %v2866
        %v2883 = vpack.c.bf16 %v2874, %v2850
        %v2884 = vpack.c.bf16 %v2859, %v2867
        %v2885 = vpack.c.bf16 %v2875, %v2851
        %v2886 = vpack.c.bf16 %v2860, %v2868
        %v2887 = vpack.c.bf16 %v2876, %v2852
        %v2888 = vpack.c.bf16 %v2861, %v2869
        %v2889 = vpack.c.bf16 %v2877, %v2853
        %v2890 = vpack.c.bf16 %v2862, %v2870
        %v2891 = vpack.c.bf16 %v2878, %v2854
        %v2892 = vpack.c.bf16 %v2863, %v2871
        %v2893 = vpack.c.bf16 %v2879, %v2855
        %v2894 = vpack.c.bf16 %v2864, %v2872
        %v2895 = vpack.c.bf16 %v2880, %v2856
        %v2896 = vpack.c.bf16 %v2865, %v2873
        %v2897 = vpack.c.bf16 %v2881, %v2857
        %v2898 = vrot.slane %v2546, 3
        %v2899 = vrot.slane %v2550, 3
        %v2900 = vrot.slane %v2554, 3
        %v2901 = vrot.slane %v2558, 3
        %v2902 = vrot.slane %v2562, 3
        %v2903 = vrot.slane %v2566, 3
        %v2904 = vrot.slane %v2570, 3
        %v2905 = vrot.slane %v2574, 3
        %v2906 = vrot.slane %v2547, 3
        %v2907 = vrot.slane %v2551, 3
        %v2908 = vrot.slane %v2555, 3
        %v2909 = vrot.slane %v2559, 3
        %v2910 = vrot.slane %v2563, 3
        %v2911 = vrot.slane %v2567, 3
        %v2912 = vrot.slane %v2571, 3
        %v2913 = vrot.slane %v2575, 3
        %v2914 = vrot.slane %v2548, 3
        %v2915 = vrot.slane %v2552, 3
        %v2916 = vrot.slane %v2556, 3
        %v2917 = vrot.slane %v2560, 3
        %v2918 = vrot.slane %v2564, 3
        %v2919 = vrot.slane %v2568, 3
        %v2920 = vrot.slane %v2572, 3
        %v2921 = vrot.slane %v2576, 3
        %v2922 = vrot.slane %v2549, 3
        %v2923 = vrot.slane %v2553, 3
        %v2924 = vrot.slane %v2557, 3
        %v2925 = vrot.slane %v2561, 3
        %v2926 = vrot.slane %v2565, 3
        %v2927 = vrot.slane %v2569, 3
        %v2928 = vrot.slane %v2573, 3
        %v2929 = vrot.slane %v2577, 3
        %v2930 = vsel %vm802, %v2914, %v2922
        %v2931 = vsel %vm802, %v2915, %v2923
        %v2932 = vsel %vm802, %v2916, %v2924
        %v2933 = vsel %vm802, %v2917, %v2925
        %v2934 = vsel %vm802, %v2918, %v2926
        %v2935 = vsel %vm802, %v2919, %v2927
        %v2936 = vsel %vm802, %v2920, %v2928
        %v2937 = vsel %vm802, %v2921, %v2929
        %v2938 = vsel %vm802, %v2906, %v2914
        %v2939 = vsel %vm802, %v2907, %v2915
        %v2940 = vsel %vm802, %v2908, %v2916
        %v2941 = vsel %vm802, %v2909, %v2917
        %v2942 = vsel %vm802, %v2910, %v2918
        %v2943 = vsel %vm802, %v2911, %v2919
        %v2944 = vsel %vm802, %v2912, %v2920
        %v2945 = vsel %vm802, %v2913, %v2921
        %v2946 = vsel %vm802, %v2898, %v2906
        %v2947 = vsel %vm802, %v2899, %v2907
        %v2948 = vsel %vm802, %v2900, %v2908
        %v2949 = vsel %vm802, %v2901, %v2909
        %v2950 = vsel %vm802, %v2902, %v2910
        %v2951 = vsel %vm802, %v2903, %v2911
        %v2952 = vsel %vm802, %v2904, %v2912
        %v2953 = vsel %vm802, %v2905, %v2913
        %v2954 = vsel %vm802, %v2922, %v2898
        %v2955 = vsel %vm802, %v2923, %v2899
        %v2956 = vsel %vm802, %v2924, %v2900
        %v2957 = vsel %vm802, %v2925, %v2901
        %v2958 = vsel %vm802, %v2926, %v2902
        %v2959 = vsel %vm802, %v2927, %v2903
        %v2960 = vsel %vm802, %v2928, %v2904
        %v2961 = vsel %vm802, %v2929, %v2905
        %v2962 = vpack.c.bf16 %v2938, %v2946
        %v2963 = vpack.c.bf16 %v2954, %v2930
        %v2964 = vpack.c.bf16 %v2939, %v2947
        %v2965 = vpack.c.bf16 %v2955, %v2931
        %v2966 = vpack.c.bf16 %v2940, %v2948
        %v2967 = vpack.c.bf16 %v2956, %v2932
        %v2968 = vpack.c.bf16 %v2941, %v2949
        %v2969 = vpack.c.bf16 %v2957, %v2933
        %v2970 = vpack.c.bf16 %v2942, %v2950
        %v2971 = vpack.c.bf16 %v2958, %v2934
        %v2972 = vpack.c.bf16 %v2943, %v2951
        %v2973 = vpack.c.bf16 %v2959, %v2935
        %v2974 = vpack.c.bf16 %v2944, %v2952
        %v2975 = vpack.c.bf16 %v2960, %v2936
        %v2976 = vpack.c.bf16 %v2945, %v2953
        %v2977 = vpack.c.bf16 %v2961, %v2937
        %v2978 = vrot.slane %v2546, 4
        %v2979 = vrot.slane %v2550, 4
        %v2980 = vrot.slane %v2554, 4
        %v2981 = vrot.slane %v2558, 4
        %v2982 = vrot.slane %v2562, 4
        %v2983 = vrot.slane %v2566, 4
        %v2984 = vrot.slane %v2570, 4
        %v2985 = vrot.slane %v2574, 4
        %v2986 = vrot.slane %v2547, 4
        %v2987 = vrot.slane %v2551, 4
        %v2988 = vrot.slane %v2555, 4
        %v2989 = vrot.slane %v2559, 4
        %v2990 = vrot.slane %v2563, 4
        %v2991 = vrot.slane %v2567, 4
        %v2992 = vrot.slane %v2571, 4
        %v2993 = vrot.slane %v2575, 4
        %v2994 = vrot.slane %v2548, 4
        %v2995 = vrot.slane %v2552, 4
        %v2996 = vrot.slane %v2556, 4
        %v2997 = vrot.slane %v2560, 4
        %v2998 = vrot.slane %v2564, 4
        %v2999 = vrot.slane %v2568, 4
        %v3000 = vrot.slane %v2572, 4
        %v3001 = vrot.slane %v2576, 4
        %v3002 = vrot.slane %v2549, 4
        %v3003 = vrot.slane %v2553, 4
        %v3004 = vrot.slane %v2557, 4
        %v3005 = vrot.slane %v2561, 4
        %v3006 = vrot.slane %v2565, 4
        %v3007 = vrot.slane %v2569, 4
        %v3008 = vrot.slane %v2573, 4
        %v3009 = vrot.slane %v2577, 4
        %v3010 = vsel %vm883, %v2994, %v3002
        %v3011 = vsel %vm883, %v2995, %v3003
        %v3012 = vsel %vm883, %v2996, %v3004
        %v3013 = vsel %vm883, %v2997, %v3005
        %v3014 = vsel %vm883, %v2998, %v3006
        %v3015 = vsel %vm883, %v2999, %v3007
        %v3016 = vsel %vm883, %v3000, %v3008
        %v3017 = vsel %vm883, %v3001, %v3009
        %v3018 = vsel %vm883, %v2986, %v2994
        %v3019 = vsel %vm883, %v2987, %v2995
        %v3020 = vsel %vm883, %v2988, %v2996
        %v3021 = vsel %vm883, %v2989, %v2997
        %v3022 = vsel %vm883, %v2990, %v2998
        %v3023 = vsel %vm883, %v2991, %v2999
        %v3024 = vsel %vm883, %v2992, %v3000
        %v3025 = vsel %vm883, %v2993, %v3001
        %v3026 = vsel %vm883, %v2978, %v2986
        %v3027 = vsel %vm883, %v2979, %v2987
        %v3028 = vsel %vm883, %v2980, %v2988
        %v3029 = vsel %vm883, %v2981, %v2989
        %v3030 = vsel %vm883, %v2982, %v2990
        %v3031 = vsel %vm883, %v2983, %v2991
        %v3032 = vsel %vm883, %v2984, %v2992
        %v3033 = vsel %vm883, %v2985, %v2993
        %v3034 = vsel %vm883, %v3002, %v2978
        %v3035 = vsel %vm883, %v3003, %v2979
        %v3036 = vsel %vm883, %v3004, %v2980
        %v3037 = vsel %vm883, %v3005, %v2981
        %v3038 = vsel %vm883, %v3006, %v2982
        %v3039 = vsel %vm883, %v3007, %v2983
        %v3040 = vsel %vm883, %v3008, %v2984
        %v3041 = vsel %vm883, %v3009, %v2985
        %v3042 = vpack.c.bf16 %v3018, %v3026
        %v3043 = vpack.c.bf16 %v3034, %v3010
        %v3044 = vpack.c.bf16 %v3019, %v3027
        %v3045 = vpack.c.bf16 %v3035, %v3011
        %v3046 = vpack.c.bf16 %v3020, %v3028
        %v3047 = vpack.c.bf16 %v3036, %v3012
        %v3048 = vpack.c.bf16 %v3021, %v3029
        %v3049 = vpack.c.bf16 %v3037, %v3013
        %v3050 = vpack.c.bf16 %v3022, %v3030
        %v3051 = vpack.c.bf16 %v3038, %v3014
        %v3052 = vpack.c.bf16 %v3023, %v3031
        %v3053 = vpack.c.bf16 %v3039, %v3015
        %v3054 = vpack.c.bf16 %v3024, %v3032
        %v3055 = vpack.c.bf16 %v3040, %v3016
        %v3056 = vpack.c.bf16 %v3025, %v3033
        %v3057 = vpack.c.bf16 %v3041, %v3017
        %v3058 = vrot.slane %v2546, 5
        %v3059 = vrot.slane %v2550, 5
        %v3060 = vrot.slane %v2554, 5
        %v3061 = vrot.slane %v2558, 5
        %v3062 = vrot.slane %v2562, 5
        %v3063 = vrot.slane %v2566, 5
        %v3064 = vrot.slane %v2570, 5
        %v3065 = vrot.slane %v2574, 5
        %v3066 = vrot.slane %v2547, 5
        %v3067 = vrot.slane %v2551, 5
        %v3068 = vrot.slane %v2555, 5
        %v3069 = vrot.slane %v2559, 5
        %v3070 = vrot.slane %v2563, 5
        %v3071 = vrot.slane %v2567, 5
        %v3072 = vrot.slane %v2571, 5
        %v3073 = vrot.slane %v2575, 5
        %v3074 = vrot.slane %v2548, 5
        %v3075 = vrot.slane %v2552, 5
        %v3076 = vrot.slane %v2556, 5
        %v3077 = vrot.slane %v2560, 5
        %v3078 = vrot.slane %v2564, 5
        %v3079 = vrot.slane %v2568, 5
        %v3080 = vrot.slane %v2572, 5
        %v3081 = vrot.slane %v2576, 5
        %v3082 = vrot.slane %v2549, 5
        %v3083 = vrot.slane %v2553, 5
        %v3084 = vrot.slane %v2557, 5
        %v3085 = vrot.slane %v2561, 5
        %v3086 = vrot.slane %v2565, 5
        %v3087 = vrot.slane %v2569, 5
        %v3088 = vrot.slane %v2573, 5
        %v3089 = vrot.slane %v2577, 5
        %v3090 = vsel %vm964, %v3074, %v3082
        %v3091 = vsel %vm964, %v3075, %v3083
        %v3092 = vsel %vm964, %v3076, %v3084
        %v3093 = vsel %vm964, %v3077, %v3085
        %v3094 = vsel %vm964, %v3078, %v3086
        %v3095 = vsel %vm964, %v3079, %v3087
        %v3096 = vsel %vm964, %v3080, %v3088
        %v3097 = vsel %vm964, %v3081, %v3089
        %v3098 = vsel %vm964, %v3066, %v3074
        %v3099 = vsel %vm964, %v3067, %v3075
        %v3100 = vsel %vm964, %v3068, %v3076
        %v3101 = vsel %vm964, %v3069, %v3077
        %v3102 = vsel %vm964, %v3070, %v3078
        %v3103 = vsel %vm964, %v3071, %v3079
        %v3104 = vsel %vm964, %v3072, %v3080
        %v3105 = vsel %vm964, %v3073, %v3081
        %v3106 = vsel %vm964, %v3058, %v3066
        %v3107 = vsel %vm964, %v3059, %v3067
        %v3108 = vsel %vm964, %v3060, %v3068
        %v3109 = vsel %vm964, %v3061, %v3069
        %v3110 = vsel %vm964, %v3062, %v3070
        %v3111 = vsel %vm964, %v3063, %v3071
        %v3112 = vsel %vm964, %v3064, %v3072
        %v3113 = vsel %vm964, %v3065, %v3073
        %v3114 = vsel %vm964, %v3082, %v3058
        %v3115 = vsel %vm964, %v3083, %v3059
        %v3116 = vsel %vm964, %v3084, %v3060
        %v3117 = vsel %vm964, %v3085, %v3061
        %v3118 = vsel %vm964, %v3086, %v3062
        %v3119 = vsel %vm964, %v3087, %v3063
        %v3120 = vsel %vm964, %v3088, %v3064
        %v3121 = vsel %vm964, %v3089, %v3065
        %v3122 = vpack.c.bf16 %v3098, %v3106
        %v3123 = vpack.c.bf16 %v3114, %v3090
        %v3124 = vpack.c.bf16 %v3099, %v3107
        %v3125 = vpack.c.bf16 %v3115, %v3091
        %v3126 = vpack.c.bf16 %v3100, %v3108
        %v3127 = vpack.c.bf16 %v3116, %v3092
        %v3128 = vpack.c.bf16 %v3101, %v3109
        %v3129 = vpack.c.bf16 %v3117, %v3093
        %v3130 = vpack.c.bf16 %v3102, %v3110
        %v3131 = vpack.c.bf16 %v3118, %v3094
        %v3132 = vpack.c.bf16 %v3103, %v3111
        %v3133 = vpack.c.bf16 %v3119, %v3095
        %v3134 = vpack.c.bf16 %v3104, %v3112
        %v3135 = vpack.c.bf16 %v3120, %v3096
        %v3136 = vpack.c.bf16 %v3105, %v3113
        %v3137 = vpack.c.bf16 %v3121, %v3097
        %v3138 = vrot.slane %v2546, 6
        %v3139 = vrot.slane %v2550, 6
        %v3140 = vrot.slane %v2554, 6
        %v3141 = vrot.slane %v2558, 6
        %v3142 = vrot.slane %v2562, 6
        %v3143 = vrot.slane %v2566, 6
        %v3144 = vrot.slane %v2570, 6
        %v3145 = vrot.slane %v2574, 6
        %v3146 = vrot.slane %v2547, 6
        %v3147 = vrot.slane %v2551, 6
        %v3148 = vrot.slane %v2555, 6
        %v3149 = vrot.slane %v2559, 6
        %v3150 = vrot.slane %v2563, 6
        %v3151 = vrot.slane %v2567, 6
        %v3152 = vrot.slane %v2571, 6
        %v3153 = vrot.slane %v2575, 6
        %v3154 = vrot.slane %v2548, 6
        %v3155 = vrot.slane %v2552, 6
        %v3156 = vrot.slane %v2556, 6
        %v3157 = vrot.slane %v2560, 6
        %v3158 = vrot.slane %v2564, 6
        %v3159 = vrot.slane %v2568, 6
        %v3160 = vrot.slane %v2572, 6
        %v3161 = vrot.slane %v2576, 6
        %v3162 = vrot.slane %v2549, 6
        %v3163 = vrot.slane %v2553, 6
        %v3164 = vrot.slane %v2557, 6
        %v3165 = vrot.slane %v2561, 6
        %v3166 = vrot.slane %v2565, 6
        %v3167 = vrot.slane %v2569, 6
        %v3168 = vrot.slane %v2573, 6
        %v3169 = vrot.slane %v2577, 6
        %v3170 = vsel %vm1045, %v3154, %v3162
        %v3171 = vsel %vm1045, %v3155, %v3163
        %v3172 = vsel %vm1045, %v3156, %v3164
        %v3173 = vsel %vm1045, %v3157, %v3165
        %v3174 = vsel %vm1045, %v3158, %v3166
        %v3175 = vsel %vm1045, %v3159, %v3167
        %v3176 = vsel %vm1045, %v3160, %v3168
        %v3177 = vsel %vm1045, %v3161, %v3169
        %v3178 = vsel %vm1045, %v3146, %v3154
        %v3179 = vsel %vm1045, %v3147, %v3155
        %v3180 = vsel %vm1045, %v3148, %v3156
        %v3181 = vsel %vm1045, %v3149, %v3157
        %v3182 = vsel %vm1045, %v3150, %v3158
        %v3183 = vsel %vm1045, %v3151, %v3159
        %v3184 = vsel %vm1045, %v3152, %v3160
        %v3185 = vsel %vm1045, %v3153, %v3161
        %v3186 = vsel %vm1045, %v3138, %v3146
        %v3187 = vsel %vm1045, %v3139, %v3147
        %v3188 = vsel %vm1045, %v3140, %v3148
        %v3189 = vsel %vm1045, %v3141, %v3149
        %v3190 = vsel %vm1045, %v3142, %v3150
        %v3191 = vsel %vm1045, %v3143, %v3151
        %v3192 = vsel %vm1045, %v3144, %v3152
        %v3193 = vsel %vm1045, %v3145, %v3153
        %v3194 = vsel %vm1045, %v3162, %v3138
        %v3195 = vsel %vm1045, %v3163, %v3139
        %v3196 = vsel %vm1045, %v3164, %v3140
        %v3197 = vsel %vm1045, %v3165, %v3141
        %v3198 = vsel %vm1045, %v3166, %v3142
        %v3199 = vsel %vm1045, %v3167, %v3143
        %v3200 = vsel %vm1045, %v3168, %v3144
        %v3201 = vsel %vm1045, %v3169, %v3145
        %v3202 = vpack.c.bf16 %v3178, %v3186
        %v3203 = vpack.c.bf16 %v3194, %v3170
        %v3204 = vpack.c.bf16 %v3179, %v3187
        %v3205 = vpack.c.bf16 %v3195, %v3171
        %v3206 = vpack.c.bf16 %v3180, %v3188
        %v3207 = vpack.c.bf16 %v3196, %v3172
        %v3208 = vpack.c.bf16 %v3181, %v3189
        %v3209 = vpack.c.bf16 %v3197, %v3173
        %v3210 = vpack.c.bf16 %v3182, %v3190
        %v3211 = vpack.c.bf16 %v3198, %v3174
        %v3212 = vpack.c.bf16 %v3183, %v3191
        %v3213 = vpack.c.bf16 %v3199, %v3175
        %v3214 = vpack.c.bf16 %v3184, %v3192
        %v3215 = vpack.c.bf16 %v3200, %v3176
        %v3216 = vpack.c.bf16 %v3185, %v3193
        %v3217 = vpack.c.bf16 %v3201, %v3177
        %v3218 = vrot.slane %v2546, 7
        %v3219 = vrot.slane %v2550, 7
        %v3220 = vrot.slane %v2554, 7
        %v3221 = vrot.slane %v2558, 7
        %v3222 = vrot.slane %v2562, 7
        %v3223 = vrot.slane %v2566, 7
        %v3224 = vrot.slane %v2570, 7
        %v3225 = vrot.slane %v2574, 7
        %v3226 = vrot.slane %v2547, 7
        %v3227 = vrot.slane %v2551, 7
        %v3228 = vrot.slane %v2555, 7
        %v3229 = vrot.slane %v2559, 7
        %v3230 = vrot.slane %v2563, 7
        %v3231 = vrot.slane %v2567, 7
        %v3232 = vrot.slane %v2571, 7
        %v3233 = vrot.slane %v2575, 7
        %v3234 = vrot.slane %v2548, 7
        %v3235 = vrot.slane %v2552, 7
        %v3236 = vrot.slane %v2556, 7
        %v3237 = vrot.slane %v2560, 7
        %v3238 = vrot.slane %v2564, 7
        %v3239 = vrot.slane %v2568, 7
        %v3240 = vrot.slane %v2572, 7
        %v3241 = vrot.slane %v2576, 7
        %v3242 = vrot.slane %v2549, 7
        %v3243 = vrot.slane %v2553, 7
        %v3244 = vrot.slane %v2557, 7
        %v3245 = vrot.slane %v2561, 7
        %v3246 = vrot.slane %v2565, 7
        %v3247 = vrot.slane %v2569, 7
        %v3248 = vrot.slane %v2573, 7
        %v3249 = vrot.slane %v2577, 7
        %v3250 = vsel %vm1126, %v3234, %v3242
        %v3251 = vsel %vm1126, %v3235, %v3243
        %v3252 = vsel %vm1126, %v3236, %v3244
        %v3253 = vsel %vm1126, %v3237, %v3245
        %v3254 = vsel %vm1126, %v3238, %v3246
        %v3255 = vsel %vm1126, %v3239, %v3247
        %v3256 = vsel %vm1126, %v3240, %v3248
        %v3257 = vsel %vm1126, %v3241, %v3249
        %v3258 = vsel %vm1126, %v3226, %v3234
        %v3259 = vsel %vm1126, %v3227, %v3235
        %v3260 = vsel %vm1126, %v3228, %v3236
        %v3261 = vsel %vm1126, %v3229, %v3237
        %v3262 = vsel %vm1126, %v3230, %v3238
        %v3263 = vsel %vm1126, %v3231, %v3239
        %v3264 = vsel %vm1126, %v3232, %v3240
        %v3265 = vsel %vm1126, %v3233, %v3241
        %v3266 = vsel %vm1126, %v3218, %v3226
        %v3267 = vsel %vm1126, %v3219, %v3227
        %v3268 = vsel %vm1126, %v3220, %v3228
        %v3269 = vsel %vm1126, %v3221, %v3229
        %v3270 = vsel %vm1126, %v3222, %v3230
        %v3271 = vsel %vm1126, %v3223, %v3231
        %v3272 = vsel %vm1126, %v3224, %v3232
        %v3273 = vsel %vm1126, %v3225, %v3233
        %v3274 = vsel %vm1126, %v3242, %v3218
        %v3275 = vsel %vm1126, %v3243, %v3219
        %v3276 = vsel %vm1126, %v3244, %v3220
        %v3277 = vsel %vm1126, %v3245, %v3221
        %v3278 = vsel %vm1126, %v3246, %v3222
        %v3279 = vsel %vm1126, %v3247, %v3223
        %v3280 = vsel %vm1126, %v3248, %v3224
        %v3281 = vsel %vm1126, %v3249, %v3225
        %v3282 = vpack.c.bf16 %v3258, %v3266
        %v3283 = vpack.c.bf16 %v3274, %v3250
        %v3284 = vpack.c.bf16 %v3259, %v3267
        %v3285 = vpack.c.bf16 %v3275, %v3251
        %v3286 = vpack.c.bf16 %v3260, %v3268
        %v3287 = vpack.c.bf16 %v3276, %v3252
        %v3288 = vpack.c.bf16 %v3261, %v3269
        %v3289 = vpack.c.bf16 %v3277, %v3253
        %v3290 = vpack.c.bf16 %v3262, %v3270
        %v3291 = vpack.c.bf16 %v3278, %v3254
        %v3292 = vpack.c.bf16 %v3263, %v3271
        %v3293 = vpack.c.bf16 %v3279, %v3255
        %v3294 = vpack.c.bf16 %v3264, %v3272
        %v3295 = vpack.c.bf16 %v3280, %v3256
        %v3296 = vpack.c.bf16 %v3265, %v3273
        %v3297 = vpack.c.bf16 %v3281, %v3257
        %v3298 = vpack.c.bf16 %v2548, %v2547
        %v3299 = vpack.c.bf16 %v2546, %v2549
        %v3300 = vpack.c.bf16 %v2552, %v2551
        %v3301 = vpack.c.bf16 %v2550, %v2553
        %v3302 = vpack.c.bf16 %v2556, %v2555
        %v3303 = vpack.c.bf16 %v2554, %v2557
        %v3304 = vpack.c.bf16 %v2560, %v2559
        %v3305 = vpack.c.bf16 %v2558, %v2561
        %v3306 = vpack.c.bf16 %v2564, %v2563
        %v3307 = vpack.c.bf16 %v2562, %v2565
        %v3308 = vpack.c.bf16 %v2568, %v2567
        %v3309 = vpack.c.bf16 %v2566, %v2569
        %v3310 = vpack.c.bf16 %v2572, %v2571
        %v3311 = vpack.c.bf16 %v2570, %v2573
        %v3312 = vpack.c.bf16 %v2576, %v2575
        %v3313 = vpack.c.bf16 %v2574, %v2577
        %v3458 = vunpack.c.l.b16 %v2578
        %v3459 = vunpack.c.l.b16 %v2579
        %v3460 = vunpack.c.l.b16 %v2580
        %v3461 = vunpack.c.l.b16 %v2581
        %v3462 = vunpack.c.l.b16 %v2582
        %v3463 = vunpack.c.l.b16 %v2583
        %v3464 = vunpack.c.l.b16 %v2584
        %v3465 = vunpack.c.l.b16 %v2585
        %v3466 = vunpack.c.l.b16 %v2586
        %v3467 = vunpack.c.l.b16 %v2587
        %v3468 = vunpack.c.l.b16 %v2588
        %v3469 = vunpack.c.l.b16 %v2589
        %v3470 = vunpack.c.l.b16 %v2590
        %v3471 = vunpack.c.l.b16 %v2591
        %v3472 = vunpack.c.l.b16 %v2592
        %v3473 = vunpack.c.l.b16 %v2593
        %v3474 = vunpack.c.l.b16 %v2594
        %v3475 = vunpack.c.l.b16 %v2595
        %v3476 = vunpack.c.l.b16 %v2596
        %v3477 = vunpack.c.l.b16 %v2597
        %v3478 = vunpack.c.l.b16 %v2598
        %v3479 = vunpack.c.l.b16 %v2599
        %v3480 = vunpack.c.l.b16 %v2600
        %v3481 = vunpack.c.l.b16 %v2601
        %v3482 = vunpack.c.l.b16 %v2602
        %v3483 = vunpack.c.l.b16 %v2603
        %v3484 = vunpack.c.l.b16 %v2604
        %v3485 = vunpack.c.l.b16 %v2605
        %v3486 = vunpack.c.l.b16 %v2606
        %v3487 = vunpack.c.l.b16 %v2607
        %v3488 = vunpack.c.l.b16 %v2608
        %v3489 = vunpack.c.l.b16 %v2609
        %v3490 = vunpack.c.l.b16 %v2610
        %v3491 = vunpack.c.l.b16 %v2611
        %v3492 = vunpack.c.l.b16 %v2612
        %v3493 = vunpack.c.l.b16 %v2613
        %v3494 = vunpack.c.l.b16 %v2614
        %v3495 = vunpack.c.l.b16 %v2615
        %v3496 = vunpack.c.l.b16 %v2616
        %v3497 = vunpack.c.l.b16 %v2617
        %v3498 = vunpack.c.l.b16 %v2618
        %v3499 = vunpack.c.l.b16 %v2619
        %v3500 = vunpack.c.l.b16 %v2620
        %v3501 = vunpack.c.l.b16 %v2621
        %v3502 = vunpack.c.l.b16 %v2622
        %v3503 = vunpack.c.l.b16 %v2623
        %v3504 = vunpack.c.l.b16 %v2624
        %v3505 = vunpack.c.l.b16 %v2625
        %v3506 = vunpack.c.l.b16 %v2626
        %v3507 = vunpack.c.l.b16 %v2627
        %v3508 = vunpack.c.l.b16 %v2628
        %v3509 = vunpack.c.l.b16 %v2629
        %v3510 = vunpack.c.l.b16 %v2630
        %v3511 = vunpack.c.l.b16 %v2631
        %v3512 = vunpack.c.l.b16 %v2632
        %v3513 = vunpack.c.l.b16 %v2633
        %v3514 = vunpack.c.l.b16 %v2634
        %v3515 = vunpack.c.l.b16 %v2635
        %v3516 = vunpack.c.l.b16 %v2636
        %v3517 = vunpack.c.l.b16 %v2637
        %v3518 = vunpack.c.l.b16 %v2638
        %v3519 = vunpack.c.l.b16 %v2639
        %v3520 = vunpack.c.l.b16 %v2640
        %v3521 = vunpack.c.l.b16 %v2641
        %v3522 = vunpack.c.l.b16 %v2642
        %v3523 = vunpack.c.l.b16 %v2643
        %v3524 = vunpack.c.l.b16 %v2644
        %v3525 = vunpack.c.l.b16 %v2645
        %v3526 = vunpack.c.l.b16 %v2646
        %v3527 = vunpack.c.l.b16 %v2647
        %v3528 = vunpack.c.l.b16 %v2648
        %v3529 = vunpack.c.l.b16 %v2649
        %v3530 = vunpack.c.l.b16 %v2650
        %v3531 = vunpack.c.l.b16 %v2651
        %v3532 = vunpack.c.l.b16 %v2652
        %v3533 = vunpack.c.l.b16 %v2653
        %v3534 = vunpack.c.l.b16 %v2654
        %v3535 = vunpack.c.l.b16 %v2655
        %v3536 = vunpack.c.l.b16 %v2656
        %v3537 = vunpack.c.l.b16 %v2657
        %v3538 = vunpack.c.l.b16 %v2658
        %v3539 = vunpack.c.l.b16 %v2659
        %v3540 = vunpack.c.l.b16 %v2660
        %v3541 = vunpack.c.l.b16 %v2661
        %v3542 = vunpack.c.l.b16 %v2662
        %v3543 = vunpack.c.l.b16 %v2663
        %v3544 = vunpack.c.l.b16 %v2664
        %v3545 = vunpack.c.l.b16 %v2665
        %v3546 = vunpack.c.l.b16 %v2666
        %v3547 = vunpack.c.l.b16 %v2667
        %v3548 = vunpack.c.l.b16 %v2668
        %v3549 = vunpack.c.l.b16 %v2669
        %v3550 = vunpack.c.l.b16 %v2670
        %v3551 = vunpack.c.l.b16 %v2671
        %v3552 = vunpack.c.l.b16 %v2672
        %v3553 = vunpack.c.l.b16 %v2673
        %v3554 = vunpack.c.l.b16 %v2674
        %v3555 = vunpack.c.l.b16 %v2675
        %v3556 = vunpack.c.l.b16 %v2676
        %v3557 = vunpack.c.l.b16 %v2677
        %v3558 = vunpack.c.l.b16 %v2678
        %v3559 = vunpack.c.l.b16 %v2679
        %v3560 = vunpack.c.l.b16 %v2680
        %v3561 = vunpack.c.l.b16 %v2681
        %v3562 = vunpack.c.l.b16 %v2682
        %v3563 = vunpack.c.l.b16 %v2683
        %v3564 = vunpack.c.l.b16 %v2684
        %v3565 = vunpack.c.l.b16 %v2685
        %v3566 = vunpack.c.l.b16 %v2686
        %v3567 = vunpack.c.l.b16 %v2687
        %v3568 = vunpack.c.l.b16 %v2688
        %v3569 = vunpack.c.l.b16 %v2689
        %v3570 = vunpack.c.l.b16 %v2690
        %v3571 = vunpack.c.l.b16 %v2691
        %v3572 = vunpack.c.l.b16 %v2692
        %v3573 = vunpack.c.l.b16 %v2693
        %v3574 = vunpack.c.l.b16 %v2694
        %v3575 = vunpack.c.l.b16 %v2695
        %v3576 = vunpack.c.l.b16 %v2696
        %v3577 = vunpack.c.l.b16 %v2697
        %v3578 = vunpack.c.l.b16 %v2698
        %v3579 = vunpack.c.l.b16 %v2699
        %v3580 = vunpack.c.l.b16 %v2700
        %v3581 = vunpack.c.l.b16 %v2701
        %v3582 = vunpack.c.l.b16 %v2702
        %v3583 = vunpack.c.l.b16 %v2703
        %v3584 = vunpack.c.l.b16 %v2704
        %v3585 = vunpack.c.l.b16 %v2705
        %v3586 = vunpack.c.l.b16 %v2706
        %v3587 = vunpack.c.l.b16 %v2707
        %v3588 = vunpack.c.l.b16 %v2708
        %v3589 = vunpack.c.l.b16 %v2709
        %v3590 = vunpack.c.l.b16 %v2710
        %v3591 = vunpack.c.l.b16 %v2711
        %v3592 = vunpack.c.l.b16 %v2712
        %v3593 = vunpack.c.l.b16 %v2713
        %v3594 = vunpack.c.l.b16 %v2714
        %v3595 = vunpack.c.l.b16 %v2715
        %v3596 = vunpack.c.l.b16 %v2716
        %v3597 = vunpack.c.l.b16 %v2717
        %v3598 = vunpack.c.l.b16 %v2718
        %v3599 = vunpack.c.l.b16 %v2719
        %v3600 = vunpack.c.l.b16 %v2720
        %v3601 = vunpack.c.l.b16 %v2721
        %v3602 = vpack.c.b16 %v3459, %v3458
        %v3603 = vpack.c.b16 %v3461, %v3460
        %v3604 = vpack.c.b16 %v3463, %v3462
        %v3605 = vpack.c.b16 %v3465, %v3464
        %v3606 = vpack.c.b16 %v3467, %v3466
        %v3607 = vpack.c.b16 %v3469, %v3468
        %v3608 = vpack.c.b16 %v3471, %v3470
        %v3609 = vpack.c.b16 %v3473, %v3472
        %v3610 = vpack.c.b16 %v3475, %v3474
        %v3611 = vpack.c.b16 %v3477, %v3476
        %v3612 = vpack.c.b16 %v3479, %v3478
        %v3613 = vpack.c.b16 %v3481, %v3480
        %v3614 = vpack.c.b16 %v3483, %v3482
        %v3615 = vpack.c.b16 %v3485, %v3484
        %v3616 = vpack.c.b16 %v3487, %v3486
        %v3617 = vpack.c.b16 %v3489, %v3488
        %v3618 = vpack.c.b16 %v3491, %v3490
        %v3619 = vpack.c.b16 %v3493, %v3492
        %v3620 = vpack.c.b16 %v3495, %v3494
        %v3621 = vpack.c.b16 %v3497, %v3496
        %v3622 = vpack.c.b16 %v3499, %v3498
        %v3623 = vpack.c.b16 %v3501, %v3500
        %v3624 = vpack.c.b16 %v3503, %v3502
        %v3625 = vpack.c.b16 %v3505, %v3504
        %v3626 = vpack.c.b16 %v3507, %v3506
        %v3627 = vpack.c.b16 %v3509, %v3508
        %v3628 = vpack.c.b16 %v3511, %v3510
        %v3629 = vpack.c.b16 %v3513, %v3512
        %v3630 = vpack.c.b16 %v3515, %v3514
        %v3631 = vpack.c.b16 %v3517, %v3516
        %v3632 = vpack.c.b16 %v3519, %v3518
        %v3633 = vpack.c.b16 %v3521, %v3520
        %v3634 = vpack.c.b16 %v3523, %v3522
        %v3635 = vpack.c.b16 %v3525, %v3524
        %v3636 = vpack.c.b16 %v3527, %v3526
        %v3637 = vpack.c.b16 %v3529, %v3528
        %v3638 = vpack.c.b16 %v3531, %v3530
        %v3639 = vpack.c.b16 %v3533, %v3532
        %v3640 = vpack.c.b16 %v3535, %v3534
        %v3641 = vpack.c.b16 %v3537, %v3536
        %v3642 = vpack.c.b16 %v3539, %v3538
        %v3643 = vpack.c.b16 %v3541, %v3540
        %v3644 = vpack.c.b16 %v3543, %v3542
        %v3645 = vpack.c.b16 %v3545, %v3544
        %v3646 = vpack.c.b16 %v3547, %v3546
        %v3647 = vpack.c.b16 %v3549, %v3548
        %v3648 = vpack.c.b16 %v3551, %v3550
        %v3649 = vpack.c.b16 %v3553, %v3552
        %v3650 = vpack.c.b16 %v3555, %v3554
        %v3651 = vpack.c.b16 %v3557, %v3556
        %v3652 = vpack.c.b16 %v3559, %v3558
        %v3653 = vpack.c.b16 %v3561, %v3560
        %v3654 = vpack.c.b16 %v3563, %v3562
        %v3655 = vpack.c.b16 %v3565, %v3564
        %v3656 = vpack.c.b16 %v3567, %v3566
        %v3657 = vpack.c.b16 %v3569, %v3568
        %v3658 = vpack.c.b16 %v3571, %v3570
        %v3659 = vpack.c.b16 %v3573, %v3572
        %v3660 = vpack.c.b16 %v3575, %v3574
        %v3661 = vpack.c.b16 %v3577, %v3576
        %v3662 = vpack.c.b16 %v3579, %v3578
        %v3663 = vpack.c.b16 %v3581, %v3580
        %v3664 = vpack.c.b16 %v3583, %v3582
        %v3665 = vpack.c.b16 %v3585, %v3584
        %v3666 = vpack.c.b16 %v3587, %v3586
        %v3667 = vpack.c.b16 %v3589, %v3588
        %v3668 = vpack.c.b16 %v3591, %v3590
        %v3669 = vpack.c.b16 %v3593, %v3592
        %v3670 = vpack.c.b16 %v3595, %v3594
        %v3671 = vpack.c.b16 %v3597, %v3596
        %v3672 = vpack.c.b16 %v3599, %v3598
        %v3673 = vpack.c.b16 %v3601, %v3600
        %3746 = vmatprep.subr.bf16.mxu0 0
        %3747 = vmatpush1.bf16.msra.mxu0 %v3602
        %3748 = vmatprep.subr.bf16.mxu0 0
        %3749 = vmatpush1.bf16.msra.mxu0 %v3603
        %3750 = vmatprep.subr.bf16.mxu0 0
        %3751 = vmatpush1.bf16.msra.mxu0 %v3604
        %3752 = vmatprep.subr.bf16.mxu0 0
        %3753 = vmatpush1.bf16.msra.mxu0 %v3605
        %3754 = vmatprep.subr.bf16.mxu0 0
        %3755 = vmatpush1.bf16.msra.mxu0 %v3606
        %3756 = vmatprep.subr.bf16.mxu0 0
        %3757 = vmatpush1.bf16.msra.mxu0 %v3607
        %3758 = vmatprep.subr.bf16.mxu0 0
        %3759 = vmatpush1.bf16.msra.mxu0 %v3608
        %3760 = vmatprep.subr.bf16.mxu0 0
        %3761 = vmatpush1.bf16.msra.mxu0 %v3609
        %3762 = vmatprep.subr.bf16.mxu0 0
        %3763 = vmatpush1.bf16.msra.mxu0 %v3610
        %3764 = vmatprep.subr.bf16.mxu0 0
        %3765 = vmatpush1.bf16.msra.mxu0 %v3611
        %3766 = vmatprep.subr.bf16.mxu0 0
        %3767 = vmatpush1.bf16.msra.mxu0 %v3612
        %3768 = vmatprep.subr.bf16.mxu0 0
        %3769 = vmatpush1.bf16.msra.mxu0 %v3613
        %3770 = vmatprep.subr.bf16.mxu0 0
        %3771 = vmatpush1.bf16.msra.mxu0 %v3614
        %3772 = vmatprep.subr.bf16.mxu0 0
        %3773 = vmatpush1.bf16.msra.mxu0 %v3615
        %3774 = vmatprep.subr.bf16.mxu0 0
        %3775 = vmatpush1.bf16.msra.mxu0 %v3616
        %3776 = vmatprep.subr.bf16.mxu0 0
        %3777 = vmatpush1.bf16.msra.mxu0 %v3617
        %3778 = vmatprep.mubr.bf16.mxu0 %v2802
        %3779 = vmatmul.mubr.bf16.gmra.mrb[0].mxu0 %v2722
        %v3780 = vpop.f32.mrb[0].mxu0
        %v3781 = vadd.f32 0.0, %v3780
        %v3782 = vpop.f32.mrb[0].mxu0
        %v3783 = vpop.f32.mrb[0].mxu0
        %v3784 = vadd.f32 0.0, %v3783
        %v3785 = vpop.f32.mrb[0].mxu0
        %3786 = vmatprep.mubr.bf16.mxu0 %v2803
        %3787 = vmatmul.mubr.bf16.gmra.mrb[0].mxu0 %v2723
        %v3788 = vpop.f32.mrb[0].mxu0
        %v3789 = vadd.f32 0.0, %v3788
        %v3790 = vpop.f32.mrb[0].mxu0
        %v3791 = vpop.f32.mrb[0].mxu0
        %v3792 = vadd.f32 0.0, %v3791
        %v3793 = vpop.f32.mrb[0].mxu0
        %3794 = vmatprep.mubr.bf16.mxu0 %v2804
        %3795 = vmatmul.mubr.bf16.gmra.mrb[0].mxu0 %v2724
        %v3796 = vpop.f32.mrb[0].mxu0
        %v3797 = vadd.f32 0.0, %v3796
        %v3798 = vpop.f32.mrb[0].mxu0
        %v3799 = vpop.f32.mrb[0].mxu0
        %v3800 = vadd.f32 0.0, %v3799
        %v3801 = vpop.f32.mrb[0].mxu0
        %3802 = vmatprep.mubr.bf16.mxu0 %v2805
        %3803 = vmatmul.mubr.bf16.gmra.mrb[0].mxu0 %v2725
        %v3804 = vpop.f32.mrb[0].mxu0
        %v3805 = vadd.f32 0.0, %v3804
        %v3806 = vpop.f32.mrb[0].mxu0
        %v3807 = vpop.f32.mrb[0].mxu0
        %v3808 = vadd.f32 0.0, %v3807
        %v3809 = vpop.f32.mrb[0].mxu0
        %3810 = vmatprep.mubr.bf16.mxu0 %v2806
        %3811 = vmatmul.mubr.bf16.gmra.mrb[0].mxu0 %v2726
        %v3812 = vpop.f32.mrb[0].mxu0
        %v3813 = vadd.f32 0.0, %v3812
        %v3814 = vpop.f32.mrb[0].mxu0
        %v3815 = vpop.f32.mrb[0].mxu0
        %v3816 = vadd.f32 0.0, %v3815
        %v3817 = vpop.f32.mrb[0].mxu0
        %3818 = vmatprep.mubr.bf16.mxu0 %v2807
        %3819 = vmatmul.mubr.bf16.gmra.mrb[0].mxu0 %v2727
        %v3820 = vpop.f32.mrb[0].mxu0
        %v3821 = vadd.f32 0.0, %v3820
        %v3822 = vpop.f32.mrb[0].mxu0
        %v3823 = vpop.f32.mrb[0].mxu0
        %v3824 = vadd.f32 0.0, %v3823
        %v3825 = vpop.f32.mrb[0].mxu0
        %3826 = vmatprep.mubr.bf16.mxu0 %v2808
        %3827 = vmatmul.mubr.bf16.gmra.mrb[0].mxu0 %v2728
        %v3828 = vpop.f32.mrb[0].mxu0
        %v3829 = vadd.f32 0.0, %v3828
        %v3830 = vpop.f32.mrb[0].mxu0
        %v3831 = vpop.f32.mrb[0].mxu0
        %v3832 = vadd.f32 0.0, %v3831
        %v3833 = vpop.f32.mrb[0].mxu0
        %3834 = vmatprep.mubr.bf16.mxu0 %v2809
        %3835 = vmatmul.mubr.bf16.gmra.mrb[0].mxu0 %v2729
        %v3836 = vpop.f32.mrb[0].mxu0
        %v3837 = vadd.f32 0.0, %v3836
        %v3838 = vpop.f32.mrb[0].mxu0
        %v3839 = vpop.f32.mrb[0].mxu0
        %v3840 = vadd.f32 0.0, %v3839
        %v3841 = vpop.f32.mrb[0].mxu0
        %3842 = vmatprep.mubr.bf16.mxu0 %v2810
        %3843 = vmatmul.mubr.bf16.gmra.mrb[0].mxu0 %v2730
        %v3844 = vpop.f32.mrb[0].mxu0
        %v3845 = vadd.f32 0.0, %v3844
        %v3846 = vpop.f32.mrb[0].mxu0
        %v3847 = vpop.f32.mrb[0].mxu0
        %v3848 = vadd.f32 0.0, %v3847
        %v3849 = vpop.f32.mrb[0].mxu0
        %3850 = vmatprep.mubr.bf16.mxu0 %v2811
        %3851 = vmatmul.mubr.bf16.gmra.mrb[0].mxu0 %v2731
        %v3852 = vpop.f32.mrb[0].mxu0
        %v3853 = vadd.f32 0.0, %v3852
        %v3854 = vpop.f32.mrb[0].mxu0
        %v3855 = vpop.f32.mrb[0].mxu0
        %v3856 = vadd.f32 0.0, %v3855
        %v3857 = vpop.f32.mrb[0].mxu0
        %3858 = vmatprep.mubr.bf16.mxu0 %v2812
        %3859 = vmatmul.mubr.bf16.gmra.mrb[0].mxu0 %v2732
        %v3860 = vpop.f32.mrb[0].mxu0
        %v3861 = vadd.f32 0.0, %v3860
        %v3862 = vpop.f32.mrb[0].mxu0
        %v3863 = vpop.f32.mrb[0].mxu0
        %v3864 = vadd.f32 0.0, %v3863
        %v3865 = vpop.f32.mrb[0].mxu0
        %3866 = vmatprep.mubr.bf16.mxu0 %v2813
        %3867 = vmatmul.mubr.bf16.gmra.mrb[0].mxu0 %v2733
        %v3868 = vpop.f32.mrb[0].mxu0
        %v3869 = vadd.f32 0.0, %v3868
        %v3870 = vpop.f32.mrb[0].mxu0
        %v3871 = vpop.f32.mrb[0].mxu0
        %v3872 = vadd.f32 0.0, %v3871
        %v3873 = vpop.f32.mrb[0].mxu0
        %3874 = vmatprep.mubr.bf16.mxu0 %v2814
        %3875 = vmatmul.mubr.bf16.gmra.mrb[0].mxu0 %v2734
        %v3876 = vpop.f32.mrb[0].mxu0
        %v3877 = vadd.f32 0.0, %v3876
        %v3878 = vpop.f32.mrb[0].mxu0
        %v3879 = vpop.f32.mrb[0].mxu0
        %v3880 = vadd.f32 0.0, %v3879
        %v3881 = vpop.f32.mrb[0].mxu0
        %3882 = vmatprep.mubr.bf16.mxu0 %v2815
        %3883 = vmatmul.mubr.bf16.gmra.mrb[0].mxu0 %v2735
        %v3884 = vpop.f32.mrb[0].mxu0
        %v3885 = vadd.f32 0.0, %v3884
        %v3886 = vpop.f32.mrb[0].mxu0
        %v3887 = vpop.f32.mrb[0].mxu0
        %v3888 = vadd.f32 0.0, %v3887
        %v3889 = vpop.f32.mrb[0].mxu0
        %3890 = vmatprep.mubr.bf16.mxu0 %v2816
        %3891 = vmatmul.mubr.bf16.gmra.mrb[0].mxu0 %v2736
        %v3892 = vpop.f32.mrb[0].mxu0
        %v3893 = vadd.f32 0.0, %v3892
        %v3894 = vpop.f32.mrb[0].mxu0
        %v3895 = vpop.f32.mrb[0].mxu0
        %v3896 = vadd.f32 0.0, %v3895
        %v3897 = vpop.f32.mrb[0].mxu0
        %3898 = vmatprep.mubr.bf16.mxu0 %v2817
        %3899 = vmatmul.mubr.bf16.gmra.mrb[0].mxu0 %v2737
        %v3900 = vpop.f32.mrb[0].mxu0
        %v3901 = vadd.f32 0.0, %v3900
        %v3902 = vpop.f32.mrb[0].mxu0
        %v3903 = vpop.f32.mrb[0].mxu0
        %v3904 = vadd.f32 0.0, %v3903
        %v3905 = vpop.f32.mrb[0].mxu0
        %3906 = vdwg.mxu0
        %3907 = vmatprep.subr.bf16.mxu0 0
        %3908 = vmatpush1.bf16.msra.mxu0 %v3618
        %3909 = vmatprep.subr.bf16.mxu0 0
        %3910 = vmatpush1.bf16.msra.mxu0 %v3619
        %3911 = vmatprep.subr.bf16.mxu0 0
        %3912 = vmatpush1.bf16.msra.mxu0 %v3620
        %3913 = vmatprep.subr.bf16.mxu0 0
        %3914 = vmatpush1.bf16.msra.mxu0 %v3621
        %3915 = vmatprep.subr.bf16.mxu0 0
        %3916 = vmatpush1.bf16.msra.mxu0 %v3622
        %3917 = vmatprep.subr.bf16.mxu0 0
        %3918 = vmatpush1.bf16.msra.mxu0 %v3623
        %3919 = vmatprep.subr.bf16.mxu0 0
        %3920 = vmatpush1.bf16.msra.mxu0 %v3624
        %3921 = vmatprep.subr.bf16.mxu0 0
        %3922 = vmatpush1.bf16.msra.mxu0 %v3625
        %3923 = vmatprep.subr.bf16.mxu0 0
        %3924 = vmatpush1.bf16.msra.mxu0 %v3626
        %3925 = vmatprep.subr.bf16.mxu0 0
        %3926 = vmatpush1.bf16.msra.mxu0 %v3627
        %3927 = vmatprep.subr.bf16.mxu0 0
        %3928 = vmatpush1.bf16.msra.mxu0 %v3628
        %3929 = vmatprep.subr.bf16.mxu0 0
        %3930 = vmatpush1.bf16.msra.mxu0 %v3629
        %3931 = vmatprep.subr.bf16.mxu0 0
        %3932 = vmatpush1.bf16.msra.mxu0 %v3630
        %3933 = vmatprep.subr.bf16.mxu0 0
        %3934 = vmatpush1.bf16.msra.mxu0 %v3631
        %3935 = vmatprep.subr.bf16.mxu0 0
        %3936 = vmatpush1.bf16.msra.mxu0 %v3632
        %3937 = vmatprep.subr.bf16.mxu0 0
        %3938 = vmatpush1.bf16.msra.mxu0 %v3633
        %3939 = vmatprep.mubr.bf16.mxu0 %v2962
        %3940 = vmatmul.mubr.bf16.gmra.mrb[0].mxu0 %v2882
        %v3941 = vpop.f32.mrb[0].mxu0
        %v3942 = vadd.f32 %v3781, %v3941
        %v3943 = vpop.f32.mrb[0].mxu0
        %v3944 = vpop.f32.mrb[0].mxu0
        %v3945 = vadd.f32 %v3784, %v3944
        %v3946 = vpop.f32.mrb[0].mxu0
        %3947 = vmatprep.mubr.bf16.mxu0 %v2963
        %3948 = vmatmul.mubr.bf16.gmra.mrb[0].mxu0 %v2883
        %v3949 = vpop.f32.mrb[0].mxu0
        %v3950 = vadd.f32 %v3789, %v3949
        %v3951 = vpop.f32.mrb[0].mxu0
        %v3952 = vpop.f32.mrb[0].mxu0
        %v3953 = vadd.f32 %v3792, %v3952
        %v3954 = vpop.f32.mrb[0].mxu0
        %3955 = vmatprep.mubr.bf16.mxu0 %v2964
        %3956 = vmatmul.mubr.bf16.gmra.mrb[0].mxu0 %v2884
        %v3957 = vpop.f32.mrb[0].mxu0
        %v3958 = vadd.f32 %v3797, %v3957
        %v3959 = vpop.f32.mrb[0].mxu0
        %v3960 = vpop.f32.mrb[0].mxu0
        %v3961 = vadd.f32 %v3800, %v3960
        %v3962 = vpop.f32.mrb[0].mxu0
        %3963 = vmatprep.mubr.bf16.mxu0 %v2965
        %3964 = vmatmul.mubr.bf16.gmra.mrb[0].mxu0 %v2885
        %v3965 = vpop.f32.mrb[0].mxu0
        %v3966 = vadd.f32 %v3805, %v3965
        %v3967 = vpop.f32.mrb[0].mxu0
        %v3968 = vpop.f32.mrb[0].mxu0
        %v3969 = vadd.f32 %v3808, %v3968
        %v3970 = vpop.f32.mrb[0].mxu0
        %3971 = vmatprep.mubr.bf16.mxu0 %v2966
        %3972 = vmatmul.mubr.bf16.gmra.mrb[0].mxu0 %v2886
        %v3973 = vpop.f32.mrb[0].mxu0
        %v3974 = vadd.f32 %v3813, %v3973
        %v3975 = vpop.f32.mrb[0].mxu0
        %v3976 = vpop.f32.mrb[0].mxu0
        %v3977 = vadd.f32 %v3816, %v3976
        %v3978 = vpop.f32.mrb[0].mxu0
        %3979 = vmatprep.mubr.bf16.mxu0 %v2967
        %3980 = vmatmul.mubr.bf16.gmra.mrb[0].mxu0 %v2887
        %v3981 = vpop.f32.mrb[0].mxu0
        %v3982 = vadd.f32 %v3821, %v3981
        %v3983 = vpop.f32.mrb[0].mxu0
        %v3984 = vpop.f32.mrb[0].mxu0
        %v3985 = vadd.f32 %v3824, %v3984
        %v3986 = vpop.f32.mrb[0].mxu0
        %3987 = vmatprep.mubr.bf16.mxu0 %v2968
        %3988 = vmatmul.mubr.bf16.gmra.mrb[0].mxu0 %v2888
        %v3989 = vpop.f32.mrb[0].mxu0
        %v3990 = vadd.f32 %v3829, %v3989
        %v3991 = vpop.f32.mrb[0].mxu0
        %v3992 = vpop.f32.mrb[0].mxu0
        %v3993 = vadd.f32 %v3832, %v3992
        %v3994 = vpop.f32.mrb[0].mxu0
        %3995 = vmatprep.mubr.bf16.mxu0 %v2969
        %3996 = vmatmul.mubr.bf16.gmra.mrb[0].mxu0 %v2889
        %v3997 = vpop.f32.mrb[0].mxu0
        %v3998 = vadd.f32 %v3837, %v3997
        %v3999 = vpop.f32.mrb[0].mxu0
        %v4000 = vpop.f32.mrb[0].mxu0
        %v4001 = vadd.f32 %v3840, %v4000
        %v4002 = vpop.f32.mrb[0].mxu0
        %4003 = vmatprep.mubr.bf16.mxu0 %v2970
        %4004 = vmatmul.mubr.bf16.gmra.mrb[0].mxu0 %v2890
        %v4005 = vpop.f32.mrb[0].mxu0
        %v4006 = vadd.f32 %v3845, %v4005
        %v4007 = vpop.f32.mrb[0].mxu0
        %v4008 = vpop.f32.mrb[0].mxu0
        %v4009 = vadd.f32 %v3848, %v4008
        %v4010 = vpop.f32.mrb[0].mxu0
        %4011 = vmatprep.mubr.bf16.mxu0 %v2971
        %4012 = vmatmul.mubr.bf16.gmra.mrb[0].mxu0 %v2891
        %v4013 = vpop.f32.mrb[0].mxu0
        %v4014 = vadd.f32 %v3853, %v4013
        %v4015 = vpop.f32.mrb[0].mxu0
        %v4016 = vpop.f32.mrb[0].mxu0
        %v4017 = vadd.f32 %v3856, %v4016
        %v4018 = vpop.f32.mrb[0].mxu0
        %4019 = vmatprep.mubr.bf16.mxu0 %v2972
        %4020 = vmatmul.mubr.bf16.gmra.mrb[0].mxu0 %v2892
        %v4021 = vpop.f32.mrb[0].mxu0
        %v4022 = vadd.f32 %v3861, %v4021
        %v4023 = vpop.f32.mrb[0].mxu0
        %v4024 = vpop.f32.mrb[0].mxu0
        %v4025 = vadd.f32 %v3864, %v4024
        %v4026 = vpop.f32.mrb[0].mxu0
        %4027 = vmatprep.mubr.bf16.mxu0 %v2973
        %4028 = vmatmul.mubr.bf16.gmra.mrb[0].mxu0 %v2893
        %v4029 = vpop.f32.mrb[0].mxu0
        %v4030 = vadd.f32 %v3869, %v4029
        %v4031 = vpop.f32.mrb[0].mxu0
        %v4032 = vpop.f32.mrb[0].mxu0
        %v4033 = vadd.f32 %v3872, %v4032
        %v4034 = vpop.f32.mrb[0].mxu0
        %4035 = vmatprep.mubr.bf16.mxu0 %v2974
        %4036 = vmatmul.mubr.bf16.gmra.mrb[0].mxu0 %v2894
        %v4037 = vpop.f32.mrb[0].mxu0
        %v4038 = vadd.f32 %v3877, %v4037
        %v4039 = vpop.f32.mrb[0].mxu0
        %v4040 = vpop.f32.mrb[0].mxu0
        %v4041 = vadd.f32 %v3880, %v4040
        %v4042 = vpop.f32.mrb[0].mxu0
        %4043 = vmatprep.mubr.bf16.mxu0 %v2975
        %4044 = vmatmul.mubr.bf16.gmra.mrb[0].mxu0 %v2895
        %v4045 = vpop.f32.mrb[0].mxu0
        %v4046 = vadd.f32 %v3885, %v4045
        %v4047 = vpop.f32.mrb[0].mxu0
        %v4048 = vpop.f32.mrb[0].mxu0
        %v4049 = vadd.f32 %v3888, %v4048
        %v4050 = vpop.f32.mrb[0].mxu0
        %4051 = vmatprep.mubr.bf16.mxu0 %v2976
        %4052 = vmatmul.mubr.bf16.gmra.mrb[0].mxu0 %v2896
        %v4053 = vpop.f32.mrb[0].mxu0
        %v4054 = vadd.f32 %v3893, %v4053
        %v4055 = vpop.f32.mrb[0].mxu0
        %v4056 = vpop.f32.mrb[0].mxu0
        %v4057 = vadd.f32 %v3896, %v4056
        %v4058 = vpop.f32.mrb[0].mxu0
        %4059 = vmatprep.mubr.bf16.mxu0 %v2977
        %4060 = vmatmul.mubr.bf16.gmra.mrb[0].mxu0 %v2897
        %v4061 = vpop.f32.mrb[0].mxu0
        %v4062 = vadd.f32 %v3901, %v4061
        %v4063 = vpop.f32.mrb[0].mxu0
        %v4064 = vpop.f32.mrb[0].mxu0
        %v4065 = vadd.f32 %v3904, %v4064
        %v4066 = vpop.f32.mrb[0].mxu0
        %4067 = vdwg.mxu0
        %4068 = vmatprep.subr.bf16.mxu0 0
        %4069 = vmatpush1.bf16.msra.mxu0 %v3634
        %4070 = vmatprep.subr.bf16.mxu0 0
        %4071 = vmatpush1.bf16.msra.mxu0 %v3635
        %4072 = vmatprep.subr.bf16.mxu0 0
        %4073 = vmatpush1.bf16.msra.mxu0 %v3636
        %4074 = vmatprep.subr.bf16.mxu0 0
        %4075 = vmatpush1.bf16.msra.mxu0 %v3637
        %4076 = vmatprep.subr.bf16.mxu0 0
        %4077 = vmatpush1.bf16.msra.mxu0 %v3638
        %4078 = vmatprep.subr.bf16.mxu0 0
        %4079 = vmatpush1.bf16.msra.mxu0 %v3639
        %4080 = vmatprep.subr.bf16.mxu0 0
        %4081 = vmatpush1.bf16.msra.mxu0 %v3640
        %4082 = vmatprep.subr.bf16.mxu0 0
        %4083 = vmatpush1.bf16.msra.mxu0 %v3641
        %4084 = vmatprep.subr.bf16.mxu0 0
        %4085 = vmatpush1.bf16.msra.mxu0 %v3642
        %4086 = vmatprep.subr.bf16.mxu0 0
        %4087 = vmatpush1.bf16.msra.mxu0 %v3643
        %4088 = vmatprep.subr.bf16.mxu0 0
        %4089 = vmatpush1.bf16.msra.mxu0 %v3644
        %4090 = vmatprep.subr.bf16.mxu0 0
        %4091 = vmatpush1.bf16.msra.mxu0 %v3645
        %4092 = vmatprep.subr.bf16.mxu0 0
        %4093 = vmatpush1.bf16.msra.mxu0 %v3646
        %4094 = vmatprep.subr.bf16.mxu0 0
        %4095 = vmatpush1.bf16.msra.mxu0 %v3647
        %4096 = vmatprep.subr.bf16.mxu0 0
        %4097 = vmatpush1.bf16.msra.mxu0 %v3648
        %4098 = vmatprep.subr.bf16.mxu0 0
        %4099 = vmatpush1.bf16.msra.mxu0 %v3649
        %4100 = vmatprep.mubr.bf16.mxu0 %v3122
        %4101 = vmatmul.mubr.bf16.gmra.mrb[0].mxu0 %v3042
        %v4102 = vpop.f32.mrb[0].mxu0
        %v4103 = vadd.f32 %v3942, %v4102
        %v4104 = vpop.f32.mrb[0].mxu0
        %v4105 = vpop.f32.mrb[0].mxu0
        %v4106 = vadd.f32 %v3945, %v4105
        %v4107 = vpop.f32.mrb[0].mxu0
        %4108 = vmatprep.mubr.bf16.mxu0 %v3123
        %4109 = vmatmul.mubr.bf16.gmra.mrb[0].mxu0 %v3043
        %v4110 = vpop.f32.mrb[0].mxu0
        %v4111 = vadd.f32 %v3950, %v4110
        %v4112 = vpop.f32.mrb[0].mxu0
        %v4113 = vpop.f32.mrb[0].mxu0
        %v4114 = vadd.f32 %v3953, %v4113
        %v4115 = vpop.f32.mrb[0].mxu0
        %4116 = vmatprep.mubr.bf16.mxu0 %v3124
        %4117 = vmatmul.mubr.bf16.gmra.mrb[0].mxu0 %v3044
        %v4118 = vpop.f32.mrb[0].mxu0
        %v4119 = vadd.f32 %v3958, %v4118
        %v4120 = vpop.f32.mrb[0].mxu0
        %v4121 = vpop.f32.mrb[0].mxu0
        %v4122 = vadd.f32 %v3961, %v4121
        %v4123 = vpop.f32.mrb[0].mxu0
        %4124 = vmatprep.mubr.bf16.mxu0 %v3125
        %4125 = vmatmul.mubr.bf16.gmra.mrb[0].mxu0 %v3045
        %v4126 = vpop.f32.mrb[0].mxu0
        %v4127 = vadd.f32 %v3966, %v4126
        %v4128 = vpop.f32.mrb[0].mxu0
        %v4129 = vpop.f32.mrb[0].mxu0
        %v4130 = vadd.f32 %v3969, %v4129
        %v4131 = vpop.f32.mrb[0].mxu0
        %4132 = vmatprep.mubr.bf16.mxu0 %v3126
        %4133 = vmatmul.mubr.bf16.gmra.mrb[0].mxu0 %v3046
        %v4134 = vpop.f32.mrb[0].mxu0
        %v4135 = vadd.f32 %v3974, %v4134
        %v4136 = vpop.f32.mrb[0].mxu0
        %v4137 = vpop.f32.mrb[0].mxu0
        %v4138 = vadd.f32 %v3977, %v4137
        %v4139 = vpop.f32.mrb[0].mxu0
        %4140 = vmatprep.mubr.bf16.mxu0 %v3127
        %4141 = vmatmul.mubr.bf16.gmra.mrb[0].mxu0 %v3047
        %v4142 = vpop.f32.mrb[0].mxu0
        %v4143 = vadd.f32 %v3982, %v4142
        %v4144 = vpop.f32.mrb[0].mxu0
        %v4145 = vpop.f32.mrb[0].mxu0
        %v4146 = vadd.f32 %v3985, %v4145
        %v4147 = vpop.f32.mrb[0].mxu0
        %4148 = vmatprep.mubr.bf16.mxu0 %v3128
        %4149 = vmatmul.mubr.bf16.gmra.mrb[0].mxu0 %v3048
        %v4150 = vpop.f32.mrb[0].mxu0
        %v4151 = vadd.f32 %v3990, %v4150
        %v4152 = vpop.f32.mrb[0].mxu0
        %v4153 = vpop.f32.mrb[0].mxu0
        %v4154 = vadd.f32 %v3993, %v4153
        %v4155 = vpop.f32.mrb[0].mxu0
        %4156 = vmatprep.mubr.bf16.mxu0 %v3129
        %4157 = vmatmul.mubr.bf16.gmra.mrb[0].mxu0 %v3049
        %v4158 = vpop.f32.mrb[0].mxu0
        %v4159 = vadd.f32 %v3998, %v4158
        %v4160 = vpop.f32.mrb[0].mxu0
        %v4161 = vpop.f32.mrb[0].mxu0
        %v4162 = vadd.f32 %v4001, %v4161
        %v4163 = vpop.f32.mrb[0].mxu0
        %4164 = vmatprep.mubr.bf16.mxu0 %v3130
        %4165 = vmatmul.mubr.bf16.gmra.mrb[0].mxu0 %v3050
        %v4166 = vpop.f32.mrb[0].mxu0
        %v4167 = vadd.f32 %v4006, %v4166
        %v4168 = vpop.f32.mrb[0].mxu0
        %v4169 = vpop.f32.mrb[0].mxu0
        %v4170 = vadd.f32 %v4009, %v4169
        %v4171 = vpop.f32.mrb[0].mxu0
        %4172 = vmatprep.mubr.bf16.mxu0 %v3131
        %4173 = vmatmul.mubr.bf16.gmra.mrb[0].mxu0 %v3051
        %v4174 = vpop.f32.mrb[0].mxu0
        %v4175 = vadd.f32 %v4014, %v4174
        %v4176 = vpop.f32.mrb[0].mxu0
        %v4177 = vpop.f32.mrb[0].mxu0
        %v4178 = vadd.f32 %v4017, %v4177
        %v4179 = vpop.f32.mrb[0].mxu0
        %4180 = vmatprep.mubr.bf16.mxu0 %v3132
        %4181 = vmatmul.mubr.bf16.gmra.mrb[0].mxu0 %v3052
        %v4182 = vpop.f32.mrb[0].mxu0
        %v4183 = vadd.f32 %v4022, %v4182
        %v4184 = vpop.f32.mrb[0].mxu0
        %v4185 = vpop.f32.mrb[0].mxu0
        %v4186 = vadd.f32 %v4025, %v4185
        %v4187 = vpop.f32.mrb[0].mxu0
        %4188 = vmatprep.mubr.bf16.mxu0 %v3133
        %4189 = vmatmul.mubr.bf16.gmra.mrb[0].mxu0 %v3053
        %v4190 = vpop.f32.mrb[0].mxu0
        %v4191 = vadd.f32 %v4030, %v4190
        %v4192 = vpop.f32.mrb[0].mxu0
        %v4193 = vpop.f32.mrb[0].mxu0
        %v4194 = vadd.f32 %v4033, %v4193
        %v4195 = vpop.f32.mrb[0].mxu0
        %4196 = vmatprep.mubr.bf16.mxu0 %v3134
        %4197 = vmatmul.mubr.bf16.gmra.mrb[0].mxu0 %v3054
        %v4198 = vpop.f32.mrb[0].mxu0
        %v4199 = vadd.f32 %v4038, %v4198
        %v4200 = vpop.f32.mrb[0].mxu0
        %v4201 = vpop.f32.mrb[0].mxu0
        %v4202 = vadd.f32 %v4041, %v4201
        %v4203 = vpop.f32.mrb[0].mxu0
        %4204 = vmatprep.mubr.bf16.mxu0 %v3135
        %4205 = vmatmul.mubr.bf16.gmra.mrb[0].mxu0 %v3055
        %v4206 = vpop.f32.mrb[0].mxu0
        %v4207 = vadd.f32 %v4046, %v4206
        %v4208 = vpop.f32.mrb[0].mxu0
        %v4209 = vpop.f32.mrb[0].mxu0
        %v4210 = vadd.f32 %v4049, %v4209
        %v4211 = vpop.f32.mrb[0].mxu0
        %4212 = vmatprep.mubr.bf16.mxu0 %v3136
        %4213 = vmatmul.mubr.bf16.gmra.mrb[0].mxu0 %v3056
        %v4214 = vpop.f32.mrb[0].mxu0
        %v4215 = vadd.f32 %v4054, %v4214
        %v4216 = vpop.f32.mrb[0].mxu0
        %v4217 = vpop.f32.mrb[0].mxu0
        %v4218 = vadd.f32 %v4057, %v4217
        %v4219 = vpop.f32.mrb[0].mxu0
        %4220 = vmatprep.mubr.bf16.mxu0 %v3137
        %4221 = vmatmul.mubr.bf16.gmra.mrb[0].mxu0 %v3057
        %v4222 = vpop.f32.mrb[0].mxu0
        %v4223 = vadd.f32 %v4062, %v4222
        %v4224 = vpop.f32.mrb[0].mxu0
        %v4225 = vpop.f32.mrb[0].mxu0
        %v4226 = vadd.f32 %v4065, %v4225
        %v4227 = vpop.f32.mrb[0].mxu0
        %4228 = vdwg.mxu0
        %4229 = vmatprep.subr.bf16.mxu0 0
        %4230 = vmatpush1.bf16.msra.mxu0 %v3650
        %4231 = vmatprep.subr.bf16.mxu0 0
        %4232 = vmatpush1.bf16.msra.mxu0 %v3651
        %4233 = vmatprep.subr.bf16.mxu0 0
        %4234 = vmatpush1.bf16.msra.mxu0 %v3652
        %4235 = vmatprep.subr.bf16.mxu0 0
        %4236 = vmatpush1.bf16.msra.mxu0 %v3653
        %4237 = vmatprep.subr.bf16.mxu0 0
        %4238 = vmatpush1.bf16.msra.mxu0 %v3654
        %4239 = vmatprep.subr.bf16.mxu0 0
        %4240 = vmatpush1.bf16.msra.mxu0 %v3655
        %4241 = vmatprep.subr.bf16.mxu0 0
        %4242 = vmatpush1.bf16.msra.mxu0 %v3656
        %4243 = vmatprep.subr.bf16.mxu0 0
        %4244 = vmatpush1.bf16.msra.mxu0 %v3657
        %4245 = vmatprep.subr.bf16.mxu0 0
        %4246 = vmatpush1.bf16.msra.mxu0 %v3658
        %4247 = vmatprep.subr.bf16.mxu0 0
        %4248 = vmatpush1.bf16.msra.mxu0 %v3659
        %4249 = vmatprep.subr.bf16.mxu0 0
        %4250 = vmatpush1.bf16.msra.mxu0 %v3660
        %4251 = vmatprep.subr.bf16.mxu0 0
        %4252 = vmatpush1.bf16.msra.mxu0 %v3661
        %4253 = vmatprep.subr.bf16.mxu0 0
        %4254 = vmatpush1.bf16.msra.mxu0 %v3662
        %4255 = vmatprep.subr.bf16.mxu0 0
        %4256 = vmatpush1.bf16.msra.mxu0 %v3663
        %4257 = vmatprep.subr.bf16.mxu0 0
        %4258 = vmatpush1.bf16.msra.mxu0 %v3664
        %4259 = vmatprep.subr.bf16.mxu0 0
        %4260 = vmatpush1.bf16.msra.mxu0 %v3665
        %4261 = vmatprep.mubr.bf16.mxu0 %v3282
        %4262 = vmatmul.mubr.bf16.gmra.mrb[0].mxu0 %v3202
        %v4263 = vpop.f32.mrb[0].mxu0
        %v4264 = vadd.f32 %v4103, %v4263
        %v4265 = vpop.f32.mrb[0].mxu0
        %v4266 = vpop.f32.mrb[0].mxu0
        %v4267 = vadd.f32 %v4106, %v4266
        %v4268 = vpop.f32.mrb[0].mxu0
        %4269 = vmatprep.mubr.bf16.mxu0 %v3283
        %4270 = vmatmul.mubr.bf16.gmra.mrb[0].mxu0 %v3203
        %v4271 = vpop.f32.mrb[0].mxu0
        %v4272 = vadd.f32 %v4111, %v4271
        %v4273 = vpop.f32.mrb[0].mxu0
        %v4274 = vpop.f32.mrb[0].mxu0
        %v4275 = vadd.f32 %v4114, %v4274
        %v4276 = vpop.f32.mrb[0].mxu0
        %4277 = vmatprep.mubr.bf16.mxu0 %v3284
        %4278 = vmatmul.mubr.bf16.gmra.mrb[0].mxu0 %v3204
        %v4279 = vpop.f32.mrb[0].mxu0
        %v4280 = vadd.f32 %v4119, %v4279
        %v4281 = vpop.f32.mrb[0].mxu0
        %v4282 = vpop.f32.mrb[0].mxu0
        %v4283 = vadd.f32 %v4122, %v4282
        %v4284 = vpop.f32.mrb[0].mxu0
        %4285 = vmatprep.mubr.bf16.mxu0 %v3285
        %4286 = vmatmul.mubr.bf16.gmra.mrb[0].mxu0 %v3205
        %v4287 = vpop.f32.mrb[0].mxu0
        %v4288 = vadd.f32 %v4127, %v4287
        %v4289 = vpop.f32.mrb[0].mxu0
        %v4290 = vpop.f32.mrb[0].mxu0
        %v4291 = vadd.f32 %v4130, %v4290
        %v4292 = vpop.f32.mrb[0].mxu0
        %4293 = vmatprep.mubr.bf16.mxu0 %v3286
        %4294 = vmatmul.mubr.bf16.gmra.mrb[0].mxu0 %v3206
        %v4295 = vpop.f32.mrb[0].mxu0
        %v4296 = vadd.f32 %v4135, %v4295
        %v4297 = vpop.f32.mrb[0].mxu0
        %v4298 = vpop.f32.mrb[0].mxu0
        %v4299 = vadd.f32 %v4138, %v4298
        %v4300 = vpop.f32.mrb[0].mxu0
        %4301 = vmatprep.mubr.bf16.mxu0 %v3287
        %4302 = vmatmul.mubr.bf16.gmra.mrb[0].mxu0 %v3207
        %v4303 = vpop.f32.mrb[0].mxu0
        %v4304 = vadd.f32 %v4143, %v4303
        %v4305 = vpop.f32.mrb[0].mxu0
        %v4306 = vpop.f32.mrb[0].mxu0
        %v4307 = vadd.f32 %v4146, %v4306
        %v4308 = vpop.f32.mrb[0].mxu0
        %4309 = vmatprep.mubr.bf16.mxu0 %v3288
        %4310 = vmatmul.mubr.bf16.gmra.mrb[0].mxu0 %v3208
        %v4311 = vpop.f32.mrb[0].mxu0
        %v4312 = vadd.f32 %v4151, %v4311
        %v4313 = vpop.f32.mrb[0].mxu0
        %v4314 = vpop.f32.mrb[0].mxu0
        %v4315 = vadd.f32 %v4154, %v4314
        %v4316 = vpop.f32.mrb[0].mxu0
        %4317 = vmatprep.mubr.bf16.mxu0 %v3289
        %4318 = vmatmul.mubr.bf16.gmra.mrb[0].mxu0 %v3209
        %v4319 = vpop.f32.mrb[0].mxu0
        %v4320 = vadd.f32 %v4159, %v4319
        %v4321 = vpop.f32.mrb[0].mxu0
        %v4322 = vpop.f32.mrb[0].mxu0
        %v4323 = vadd.f32 %v4162, %v4322
        %v4324 = vpop.f32.mrb[0].mxu0
        %4325 = vmatprep.mubr.bf16.mxu0 %v3290
        %4326 = vmatmul.mubr.bf16.gmra.mrb[0].mxu0 %v3210
        %v4327 = vpop.f32.mrb[0].mxu0
        %v4328 = vadd.f32 %v4167, %v4327
        %v4329 = vpop.f32.mrb[0].mxu0
        %v4330 = vpop.f32.mrb[0].mxu0
        %v4331 = vadd.f32 %v4170, %v4330
        %v4332 = vpop.f32.mrb[0].mxu0
        %4333 = vmatprep.mubr.bf16.mxu0 %v3291
        %4334 = vmatmul.mubr.bf16.gmra.mrb[0].mxu0 %v3211
        %v4335 = vpop.f32.mrb[0].mxu0
        %v4336 = vadd.f32 %v4175, %v4335
        %v4337 = vpop.f32.mrb[0].mxu0
        %v4338 = vpop.f32.mrb[0].mxu0
        %v4339 = vadd.f32 %v4178, %v4338
        %v4340 = vpop.f32.mrb[0].mxu0
        %4341 = vmatprep.mubr.bf16.mxu0 %v3292
        %4342 = vmatmul.mubr.bf16.gmra.mrb[0].mxu0 %v3212
        %v4343 = vpop.f32.mrb[0].mxu0
        %v4344 = vadd.f32 %v4183, %v4343
        %v4345 = vpop.f32.mrb[0].mxu0
        %v4346 = vpop.f32.mrb[0].mxu0
        %v4347 = vadd.f32 %v4186, %v4346
        %v4348 = vpop.f32.mrb[0].mxu0
        %4349 = vmatprep.mubr.bf16.mxu0 %v3293
        %4350 = vmatmul.mubr.bf16.gmra.mrb[0].mxu0 %v3213
        %v4351 = vpop.f32.mrb[0].mxu0
        %v4352 = vadd.f32 %v4191, %v4351
        %v4353 = vpop.f32.mrb[0].mxu0
        %v4354 = vpop.f32.mrb[0].mxu0
        %v4355 = vadd.f32 %v4194, %v4354
        %v4356 = vpop.f32.mrb[0].mxu0
        %4357 = vmatprep.mubr.bf16.mxu0 %v3294
        %4358 = vmatmul.mubr.bf16.gmra.mrb[0].mxu0 %v3214
        %v4359 = vpop.f32.mrb[0].mxu0
        %v4360 = vadd.f32 %v4199, %v4359
        %v4361 = vpop.f32.mrb[0].mxu0
        %v4362 = vpop.f32.mrb[0].mxu0
        %v4363 = vadd.f32 %v4202, %v4362
        %v4364 = vpop.f32.mrb[0].mxu0
        %4365 = vmatprep.mubr.bf16.mxu0 %v3295
        %4366 = vmatmul.mubr.bf16.gmra.mrb[0].mxu0 %v3215
        %v4367 = vpop.f32.mrb[0].mxu0
        %v4368 = vadd.f32 %v4207, %v4367
        %v4369 = vpop.f32.mrb[0].mxu0
        %v4370 = vpop.f32.mrb[0].mxu0
        %v4371 = vadd.f32 %v4210, %v4370
        %v4372 = vpop.f32.mrb[0].mxu0
        %4373 = vmatprep.mubr.bf16.mxu0 %v3296
        %4374 = vmatmul.mubr.bf16.gmra.mrb[0].mxu0 %v3216
        %v4375 = vpop.f32.mrb[0].mxu0
        %v4376 = vadd.f32 %v4215, %v4375
        %v4377 = vpop.f32.mrb[0].mxu0
        %v4378 = vpop.f32.mrb[0].mxu0
        %v4379 = vadd.f32 %v4218, %v4378
        %v4380 = vpop.f32.mrb[0].mxu0
        %4381 = vmatprep.mubr.bf16.mxu0 %v3297
        %4382 = vmatmul.mubr.bf16.gmra.mrb[0].mxu0 %v3217
        %v4383 = vpop.f32.mrb[0].mxu0
        %v4384 = vadd.f32 %v4223, %v4383
        %v4385 = vpop.f32.mrb[0].mxu0
        %v4386 = vpop.f32.mrb[0].mxu0
        %v4387 = vadd.f32 %v4226, %v4386
        %v4388 = vpop.f32.mrb[0].mxu0
        %4389 = vdwg.mxu0
        %4390 = vmatprep.subr.bf16.mxu0 0
        %4391 = vmatpush1.bf16.msra.mxu0 %v3666
        %4392 = vmatprep.subr.bf16.mxu0 0
        %4393 = vmatpush1.bf16.msra.mxu0 %v3667
        %4394 = vmatprep.subr.bf16.mxu0 0
        %4395 = vmatpush1.bf16.msra.mxu0 %v3668
        %4396 = vmatprep.subr.bf16.mxu0 0
        %4397 = vmatpush1.bf16.msra.mxu0 %v3669
        %4398 = vmatprep.subr.bf16.mxu0 0
        %4399 = vmatpush1.bf16.msra.mxu0 %v3670
        %4400 = vmatprep.subr.bf16.mxu0 0
        %4401 = vmatpush1.bf16.msra.mxu0 %v3671
        %4402 = vmatprep.subr.bf16.mxu0 0
        %4403 = vmatpush1.bf16.msra.mxu0 %v3672
        %4404 = vmatprep.subr.bf16.mxu0 0
        %4405 = vmatpush1.bf16.msra.mxu0 %v3673
        %4406 = vmatprep.subr.bf16.mxu0 0
        %4407 = vmatpush1.bf16.msra.mxu0 0
        %4408 = vmatprep.subr.bf16.mxu0 0
        %4409 = vmatpush1.bf16.msra.mxu0 0
        %4410 = vmatprep.subr.bf16.mxu0 0
        %4411 = vmatpush1.bf16.msra.mxu0 0
        %4412 = vmatprep.subr.bf16.mxu0 0
        %4413 = vmatpush1.bf16.msra.mxu0 0
        %4414 = vmatprep.subr.bf16.mxu0 0
        %4415 = vmatpush1.bf16.msra.mxu0 0
        %4416 = vmatprep.subr.bf16.mxu0 0
        %4417 = vmatpush1.bf16.msra.mxu0 0
        %4418 = vmatprep.subr.bf16.mxu0 0
        %4419 = vmatpush1.bf16.msra.mxu0 0
        %4420 = vmatprep.subr.bf16.mxu0 0
        %4421 = vmatpush1.bf16.msra.mxu0 0
        %4422 = vmatprep.mubr.bf16.mxu0 0
        %4423 = vmatmul.mubr.bf16.gmra.mrb[0].mxu0 %v3298
        %v4424 = vpop.f32.mrb[0].mxu0
        %v4425 = vadd.f32 %v4264, %v4424
        %v4426 = vpop.f32.mrb[0].mxu0
        %v4427 = vpop.f32.mrb[0].mxu0
        %v4428 = vadd.f32 %v4267, %v4427
        %v4429 = vpop.f32.mrb[0].mxu0
        %4430 = vmatprep.mubr.bf16.mxu0 0
        %4431 = vmatmul.mubr.bf16.gmra.mrb[0].mxu0 %v3299
        %v4432 = vpop.f32.mrb[0].mxu0
        %v4433 = vadd.f32 %v4272, %v4432
        %v4434 = vpop.f32.mrb[0].mxu0
        %v4435 = vpop.f32.mrb[0].mxu0
        %v4436 = vadd.f32 %v4275, %v4435
        %v4437 = vpop.f32.mrb[0].mxu0
        %4438 = vmatprep.mubr.bf16.mxu0 0
        %4439 = vmatmul.mubr.bf16.gmra.mrb[0].mxu0 %v3300
        %v4440 = vpop.f32.mrb[0].mxu0
        %v4441 = vadd.f32 %v4280, %v4440
        %v4442 = vpop.f32.mrb[0].mxu0
        %v4443 = vpop.f32.mrb[0].mxu0
        %v4444 = vadd.f32 %v4283, %v4443
        %v4445 = vpop.f32.mrb[0].mxu0
        %4446 = vmatprep.mubr.bf16.mxu0 0
        %4447 = vmatmul.mubr.bf16.gmra.mrb[0].mxu0 %v3301
        %v4448 = vpop.f32.mrb[0].mxu0
        %v4449 = vadd.f32 %v4288, %v4448
        %v4450 = vpop.f32.mrb[0].mxu0
        %v4451 = vpop.f32.mrb[0].mxu0
        %v4452 = vadd.f32 %v4291, %v4451
        %v4453 = vpop.f32.mrb[0].mxu0
        %4454 = vmatprep.mubr.bf16.mxu0 0
        %4455 = vmatmul.mubr.bf16.gmra.mrb[0].mxu0 %v3302
        %v4456 = vpop.f32.mrb[0].mxu0
        %v4457 = vadd.f32 %v4296, %v4456
        %v4458 = vpop.f32.mrb[0].mxu0
        %v4459 = vpop.f32.mrb[0].mxu0
        %v4460 = vadd.f32 %v4299, %v4459
        %v4461 = vpop.f32.mrb[0].mxu0
        %4462 = vmatprep.mubr.bf16.mxu0 0
        %4463 = vmatmul.mubr.bf16.gmra.mrb[0].mxu0 %v3303
        %v4464 = vpop.f32.mrb[0].mxu0
        %v4465 = vadd.f32 %v4304, %v4464
        %v4466 = vpop.f32.mrb[0].mxu0
        %v4467 = vpop.f32.mrb[0].mxu0
        %v4468 = vadd.f32 %v4307, %v4467
        %v4469 = vpop.f32.mrb[0].mxu0
        %4470 = vmatprep.mubr.bf16.mxu0 0
        %4471 = vmatmul.mubr.bf16.gmra.mrb[0].mxu0 %v3304
        %v4472 = vpop.f32.mrb[0].mxu0
        %v4473 = vadd.f32 %v4312, %v4472
        %v4474 = vpop.f32.mrb[0].mxu0
        %v4475 = vpop.f32.mrb[0].mxu0
        %v4476 = vadd.f32 %v4315, %v4475
        %v4477 = vpop.f32.mrb[0].mxu0
        %4478 = vmatprep.mubr.bf16.mxu0 0
        %4479 = vmatmul.mubr.bf16.gmra.mrb[0].mxu0 %v3305
        %v4480 = vpop.f32.mrb[0].mxu0
        %v4481 = vadd.f32 %v4320, %v4480
        %v4482 = vpop.f32.mrb[0].mxu0
        %v4483 = vpop.f32.mrb[0].mxu0
        %v4484 = vadd.f32 %v4323, %v4483
        %v4485 = vpop.f32.mrb[0].mxu0
        %4486 = vmatprep.mubr.bf16.mxu0 0
        %4487 = vmatmul.mubr.bf16.gmra.mrb[0].mxu0 %v3306
        %v4488 = vpop.f32.mrb[0].mxu0
        %v4489 = vadd.f32 %v4328, %v4488
        %v4490 = vpop.f32.mrb[0].mxu0
        %v4491 = vpop.f32.mrb[0].mxu0
        %v4492 = vadd.f32 %v4331, %v4491
        %v4493 = vpop.f32.mrb[0].mxu0
        %4494 = vmatprep.mubr.bf16.mxu0 0
        %4495 = vmatmul.mubr.bf16.gmra.mrb[0].mxu0 %v3307
        %v4496 = vpop.f32.mrb[0].mxu0
        %v4497 = vadd.f32 %v4336, %v4496
        %v4498 = vpop.f32.mrb[0].mxu0
        %v4499 = vpop.f32.mrb[0].mxu0
        %v4500 = vadd.f32 %v4339, %v4499
        %v4501 = vpop.f32.mrb[0].mxu0
        %4502 = vmatprep.mubr.bf16.mxu0 0
        %4503 = vmatmul.mubr.bf16.gmra.mrb[0].mxu0 %v3308
        %v4504 = vpop.f32.mrb[0].mxu0
        %v4505 = vadd.f32 %v4344, %v4504
        %v4506 = vpop.f32.mrb[0].mxu0
        %v4507 = vpop.f32.mrb[0].mxu0
        %v4508 = vadd.f32 %v4347, %v4507
        %v4509 = vpop.f32.mrb[0].mxu0
        %4510 = vmatprep.mubr.bf16.mxu0 0
        %4511 = vmatmul.mubr.bf16.gmra.mrb[0].mxu0 %v3309
        %v4512 = vpop.f32.mrb[0].mxu0
        %v4513 = vadd.f32 %v4352, %v4512
        %v4514 = vpop.f32.mrb[0].mxu0
        %v4515 = vpop.f32.mrb[0].mxu0
        %v4516 = vadd.f32 %v4355, %v4515
        %v4517 = vpop.f32.mrb[0].mxu0
        %4518 = vmatprep.mubr.bf16.mxu0 0
        %4519 = vmatmul.mubr.bf16.gmra.mrb[0].mxu0 %v3310
        %v4520 = vpop.f32.mrb[0].mxu0
        %v4521 = vadd.f32 %v4360, %v4520
        %v4522 = vpop.f32.mrb[0].mxu0
        %v4523 = vpop.f32.mrb[0].mxu0
        %v4524 = vadd.f32 %v4363, %v4523
        %v4525 = vpop.f32.mrb[0].mxu0
        %4526 = vmatprep.mubr.bf16.mxu0 0
        %4527 = vmatmul.mubr.bf16.gmra.mrb[0].mxu0 %v3311
        %v4528 = vpop.f32.mrb[0].mxu0
        %v4529 = vadd.f32 %v4368, %v4528
        %v4530 = vpop.f32.mrb[0].mxu0
        %v4531 = vpop.f32.mrb[0].mxu0
        %v4532 = vadd.f32 %v4371, %v4531
        %v4533 = vpop.f32.mrb[0].mxu0
        %4534 = vmatprep.mubr.bf16.mxu0 0
        %4535 = vmatmul.mubr.bf16.gmra.mrb[0].mxu0 %v3312
        %v4536 = vpop.f32.mrb[0].mxu0
        %v4537 = vadd.f32 %v4376, %v4536
        %v4538 = vpop.f32.mrb[0].mxu0
        %v4539 = vpop.f32.mrb[0].mxu0
        %v4540 = vadd.f32 %v4379, %v4539
        %v4541 = vpop.f32.mrb[0].mxu0
        %4542 = vmatprep.mubr.bf16.mxu0 0
        %4543 = vmatmul.mubr.bf16.gmra.mrb[0].mxu0 %v3313
        %v4544 = vpop.f32.mrb[0].mxu0
        %v4545 = vadd.f32 %v4384, %v4544
        %v4546 = vpop.f32.mrb[0].mxu0
        %v4547 = vpop.f32.mrb[0].mxu0
        %v4548 = vadd.f32 %v4387, %v4547
        %v4549 = vpop.f32.mrb[0].mxu0
        %4550 = vdwg.mxu0
        %v4551 = vld [vmem:[%s5] sm:$0x1]
        %v4553 = vlaneseq
        %v4554 = vshrl.u32 %v4553, 7
        %v4555 = vsub.s32 0, %v4554
        %v4556 = vrot.slane %v4551, %v4555
        %v4558 = vadd.f32 %v4425, %v4556
        %v4559 = vadd.f32 %v4428, %v4556
        %v4560 = vadd.f32 %v4433, %v4556
        %v4561 = vadd.f32 %v4436, %v4556
        %v4562 = vadd.f32 %v4441, %v4556
        %v4563 = vadd.f32 %v4444, %v4556
        %v4564 = vadd.f32 %v4449, %v4556
        %v4565 = vadd.f32 %v4452, %v4556
        %v4566 = vadd.f32 %v4457, %v4556
        %v4567 = vadd.f32 %v4460, %v4556
        %v4568 = vadd.f32 %v4465, %v4556
        %v4569 = vadd.f32 %v4468, %v4556
        %v4570 = vadd.f32 %v4473, %v4556
        %v4571 = vadd.f32 %v4476, %v4556
        %v4572 = vadd.f32 %v4481, %v4556
        %v4573 = vadd.f32 %v4484, %v4556
        %v4574 = vadd.f32 %v4489, %v4556
        %v4575 = vadd.f32 %v4492, %v4556
        %v4576 = vadd.f32 %v4497, %v4556
        %v4577 = vadd.f32 %v4500, %v4556
        %v4578 = vadd.f32 %v4505, %v4556
        %v4579 = vadd.f32 %v4508, %v4556
        %v4580 = vadd.f32 %v4513, %v4556
        %v4581 = vadd.f32 %v4516, %v4556
        %v4582 = vadd.f32 %v4521, %v4556
        %v4583 = vadd.f32 %v4524, %v4556
        %v4584 = vadd.f32 %v4529, %v4556
        %v4585 = vadd.f32 %v4532, %v4556
        %v4586 = vadd.f32 %v4537, %v4556
        %v4587 = vadd.f32 %v4540, %v4556
        %v4588 = vadd.f32 %v4545, %v4556
        %v4589 = vadd.f32 %v4548, %v4556
        %v4590 = vsel %vm2510, %v4558, 0.0
        %v4591 = vsel %vm2511, %v4559, 0.0
        %v4592 = vsel %vm2512, %v4560, 0.0
        %v4593 = vsel %vm2513, %v4561, 0.0
        %v4594 = vsel %vm2510, %v4562, 0.0
        %v4595 = vsel %vm2511, %v4563, 0.0
        %v4596 = vsel %vm2512, %v4564, 0.0
        %v4597 = vsel %vm2513, %v4565, 0.0
        %v4598 = vsel %vm2510, %v4566, 0.0
        %v4599 = vsel %vm2511, %v4567, 0.0
        %v4600 = vsel %vm2512, %v4568, 0.0
        %v4601 = vsel %vm2513, %v4569, 0.0
        %v4602 = vsel %vm2510, %v4570, 0.0
        %v4603 = vsel %vm2511, %v4571, 0.0
        %v4604 = vsel %vm2512, %v4572, 0.0
        %v4605 = vsel %vm2513, %v4573, 0.0
        %v4606 = vsel %vm2510, %v4574, 0.0
        %v4607 = vsel %vm2511, %v4575, 0.0
        %v4608 = vsel %vm2512, %v4576, 0.0
        %v4609 = vsel %vm2513, %v4577, 0.0
        %v4610 = vsel %vm2510, %v4578, 0.0
        %v4611 = vsel %vm2511, %v4579, 0.0
        %v4612 = vsel %vm2512, %v4580, 0.0
        %v4613 = vsel %vm2513, %v4581, 0.0
        %v4614 = vsel %vm2510, %v4582, 0.0
        %v4615 = vsel %vm2511, %v4583, 0.0
        %v4616 = vsel %vm2512, %v4584, 0.0
        %v4617 = vsel %vm2513, %v4585, 0.0
        %v4618 = vsel %vm2510, %v4586, 0.0
        %v4619 = vsel %vm2511, %v4587, 0.0
        %v4620 = vsel %vm2512, %v4588, 0.0
        %v4621 = vsel %vm2513, %v4589, 0.0
        %v4622 = vadd.f32 %v4590, %v2546
        %v4623 = vadd.f32 %v4591, %v2547
        %v4624 = vadd.f32 %v4592, %v2548
        %v4625 = vadd.f32 %v4593, %v2549
        %v4626 = vadd.f32 %v4594, %v2550
        %v4627 = vadd.f32 %v4595, %v2551
        %v4628 = vadd.f32 %v4596, %v2552
        %v4629 = vadd.f32 %v4597, %v2553
        %v4630 = vadd.f32 %v4598, %v2554
        %v4631 = vadd.f32 %v4599, %v2555
        %v4632 = vadd.f32 %v4600, %v2556
        %v4633 = vadd.f32 %v4601, %v2557
        %v4634 = vadd.f32 %v4602, %v2558
        %v4635 = vadd.f32 %v4603, %v2559
        %v4636 = vadd.f32 %v4604, %v2560
        %v4637 = vadd.f32 %v4605, %v2561
        %v4638 = vadd.f32 %v4606, %v2562
        %v4639 = vadd.f32 %v4607, %v2563
        %v4640 = vadd.f32 %v4608, %v2564
        %v4641 = vadd.f32 %v4609, %v2565
        %v4642 = vadd.f32 %v4610, %v2566
        %v4643 = vadd.f32 %v4611, %v2567
        %v4644 = vadd.f32 %v4612, %v2568
        %v4645 = vadd.f32 %v4613, %v2569
        %v4646 = vadd.f32 %v4614, %v2570
        %v4647 = vadd.f32 %v4615, %v2571
        %v4648 = vadd.f32 %v4616, %v2572
        %v4649 = vadd.f32 %v4617, %v2573
        %v4650 = vadd.f32 %v4618, %v2574
        %v4651 = vadd.f32 %v4619, %v2575
        %v4652 = vadd.f32 %v4620, %v2576
        %v4653 = vadd.f32 %v4621, %v2577
        %v4654 = vtanh.pop %v4622
        %v4655 = vtanh.pop %v4623
        %v4656 = vtanh.pop %v4624
        %v4657 = vtanh.pop %v4625
        %v4658 = vtanh.pop %v4626
        %v4659 = vtanh.pop %v4627
        %v4660 = vtanh.pop %v4628
        %v4661 = vtanh.pop %v4629
        %v4662 = vtanh.pop %v4630
        %v4663 = vtanh.pop %v4631
        %v4664 = vtanh.pop %v4632
        %v4665 = vtanh.pop %v4633
        %v4666 = vtanh.pop %v4634
        %v4667 = vtanh.pop %v4635
        %v4668 = vtanh.pop %v4636
        %v4669 = vtanh.pop %v4637
        %v4670 = vtanh.pop %v4638
        %v4671 = vtanh.pop %v4639
        %v4672 = vtanh.pop %v4640
        %v4673 = vtanh.pop %v4641
        %v4674 = vtanh.pop %v4642
        %v4675 = vtanh.pop %v4643
        %v4676 = vtanh.pop %v4644
        %v4677 = vtanh.pop %v4645
        %v4678 = vtanh.pop %v4646
        %v4679 = vtanh.pop %v4647
        %v4680 = vtanh.pop %v4648
        %v4681 = vtanh.pop %v4649
        %v4682 = vtanh.pop %v4650
        %v4683 = vtanh.pop %v4651
        %v4684 = vtanh.pop %v4652
        %v4685 = vtanh.pop %v4653
        %v4686 = vld [vmem:[#allocation11] sm:$0xf]
        %v4687 = vld [vmem:[#allocation11 + $0x4] sm:$0xf]
        %v4688 = vld [vmem:[#allocation11 + $0x8] sm:$0xf]
        %v4689 = vld [vmem:[#allocation11 + $0xc] sm:$0xf]
        %v4690 = vld [vmem:[#allocation11 + $0x10] sm:$0xf]
        %v4691 = vld [vmem:[#allocation11 + $0x14] sm:$0xf]
        %v4692 = vld [vmem:[#allocation11 + $0x18] sm:$0xf]
        %v4693 = vld [vmem:[#allocation11 + $0x1c] sm:$0xf]
        %v4694 = vld [vmem:[#allocation11 + $0x20] sm:$0xf]
        %v4695 = vld [vmem:[#allocation11 + $0x24] sm:$0xf]
        %v4696 = vld [vmem:[#allocation11 + $0x28] sm:$0xf]
        %v4697 = vld [vmem:[#allocation11 + $0x2c] sm:$0xf]
        %v4698 = vld [vmem:[#allocation11 + $0x30] sm:$0xf]
        %v4699 = vld [vmem:[#allocation11 + $0x34] sm:$0xf]
        %v4700 = vld [vmem:[#allocation11 + $0x38] sm:$0xf]
        %v4701 = vld [vmem:[#allocation11 + $0x3c] sm:$0xf]
        %v4702 = vld [vmem:[#allocation11 + $0x40] sm:$0xf]
        %v4703 = vld [vmem:[#allocation11 + $0x44] sm:$0xf]
        %v4704 = vld [vmem:[#allocation11 + $0x48] sm:$0xf]
        %v4705 = vld [vmem:[#allocation11 + $0x4c] sm:$0xf]
        %v4706 = vld [vmem:[#allocation11 + $0x50] sm:$0xf]
        %v4707 = vld [vmem:[#allocation11 + $0x54] sm:$0xf]
        %v4708 = vld [vmem:[#allocation11 + $0x58] sm:$0xf]
        %v4709 = vld [vmem:[#allocation11 + $0x5c] sm:$0xf]
        %v4710 = vld [vmem:[#allocation11 + $0x60] sm:$0xf]
        %v4711 = vld [vmem:[#allocation11 + $0x64] sm:$0xf]
        %v4712 = vld [vmem:[#allocation11 + $0x68] sm:$0xf]
        %v4713 = vld [vmem:[#allocation11 + $0x6c] sm:$0xf]
        %v4714 = vld [vmem:[#allocation11 + $0x70] sm:$0xf]
        %v4715 = vld [vmem:[#allocation11 + $0x74] sm:$0xf]
        %v4716 = vld [vmem:[#allocation11 + $0x78] sm:$0xf]
        %v4717 = vld [vmem:[#allocation11 + $0x7c] sm:$0xf]
        %v4718 = vld [vmem:[#allocation11 + $0x80] sm:$0xf]
        %v4719 = vld [vmem:[#allocation11 + $0x84] sm:$0xf]
        %v4720 = vld [vmem:[#allocation11 + $0x88] sm:$0xf]
        %v4721 = vld [vmem:[#allocation11 + $0x8c] sm:$0xf]
        %v4722 = vld [vmem:[#allocation11 + $0x90] sm:$0xf]
        %v4723 = vld [vmem:[#allocation11 + $0x94] sm:$0xf]
        %v4724 = vld [vmem:[#allocation11 + $0x98] sm:$0xf]
        %v4725 = vld [vmem:[#allocation11 + $0x9c] sm:$0xf]
        %v4726 = vld [vmem:[#allocation11 + $0xa0] sm:$0xf]
        %v4727 = vld [vmem:[#allocation11 + $0xa4] sm:$0xf]
        %v4728 = vld [vmem:[#allocation11 + $0xa8] sm:$0xf]
        %v4729 = vld [vmem:[#allocation11 + $0xac] sm:$0xf]
        %v4730 = vld [vmem:[#allocation11 + $0xb0] sm:$0xf]
        %v4731 = vld [vmem:[#allocation11 + $0xb4] sm:$0xf]
        %v4732 = vld [vmem:[#allocation11 + $0xb8] sm:$0xf]
        %v4733 = vld [vmem:[#allocation11 + $0xbc] sm:$0xf]
        %v4734 = vld [vmem:[#allocation11 + $0xc0] sm:$0xf]
        %v4735 = vld [vmem:[#allocation11 + $0xc4] sm:$0xf]
        %v4736 = vld [vmem:[#allocation11 + $0xc8] sm:$0xf]
        %v4737 = vld [vmem:[#allocation11 + $0xcc] sm:$0xf]
        %v4738 = vld [vmem:[#allocation11 + $0xd0] sm:$0xf]
        %v4739 = vld [vmem:[#allocation11 + $0xd4] sm:$0xf]
        %v4740 = vld [vmem:[#allocation11 + $0xd8] sm:$0xf]
        %v4741 = vld [vmem:[#allocation11 + $0xdc] sm:$0xf]
        %v4742 = vld [vmem:[#allocation11 + $0xe0] sm:$0xf]
        %v4743 = vld [vmem:[#allocation11 + $0xe4] sm:$0xf]
        %v4744 = vld [vmem:[#allocation11 + $0xe8] sm:$0xf]
        %v4745 = vld [vmem:[#allocation11 + $0xec] sm:$0xf]
        %v4746 = vld [vmem:[#allocation11 + $0xf0] sm:$0xf]
        %v4747 = vld [vmem:[#allocation11 + $0xf4] sm:$0xf]
        %v4748 = vld [vmem:[#allocation11 + $0xf8] sm:$0xf]
        %v4749 = vld [vmem:[#allocation11 + $0xfc] sm:$0xf]
        %v4750 = vld [vmem:[#allocation11 + $0x100] sm:$0xf]
        %v4751 = vld [vmem:[#allocation11 + $0x104] sm:$0xf]
        %v4752 = vld [vmem:[#allocation11 + $0x108] sm:$0xf]
        %v4753 = vld [vmem:[#allocation11 + $0x10c] sm:$0xf]
        %v4754 = vld [vmem:[#allocation11 + $0x110] sm:$0xf]
        %v4755 = vld [vmem:[#allocation11 + $0x114] sm:$0xf]
        %v4756 = vld [vmem:[#allocation11 + $0x118] sm:$0xf]
        %v4757 = vld [vmem:[#allocation11 + $0x11c] sm:$0xf]
        %v4758 = vld [vmem:[#allocation11 + $0x120] sm:$0xf]
        %v4759 = vld [vmem:[#allocation11 + $0x124] sm:$0xf]
        %v4760 = vld [vmem:[#allocation11 + $0x128] sm:$0xf]
        %v4761 = vld [vmem:[#allocation11 + $0x12c] sm:$0xf]
        %v4762 = vld [vmem:[#allocation11 + $0x130] sm:$0xf]
        %v4763 = vld [vmem:[#allocation11 + $0x134] sm:$0xf]
        %v4764 = vld [vmem:[#allocation11 + $0x138] sm:$0xf]
        %v4765 = vld [vmem:[#allocation11 + $0x13c] sm:$0xf]
        %v4766 = vld [vmem:[#allocation11 + $0x140] sm:$0xf]
        %v4767 = vld [vmem:[#allocation11 + $0x144] sm:$0xf]
        %v4768 = vld [vmem:[#allocation11 + $0x148] sm:$0xf]
        %v4769 = vld [vmem:[#allocation11 + $0x14c] sm:$0xf]
        %v4770 = vld [vmem:[#allocation11 + $0x150] sm:$0xf]
        %v4771 = vld [vmem:[#allocation11 + $0x154] sm:$0xf]
        %v4772 = vld [vmem:[#allocation11 + $0x158] sm:$0xf]
        %v4773 = vld [vmem:[#allocation11 + $0x15c] sm:$0xf]
        %v4774 = vld [vmem:[#allocation11 + $0x160] sm:$0xf]
        %v4775 = vld [vmem:[#allocation11 + $0x164] sm:$0xf]
        %v4776 = vld [vmem:[#allocation11 + $0x168] sm:$0xf]
        %v4777 = vld [vmem:[#allocation11 + $0x16c] sm:$0xf]
        %v4778 = vld [vmem:[#allocation11 + $0x170] sm:$0xf]
        %v4779 = vld [vmem:[#allocation11 + $0x174] sm:$0xf]
        %v4780 = vld [vmem:[#allocation11 + $0x178] sm:$0xf]
        %v4781 = vld [vmem:[#allocation11 + $0x17c] sm:$0xf]
        %v4782 = vld [vmem:[#allocation11 + $0x180] sm:$0xf]
        %v4783 = vld [vmem:[#allocation11 + $0x184] sm:$0xf]
        %v4784 = vld [vmem:[#allocation11 + $0x188] sm:$0xf]
        %v4785 = vld [vmem:[#allocation11 + $0x18c] sm:$0xf]
        %v4786 = vld [vmem:[#allocation11 + $0x190] sm:$0xf]
        %v4787 = vld [vmem:[#allocation11 + $0x194] sm:$0xf]
        %v4788 = vld [vmem:[#allocation11 + $0x198] sm:$0xf]
        %v4789 = vld [vmem:[#allocation11 + $0x19c] sm:$0xf]
        %v4790 = vld [vmem:[#allocation11 + $0x1a0] sm:$0xf]
        %v4791 = vld [vmem:[#allocation11 + $0x1a4] sm:$0xf]
        %v4792 = vld [vmem:[#allocation11 + $0x1a8] sm:$0xf]
        %v4793 = vld [vmem:[#allocation11 + $0x1ac] sm:$0xf]
        %v4794 = vld [vmem:[#allocation11 + $0x1b0] sm:$0xf]
        %v4795 = vld [vmem:[#allocation11 + $0x1b4] sm:$0xf]
        %v4796 = vld [vmem:[#allocation11 + $0x1b8] sm:$0xf]
        %v4797 = vld [vmem:[#allocation11 + $0x1bc] sm:$0xf]
        %v4798 = vld [vmem:[#allocation11 + $0x1c0] sm:$0xf]
        %v4799 = vld [vmem:[#allocation11 + $0x1c4] sm:$0xf]
        %v4800 = vld [vmem:[#allocation11 + $0x1c8] sm:$0xf]
        %v4801 = vld [vmem:[#allocation11 + $0x1cc] sm:$0xf]
        %v4802 = vld [vmem:[#allocation11 + $0x1d0] sm:$0xf]
        %v4803 = vld [vmem:[#allocation11 + $0x1d4] sm:$0xf]
        %v4804 = vld [vmem:[#allocation11 + $0x1d8] sm:$0xf]
        %v4805 = vld [vmem:[#allocation11 + $0x1dc] sm:$0xf]
        %v4806 = vld [vmem:[#allocation11 + $0x1e0] sm:$0xf]
        %v4807 = vld [vmem:[#allocation11 + $0x1e4] sm:$0xf]
        %v4808 = vld [vmem:[#allocation11 + $0x1e8] sm:$0xf]
        %v4809 = vld [vmem:[#allocation11 + $0x1ec] sm:$0xf]
        %v4810 = vld [vmem:[#allocation11 + $0x1f0] sm:$0xf]
        %v4811 = vld [vmem:[#allocation11 + $0x1f4] sm:$0xf]
        %v4812 = vld [vmem:[#allocation11 + $0x1f8] sm:$0xf]
        %v4813 = vld [vmem:[#allocation11 + $0x1fc] sm:$0xf]
        %v4814 = vld [vmem:[#allocation11 + $0x200] sm:$0xf]
        %v4815 = vld [vmem:[#allocation11 + $0x204] sm:$0xf]
        %v4816 = vld [vmem:[#allocation11 + $0x208] sm:$0xf]
        %v4817 = vld [vmem:[#allocation11 + $0x20c] sm:$0xf]
        %v4818 = vld [vmem:[#allocation11 + $0x210] sm:$0xf]
        %v4819 = vld [vmem:[#allocation11 + $0x214] sm:$0xf]
        %v4820 = vld [vmem:[#allocation11 + $0x218] sm:$0xf]
        %v4821 = vld [vmem:[#allocation11 + $0x21c] sm:$0xf]
        %v4822 = vld [vmem:[#allocation11 + $0x220] sm:$0xf]
        %v4823 = vld [vmem:[#allocation11 + $0x224] sm:$0xf]
        %v4824 = vld [vmem:[#allocation11 + $0x228] sm:$0xf]
        %v4825 = vld [vmem:[#allocation11 + $0x22c] sm:$0xf]
        %v4826 = vld [vmem:[#allocation11 + $0x230] sm:$0xf]
        %v4827 = vld [vmem:[#allocation11 + $0x234] sm:$0xf]
        %v4828 = vld [vmem:[#allocation11 + $0x238] sm:$0xf]
        %v4829 = vld [vmem:[#allocation11 + $0x23c] sm:$0xf]
        %v4830 = vpack.c.bf16 %v4655, %v4654
        %v4831 = vpack.c.bf16 %v4657, %v4656
        %v4832 = vpack.c.bf16 %v4659, %v4658
        %v4833 = vpack.c.bf16 %v4661, %v4660
        %v4834 = vpack.c.bf16 %v4663, %v4662
        %v4835 = vpack.c.bf16 %v4665, %v4664
        %v4836 = vpack.c.bf16 %v4667, %v4666
        %v4837 = vpack.c.bf16 %v4669, %v4668
        %v4838 = vpack.c.bf16 %v4671, %v4670
        %v4839 = vpack.c.bf16 %v4673, %v4672
        %v4840 = vpack.c.bf16 %v4675, %v4674
        %v4841 = vpack.c.bf16 %v4677, %v4676
        %v4842 = vpack.c.bf16 %v4679, %v4678
        %v4843 = vpack.c.bf16 %v4681, %v4680
        %v4844 = vpack.c.bf16 %v4683, %v4682
        %v4845 = vpack.c.bf16 %v4685, %v4684
        %v4846 = vrot.slane %v4654, 1
        %v4847 = vrot.slane %v4658, 1
        %v4848 = vrot.slane %v4662, 1
        %v4849 = vrot.slane %v4666, 1
        %v4850 = vrot.slane %v4670, 1
        %v4851 = vrot.slane %v4674, 1
        %v4852 = vrot.slane %v4678, 1
        %v4853 = vrot.slane %v4682, 1
        %v4854 = vrot.slane %v4655, 1
        %v4855 = vrot.slane %v4659, 1
        %v4856 = vrot.slane %v4663, 1
        %v4857 = vrot.slane %v4667, 1
        %v4858 = vrot.slane %v4671, 1
        %v4859 = vrot.slane %v4675, 1
        %v4860 = vrot.slane %v4679, 1
        %v4861 = vrot.slane %v4683, 1
        %v4862 = vrot.slane %v4656, 1
        %v4863 = vrot.slane %v4660, 1
        %v4864 = vrot.slane %v4664, 1
        %v4865 = vrot.slane %v4668, 1
        %v4866 = vrot.slane %v4672, 1
        %v4867 = vrot.slane %v4676, 1
        %v4868 = vrot.slane %v4680, 1
        %v4869 = vrot.slane %v4684, 1
        %v4870 = vrot.slane %v4657, 1
        %v4871 = vrot.slane %v4661, 1
        %v4872 = vrot.slane %v4665, 1
        %v4873 = vrot.slane %v4669, 1
        %v4874 = vrot.slane %v4673, 1
        %v4875 = vrot.slane %v4677, 1
        %v4876 = vrot.slane %v4681, 1
        %v4877 = vrot.slane %v4685, 1
        %v4878 = vsel %vm640, %v4862, %v4870
        %v4879 = vsel %vm640, %v4863, %v4871
        %v4880 = vsel %vm640, %v4864, %v4872
        %v4881 = vsel %vm640, %v4865, %v4873
        %v4882 = vsel %vm640, %v4866, %v4874
        %v4883 = vsel %vm640, %v4867, %v4875
        %v4884 = vsel %vm640, %v4868, %v4876
        %v4885 = vsel %vm640, %v4869, %v4877
        %v4886 = vsel %vm640, %v4854, %v4862
        %v4887 = vsel %vm640, %v4855, %v4863
        %v4888 = vsel %vm640, %v4856, %v4864
        %v4889 = vsel %vm640, %v4857, %v4865
        %v4890 = vsel %vm640, %v4858, %v4866
        %v4891 = vsel %vm640, %v4859, %v4867
        %v4892 = vsel %vm640, %v4860, %v4868
        %v4893 = vsel %vm640, %v4861, %v4869
        %v4894 = vsel %vm640, %v4846, %v4854
        %v4895 = vsel %vm640, %v4847, %v4855
        %v4896 = vsel %vm640, %v4848, %v4856
        %v4897 = vsel %vm640, %v4849, %v4857
        %v4898 = vsel %vm640, %v4850, %v4858
        %v4899 = vsel %vm640, %v4851, %v4859
        %v4900 = vsel %vm640, %v4852, %v4860
        %v4901 = vsel %vm640, %v4853, %v4861
        %v4902 = vsel %vm640, %v4870, %v4846
        %v4903 = vsel %vm640, %v4871, %v4847
        %v4904 = vsel %vm640, %v4872, %v4848
        %v4905 = vsel %vm640, %v4873, %v4849
        %v4906 = vsel %vm640, %v4874, %v4850
        %v4907 = vsel %vm640, %v4875, %v4851
        %v4908 = vsel %vm640, %v4876, %v4852
        %v4909 = vsel %vm640, %v4877, %v4853
        %v4910 = vpack.c.bf16 %v4886, %v4894
        %v4911 = vpack.c.bf16 %v4902, %v4878
        %v4912 = vpack.c.bf16 %v4887, %v4895
        %v4913 = vpack.c.bf16 %v4903, %v4879
        %v4914 = vpack.c.bf16 %v4888, %v4896
        %v4915 = vpack.c.bf16 %v4904, %v4880
        %v4916 = vpack.c.bf16 %v4889, %v4897
        %v4917 = vpack.c.bf16 %v4905, %v4881
        %v4918 = vpack.c.bf16 %v4890, %v4898
        %v4919 = vpack.c.bf16 %v4906, %v4882
        %v4920 = vpack.c.bf16 %v4891, %v4899
        %v4921 = vpack.c.bf16 %v4907, %v4883
        %v4922 = vpack.c.bf16 %v4892, %v4900
        %v4923 = vpack.c.bf16 %v4908, %v4884
        %v4924 = vpack.c.bf16 %v4893, %v4901
        %v4925 = vpack.c.bf16 %v4909, %v4885
        %v4926 = vrot.slane %v4654, 2
        %v4927 = vrot.slane %v4658, 2
        %v4928 = vrot.slane %v4662, 2
        %v4929 = vrot.slane %v4666, 2
        %v4930 = vrot.slane %v4670, 2
        %v4931 = vrot.slane %v4674, 2
        %v4932 = vrot.slane %v4678, 2
        %v4933 = vrot.slane %v4682, 2
        %v4934 = vrot.slane %v4655, 2
        %v4935 = vrot.slane %v4659, 2
        %v4936 = vrot.slane %v4663, 2
        %v4937 = vrot.slane %v4667, 2
        %v4938 = vrot.slane %v4671, 2
        %v4939 = vrot.slane %v4675, 2
        %v4940 = vrot.slane %v4679, 2
        %v4941 = vrot.slane %v4683, 2
        %v4942 = vrot.slane %v4656, 2
        %v4943 = vrot.slane %v4660, 2
        %v4944 = vrot.slane %v4664, 2
        %v4945 = vrot.slane %v4668, 2
        %v4946 = vrot.slane %v4672, 2
        %v4947 = vrot.slane %v4676, 2
        %v4948 = vrot.slane %v4680, 2
        %v4949 = vrot.slane %v4684, 2
        %v4950 = vrot.slane %v4657, 2
        %v4951 = vrot.slane %v4661, 2
        %v4952 = vrot.slane %v4665, 2
        %v4953 = vrot.slane %v4669, 2
        %v4954 = vrot.slane %v4673, 2
        %v4955 = vrot.slane %v4677, 2
        %v4956 = vrot.slane %v4681, 2
        %v4957 = vrot.slane %v4685, 2
        %v4958 = vsel %vm721, %v4942, %v4950
        %v4959 = vsel %vm721, %v4943, %v4951
        %v4960 = vsel %vm721, %v4944, %v4952
        %v4961 = vsel %vm721, %v4945, %v4953
        %v4962 = vsel %vm721, %v4946, %v4954
        %v4963 = vsel %vm721, %v4947, %v4955
        %v4964 = vsel %vm721, %v4948, %v4956
        %v4965 = vsel %vm721, %v4949, %v4957
        %v4966 = vsel %vm721, %v4934, %v4942
        %v4967 = vsel %vm721, %v4935, %v4943
        %v4968 = vsel %vm721, %v4936, %v4944
        %v4969 = vsel %vm721, %v4937, %v4945
        %v4970 = vsel %vm721, %v4938, %v4946
        %v4971 = vsel %vm721, %v4939, %v4947
        %v4972 = vsel %vm721, %v4940, %v4948
        %v4973 = vsel %vm721, %v4941, %v4949
        %v4974 = vsel %vm721, %v4926, %v4934
        %v4975 = vsel %vm721, %v4927, %v4935
        %v4976 = vsel %vm721, %v4928, %v4936
        %v4977 = vsel %vm721, %v4929, %v4937
        %v4978 = vsel %vm721, %v4930, %v4938
        %v4979 = vsel %vm721, %v4931, %v4939
        %v4980 = vsel %vm721, %v4932, %v4940
        %v4981 = vsel %vm721, %v4933, %v4941
        %v4982 = vsel %vm721, %v4950, %v4926
        %v4983 = vsel %vm721, %v4951, %v4927
        %v4984 = vsel %vm721, %v4952, %v4928
        %v4985 = vsel %vm721, %v4953, %v4929
        %v4986 = vsel %vm721, %v4954, %v4930
        %v4987 = vsel %vm721, %v4955, %v4931
        %v4988 = vsel %vm721, %v4956, %v4932
        %v4989 = vsel %vm721, %v4957, %v4933
        %v4990 = vpack.c.bf16 %v4966, %v4974
        %v4991 = vpack.c.bf16 %v4982, %v4958
        %v4992 = vpack.c.bf16 %v4967, %v4975
        %v4993 = vpack.c.bf16 %v4983, %v4959
        %v4994 = vpack.c.bf16 %v4968, %v4976
        %v4995 = vpack.c.bf16 %v4984, %v4960
        %v4996 = vpack.c.bf16 %v4969, %v4977
        %v4997 = vpack.c.bf16 %v4985, %v4961
        %v4998 = vpack.c.bf16 %v4970, %v4978
        %v4999 = vpack.c.bf16 %v4986, %v4962
        %v5000 = vpack.c.bf16 %v4971, %v4979
        %v5001 = vpack.c.bf16 %v4987, %v4963
        %v5002 = vpack.c.bf16 %v4972, %v4980
        %v5003 = vpack.c.bf16 %v4988, %v4964
        %v5004 = vpack.c.bf16 %v4973, %v4981
        %v5005 = vpack.c.bf16 %v4989, %v4965
        %v5006 = vrot.slane %v4654, 3
        %v5007 = vrot.slane %v4658, 3
        %v5008 = vrot.slane %v4662, 3
        %v5009 = vrot.slane %v4666, 3
        %v5010 = vrot.slane %v4670, 3
        %v5011 = vrot.slane %v4674, 3
        %v5012 = vrot.slane %v4678, 3
        %v5013 = vrot.slane %v4682, 3
        %v5014 = vrot.slane %v4655, 3
        %v5015 = vrot.slane %v4659, 3
        %v5016 = vrot.slane %v4663, 3
        %v5017 = vrot.slane %v4667, 3
        %v5018 = vrot.slane %v4671, 3
        %v5019 = vrot.slane %v4675, 3
        %v5020 = vrot.slane %v4679, 3
        %v5021 = vrot.slane %v4683, 3
        %v5022 = vrot.slane %v4656, 3
        %v5023 = vrot.slane %v4660, 3
        %v5024 = vrot.slane %v4664, 3
        %v5025 = vrot.slane %v4668, 3
        %v5026 = vrot.slane %v4672, 3
        %v5027 = vrot.slane %v4676, 3
        %v5028 = vrot.slane %v4680, 3
        %v5029 = vrot.slane %v4684, 3
        %v5030 = vrot.slane %v4657, 3
        %v5031 = vrot.slane %v4661, 3
        %v5032 = vrot.slane %v4665, 3
        %v5033 = vrot.slane %v4669, 3
        %v5034 = vrot.slane %v4673, 3
        %v5035 = vrot.slane %v4677, 3
        %v5036 = vrot.slane %v4681, 3
        %v5037 = vrot.slane %v4685, 3
        %v5038 = vsel %vm802, %v5022, %v5030
        %v5039 = vsel %vm802, %v5023, %v5031
        %v5040 = vsel %vm802, %v5024, %v5032
        %v5041 = vsel %vm802, %v5025, %v5033
        %v5042 = vsel %vm802, %v5026, %v5034
        %v5043 = vsel %vm802, %v5027, %v5035
        %v5044 = vsel %vm802, %v5028, %v5036
        %v5045 = vsel %vm802, %v5029, %v5037
        %v5046 = vsel %vm802, %v5014, %v5022
        %v5047 = vsel %vm802, %v5015, %v5023
        %v5048 = vsel %vm802, %v5016, %v5024
        %v5049 = vsel %vm802, %v5017, %v5025
        %v5050 = vsel %vm802, %v5018, %v5026
        %v5051 = vsel %vm802, %v5019, %v5027
        %v5052 = vsel %vm802, %v5020, %v5028
        %v5053 = vsel %vm802, %v5021, %v5029
        %v5054 = vsel %vm802, %v5006, %v5014
        %v5055 = vsel %vm802, %v5007, %v5015
        %v5056 = vsel %vm802, %v5008, %v5016
        %v5057 = vsel %vm802, %v5009, %v5017
        %v5058 = vsel %vm802, %v5010, %v5018
        %v5059 = vsel %vm802, %v5011, %v5019
        %v5060 = vsel %vm802, %v5012, %v5020
        %v5061 = vsel %vm802, %v5013, %v5021
        %v5062 = vsel %vm802, %v5030, %v5006
        %v5063 = vsel %vm802, %v5031, %v5007
        %v5064 = vsel %vm802, %v5032, %v5008
        %v5065 = vsel %vm802, %v5033, %v5009
        %v5066 = vsel %vm802, %v5034, %v5010
        %v5067 = vsel %vm802, %v5035, %v5011
        %v5068 = vsel %vm802, %v5036, %v5012
        %v5069 = vsel %vm802, %v5037, %v5013
        %v5070 = vpack.c.bf16 %v5046, %v5054
        %v5071 = vpack.c.bf16 %v5062, %v5038
        %v5072 = vpack.c.bf16 %v5047, %v5055
        %v5073 = vpack.c.bf16 %v5063, %v5039
        %v5074 = vpack.c.bf16 %v5048, %v5056
        %v5075 = vpack.c.bf16 %v5064, %v5040
        %v5076 = vpack.c.bf16 %v5049, %v5057
        %v5077 = vpack.c.bf16 %v5065, %v5041
        %v5078 = vpack.c.bf16 %v5050, %v5058
        %v5079 = vpack.c.bf16 %v5066, %v5042
        %v5080 = vpack.c.bf16 %v5051, %v5059
        %v5081 = vpack.c.bf16 %v5067, %v5043
        %v5082 = vpack.c.bf16 %v5052, %v5060
        %v5083 = vpack.c.bf16 %v5068, %v5044
        %v5084 = vpack.c.bf16 %v5053, %v5061
        %v5085 = vpack.c.bf16 %v5069, %v5045
        %v5086 = vrot.slane %v4654, 4
        %v5087 = vrot.slane %v4658, 4
        %v5088 = vrot.slane %v4662, 4
        %v5089 = vrot.slane %v4666, 4
        %v5090 = vrot.slane %v4670, 4
        %v5091 = vrot.slane %v4674, 4
        %v5092 = vrot.slane %v4678, 4
        %v5093 = vrot.slane %v4682, 4
        %v5094 = vrot.slane %v4655, 4
        %v5095 = vrot.slane %v4659, 4
        %v5096 = vrot.slane %v4663, 4
        %v5097 = vrot.slane %v4667, 4
        %v5098 = vrot.slane %v4671, 4
        %v5099 = vrot.slane %v4675, 4
        %v5100 = vrot.slane %v4679, 4
        %v5101 = vrot.slane %v4683, 4
        %v5102 = vrot.slane %v4656, 4
        %v5103 = vrot.slane %v4660, 4
        %v5104 = vrot.slane %v4664, 4
        %v5105 = vrot.slane %v4668, 4
        %v5106 = vrot.slane %v4672, 4
        %v5107 = vrot.slane %v4676, 4
        %v5108 = vrot.slane %v4680, 4
        %v5109 = vrot.slane %v4684, 4
        %v5110 = vrot.slane %v4657, 4
        %v5111 = vrot.slane %v4661, 4
        %v5112 = vrot.slane %v4665, 4
        %v5113 = vrot.slane %v4669, 4
        %v5114 = vrot.slane %v4673, 4
        %v5115 = vrot.slane %v4677, 4
        %v5116 = vrot.slane %v4681, 4
        %v5117 = vrot.slane %v4685, 4
        %v5118 = vsel %vm883, %v5102, %v5110
        %v5119 = vsel %vm883, %v5103, %v5111
        %v5120 = vsel %vm883, %v5104, %v5112
        %v5121 = vsel %vm883, %v5105, %v5113
        %v5122 = vsel %vm883, %v5106, %v5114
        %v5123 = vsel %vm883, %v5107, %v5115
        %v5124 = vsel %vm883, %v5108, %v5116
        %v5125 = vsel %vm883, %v5109, %v5117
        %v5126 = vsel %vm883, %v5094, %v5102
        %v5127 = vsel %vm883, %v5095, %v5103
        %v5128 = vsel %vm883, %v5096, %v5104
        %v5129 = vsel %vm883, %v5097, %v5105
        %v5130 = vsel %vm883, %v5098, %v5106
        %v5131 = vsel %vm883, %v5099, %v5107
        %v5132 = vsel %vm883, %v5100, %v5108
        %v5133 = vsel %vm883, %v5101, %v5109
        %v5134 = vsel %vm883, %v5086, %v5094
        %v5135 = vsel %vm883, %v5087, %v5095
        %v5136 = vsel %vm883, %v5088, %v5096
        %v5137 = vsel %vm883, %v5089, %v5097
        %v5138 = vsel %vm883, %v5090, %v5098
        %v5139 = vsel %vm883, %v5091, %v5099
        %v5140 = vsel %vm883, %v5092, %v5100
        %v5141 = vsel %vm883, %v5093, %v5101
        %v5142 = vsel %vm883, %v5110, %v5086
        %v5143 = vsel %vm883, %v5111, %v5087
        %v5144 = vsel %vm883, %v5112, %v5088
        %v5145 = vsel %vm883, %v5113, %v5089
        %v5146 = vsel %vm883, %v5114, %v5090
        %v5147 = vsel %vm883, %v5115, %v5091
        %v5148 = vsel %vm883, %v5116, %v5092
        %v5149 = vsel %vm883, %v5117, %v5093
        %v5150 = vpack.c.bf16 %v5126, %v5134
        %v5151 = vpack.c.bf16 %v5142, %v5118
        %v5152 = vpack.c.bf16 %v5127, %v5135
        %v5153 = vpack.c.bf16 %v5143, %v5119
        %v5154 = vpack.c.bf16 %v5128, %v5136
        %v5155 = vpack.c.bf16 %v5144, %v5120
        %v5156 = vpack.c.bf16 %v5129, %v5137
        %v5157 = vpack.c.bf16 %v5145, %v5121
        %v5158 = vpack.c.bf16 %v5130, %v5138
        %v5159 = vpack.c.bf16 %v5146, %v5122
        %v5160 = vpack.c.bf16 %v5131, %v5139
        %v5161 = vpack.c.bf16 %v5147, %v5123
        %v5162 = vpack.c.bf16 %v5132, %v5140
        %v5163 = vpack.c.bf16 %v5148, %v5124
        %v5164 = vpack.c.bf16 %v5133, %v5141
        %v5165 = vpack.c.bf16 %v5149, %v5125
        %v5166 = vrot.slane %v4654, 5
        %v5167 = vrot.slane %v4658, 5
        %v5168 = vrot.slane %v4662, 5
        %v5169 = vrot.slane %v4666, 5
        %v5170 = vrot.slane %v4670, 5
        %v5171 = vrot.slane %v4674, 5
        %v5172 = vrot.slane %v4678, 5
        %v5173 = vrot.slane %v4682, 5
        %v5174 = vrot.slane %v4655, 5
        %v5175 = vrot.slane %v4659, 5
        %v5176 = vrot.slane %v4663, 5
        %v5177 = vrot.slane %v4667, 5
        %v5178 = vrot.slane %v4671, 5
        %v5179 = vrot.slane %v4675, 5
        %v5180 = vrot.slane %v4679, 5
        %v5181 = vrot.slane %v4683, 5
        %v5182 = vrot.slane %v4656, 5
        %v5183 = vrot.slane %v4660, 5
        %v5184 = vrot.slane %v4664, 5
        %v5185 = vrot.slane %v4668, 5
        %v5186 = vrot.slane %v4672, 5
        %v5187 = vrot.slane %v4676, 5
        %v5188 = vrot.slane %v4680, 5
        %v5189 = vrot.slane %v4684, 5
        %v5190 = vrot.slane %v4657, 5
        %v5191 = vrot.slane %v4661, 5
        %v5192 = vrot.slane %v4665, 5
        %v5193 = vrot.slane %v4669, 5
        %v5194 = vrot.slane %v4673, 5
        %v5195 = vrot.slane %v4677, 5
        %v5196 = vrot.slane %v4681, 5
        %v5197 = vrot.slane %v4685, 5
        %v5198 = vsel %vm964, %v5182, %v5190
        %v5199 = vsel %vm964, %v5183, %v5191
        %v5200 = vsel %vm964, %v5184, %v5192
        %v5201 = vsel %vm964, %v5185, %v5193
        %v5202 = vsel %vm964, %v5186, %v5194
        %v5203 = vsel %vm964, %v5187, %v5195
        %v5204 = vsel %vm964, %v5188, %v5196
        %v5205 = vsel %vm964, %v5189, %v5197
        %v5206 = vsel %vm964, %v5174, %v5182
        %v5207 = vsel %vm964, %v5175, %v5183
        %v5208 = vsel %vm964, %v5176, %v5184
        %v5209 = vsel %vm964, %v5177, %v5185
        %v5210 = vsel %vm964, %v5178, %v5186
        %v5211 = vsel %vm964, %v5179, %v5187
        %v5212 = vsel %vm964, %v5180, %v5188
        %v5213 = vsel %vm964, %v5181, %v5189
        %v5214 = vsel %vm964, %v5166, %v5174
        %v5215 = vsel %vm964, %v5167, %v5175
        %v5216 = vsel %vm964, %v5168, %v5176
        %v5217 = vsel %vm964, %v5169, %v5177
        %v5218 = vsel %vm964, %v5170, %v5178
        %v5219 = vsel %vm964, %v5171, %v5179
        %v5220 = vsel %vm964, %v5172, %v5180
        %v5221 = vsel %vm964, %v5173, %v5181
        %v5222 = vsel %vm964, %v5190, %v5166
        %v5223 = vsel %vm964, %v5191, %v5167
        %v5224 = vsel %vm964, %v5192, %v5168
        %v5225 = vsel %vm964, %v5193, %v5169
        %v5226 = vsel %vm964, %v5194, %v5170
        %v5227 = vsel %vm964, %v5195, %v5171
        %v5228 = vsel %vm964, %v5196, %v5172
        %v5229 = vsel %vm964, %v5197, %v5173
        %v5230 = vpack.c.bf16 %v5206, %v5214
        %v5231 = vpack.c.bf16 %v5222, %v5198
        %v5232 = vpack.c.bf16 %v5207, %v5215
        %v5233 = vpack.c.bf16 %v5223, %v5199
        %v5234 = vpack.c.bf16 %v5208, %v5216
        %v5235 = vpack.c.bf16 %v5224, %v5200
        %v5236 = vpack.c.bf16 %v5209, %v5217
        %v5237 = vpack.c.bf16 %v5225, %v5201
        %v5238 = vpack.c.bf16 %v5210, %v5218
        %v5239 = vpack.c.bf16 %v5226, %v5202
        %v5240 = vpack.c.bf16 %v5211, %v5219
        %v5241 = vpack.c.bf16 %v5227, %v5203
        %v5242 = vpack.c.bf16 %v5212, %v5220
        %v5243 = vpack.c.bf16 %v5228, %v5204
        %v5244 = vpack.c.bf16 %v5213, %v5221
        %v5245 = vpack.c.bf16 %v5229, %v5205
        %v5246 = vrot.slane %v4654, 6
        %v5247 = vrot.slane %v4658, 6
        %v5248 = vrot.slane %v4662, 6
        %v5249 = vrot.slane %v4666, 6
        %v5250 = vrot.slane %v4670, 6
        %v5251 = vrot.slane %v4674, 6
        %v5252 = vrot.slane %v4678, 6
        %v5253 = vrot.slane %v4682, 6
        %v5254 = vrot.slane %v4655, 6
        %v5255 = vrot.slane %v4659, 6
        %v5256 = vrot.slane %v4663, 6
        %v5257 = vrot.slane %v4667, 6
        %v5258 = vrot.slane %v4671, 6
        %v5259 = vrot.slane %v4675, 6
        %v5260 = vrot.slane %v4679, 6
        %v5261 = vrot.slane %v4683, 6
        %v5262 = vrot.slane %v4656, 6
        %v5263 = vrot.slane %v4660, 6
        %v5264 = vrot.slane %v4664, 6
        %v5265 = vrot.slane %v4668, 6
        %v5266 = vrot.slane %v4672, 6
        %v5267 = vrot.slane %v4676, 6
        %v5268 = vrot.slane %v4680, 6
        %v5269 = vrot.slane %v4684, 6
        %v5270 = vrot.slane %v4657, 6
        %v5271 = vrot.slane %v4661, 6
        %v5272 = vrot.slane %v4665, 6
        %v5273 = vrot.slane %v4669, 6
        %v5274 = vrot.slane %v4673, 6
        %v5275 = vrot.slane %v4677, 6
        %v5276 = vrot.slane %v4681, 6
        %v5277 = vrot.slane %v4685, 6
        %v5278 = vsel %vm1045, %v5262, %v5270
        %v5279 = vsel %vm1045, %v5263, %v5271
        %v5280 = vsel %vm1045, %v5264, %v5272
        %v5281 = vsel %vm1045, %v5265, %v5273
        %v5282 = vsel %vm1045, %v5266, %v5274
        %v5283 = vsel %vm1045, %v5267, %v5275
        %v5284 = vsel %vm1045, %v5268, %v5276
        %v5285 = vsel %vm1045, %v5269, %v5277
        %v5286 = vsel %vm1045, %v5254, %v5262
        %v5287 = vsel %vm1045, %v5255, %v5263
        %v5288 = vsel %vm1045, %v5256, %v5264
        %v5289 = vsel %vm1045, %v5257, %v5265
        %v5290 = vsel %vm1045, %v5258, %v5266
        %v5291 = vsel %vm1045, %v5259, %v5267
        %v5292 = vsel %vm1045, %v5260, %v5268
        %v5293 = vsel %vm1045, %v5261, %v5269
        %v5294 = vsel %vm1045, %v5246, %v5254
        %v5295 = vsel %vm1045, %v5247, %v5255
        %v5296 = vsel %vm1045, %v5248, %v5256
        %v5297 = vsel %vm1045, %v5249, %v5257
        %v5298 = vsel %vm1045, %v5250, %v5258
        %v5299 = vsel %vm1045, %v5251, %v5259
        %v5300 = vsel %vm1045, %v5252, %v5260
        %v5301 = vsel %vm1045, %v5253, %v5261
        %v5302 = vsel %vm1045, %v5270, %v5246
        %v5303 = vsel %vm1045, %v5271, %v5247
        %v5304 = vsel %vm1045, %v5272, %v5248
        %v5305 = vsel %vm1045, %v5273, %v5249
        %v5306 = vsel %vm1045, %v5274, %v5250
        %v5307 = vsel %vm1045, %v5275, %v5251
        %v5308 = vsel %vm1045, %v5276, %v5252
        %v5309 = vsel %vm1045, %v5277, %v5253
        %v5310 = vpack.c.bf16 %v5286, %v5294
        %v5311 = vpack.c.bf16 %v5302, %v5278
        %v5312 = vpack.c.bf16 %v5287, %v5295
        %v5313 = vpack.c.bf16 %v5303, %v5279
        %v5314 = vpack.c.bf16 %v5288, %v5296
        %v5315 = vpack.c.bf16 %v5304, %v5280
        %v5316 = vpack.c.bf16 %v5289, %v5297
        %v5317 = vpack.c.bf16 %v5305, %v5281
        %v5318 = vpack.c.bf16 %v5290, %v5298
        %v5319 = vpack.c.bf16 %v5306, %v5282
        %v5320 = vpack.c.bf16 %v5291, %v5299
        %v5321 = vpack.c.bf16 %v5307, %v5283
        %v5322 = vpack.c.bf16 %v5292, %v5300
        %v5323 = vpack.c.bf16 %v5308, %v5284
        %v5324 = vpack.c.bf16 %v5293, %v5301
        %v5325 = vpack.c.bf16 %v5309, %v5285
        %v5326 = vrot.slane %v4654, 7
        %v5327 = vrot.slane %v4658, 7
        %v5328 = vrot.slane %v4662, 7
        %v5329 = vrot.slane %v4666, 7
        %v5330 = vrot.slane %v4670, 7
        %v5331 = vrot.slane %v4674, 7
        %v5332 = vrot.slane %v4678, 7
        %v5333 = vrot.slane %v4682, 7
        %v5334 = vrot.slane %v4655, 7
        %v5335 = vrot.slane %v4659, 7
        %v5336 = vrot.slane %v4663, 7
        %v5337 = vrot.slane %v4667, 7
        %v5338 = vrot.slane %v4671, 7
        %v5339 = vrot.slane %v4675, 7
        %v5340 = vrot.slane %v4679, 7
        %v5341 = vrot.slane %v4683, 7
        %v5342 = vrot.slane %v4656, 7
        %v5343 = vrot.slane %v4660, 7
        %v5344 = vrot.slane %v4664, 7
        %v5345 = vrot.slane %v4668, 7
        %v5346 = vrot.slane %v4672, 7
        %v5347 = vrot.slane %v4676, 7
        %v5348 = vrot.slane %v4680, 7
        %v5349 = vrot.slane %v4684, 7
        %v5350 = vrot.slane %v4657, 7
        %v5351 = vrot.slane %v4661, 7
        %v5352 = vrot.slane %v4665, 7
        %v5353 = vrot.slane %v4669, 7
        %v5354 = vrot.slane %v4673, 7
        %v5355 = vrot.slane %v4677, 7
        %v5356 = vrot.slane %v4681, 7
        %v5357 = vrot.slane %v4685, 7
        %v5358 = vsel %vm1126, %v5342, %v5350
        %v5359 = vsel %vm1126, %v5343, %v5351
        %v5360 = vsel %vm1126, %v5344, %v5352
        %v5361 = vsel %vm1126, %v5345, %v5353
        %v5362 = vsel %vm1126, %v5346, %v5354
        %v5363 = vsel %vm1126, %v5347, %v5355
        %v5364 = vsel %vm1126, %v5348, %v5356
        %v5365 = vsel %vm1126, %v5349, %v5357
        %v5366 = vsel %vm1126, %v5334, %v5342
        %v5367 = vsel %vm1126, %v5335, %v5343
        %v5368 = vsel %vm1126, %v5336, %v5344
        %v5369 = vsel %vm1126, %v5337, %v5345
        %v5370 = vsel %vm1126, %v5338, %v5346
        %v5371 = vsel %vm1126, %v5339, %v5347
        %v5372 = vsel %vm1126, %v5340, %v5348
        %v5373 = vsel %vm1126, %v5341, %v5349
        %v5374 = vsel %vm1126, %v5326, %v5334
        %v5375 = vsel %vm1126, %v5327, %v5335
        %v5376 = vsel %vm1126, %v5328, %v5336
        %v5377 = vsel %vm1126, %v5329, %v5337
        %v5378 = vsel %vm1126, %v5330, %v5338
        %v5379 = vsel %vm1126, %v5331, %v5339
        %v5380 = vsel %vm1126, %v5332, %v5340
        %v5381 = vsel %vm1126, %v5333, %v5341
        %v5382 = vsel %vm1126, %v5350, %v5326
        %v5383 = vsel %vm1126, %v5351, %v5327
        %v5384 = vsel %vm1126, %v5352, %v5328
        %v5385 = vsel %vm1126, %v5353, %v5329
        %v5386 = vsel %vm1126, %v5354, %v5330
        %v5387 = vsel %vm1126, %v5355, %v5331
        %v5388 = vsel %vm1126, %v5356, %v5332
        %v5389 = vsel %vm1126, %v5357, %v5333
        %v5390 = vpack.c.bf16 %v5366, %v5374
        %v5391 = vpack.c.bf16 %v5382, %v5358
        %v5392 = vpack.c.bf16 %v5367, %v5375
        %v5393 = vpack.c.bf16 %v5383, %v5359
        %v5394 = vpack.c.bf16 %v5368, %v5376
        %v5395 = vpack.c.bf16 %v5384, %v5360
        %v5396 = vpack.c.bf16 %v5369, %v5377
        %v5397 = vpack.c.bf16 %v5385, %v5361
        %v5398 = vpack.c.bf16 %v5370, %v5378
        %v5399 = vpack.c.bf16 %v5386, %v5362
        %v5400 = vpack.c.bf16 %v5371, %v5379
        %v5401 = vpack.c.bf16 %v5387, %v5363
        %v5402 = vpack.c.bf16 %v5372, %v5380
        %v5403 = vpack.c.bf16 %v5388, %v5364
        %v5404 = vpack.c.bf16 %v5373, %v5381
        %v5405 = vpack.c.bf16 %v5389, %v5365
        %v5406 = vpack.c.bf16 %v4656, %v4655
        %v5407 = vpack.c.bf16 %v4654, %v4657
        %v5408 = vpack.c.bf16 %v4660, %v4659
        %v5409 = vpack.c.bf16 %v4658, %v4661
        %v5410 = vpack.c.bf16 %v4664, %v4663
        %v5411 = vpack.c.bf16 %v4662, %v4665
        %v5412 = vpack.c.bf16 %v4668, %v4667
        %v5413 = vpack.c.bf16 %v4666, %v4669
        %v5414 = vpack.c.bf16 %v4672, %v4671
        %v5415 = vpack.c.bf16 %v4670, %v4673
        %v5416 = vpack.c.bf16 %v4676, %v4675
        %v5417 = vpack.c.bf16 %v4674, %v4677
        %v5418 = vpack.c.bf16 %v4680, %v4679
        %v5419 = vpack.c.bf16 %v4678, %v4681
        %v5420 = vpack.c.bf16 %v4684, %v4683
        %v5421 = vpack.c.bf16 %v4682, %v4685
        %v5566 = vunpack.c.l.b16 %v4686
        %v5567 = vunpack.c.l.b16 %v4687
        %v5568 = vunpack.c.l.b16 %v4688
        %v5569 = vunpack.c.l.b16 %v4689
        %v5570 = vunpack.c.l.b16 %v4690
        %v5571 = vunpack.c.l.b16 %v4691
        %v5572 = vunpack.c.l.b16 %v4692
        %v5573 = vunpack.c.l.b16 %v4693
        %v5574 = vunpack.c.l.b16 %v4694
        %v5575 = vunpack.c.l.b16 %v4695
        %v5576 = vunpack.c.l.b16 %v4696
        %v5577 = vunpack.c.l.b16 %v4697
        %v5578 = vunpack.c.l.b16 %v4698
        %v5579 = vunpack.c.l.b16 %v4699
        %v5580 = vunpack.c.l.b16 %v4700
        %v5581 = vunpack.c.l.b16 %v4701
        %v5582 = vunpack.c.l.b16 %v4702
        %v5583 = vunpack.c.l.b16 %v4703
        %v5584 = vunpack.c.l.b16 %v4704
        %v5585 = vunpack.c.l.b16 %v4705
        %v5586 = vunpack.c.l.b16 %v4706
        %v5587 = vunpack.c.l.b16 %v4707
        %v5588 = vunpack.c.l.b16 %v4708
        %v5589 = vunpack.c.l.b16 %v4709
        %v5590 = vunpack.c.l.b16 %v4710
        %v5591 = vunpack.c.l.b16 %v4711
        %v5592 = vunpack.c.l.b16 %v4712
        %v5593 = vunpack.c.l.b16 %v4713
        %v5594 = vunpack.c.l.b16 %v4714
        %v5595 = vunpack.c.l.b16 %v4715
        %v5596 = vunpack.c.l.b16 %v4716
        %v5597 = vunpack.c.l.b16 %v4717
        %v5598 = vunpack.c.l.b16 %v4718
        %v5599 = vunpack.c.l.b16 %v4719
        %v5600 = vunpack.c.l.b16 %v4720
        %v5601 = vunpack.c.l.b16 %v4721
        %v5602 = vunpack.c.l.b16 %v4722
        %v5603 = vunpack.c.l.b16 %v4723
        %v5604 = vunpack.c.l.b16 %v4724
        %v5605 = vunpack.c.l.b16 %v4725
        %v5606 = vunpack.c.l.b16 %v4726
        %v5607 = vunpack.c.l.b16 %v4727
        %v5608 = vunpack.c.l.b16 %v4728
        %v5609 = vunpack.c.l.b16 %v4729
        %v5610 = vunpack.c.l.b16 %v4730
        %v5611 = vunpack.c.l.b16 %v4731
        %v5612 = vunpack.c.l.b16 %v4732
        %v5613 = vunpack.c.l.b16 %v4733
        %v5614 = vunpack.c.l.b16 %v4734
        %v5615 = vunpack.c.l.b16 %v4735
        %v5616 = vunpack.c.l.b16 %v4736
        %v5617 = vunpack.c.l.b16 %v4737
        %v5618 = vunpack.c.l.b16 %v4738
        %v5619 = vunpack.c.l.b16 %v4739
        %v5620 = vunpack.c.l.b16 %v4740
        %v5621 = vunpack.c.l.b16 %v4741
        %v5622 = vunpack.c.l.b16 %v4742
        %v5623 = vunpack.c.l.b16 %v4743
        %v5624 = vunpack.c.l.b16 %v4744
        %v5625 = vunpack.c.l.b16 %v4745
        %v5626 = vunpack.c.l.b16 %v4746
        %v5627 = vunpack.c.l.b16 %v4747
        %v5628 = vunpack.c.l.b16 %v4748
        %v5629 = vunpack.c.l.b16 %v4749
        %v5630 = vunpack.c.l.b16 %v4750
        %v5631 = vunpack.c.l.b16 %v4751
        %v5632 = vunpack.c.l.b16 %v4752
        %v5633 = vunpack.c.l.b16 %v4753
        %v5634 = vunpack.c.l.b16 %v4754
        %v5635 = vunpack.c.l.b16 %v4755
        %v5636 = vunpack.c.l.b16 %v4756
        %v5637 = vunpack.c.l.b16 %v4757
        %v5638 = vunpack.c.l.b16 %v4758
        %v5639 = vunpack.c.l.b16 %v4759
        %v5640 = vunpack.c.l.b16 %v4760
        %v5641 = vunpack.c.l.b16 %v4761
        %v5642 = vunpack.c.l.b16 %v4762
        %v5643 = vunpack.c.l.b16 %v4763
        %v5644 = vunpack.c.l.b16 %v4764
        %v5645 = vunpack.c.l.b16 %v4765
        %v5646 = vunpack.c.l.b16 %v4766
        %v5647 = vunpack.c.l.b16 %v4767
        %v5648 = vunpack.c.l.b16 %v4768
        %v5649 = vunpack.c.l.b16 %v4769
        %v5650 = vunpack.c.l.b16 %v4770
        %v5651 = vunpack.c.l.b16 %v4771
        %v5652 = vunpack.c.l.b16 %v4772
        %v5653 = vunpack.c.l.b16 %v4773
        %v5654 = vunpack.c.l.b16 %v4774
        %v5655 = vunpack.c.l.b16 %v4775
        %v5656 = vunpack.c.l.b16 %v4776
        %v5657 = vunpack.c.l.b16 %v4777
        %v5658 = vunpack.c.l.b16 %v4778
        %v5659 = vunpack.c.l.b16 %v4779
        %v5660 = vunpack.c.l.b16 %v4780
        %v5661 = vunpack.c.l.b16 %v4781
        %v5662 = vunpack.c.l.b16 %v4782
        %v5663 = vunpack.c.l.b16 %v4783
        %v5664 = vunpack.c.l.b16 %v4784
        %v5665 = vunpack.c.l.b16 %v4785
        %v5666 = vunpack.c.l.b16 %v4786
        %v5667 = vunpack.c.l.b16 %v4787
        %v5668 = vunpack.c.l.b16 %v4788
        %v5669 = vunpack.c.l.b16 %v4789
        %v5670 = vunpack.c.l.b16 %v4790
        %v5671 = vunpack.c.l.b16 %v4791
        %v5672 = vunpack.c.l.b16 %v4792
        %v5673 = vunpack.c.l.b16 %v4793
        %v5674 = vunpack.c.l.b16 %v4794
        %v5675 = vunpack.c.l.b16 %v4795
        %v5676 = vunpack.c.l.b16 %v4796
        %v5677 = vunpack.c.l.b16 %v4797
        %v5678 = vunpack.c.l.b16 %v4798
        %v5679 = vunpack.c.l.b16 %v4799
        %v5680 = vunpack.c.l.b16 %v4800
        %v5681 = vunpack.c.l.b16 %v4801
        %v5682 = vunpack.c.l.b16 %v4802
        %v5683 = vunpack.c.l.b16 %v4803
        %v5684 = vunpack.c.l.b16 %v4804
        %v5685 = vunpack.c.l.b16 %v4805
        %v5686 = vunpack.c.l.b16 %v4806
        %v5687 = vunpack.c.l.b16 %v4807
        %v5688 = vunpack.c.l.b16 %v4808
        %v5689 = vunpack.c.l.b16 %v4809
        %v5690 = vunpack.c.l.b16 %v4810
        %v5691 = vunpack.c.l.b16 %v4811
        %v5692 = vunpack.c.l.b16 %v4812
        %v5693 = vunpack.c.l.b16 %v4813
        %v5694 = vunpack.c.l.b16 %v4814
        %v5695 = vunpack.c.l.b16 %v4815
        %v5696 = vunpack.c.l.b16 %v4816
        %v5697 = vunpack.c.l.b16 %v4817
        %v5698 = vunpack.c.l.b16 %v4818
        %v5699 = vunpack.c.l.b16 %v4819
        %v5700 = vunpack.c.l.b16 %v4820
        %v5701 = vunpack.c.l.b16 %v4821
        %v5702 = vunpack.c.l.b16 %v4822
        %v5703 = vunpack.c.l.b16 %v4823
        %v5704 = vunpack.c.l.b16 %v4824
        %v5705 = vunpack.c.l.b16 %v4825
        %v5706 = vunpack.c.l.b16 %v4826
        %v5707 = vunpack.c.l.b16 %v4827
        %v5708 = vunpack.c.l.b16 %v4828
        %v5709 = vunpack.c.l.b16 %v4829
        %v5710 = vpack.c.b16 %v5567, %v5566
        %v5711 = vpack.c.b16 %v5569, %v5568
        %v5712 = vpack.c.b16 %v5571, %v5570
        %v5713 = vpack.c.b16 %v5573, %v5572
        %v5714 = vpack.c.b16 %v5575, %v5574
        %v5715 = vpack.c.b16 %v5577, %v5576
        %v5716 = vpack.c.b16 %v5579, %v5578
        %v5717 = vpack.c.b16 %v5581, %v5580
        %v5718 = vpack.c.b16 %v5583, %v5582
        %v5719 = vpack.c.b16 %v5585, %v5584
        %v5720 = vpack.c.b16 %v5587, %v5586
        %v5721 = vpack.c.b16 %v5589, %v5588
        %v5722 = vpack.c.b16 %v5591, %v5590
        %v5723 = vpack.c.b16 %v5593, %v5592
        %v5724 = vpack.c.b16 %v5595, %v5594
        %v5725 = vpack.c.b16 %v5597, %v5596
        %v5726 = vpack.c.b16 %v5599, %v5598
        %v5727 = vpack.c.b16 %v5601, %v5600
        %v5728 = vpack.c.b16 %v5603, %v5602
        %v5729 = vpack.c.b16 %v5605, %v5604
        %v5730 = vpack.c.b16 %v5607, %v5606
        %v5731 = vpack.c.b16 %v5609, %v5608
        %v5732 = vpack.c.b16 %v5611, %v5610
        %v5733 = vpack.c.b16 %v5613, %v5612
        %v5734 = vpack.c.b16 %v5615, %v5614
        %v5735 = vpack.c.b16 %v5617, %v5616
        %v5736 = vpack.c.b16 %v5619, %v5618
        %v5737 = vpack.c.b16 %v5621, %v5620
        %v5738 = vpack.c.b16 %v5623, %v5622
        %v5739 = vpack.c.b16 %v5625, %v5624
        %v5740 = vpack.c.b16 %v5627, %v5626
        %v5741 = vpack.c.b16 %v5629, %v5628
        %v5742 = vpack.c.b16 %v5631, %v5630
        %v5743 = vpack.c.b16 %v5633, %v5632
        %v5744 = vpack.c.b16 %v5635, %v5634
        %v5745 = vpack.c.b16 %v5637, %v5636
        %v5746 = vpack.c.b16 %v5639, %v5638
        %v5747 = vpack.c.b16 %v5641, %v5640
        %v5748 = vpack.c.b16 %v5643, %v5642
        %v5749 = vpack.c.b16 %v5645, %v5644
        %v5750 = vpack.c.b16 %v5647, %v5646
        %v5751 = vpack.c.b16 %v5649, %v5648
        %v5752 = vpack.c.b16 %v5651, %v5650
        %v5753 = vpack.c.b16 %v5653, %v5652
        %v5754 = vpack.c.b16 %v5655, %v5654
        %v5755 = vpack.c.b16 %v5657, %v5656
        %v5756 = vpack.c.b16 %v5659, %v5658
        %v5757 = vpack.c.b16 %v5661, %v5660
        %v5758 = vpack.c.b16 %v5663, %v5662
        %v5759 = vpack.c.b16 %v5665, %v5664
        %v5760 = vpack.c.b16 %v5667, %v5666
        %v5761 = vpack.c.b16 %v5669, %v5668
        %v5762 = vpack.c.b16 %v5671, %v5670
        %v5763 = vpack.c.b16 %v5673, %v5672
        %v5764 = vpack.c.b16 %v5675, %v5674
        %v5765 = vpack.c.b16 %v5677, %v5676
        %v5766 = vpack.c.b16 %v5679, %v5678
        %v5767 = vpack.c.b16 %v5681, %v5680
        %v5768 = vpack.c.b16 %v5683, %v5682
        %v5769 = vpack.c.b16 %v5685, %v5684
        %v5770 = vpack.c.b16 %v5687, %v5686
        %v5771 = vpack.c.b16 %v5689, %v5688
        %v5772 = vpack.c.b16 %v5691, %v5690
        %v5773 = vpack.c.b16 %v5693, %v5692
        %v5774 = vpack.c.b16 %v5695, %v5694
        %v5775 = vpack.c.b16 %v5697, %v5696
        %v5776 = vpack.c.b16 %v5699, %v5698
        %v5777 = vpack.c.b16 %v5701, %v5700
        %v5778 = vpack.c.b16 %v5703, %v5702
        %v5779 = vpack.c.b16 %v5705, %v5704
        %v5780 = vpack.c.b16 %v5707, %v5706
        %v5781 = vpack.c.b16 %v5709, %v5708
        %5854 = vmatprep.subr.bf16.mxu0 0
        %5855 = vmatpush1.bf16.msra.mxu0 %v5710
        %5856 = vmatprep.subr.bf16.mxu0 0
        %5857 = vmatpush1.bf16.msra.mxu0 %v5711
        %5858 = vmatprep.subr.bf16.mxu0 0
        %5859 = vmatpush1.bf16.msra.mxu0 %v5712
        %5860 = vmatprep.subr.bf16.mxu0 0
        %5861 = vmatpush1.bf16.msra.mxu0 %v5713
        %5862 = vmatprep.subr.bf16.mxu0 0
        %5863 = vmatpush1.bf16.msra.mxu0 %v5714
        %5864 = vmatprep.subr.bf16.mxu0 0
        %5865 = vmatpush1.bf16.msra.mxu0 %v5715
        %5866 = vmatprep.subr.bf16.mxu0 0
        %5867 = vmatpush1.bf16.msra.mxu0 %v5716
        %5868 = vmatprep.subr.bf16.mxu0 0
        %5869 = vmatpush1.bf16.msra.mxu0 %v5717
        %5870 = vmatprep.subr.bf16.mxu0 0
        %5871 = vmatpush1.bf16.msra.mxu0 %v5718
        %5872 = vmatprep.subr.bf16.mxu0 0
        %5873 = vmatpush1.bf16.msra.mxu0 %v5719
        %5874 = vmatprep.subr.bf16.mxu0 0
        %5875 = vmatpush1.bf16.msra.mxu0 %v5720
        %5876 = vmatprep.subr.bf16.mxu0 0
        %5877 = vmatpush1.bf16.msra.mxu0 %v5721
        %5878 = vmatprep.subr.bf16.mxu0 0
        %5879 = vmatpush1.bf16.msra.mxu0 %v5722
        %5880 = vmatprep.subr.bf16.mxu0 0
        %5881 = vmatpush1.bf16.msra.mxu0 %v5723
        %5882 = vmatprep.subr.bf16.mxu0 0
        %5883 = vmatpush1.bf16.msra.mxu0 %v5724
        %5884 = vmatprep.subr.bf16.mxu0 0
        %5885 = vmatpush1.bf16.msra.mxu0 %v5725
        %5886 = vmatprep.mubr.bf16.mxu0 %v4910
        %5887 = vmatmul.mubr.bf16.gmra.mrb[0].mxu0 %v4830
        %v5888 = vpop.f32.mrb[0].mxu0
        %v5889 = vadd.f32 0.0, %v5888
        %v5890 = vpop.f32.mrb[0].mxu0
        %v5891 = vpop.f32.mrb[0].mxu0
        %v5892 = vadd.f32 0.0, %v5891
        %v5893 = vpop.f32.mrb[0].mxu0
        %5894 = vmatprep.mubr.bf16.mxu0 %v4911
        %5895 = vmatmul.mubr.bf16.gmra.mrb[0].mxu0 %v4831
        %v5896 = vpop.f32.mrb[0].mxu0
        %v5897 = vadd.f32 0.0, %v5896
        %v5898 = vpop.f32.mrb[0].mxu0
        %v5899 = vpop.f32.mrb[0].mxu0
        %v5900 = vadd.f32 0.0, %v5899
        %v5901 = vpop.f32.mrb[0].mxu0
        %5902 = vmatprep.mubr.bf16.mxu0 %v4912
        %5903 = vmatmul.mubr.bf16.gmra.mrb[0].mxu0 %v4832
        %v5904 = vpop.f32.mrb[0].mxu0
        %v5905 = vadd.f32 0.0, %v5904
        %v5906 = vpop.f32.mrb[0].mxu0
        %v5907 = vpop.f32.mrb[0].mxu0
        %v5908 = vadd.f32 0.0, %v5907
        %v5909 = vpop.f32.mrb[0].mxu0
        %5910 = vmatprep.mubr.bf16.mxu0 %v4913
        %5911 = vmatmul.mubr.bf16.gmra.mrb[0].mxu0 %v4833
        %v5912 = vpop.f32.mrb[0].mxu0
        %v5913 = vadd.f32 0.0, %v5912
        %v5914 = vpop.f32.mrb[0].mxu0
        %v5915 = vpop.f32.mrb[0].mxu0
        %v5916 = vadd.f32 0.0, %v5915
        %v5917 = vpop.f32.mrb[0].mxu0
        %5918 = vmatprep.mubr.bf16.mxu0 %v4914
        %5919 = vmatmul.mubr.bf16.gmra.mrb[0].mxu0 %v4834
        %v5920 = vpop.f32.mrb[0].mxu0
        %v5921 = vadd.f32 0.0, %v5920
        %v5922 = vpop.f32.mrb[0].mxu0
        %v5923 = vpop.f32.mrb[0].mxu0
        %v5924 = vadd.f32 0.0, %v5923
        %v5925 = vpop.f32.mrb[0].mxu0
        %5926 = vmatprep.mubr.bf16.mxu0 %v4915
        %5927 = vmatmul.mubr.bf16.gmra.mrb[0].mxu0 %v4835
        %v5928 = vpop.f32.mrb[0].mxu0
        %v5929 = vadd.f32 0.0, %v5928
        %v5930 = vpop.f32.mrb[0].mxu0
        %v5931 = vpop.f32.mrb[0].mxu0
        %v5932 = vadd.f32 0.0, %v5931
        %v5933 = vpop.f32.mrb[0].mxu0
        %5934 = vmatprep.mubr.bf16.mxu0 %v4916
        %5935 = vmatmul.mubr.bf16.gmra.mrb[0].mxu0 %v4836
        %v5936 = vpop.f32.mrb[0].mxu0
        %v5937 = vadd.f32 0.0, %v5936
        %v5938 = vpop.f32.mrb[0].mxu0
        %v5939 = vpop.f32.mrb[0].mxu0
        %v5940 = vadd.f32 0.0, %v5939
        %v5941 = vpop.f32.mrb[0].mxu0
        %5942 = vmatprep.mubr.bf16.mxu0 %v4917
        %5943 = vmatmul.mubr.bf16.gmra.mrb[0].mxu0 %v4837
        %v5944 = vpop.f32.mrb[0].mxu0
        %v5945 = vadd.f32 0.0, %v5944
        %v5946 = vpop.f32.mrb[0].mxu0
        %v5947 = vpop.f32.mrb[0].mxu0
        %v5948 = vadd.f32 0.0, %v5947
        %v5949 = vpop.f32.mrb[0].mxu0
        %5950 = vmatprep.mubr.bf16.mxu0 %v4918
        %5951 = vmatmul.mubr.bf16.gmra.mrb[0].mxu0 %v4838
        %v5952 = vpop.f32.mrb[0].mxu0
        %v5953 = vadd.f32 0.0, %v5952
        %v5954 = vpop.f32.mrb[0].mxu0
        %v5955 = vpop.f32.mrb[0].mxu0
        %v5956 = vadd.f32 0.0, %v5955
        %v5957 = vpop.f32.mrb[0].mxu0
        %5958 = vmatprep.mubr.bf16.mxu0 %v4919
        %5959 = vmatmul.mubr.bf16.gmra.mrb[0].mxu0 %v4839
        %v5960 = vpop.f32.mrb[0].mxu0
        %v5961 = vadd.f32 0.0, %v5960
        %v5962 = vpop.f32.mrb[0].mxu0
        %v5963 = vpop.f32.mrb[0].mxu0
        %v5964 = vadd.f32 0.0, %v5963
        %v5965 = vpop.f32.mrb[0].mxu0
        %5966 = vmatprep.mubr.bf16.mxu0 %v4920
        %5967 = vmatmul.mubr.bf16.gmra.mrb[0].mxu0 %v4840
        %v5968 = vpop.f32.mrb[0].mxu0
        %v5969 = vadd.f32 0.0, %v5968
        %v5970 = vpop.f32.mrb[0].mxu0
        %v5971 = vpop.f32.mrb[0].mxu0
        %v5972 = vadd.f32 0.0, %v5971
        %v5973 = vpop.f32.mrb[0].mxu0
        %5974 = vmatprep.mubr.bf16.mxu0 %v4921
        %5975 = vmatmul.mubr.bf16.gmra.mrb[0].mxu0 %v4841
        %v5976 = vpop.f32.mrb[0].mxu0
        %v5977 = vadd.f32 0.0, %v5976
        %v5978 = vpop.f32.mrb[0].mxu0
        %v5979 = vpop.f32.mrb[0].mxu0
        %v5980 = vadd.f32 0.0, %v5979
        %v5981 = vpop.f32.mrb[0].mxu0
        %5982 = vmatprep.mubr.bf16.mxu0 %v4922
        %5983 = vmatmul.mubr.bf16.gmra.mrb[0].mxu0 %v4842
        %v5984 = vpop.f32.mrb[0].mxu0
        %v5985 = vadd.f32 0.0, %v5984
        %v5986 = vpop.f32.mrb[0].mxu0
        %v5987 = vpop.f32.mrb[0].mxu0
        %v5988 = vadd.f32 0.0, %v5987
        %v5989 = vpop.f32.mrb[0].mxu0
        %5990 = vmatprep.mubr.bf16.mxu0 %v4923
        %5991 = vmatmul.mubr.bf16.gmra.mrb[0].mxu0 %v4843
        %v5992 = vpop.f32.mrb[0].mxu0
        %v5993 = vadd.f32 0.0, %v5992
        %v5994 = vpop.f32.mrb[0].mxu0
        %v5995 = vpop.f32.mrb[0].mxu0
        %v5996 = vadd.f32 0.0, %v5995
        %v5997 = vpop.f32.mrb[0].mxu0
        %5998 = vmatprep.mubr.bf16.mxu0 %v4924
        %5999 = vmatmul.mubr.bf16.gmra.mrb[0].mxu0 %v4844
        %v6000 = vpop.f32.mrb[0].mxu0
        %v6001 = vadd.f32 0.0, %v6000
        %v6002 = vpop.f32.mrb[0].mxu0
        %v6003 = vpop.f32.mrb[0].mxu0
        %v6004 = vadd.f32 0.0, %v6003
        %v6005 = vpop.f32.mrb[0].mxu0
        %6006 = vmatprep.mubr.bf16.mxu0 %v4925
        %6007 = vmatmul.mubr.bf16.gmra.mrb[0].mxu0 %v4845
        %v6008 = vpop.f32.mrb[0].mxu0
        %v6009 = vadd.f32 0.0, %v6008
        %v6010 = vpop.f32.mrb[0].mxu0
        %v6011 = vpop.f32.mrb[0].mxu0
        %v6012 = vadd.f32 0.0, %v6011
        %v6013 = vpop.f32.mrb[0].mxu0
        %6014 = vdwg.mxu0
        %6015 = vmatprep.subr.bf16.mxu0 0
        %6016 = vmatpush1.bf16.msra.mxu0 %v5726
        %6017 = vmatprep.subr.bf16.mxu0 0
        %6018 = vmatpush1.bf16.msra.mxu0 %v5727
        %6019 = vmatprep.subr.bf16.mxu0 0
        %6020 = vmatpush1.bf16.msra.mxu0 %v5728
        %6021 = vmatprep.subr.bf16.mxu0 0
        %6022 = vmatpush1.bf16.msra.mxu0 %v5729
        %6023 = vmatprep.subr.bf16.mxu0 0
        %6024 = vmatpush1.bf16.msra.mxu0 %v5730
        %6025 = vmatprep.subr.bf16.mxu0 0
        %6026 = vmatpush1.bf16.msra.mxu0 %v5731
        %6027 = vmatprep.subr.bf16.mxu0 0
        %6028 = vmatpush1.bf16.msra.mxu0 %v5732
        %6029 = vmatprep.subr.bf16.mxu0 0
        %6030 = vmatpush1.bf16.msra.mxu0 %v5733
        %6031 = vmatprep.subr.bf16.mxu0 0
        %6032 = vmatpush1.bf16.msra.mxu0 %v5734
        %6033 = vmatprep.subr.bf16.mxu0 0
        %6034 = vmatpush1.bf16.msra.mxu0 %v5735
        %6035 = vmatprep.subr.bf16.mxu0 0
        %6036 = vmatpush1.bf16.msra.mxu0 %v5736
        %6037 = vmatprep.subr.bf16.mxu0 0
        %6038 = vmatpush1.bf16.msra.mxu0 %v5737
        %6039 = vmatprep.subr.bf16.mxu0 0
        %6040 = vmatpush1.bf16.msra.mxu0 %v5738
        %6041 = vmatprep.subr.bf16.mxu0 0
        %6042 = vmatpush1.bf16.msra.mxu0 %v5739
        %6043 = vmatprep.subr.bf16.mxu0 0
        %6044 = vmatpush1.bf16.msra.mxu0 %v5740
        %6045 = vmatprep.subr.bf16.mxu0 0
        %6046 = vmatpush1.bf16.msra.mxu0 %v5741
        %6047 = vmatprep.mubr.bf16.mxu0 %v5070
        %6048 = vmatmul.mubr.bf16.gmra.mrb[0].mxu0 %v4990
        %v6049 = vpop.f32.mrb[0].mxu0
        %v6050 = vadd.f32 %v5889, %v6049
        %v6051 = vpop.f32.mrb[0].mxu0
        %v6052 = vpop.f32.mrb[0].mxu0
        %v6053 = vadd.f32 %v5892, %v6052
        %v6054 = vpop.f32.mrb[0].mxu0
        %6055 = vmatprep.mubr.bf16.mxu0 %v5071
        %6056 = vmatmul.mubr.bf16.gmra.mrb[0].mxu0 %v4991
        %v6057 = vpop.f32.mrb[0].mxu0
        %v6058 = vadd.f32 %v5897, %v6057
        %v6059 = vpop.f32.mrb[0].mxu0
        %v6060 = vpop.f32.mrb[0].mxu0
        %v6061 = vadd.f32 %v5900, %v6060
        %v6062 = vpop.f32.mrb[0].mxu0
        %6063 = vmatprep.mubr.bf16.mxu0 %v5072
        %6064 = vmatmul.mubr.bf16.gmra.mrb[0].mxu0 %v4992
        %v6065 = vpop.f32.mrb[0].mxu0
        %v6066 = vadd.f32 %v5905, %v6065
        %v6067 = vpop.f32.mrb[0].mxu0
        %v6068 = vpop.f32.mrb[0].mxu0
        %v6069 = vadd.f32 %v5908, %v6068
        %v6070 = vpop.f32.mrb[0].mxu0
        %6071 = vmatprep.mubr.bf16.mxu0 %v5073
        %6072 = vmatmul.mubr.bf16.gmra.mrb[0].mxu0 %v4993
        %v6073 = vpop.f32.mrb[0].mxu0
        %v6074 = vadd.f32 %v5913, %v6073
        %v6075 = vpop.f32.mrb[0].mxu0
        %v6076 = vpop.f32.mrb[0].mxu0
        %v6077 = vadd.f32 %v5916, %v6076
        %v6078 = vpop.f32.mrb[0].mxu0
        %6079 = vmatprep.mubr.bf16.mxu0 %v5074
        %6080 = vmatmul.mubr.bf16.gmra.mrb[0].mxu0 %v4994
        %v6081 = vpop.f32.mrb[0].mxu0
        %v6082 = vadd.f32 %v5921, %v6081
        %v6083 = vpop.f32.mrb[0].mxu0
        %v6084 = vpop.f32.mrb[0].mxu0
        %v6085 = vadd.f32 %v5924, %v6084
        %v6086 = vpop.f32.mrb[0].mxu0
        %6087 = vmatprep.mubr.bf16.mxu0 %v5075
        %6088 = vmatmul.mubr.bf16.gmra.mrb[0].mxu0 %v4995
        %v6089 = vpop.f32.mrb[0].mxu0
        %v6090 = vadd.f32 %v5929, %v6089
        %v6091 = vpop.f32.mrb[0].mxu0
        %v6092 = vpop.f32.mrb[0].mxu0
        %v6093 = vadd.f32 %v5932, %v6092
        %v6094 = vpop.f32.mrb[0].mxu0
        %6095 = vmatprep.mubr.bf16.mxu0 %v5076
        %6096 = vmatmul.mubr.bf16.gmra.mrb[0].mxu0 %v4996
        %v6097 = vpop.f32.mrb[0].mxu0
        %v6098 = vadd.f32 %v5937, %v6097
        %v6099 = vpop.f32.mrb[0].mxu0
        %v6100 = vpop.f32.mrb[0].mxu0
        %v6101 = vadd.f32 %v5940, %v6100
        %v6102 = vpop.f32.mrb[0].mxu0
        %6103 = vmatprep.mubr.bf16.mxu0 %v5077
        %6104 = vmatmul.mubr.bf16.gmra.mrb[0].mxu0 %v4997
        %v6105 = vpop.f32.mrb[0].mxu0
        %v6106 = vadd.f32 %v5945, %v6105
        %v6107 = vpop.f32.mrb[0].mxu0
        %v6108 = vpop.f32.mrb[0].mxu0
        %v6109 = vadd.f32 %v5948, %v6108
        %v6110 = vpop.f32.mrb[0].mxu0
        %6111 = vmatprep.mubr.bf16.mxu0 %v5078
        %6112 = vmatmul.mubr.bf16.gmra.mrb[0].mxu0 %v4998
        %v6113 = vpop.f32.mrb[0].mxu0
        %v6114 = vadd.f32 %v5953, %v6113
        %v6115 = vpop.f32.mrb[0].mxu0
        %v6116 = vpop.f32.mrb[0].mxu0
        %v6117 = vadd.f32 %v5956, %v6116
        %v6118 = vpop.f32.mrb[0].mxu0
        %6119 = vmatprep.mubr.bf16.mxu0 %v5079
        %6120 = vmatmul.mubr.bf16.gmra.mrb[0].mxu0 %v4999
        %v6121 = vpop.f32.mrb[0].mxu0
        %v6122 = vadd.f32 %v5961, %v6121
        %v6123 = vpop.f32.mrb[0].mxu0
        %v6124 = vpop.f32.mrb[0].mxu0
        %v6125 = vadd.f32 %v5964, %v6124
        %v6126 = vpop.f32.mrb[0].mxu0
        %6127 = vmatprep.mubr.bf16.mxu0 %v5080
        %6128 = vmatmul.mubr.bf16.gmra.mrb[0].mxu0 %v5000
        %v6129 = vpop.f32.mrb[0].mxu0
        %v6130 = vadd.f32 %v5969, %v6129
        %v6131 = vpop.f32.mrb[0].mxu0
        %v6132 = vpop.f32.mrb[0].mxu0
        %v6133 = vadd.f32 %v5972, %v6132
        %v6134 = vpop.f32.mrb[0].mxu0
        %6135 = vmatprep.mubr.bf16.mxu0 %v5081
        %6136 = vmatmul.mubr.bf16.gmra.mrb[0].mxu0 %v5001
        %v6137 = vpop.f32.mrb[0].mxu0
        %v6138 = vadd.f32 %v5977, %v6137
        %v6139 = vpop.f32.mrb[0].mxu0
        %v6140 = vpop.f32.mrb[0].mxu0
        %v6141 = vadd.f32 %v5980, %v6140
        %v6142 = vpop.f32.mrb[0].mxu0
        %6143 = vmatprep.mubr.bf16.mxu0 %v5082
        %6144 = vmatmul.mubr.bf16.gmra.mrb[0].mxu0 %v5002
        %v6145 = vpop.f32.mrb[0].mxu0
        %v6146 = vadd.f32 %v5985, %v6145
        %v6147 = vpop.f32.mrb[0].mxu0
        %v6148 = vpop.f32.mrb[0].mxu0
        %v6149 = vadd.f32 %v5988, %v6148
        %v6150 = vpop.f32.mrb[0].mxu0
        %6151 = vmatprep.mubr.bf16.mxu0 %v5083
        %6152 = vmatmul.mubr.bf16.gmra.mrb[0].mxu0 %v5003
        %v6153 = vpop.f32.mrb[0].mxu0
        %v6154 = vadd.f32 %v5993, %v6153
        %v6155 = vpop.f32.mrb[0].mxu0
        %v6156 = vpop.f32.mrb[0].mxu0
        %v6157 = vadd.f32 %v5996, %v6156
        %v6158 = vpop.f32.mrb[0].mxu0
        %6159 = vmatprep.mubr.bf16.mxu0 %v5084
        %6160 = vmatmul.mubr.bf16.gmra.mrb[0].mxu0 %v5004
        %v6161 = vpop.f32.mrb[0].mxu0
        %v6162 = vadd.f32 %v6001, %v6161
        %v6163 = vpop.f32.mrb[0].mxu0
        %v6164 = vpop.f32.mrb[0].mxu0
        %v6165 = vadd.f32 %v6004, %v6164
        %v6166 = vpop.f32.mrb[0].mxu0
        %6167 = vmatprep.mubr.bf16.mxu0 %v5085
        %6168 = vmatmul.mubr.bf16.gmra.mrb[0].mxu0 %v5005
        %v6169 = vpop.f32.mrb[0].mxu0
        %v6170 = vadd.f32 %v6009, %v6169
        %v6171 = vpop.f32.mrb[0].mxu0
        %v6172 = vpop.f32.mrb[0].mxu0
        %v6173 = vadd.f32 %v6012, %v6172
        %v6174 = vpop.f32.mrb[0].mxu0
        %6175 = vdwg.mxu0
        %6176 = vmatprep.subr.bf16.mxu0 0
        %6177 = vmatpush1.bf16.msra.mxu0 %v5742
        %6178 = vmatprep.subr.bf16.mxu0 0
        %6179 = vmatpush1.bf16.msra.mxu0 %v5743
        %6180 = vmatprep.subr.bf16.mxu0 0
        %6181 = vmatpush1.bf16.msra.mxu0 %v5744
        %6182 = vmatprep.subr.bf16.mxu0 0
        %6183 = vmatpush1.bf16.msra.mxu0 %v5745
        %6184 = vmatprep.subr.bf16.mxu0 0
        %6185 = vmatpush1.bf16.msra.mxu0 %v5746
        %6186 = vmatprep.subr.bf16.mxu0 0
        %6187 = vmatpush1.bf16.msra.mxu0 %v5747
        %6188 = vmatprep.subr.bf16.mxu0 0
        %6189 = vmatpush1.bf16.msra.mxu0 %v5748
        %6190 = vmatprep.subr.bf16.mxu0 0
        %6191 = vmatpush1.bf16.msra.mxu0 %v5749
        %6192 = vmatprep.subr.bf16.mxu0 0
        %6193 = vmatpush1.bf16.msra.mxu0 %v5750
        %6194 = vmatprep.subr.bf16.mxu0 0
        %6195 = vmatpush1.bf16.msra.mxu0 %v5751
        %6196 = vmatprep.subr.bf16.mxu0 0
        %6197 = vmatpush1.bf16.msra.mxu0 %v5752
        %6198 = vmatprep.subr.bf16.mxu0 0
        %6199 = vmatpush1.bf16.msra.mxu0 %v5753
        %6200 = vmatprep.subr.bf16.mxu0 0
        %6201 = vmatpush1.bf16.msra.mxu0 %v5754
        %6202 = vmatprep.subr.bf16.mxu0 0
        %6203 = vmatpush1.bf16.msra.mxu0 %v5755
        %6204 = vmatprep.subr.bf16.mxu0 0
        %6205 = vmatpush1.bf16.msra.mxu0 %v5756
        %6206 = vmatprep.subr.bf16.mxu0 0
        %6207 = vmatpush1.bf16.msra.mxu0 %v5757
        %6208 = vmatprep.mubr.bf16.mxu0 %v5230
        %6209 = vmatmul.mubr.bf16.gmra.mrb[0].mxu0 %v5150
        %v6210 = vpop.f32.mrb[0].mxu0
        %v6211 = vadd.f32 %v6050, %v6210
        %v6212 = vpop.f32.mrb[0].mxu0
        %v6213 = vpop.f32.mrb[0].mxu0
        %v6214 = vadd.f32 %v6053, %v6213
        %v6215 = vpop.f32.mrb[0].mxu0
        %6216 = vmatprep.mubr.bf16.mxu0 %v5231
        %6217 = vmatmul.mubr.bf16.gmra.mrb[0].mxu0 %v5151
        %v6218 = vpop.f32.mrb[0].mxu0
        %v6219 = vadd.f32 %v6058, %v6218
        %v6220 = vpop.f32.mrb[0].mxu0
        %v6221 = vpop.f32.mrb[0].mxu0
        %v6222 = vadd.f32 %v6061, %v6221
        %v6223 = vpop.f32.mrb[0].mxu0
        %6224 = vmatprep.mubr.bf16.mxu0 %v5232
        %6225 = vmatmul.mubr.bf16.gmra.mrb[0].mxu0 %v5152
        %v6226 = vpop.f32.mrb[0].mxu0
        %v6227 = vadd.f32 %v6066, %v6226
        %v6228 = vpop.f32.mrb[0].mxu0
        %v6229 = vpop.f32.mrb[0].mxu0
        %v6230 = vadd.f32 %v6069, %v6229
        %v6231 = vpop.f32.mrb[0].mxu0
        %6232 = vmatprep.mubr.bf16.mxu0 %v5233
        %6233 = vmatmul.mubr.bf16.gmra.mrb[0].mxu0 %v5153
        %v6234 = vpop.f32.mrb[0].mxu0
        %v6235 = vadd.f32 %v6074, %v6234
        %v6236 = vpop.f32.mrb[0].mxu0
        %v6237 = vpop.f32.mrb[0].mxu0
        %v6238 = vadd.f32 %v6077, %v6237
        %v6239 = vpop.f32.mrb[0].mxu0
        %6240 = vmatprep.mubr.bf16.mxu0 %v5234
        %6241 = vmatmul.mubr.bf16.gmra.mrb[0].mxu0 %v5154
        %v6242 = vpop.f32.mrb[0].mxu0
        %v6243 = vadd.f32 %v6082, %v6242
        %v6244 = vpop.f32.mrb[0].mxu0
        %v6245 = vpop.f32.mrb[0].mxu0
        %v6246 = vadd.f32 %v6085, %v6245
        %v6247 = vpop.f32.mrb[0].mxu0
        %6248 = vmatprep.mubr.bf16.mxu0 %v5235
        %6249 = vmatmul.mubr.bf16.gmra.mrb[0].mxu0 %v5155
        %v6250 = vpop.f32.mrb[0].mxu0
        %v6251 = vadd.f32 %v6090, %v6250
        %v6252 = vpop.f32.mrb[0].mxu0
        %v6253 = vpop.f32.mrb[0].mxu0
        %v6254 = vadd.f32 %v6093, %v6253
        %v6255 = vpop.f32.mrb[0].mxu0
        %6256 = vmatprep.mubr.bf16.mxu0 %v5236
        %6257 = vmatmul.mubr.bf16.gmra.mrb[0].mxu0 %v5156
        %v6258 = vpop.f32.mrb[0].mxu0
        %v6259 = vadd.f32 %v6098, %v6258
        %v6260 = vpop.f32.mrb[0].mxu0
        %v6261 = vpop.f32.mrb[0].mxu0
        %v6262 = vadd.f32 %v6101, %v6261
        %v6263 = vpop.f32.mrb[0].mxu0
        %6264 = vmatprep.mubr.bf16.mxu0 %v5237
        %6265 = vmatmul.mubr.bf16.gmra.mrb[0].mxu0 %v5157
        %v6266 = vpop.f32.mrb[0].mxu0
        %v6267 = vadd.f32 %v6106, %v6266
        %v6268 = vpop.f32.mrb[0].mxu0
        %v6269 = vpop.f32.mrb[0].mxu0
        %v6270 = vadd.f32 %v6109, %v6269
        %v6271 = vpop.f32.mrb[0].mxu0
        %6272 = vmatprep.mubr.bf16.mxu0 %v5238
        %6273 = vmatmul.mubr.bf16.gmra.mrb[0].mxu0 %v5158
        %v6274 = vpop.f32.mrb[0].mxu0
        %v6275 = vadd.f32 %v6114, %v6274
        %v6276 = vpop.f32.mrb[0].mxu0
        %v6277 = vpop.f32.mrb[0].mxu0
        %v6278 = vadd.f32 %v6117, %v6277
        %v6279 = vpop.f32.mrb[0].mxu0
        %6280 = vmatprep.mubr.bf16.mxu0 %v5239
        %6281 = vmatmul.mubr.bf16.gmra.mrb[0].mxu0 %v5159
        %v6282 = vpop.f32.mrb[0].mxu0
        %v6283 = vadd.f32 %v6122, %v6282
        %v6284 = vpop.f32.mrb[0].mxu0
        %v6285 = vpop.f32.mrb[0].mxu0
        %v6286 = vadd.f32 %v6125, %v6285
        %v6287 = vpop.f32.mrb[0].mxu0
        %6288 = vmatprep.mubr.bf16.mxu0 %v5240
        %6289 = vmatmul.mubr.bf16.gmra.mrb[0].mxu0 %v5160
        %v6290 = vpop.f32.mrb[0].mxu0
        %v6291 = vadd.f32 %v6130, %v6290
        %v6292 = vpop.f32.mrb[0].mxu0
        %v6293 = vpop.f32.mrb[0].mxu0
        %v6294 = vadd.f32 %v6133, %v6293
        %v6295 = vpop.f32.mrb[0].mxu0
        %6296 = vmatprep.mubr.bf16.mxu0 %v5241
        %6297 = vmatmul.mubr.bf16.gmra.mrb[0].mxu0 %v5161
        %v6298 = vpop.f32.mrb[0].mxu0
        %v6299 = vadd.f32 %v6138, %v6298
        %v6300 = vpop.f32.mrb[0].mxu0
        %v6301 = vpop.f32.mrb[0].mxu0
        %v6302 = vadd.f32 %v6141, %v6301
        %v6303 = vpop.f32.mrb[0].mxu0
        %6304 = vmatprep.mubr.bf16.mxu0 %v5242
        %6305 = vmatmul.mubr.bf16.gmra.mrb[0].mxu0 %v5162
        %v6306 = vpop.f32.mrb[0].mxu0
        %v6307 = vadd.f32 %v6146, %v6306
        %v6308 = vpop.f32.mrb[0].mxu0
        %v6309 = vpop.f32.mrb[0].mxu0
        %v6310 = vadd.f32 %v6149, %v6309
        %v6311 = vpop.f32.mrb[0].mxu0
        %6312 = vmatprep.mubr.bf16.mxu0 %v5243
        %6313 = vmatmul.mubr.bf16.gmra.mrb[0].mxu0 %v5163
        %v6314 = vpop.f32.mrb[0].mxu0
        %v6315 = vadd.f32 %v6154, %v6314
        %v6316 = vpop.f32.mrb[0].mxu0
        %v6317 = vpop.f32.mrb[0].mxu0
        %v6318 = vadd.f32 %v6157, %v6317
        %v6319 = vpop.f32.mrb[0].mxu0
        %6320 = vmatprep.mubr.bf16.mxu0 %v5244
        %6321 = vmatmul.mubr.bf16.gmra.mrb[0].mxu0 %v5164
        %v6322 = vpop.f32.mrb[0].mxu0
        %v6323 = vadd.f32 %v6162, %v6322
        %v6324 = vpop.f32.mrb[0].mxu0
        %v6325 = vpop.f32.mrb[0].mxu0
        %v6326 = vadd.f32 %v6165, %v6325
        %v6327 = vpop.f32.mrb[0].mxu0
        %6328 = vmatprep.mubr.bf16.mxu0 %v5245
        %6329 = vmatmul.mubr.bf16.gmra.mrb[0].mxu0 %v5165
        %v6330 = vpop.f32.mrb[0].mxu0
        %v6331 = vadd.f32 %v6170, %v6330
        %v6332 = vpop.f32.mrb[0].mxu0
        %v6333 = vpop.f32.mrb[0].mxu0
        %v6334 = vadd.f32 %v6173, %v6333
        %v6335 = vpop.f32.mrb[0].mxu0
        %6336 = vdwg.mxu0
        %6337 = vmatprep.subr.bf16.mxu0 0
        %6338 = vmatpush1.bf16.msra.mxu0 %v5758
        %6339 = vmatprep.subr.bf16.mxu0 0
        %6340 = vmatpush1.bf16.msra.mxu0 %v5759
        %6341 = vmatprep.subr.bf16.mxu0 0
        %6342 = vmatpush1.bf16.msra.mxu0 %v5760
        %6343 = vmatprep.subr.bf16.mxu0 0
        %6344 = vmatpush1.bf16.msra.mxu0 %v5761
        %6345 = vmatprep.subr.bf16.mxu0 0
        %6346 = vmatpush1.bf16.msra.mxu0 %v5762
        %6347 = vmatprep.subr.bf16.mxu0 0
        %6348 = vmatpush1.bf16.msra.mxu0 %v5763
        %6349 = vmatprep.subr.bf16.mxu0 0
        %6350 = vmatpush1.bf16.msra.mxu0 %v5764
        %6351 = vmatprep.subr.bf16.mxu0 0
        %6352 = vmatpush1.bf16.msra.mxu0 %v5765
        %6353 = vmatprep.subr.bf16.mxu0 0
        %6354 = vmatpush1.bf16.msra.mxu0 %v5766
        %6355 = vmatprep.subr.bf16.mxu0 0
        %6356 = vmatpush1.bf16.msra.mxu0 %v5767
        %6357 = vmatprep.subr.bf16.mxu0 0
        %6358 = vmatpush1.bf16.msra.mxu0 %v5768
        %6359 = vmatprep.subr.bf16.mxu0 0
        %6360 = vmatpush1.bf16.msra.mxu0 %v5769
        %6361 = vmatprep.subr.bf16.mxu0 0
        %6362 = vmatpush1.bf16.msra.mxu0 %v5770
        %6363 = vmatprep.subr.bf16.mxu0 0
        %6364 = vmatpush1.bf16.msra.mxu0 %v5771
        %6365 = vmatprep.subr.bf16.mxu0 0
        %6366 = vmatpush1.bf16.msra.mxu0 %v5772
        %6367 = vmatprep.subr.bf16.mxu0 0
        %6368 = vmatpush1.bf16.msra.mxu0 %v5773
        %6369 = vmatprep.mubr.bf16.mxu0 %v5390
        %6370 = vmatmul.mubr.bf16.gmra.mrb[0].mxu0 %v5310
        %v6371 = vpop.f32.mrb[0].mxu0
        %v6372 = vadd.f32 %v6211, %v6371
        %v6373 = vpop.f32.mrb[0].mxu0
        %v6374 = vpop.f32.mrb[0].mxu0
        %v6375 = vadd.f32 %v6214, %v6374
        %v6376 = vpop.f32.mrb[0].mxu0
        %6377 = vmatprep.mubr.bf16.mxu0 %v5391
        %6378 = vmatmul.mubr.bf16.gmra.mrb[0].mxu0 %v5311
        %v6379 = vpop.f32.mrb[0].mxu0
        %v6380 = vadd.f32 %v6219, %v6379
        %v6381 = vpop.f32.mrb[0].mxu0
        %v6382 = vpop.f32.mrb[0].mxu0
        %v6383 = vadd.f32 %v6222, %v6382
        %v6384 = vpop.f32.mrb[0].mxu0
        %6385 = vmatprep.mubr.bf16.mxu0 %v5392
        %6386 = vmatmul.mubr.bf16.gmra.mrb[0].mxu0 %v5312
        %v6387 = vpop.f32.mrb[0].mxu0
        %v6388 = vadd.f32 %v6227, %v6387
        %v6389 = vpop.f32.mrb[0].mxu0
        %v6390 = vpop.f32.mrb[0].mxu0
        %v6391 = vadd.f32 %v6230, %v6390
        %v6392 = vpop.f32.mrb[0].mxu0
        %6393 = vmatprep.mubr.bf16.mxu0 %v5393
        %6394 = vmatmul.mubr.bf16.gmra.mrb[0].mxu0 %v5313
        %v6395 = vpop.f32.mrb[0].mxu0
        %v6396 = vadd.f32 %v6235, %v6395
        %v6397 = vpop.f32.mrb[0].mxu0
        %v6398 = vpop.f32.mrb[0].mxu0
        %v6399 = vadd.f32 %v6238, %v6398
        %v6400 = vpop.f32.mrb[0].mxu0
        %6401 = vmatprep.mubr.bf16.mxu0 %v5394
        %6402 = vmatmul.mubr.bf16.gmra.mrb[0].mxu0 %v5314
        %v6403 = vpop.f32.mrb[0].mxu0
        %v6404 = vadd.f32 %v6243, %v6403
        %v6405 = vpop.f32.mrb[0].mxu0
        %v6406 = vpop.f32.mrb[0].mxu0
        %v6407 = vadd.f32 %v6246, %v6406
        %v6408 = vpop.f32.mrb[0].mxu0
        %6409 = vmatprep.mubr.bf16.mxu0 %v5395
        %6410 = vmatmul.mubr.bf16.gmra.mrb[0].mxu0 %v5315
        %v6411 = vpop.f32.mrb[0].mxu0
        %v6412 = vadd.f32 %v6251, %v6411
        %v6413 = vpop.f32.mrb[0].mxu0
        %v6414 = vpop.f32.mrb[0].mxu0
        %v6415 = vadd.f32 %v6254, %v6414
        %v6416 = vpop.f32.mrb[0].mxu0
        %6417 = vmatprep.mubr.bf16.mxu0 %v5396
        %6418 = vmatmul.mubr.bf16.gmra.mrb[0].mxu0 %v5316
        %v6419 = vpop.f32.mrb[0].mxu0
        %v6420 = vadd.f32 %v6259, %v6419
        %v6421 = vpop.f32.mrb[0].mxu0
        %v6422 = vpop.f32.mrb[0].mxu0
        %v6423 = vadd.f32 %v6262, %v6422
        %v6424 = vpop.f32.mrb[0].mxu0
        %6425 = vmatprep.mubr.bf16.mxu0 %v5397
        %6426 = vmatmul.mubr.bf16.gmra.mrb[0].mxu0 %v5317
        %v6427 = vpop.f32.mrb[0].mxu0
        %v6428 = vadd.f32 %v6267, %v6427
        %v6429 = vpop.f32.mrb[0].mxu0
        %v6430 = vpop.f32.mrb[0].mxu0
        %v6431 = vadd.f32 %v6270, %v6430
        %v6432 = vpop.f32.mrb[0].mxu0
        %6433 = vmatprep.mubr.bf16.mxu0 %v5398
        %6434 = vmatmul.mubr.bf16.gmra.mrb[0].mxu0 %v5318
        %v6435 = vpop.f32.mrb[0].mxu0
        %v6436 = vadd.f32 %v6275, %v6435
        %v6437 = vpop.f32.mrb[0].mxu0
        %v6438 = vpop.f32.mrb[0].mxu0
        %v6439 = vadd.f32 %v6278, %v6438
        %v6440 = vpop.f32.mrb[0].mxu0
        %6441 = vmatprep.mubr.bf16.mxu0 %v5399
        %6442 = vmatmul.mubr.bf16.gmra.mrb[0].mxu0 %v5319
        %v6443 = vpop.f32.mrb[0].mxu0
        %v6444 = vadd.f32 %v6283, %v6443
        %v6445 = vpop.f32.mrb[0].mxu0
        %v6446 = vpop.f32.mrb[0].mxu0
        %v6447 = vadd.f32 %v6286, %v6446
        %v6448 = vpop.f32.mrb[0].mxu0
        %6449 = vmatprep.mubr.bf16.mxu0 %v5400
        %6450 = vmatmul.mubr.bf16.gmra.mrb[0].mxu0 %v5320
        %v6451 = vpop.f32.mrb[0].mxu0
        %v6452 = vadd.f32 %v6291, %v6451
        %v6453 = vpop.f32.mrb[0].mxu0
        %v6454 = vpop.f32.mrb[0].mxu0
        %v6455 = vadd.f32 %v6294, %v6454
        %v6456 = vpop.f32.mrb[0].mxu0
        %6457 = vmatprep.mubr.bf16.mxu0 %v5401
        %6458 = vmatmul.mubr.bf16.gmra.mrb[0].mxu0 %v5321
        %v6459 = vpop.f32.mrb[0].mxu0
        %v6460 = vadd.f32 %v6299, %v6459
        %v6461 = vpop.f32.mrb[0].mxu0
        %v6462 = vpop.f32.mrb[0].mxu0
        %v6463 = vadd.f32 %v6302, %v6462
        %v6464 = vpop.f32.mrb[0].mxu0
        %6465 = vmatprep.mubr.bf16.mxu0 %v5402
        %6466 = vmatmul.mubr.bf16.gmra.mrb[0].mxu0 %v5322
        %v6467 = vpop.f32.mrb[0].mxu0
        %v6468 = vadd.f32 %v6307, %v6467
        %v6469 = vpop.f32.mrb[0].mxu0
        %v6470 = vpop.f32.mrb[0].mxu0
        %v6471 = vadd.f32 %v6310, %v6470
        %v6472 = vpop.f32.mrb[0].mxu0
        %6473 = vmatprep.mubr.bf16.mxu0 %v5403
        %6474 = vmatmul.mubr.bf16.gmra.mrb[0].mxu0 %v5323
        %v6475 = vpop.f32.mrb[0].mxu0
        %v6476 = vadd.f32 %v6315, %v6475
        %v6477 = vpop.f32.mrb[0].mxu0
        %v6478 = vpop.f32.mrb[0].mxu0
        %v6479 = vadd.f32 %v6318, %v6478
        %v6480 = vpop.f32.mrb[0].mxu0
        %6481 = vmatprep.mubr.bf16.mxu0 %v5404
        %6482 = vmatmul.mubr.bf16.gmra.mrb[0].mxu0 %v5324
        %v6483 = vpop.f32.mrb[0].mxu0
        %v6484 = vadd.f32 %v6323, %v6483
        %v6485 = vpop.f32.mrb[0].mxu0
        %v6486 = vpop.f32.mrb[0].mxu0
        %v6487 = vadd.f32 %v6326, %v6486
        %v6488 = vpop.f32.mrb[0].mxu0
        %6489 = vmatprep.mubr.bf16.mxu0 %v5405
        %6490 = vmatmul.mubr.bf16.gmra.mrb[0].mxu0 %v5325
        %v6491 = vpop.f32.mrb[0].mxu0
        %v6492 = vadd.f32 %v6331, %v6491
        %v6493 = vpop.f32.mrb[0].mxu0
        %v6494 = vpop.f32.mrb[0].mxu0
        %v6495 = vadd.f32 %v6334, %v6494
        %v6496 = vpop.f32.mrb[0].mxu0
        %6497 = vdwg.mxu0
        %6498 = vmatprep.subr.bf16.mxu0 0
        %6499 = vmatpush1.bf16.msra.mxu0 %v5774
        %6500 = vmatprep.subr.bf16.mxu0 0
        %6501 = vmatpush1.bf16.msra.mxu0 %v5775
        %6502 = vmatprep.subr.bf16.mxu0 0
        %6503 = vmatpush1.bf16.msra.mxu0 %v5776
        %6504 = vmatprep.subr.bf16.mxu0 0
        %6505 = vmatpush1.bf16.msra.mxu0 %v5777
        %6506 = vmatprep.subr.bf16.mxu0 0
        %6507 = vmatpush1.bf16.msra.mxu0 %v5778
        %6508 = vmatprep.subr.bf16.mxu0 0
        %6509 = vmatpush1.bf16.msra.mxu0 %v5779
        %6510 = vmatprep.subr.bf16.mxu0 0
        %6511 = vmatpush1.bf16.msra.mxu0 %v5780
        %6512 = vmatprep.subr.bf16.mxu0 0
        %6513 = vmatpush1.bf16.msra.mxu0 %v5781
        %6514 = vmatprep.subr.bf16.mxu0 0
        %6515 = vmatpush1.bf16.msra.mxu0 0
        %6516 = vmatprep.subr.bf16.mxu0 0
        %6517 = vmatpush1.bf16.msra.mxu0 0
        %6518 = vmatprep.subr.bf16.mxu0 0
        %6519 = vmatpush1.bf16.msra.mxu0 0
        %6520 = vmatprep.subr.bf16.mxu0 0
        %6521 = vmatpush1.bf16.msra.mxu0 0
        %6522 = vmatprep.subr.bf16.mxu0 0
        %6523 = vmatpush1.bf16.msra.mxu0 0
        %6524 = vmatprep.subr.bf16.mxu0 0
        %6525 = vmatpush1.bf16.msra.mxu0 0
        %6526 = vmatprep.subr.bf16.mxu0 0
        %6527 = vmatpush1.bf16.msra.mxu0 0
        %6528 = vmatprep.subr.bf16.mxu0 0
        %6529 = vmatpush1.bf16.msra.mxu0 0
        %6530 = vmatprep.mubr.bf16.mxu0 0
        %6531 = vmatmul.mubr.bf16.gmra.mrb[0].mxu0 %v5406
        %v6532 = vpop.f32.mrb[0].mxu0
        %v6533 = vadd.f32 %v6372, %v6532
        %v6534 = vpop.f32.mrb[0].mxu0
        %v6535 = vpop.f32.mrb[0].mxu0
        %v6536 = vadd.f32 %v6375, %v6535
        %v6537 = vpop.f32.mrb[0].mxu0
        %6538 = vmatprep.mubr.bf16.mxu0 0
        %6539 = vmatmul.mubr.bf16.gmra.mrb[0].mxu0 %v5407
        %v6540 = vpop.f32.mrb[0].mxu0
        %v6541 = vadd.f32 %v6380, %v6540
        %v6542 = vpop.f32.mrb[0].mxu0
        %v6543 = vpop.f32.mrb[0].mxu0
        %v6544 = vadd.f32 %v6383, %v6543
        %v6545 = vpop.f32.mrb[0].mxu0
        %6546 = vmatprep.mubr.bf16.mxu0 0
        %6547 = vmatmul.mubr.bf16.gmra.mrb[0].mxu0 %v5408
        %v6548 = vpop.f32.mrb[0].mxu0
        %v6549 = vadd.f32 %v6388, %v6548
        %v6550 = vpop.f32.mrb[0].mxu0
        %v6551 = vpop.f32.mrb[0].mxu0
        %v6552 = vadd.f32 %v6391, %v6551
        %v6553 = vpop.f32.mrb[0].mxu0
        %6554 = vmatprep.mubr.bf16.mxu0 0
        %6555 = vmatmul.mubr.bf16.gmra.mrb[0].mxu0 %v5409
        %v6556 = vpop.f32.mrb[0].mxu0
        %v6557 = vadd.f32 %v6396, %v6556
        %v6558 = vpop.f32.mrb[0].mxu0
        %v6559 = vpop.f32.mrb[0].mxu0
        %v6560 = vadd.f32 %v6399, %v6559
        %v6561 = vpop.f32.mrb[0].mxu0
        %6562 = vmatprep.mubr.bf16.mxu0 0
        %6563 = vmatmul.mubr.bf16.gmra.mrb[0].mxu0 %v5410
        %v6564 = vpop.f32.mrb[0].mxu0
        %v6565 = vadd.f32 %v6404, %v6564
        %v6566 = vpop.f32.mrb[0].mxu0
        %v6567 = vpop.f32.mrb[0].mxu0
        %v6568 = vadd.f32 %v6407, %v6567
        %v6569 = vpop.f32.mrb[0].mxu0
        %6570 = vmatprep.mubr.bf16.mxu0 0
        %6571 = vmatmul.mubr.bf16.gmra.mrb[0].mxu0 %v5411
        %v6572 = vpop.f32.mrb[0].mxu0
        %v6573 = vadd.f32 %v6412, %v6572
        %v6574 = vpop.f32.mrb[0].mxu0
        %v6575 = vpop.f32.mrb[0].mxu0
        %v6576 = vadd.f32 %v6415, %v6575
        %v6577 = vpop.f32.mrb[0].mxu0
        %6578 = vmatprep.mubr.bf16.mxu0 0
        %6579 = vmatmul.mubr.bf16.gmra.mrb[0].mxu0 %v5412
        %v6580 = vpop.f32.mrb[0].mxu0
        %v6581 = vadd.f32 %v6420, %v6580
        %v6582 = vpop.f32.mrb[0].mxu0
        %v6583 = vpop.f32.mrb[0].mxu0
        %v6584 = vadd.f32 %v6423, %v6583
        %v6585 = vpop.f32.mrb[0].mxu0
        %6586 = vmatprep.mubr.bf16.mxu0 0
        %6587 = vmatmul.mubr.bf16.gmra.mrb[0].mxu0 %v5413
        %v6588 = vpop.f32.mrb[0].mxu0
        %v6589 = vadd.f32 %v6428, %v6588
        %v6590 = vpop.f32.mrb[0].mxu0
        %v6591 = vpop.f32.mrb[0].mxu0
        %v6592 = vadd.f32 %v6431, %v6591
        %v6593 = vpop.f32.mrb[0].mxu0
        %6594 = vmatprep.mubr.bf16.mxu0 0
        %6595 = vmatmul.mubr.bf16.gmra.mrb[0].mxu0 %v5414
        %v6596 = vpop.f32.mrb[0].mxu0
        %v6597 = vadd.f32 %v6436, %v6596
        %v6598 = vpop.f32.mrb[0].mxu0
        %v6599 = vpop.f32.mrb[0].mxu0
        %v6600 = vadd.f32 %v6439, %v6599
        %v6601 = vpop.f32.mrb[0].mxu0
        %6602 = vmatprep.mubr.bf16.mxu0 0
        %6603 = vmatmul.mubr.bf16.gmra.mrb[0].mxu0 %v5415
        %v6604 = vpop.f32.mrb[0].mxu0
        %v6605 = vadd.f32 %v6444, %v6604
        %v6606 = vpop.f32.mrb[0].mxu0
        %v6607 = vpop.f32.mrb[0].mxu0
        %v6608 = vadd.f32 %v6447, %v6607
        %v6609 = vpop.f32.mrb[0].mxu0
        %6610 = vmatprep.mubr.bf16.mxu0 0
        %6611 = vmatmul.mubr.bf16.gmra.mrb[0].mxu0 %v5416
        %v6612 = vpop.f32.mrb[0].mxu0
        %v6613 = vadd.f32 %v6452, %v6612
        %v6614 = vpop.f32.mrb[0].mxu0
        %v6615 = vpop.f32.mrb[0].mxu0
        %v6616 = vadd.f32 %v6455, %v6615
        %v6617 = vpop.f32.mrb[0].mxu0
        %6618 = vmatprep.mubr.bf16.mxu0 0
        %6619 = vmatmul.mubr.bf16.gmra.mrb[0].mxu0 %v5417
        %v6620 = vpop.f32.mrb[0].mxu0
        %v6621 = vadd.f32 %v6460, %v6620
        %v6622 = vpop.f32.mrb[0].mxu0
        %v6623 = vpop.f32.mrb[0].mxu0
        %v6624 = vadd.f32 %v6463, %v6623
        %v6625 = vpop.f32.mrb[0].mxu0
        %6626 = vmatprep.mubr.bf16.mxu0 0
        %6627 = vmatmul.mubr.bf16.gmra.mrb[0].mxu0 %v5418
        %v6628 = vpop.f32.mrb[0].mxu0
        %v6629 = vadd.f32 %v6468, %v6628
        %v6630 = vpop.f32.mrb[0].mxu0
        %v6631 = vpop.f32.mrb[0].mxu0
        %v6632 = vadd.f32 %v6471, %v6631
        %v6633 = vpop.f32.mrb[0].mxu0
        %6634 = vmatprep.mubr.bf16.mxu0 0
        %6635 = vmatmul.mubr.bf16.gmra.mrb[0].mxu0 %v5419
        %v6636 = vpop.f32.mrb[0].mxu0
        %v6637 = vadd.f32 %v6476, %v6636
        %v6638 = vpop.f32.mrb[0].mxu0
        %v6639 = vpop.f32.mrb[0].mxu0
        %v6640 = vadd.f32 %v6479, %v6639
        %v6641 = vpop.f32.mrb[0].mxu0
        %6642 = vmatprep.mubr.bf16.mxu0 0
        %6643 = vmatmul.mubr.bf16.gmra.mrb[0].mxu0 %v5420
        %v6644 = vpop.f32.mrb[0].mxu0
        %v6645 = vadd.f32 %v6484, %v6644
        %v6646 = vpop.f32.mrb[0].mxu0
        %v6647 = vpop.f32.mrb[0].mxu0
        %v6648 = vadd.f32 %v6487, %v6647
        %v6649 = vpop.f32.mrb[0].mxu0
        %6650 = vmatprep.mubr.bf16.mxu0 0
        %6651 = vmatmul.mubr.bf16.gmra.mrb[0].mxu0 %v5421
        %v6652 = vpop.f32.mrb[0].mxu0
        %v6653 = vadd.f32 %v6492, %v6652
        %v6654 = vpop.f32.mrb[0].mxu0
        %v6655 = vpop.f32.mrb[0].mxu0
        %v6656 = vadd.f32 %v6495, %v6655
        %v6657 = vpop.f32.mrb[0].mxu0
        %6658 = vdwg.mxu0
        %v6659 = vld [vmem:[%s7] sm:$0x1]
        %v6661 = vlaneseq
        %v6662 = vshrl.u32 %v6661, 7
        %v6663 = vsub.s32 0, %v6662
        %v6664 = vrot.slane %v6659, %v6663
        %v6666 = vadd.f32 %v6533, %v6664
        %v6667 = vadd.f32 %v6536, %v6664
        %v6668 = vadd.f32 %v6541, %v6664
        %v6669 = vadd.f32 %v6544, %v6664
        %v6670 = vadd.f32 %v6549, %v6664
        %v6671 = vadd.f32 %v6552, %v6664
        %v6672 = vadd.f32 %v6557, %v6664
        %v6673 = vadd.f32 %v6560, %v6664
        %v6674 = vadd.f32 %v6565, %v6664
        %v6675 = vadd.f32 %v6568, %v6664
        %v6676 = vadd.f32 %v6573, %v6664
        %v6677 = vadd.f32 %v6576, %v6664
        %v6678 = vadd.f32 %v6581, %v6664
        %v6679 = vadd.f32 %v6584, %v6664
        %v6680 = vadd.f32 %v6589, %v6664
        %v6681 = vadd.f32 %v6592, %v6664
        %v6682 = vadd.f32 %v6597, %v6664
        %v6683 = vadd.f32 %v6600, %v6664
        %v6684 = vadd.f32 %v6605, %v6664
        %v6685 = vadd.f32 %v6608, %v6664
        %v6686 = vadd.f32 %v6613, %v6664
        %v6687 = vadd.f32 %v6616, %v6664
        %v6688 = vadd.f32 %v6621, %v6664
        %v6689 = vadd.f32 %v6624, %v6664
        %v6690 = vadd.f32 %v6629, %v6664
        %v6691 = vadd.f32 %v6632, %v6664
        %v6692 = vadd.f32 %v6637, %v6664
        %v6693 = vadd.f32 %v6640, %v6664
        %v6694 = vadd.f32 %v6645, %v6664
        %v6695 = vadd.f32 %v6648, %v6664
        %v6696 = vadd.f32 %v6653, %v6664
        %v6697 = vadd.f32 %v6656, %v6664
        %v6698 = vsel %vm2510, %v6666, 0.0
        %v6699 = vsel %vm2511, %v6667, 0.0
        %v6700 = vsel %vm2512, %v6668, 0.0
        %v6701 = vsel %vm2513, %v6669, 0.0
        %v6702 = vsel %vm2510, %v6670, 0.0
        %v6703 = vsel %vm2511, %v6671, 0.0
        %v6704 = vsel %vm2512, %v6672, 0.0
        %v6705 = vsel %vm2513, %v6673, 0.0
        %v6706 = vsel %vm2510, %v6674, 0.0
        %v6707 = vsel %vm2511, %v6675, 0.0
        %v6708 = vsel %vm2512, %v6676, 0.0
        %v6709 = vsel %vm2513, %v6677, 0.0
        %v6710 = vsel %vm2510, %v6678, 0.0
        %v6711 = vsel %vm2511, %v6679, 0.0
        %v6712 = vsel %vm2512, %v6680, 0.0
        %v6713 = vsel %vm2513, %v6681, 0.0
        %v6714 = vsel %vm2510, %v6682, 0.0
        %v6715 = vsel %vm2511, %v6683, 0.0
        %v6716 = vsel %vm2512, %v6684, 0.0
        %v6717 = vsel %vm2513, %v6685, 0.0
        %v6718 = vsel %vm2510, %v6686, 0.0
        %v6719 = vsel %vm2511, %v6687, 0.0
        %v6720 = vsel %vm2512, %v6688, 0.0
        %v6721 = vsel %vm2513, %v6689, 0.0
        %v6722 = vsel %vm2510, %v6690, 0.0
        %v6723 = vsel %vm2511, %v6691, 0.0
        %v6724 = vsel %vm2512, %v6692, 0.0
        %v6725 = vsel %vm2513, %v6693, 0.0
        %v6726 = vsel %vm2510, %v6694, 0.0
        %v6727 = vsel %vm2511, %v6695, 0.0
        %v6728 = vsel %vm2512, %v6696, 0.0
        %v6729 = vsel %vm2513, %v6697, 0.0
        %v6730 = vtanh.pop %v6698
        %v6731 = vtanh.pop %v6699
        %v6732 = vtanh.pop %v6700
        %v6733 = vtanh.pop %v6701
        %v6734 = vtanh.pop %v6702
        %v6735 = vtanh.pop %v6703
        %v6736 = vtanh.pop %v6704
        %v6737 = vtanh.pop %v6705
        %v6738 = vtanh.pop %v6706
        %v6739 = vtanh.pop %v6707
        %v6740 = vtanh.pop %v6708
        %v6741 = vtanh.pop %v6709
        %v6742 = vtanh.pop %v6710
        %v6743 = vtanh.pop %v6711
        %v6744 = vtanh.pop %v6712
        %v6745 = vtanh.pop %v6713
        %v6746 = vtanh.pop %v6714
        %v6747 = vtanh.pop %v6715
        %v6748 = vtanh.pop %v6716
        %v6749 = vtanh.pop %v6717
        %v6750 = vtanh.pop %v6718
        %v6751 = vtanh.pop %v6719
        %v6752 = vtanh.pop %v6720
        %v6753 = vtanh.pop %v6721
        %v6754 = vtanh.pop %v6722
        %v6755 = vtanh.pop %v6723
        %v6756 = vtanh.pop %v6724
        %v6757 = vtanh.pop %v6725
        %v6758 = vtanh.pop %v6726
        %v6759 = vtanh.pop %v6727
        %v6760 = vtanh.pop %v6728
        %v6761 = vtanh.pop %v6729
        %v6762 = vld [vmem:[%s8] sm:$0x1]
        %v6764 = vlaneseq
        %v6765 = vshrl.u32 %v6764, 7
        %v6766 = vsub.s32 0, %v6765
        %v6767 = vrot.slane %v6762, %v6766
        %v6769 = vmul.f32 %v6730, %v6767
        %v6770 = vmul.f32 %v6731, %v6767
        %v6771 = vmul.f32 %v6732, %v6767
        %v6772 = vmul.f32 %v6733, %v6767
        %v6773 = vmul.f32 %v6734, %v6767
        %v6774 = vmul.f32 %v6735, %v6767
        %v6775 = vmul.f32 %v6736, %v6767
        %v6776 = vmul.f32 %v6737, %v6767
        %v6777 = vmul.f32 %v6738, %v6767
        %v6778 = vmul.f32 %v6739, %v6767
        %v6779 = vmul.f32 %v6740, %v6767
        %v6780 = vmul.f32 %v6741, %v6767
        %v6781 = vmul.f32 %v6742, %v6767
        %v6782 = vmul.f32 %v6743, %v6767
        %v6783 = vmul.f32 %v6744, %v6767
        %v6784 = vmul.f32 %v6745, %v6767
        %v6785 = vmul.f32 %v6746, %v6767
        %v6786 = vmul.f32 %v6747, %v6767
        %v6787 = vmul.f32 %v6748, %v6767
        %v6788 = vmul.f32 %v6749, %v6767
        %v6789 = vmul.f32 %v6750, %v6767
        %v6790 = vmul.f32 %v6751, %v6767
        %v6791 = vmul.f32 %v6752, %v6767
        %v6792 = vmul.f32 %v6753, %v6767
        %v6793 = vmul.f32 %v6754, %v6767
        %v6794 = vmul.f32 %v6755, %v6767
        %v6795 = vmul.f32 %v6756, %v6767
        %v6796 = vmul.f32 %v6757, %v6767
        %v6797 = vmul.f32 %v6758, %v6767
        %v6798 = vmul.f32 %v6759, %v6767
        %v6799 = vmul.f32 %v6760, %v6767
        %v6800 = vmul.f32 %v6761, %v6767
        %6801 = vadd.xlane.f32.xlu0 %v6769
        %v6802 = vpop.xlane.xlu0 %6801
        %6803 = vadd.xlane.f32.xlu0 %v6770
        %v6804 = vpop.xlane.xlu0 %6803
        %6805 = vadd.xlane.f32.xlu0 %v6771
        %v6806 = vpop.xlane.xlu0 %6805
        %6807 = vadd.xlane.f32.xlu0 %v6772
        %v6808 = vpop.xlane.xlu0 %6807
        %6809 = vadd.xlane.f32.xlu0 %v6773
        %v6810 = vpop.xlane.xlu0 %6809
        %6811 = vadd.xlane.f32.xlu0 %v6774
        %v6812 = vpop.xlane.xlu0 %6811
        %6813 = vadd.xlane.f32.xlu0 %v6775
        %v6814 = vpop.xlane.xlu0 %6813
        %6815 = vadd.xlane.f32.xlu0 %v6776
        %v6816 = vpop.xlane.xlu0 %6815
        %6817 = vadd.xlane.f32.xlu0 %v6777
        %v6818 = vpop.xlane.xlu0 %6817
        %6819 = vadd.xlane.f32.xlu0 %v6778
        %v6820 = vpop.xlane.xlu0 %6819
        %6821 = vadd.xlane.f32.xlu0 %v6779
        %v6822 = vpop.xlane.xlu0 %6821
        %6823 = vadd.xlane.f32.xlu0 %v6780
        %v6824 = vpop.xlane.xlu0 %6823
        %6825 = vadd.xlane.f32.xlu0 %v6781
        %v6826 = vpop.xlane.xlu0 %6825
        %6827 = vadd.xlane.f32.xlu0 %v6782
        %v6828 = vpop.xlane.xlu0 %6827
        %6829 = vadd.xlane.f32.xlu0 %v6783
        %v6830 = vpop.xlane.xlu0 %6829
        %6831 = vadd.xlane.f32.xlu0 %v6784
        %v6832 = vpop.xlane.xlu0 %6831
        %6833 = vadd.xlane.f32.xlu0 %v6785
        %v6834 = vpop.xlane.xlu0 %6833
        %6835 = vadd.xlane.f32.xlu0 %v6786
        %v6836 = vpop.xlane.xlu0 %6835
        %6837 = vadd.xlane.f32.xlu0 %v6787
        %v6838 = vpop.xlane.xlu0 %6837
        %6839 = vadd.xlane.f32.xlu0 %v6788
        %v6840 = vpop.xlane.xlu0 %6839
        %6841 = vadd.xlane.f32.xlu0 %v6789
        %v6842 = vpop.xlane.xlu0 %6841
        %6843 = vadd.xlane.f32.xlu0 %v6790
        %v6844 = vpop.xlane.xlu0 %6843
        %6845 = vadd.xlane.f32.xlu0 %v6791
        %v6846 = vpop.xlane.xlu0 %6845
        %6847 = vadd.xlane.f32.xlu0 %v6792
        %v6848 = vpop.xlane.xlu0 %6847
        %6849 = vadd.xlane.f32.xlu0 %v6793
        %v6850 = vpop.xlane.xlu0 %6849
        %6851 = vadd.xlane.f32.xlu0 %v6794
        %v6852 = vpop.xlane.xlu0 %6851
        %6853 = vadd.xlane.f32.xlu0 %v6795
        %v6854 = vpop.xlane.xlu0 %6853
        %6855 = vadd.xlane.f32.xlu0 %v6796
        %v6856 = vpop.xlane.xlu0 %6855
        %6857 = vadd.xlane.f32.xlu0 %v6797
        %v6858 = vpop.xlane.xlu0 %6857
        %6859 = vadd.xlane.f32.xlu0 %v6798
        %v6860 = vpop.xlane.xlu0 %6859
        %6861 = vadd.xlane.f32.xlu0 %v6799
        %v6862 = vpop.xlane.xlu0 %6861
        %6863 = vadd.xlane.f32.xlu0 %v6800
        %v6864 = vpop.xlane.xlu0 %6863
        %v6865 = vld [vmem:[#allocation2] sm:$0x1]
        %v6867 = vlaneseq
        %v6868 = vshrl.u32 %v6867, 7
        %v6869 = vsub.s32 0, %v6868
        %v6870 = vrot.slane %v6865, %v6869
        %6871 = vset.pattern.permute.xlu0 0
        %6872 = vperm.xlu0 %6871, %v6870
        %v6873 = vpop.permute.xlu0 %6872
        %v6875 = vadd.f32 %v6802, %v6873
        %v6876 = vadd.f32 %v6804, %v6873
        %v6877 = vadd.f32 %v6806, %v6873
        %v6878 = vadd.f32 %v6808, %v6873
        %v6879 = vadd.f32 %v6810, %v6873
        %v6880 = vadd.f32 %v6812, %v6873
        %v6881 = vadd.f32 %v6814, %v6873
        %v6882 = vadd.f32 %v6816, %v6873
        %v6883 = vadd.f32 %v6818, %v6873
        %v6884 = vadd.f32 %v6820, %v6873
        %v6885 = vadd.f32 %v6822, %v6873
        %v6886 = vadd.f32 %v6824, %v6873
        %v6887 = vadd.f32 %v6826, %v6873
        %v6888 = vadd.f32 %v6828, %v6873
        %v6889 = vadd.f32 %v6830, %v6873
        %v6890 = vadd.f32 %v6832, %v6873
        %v6891 = vadd.f32 %v6834, %v6873
        %v6892 = vadd.f32 %v6836, %v6873
        %v6893 = vadd.f32 %v6838, %v6873
        %v6894 = vadd.f32 %v6840, %v6873
        %v6895 = vadd.f32 %v6842, %v6873
        %v6896 = vadd.f32 %v6844, %v6873
        %v6897 = vadd.f32 %v6846, %v6873
        %v6898 = vadd.f32 %v6848, %v6873
        %v6899 = vadd.f32 %v6850, %v6873
        %v6900 = vadd.f32 %v6852, %v6873
        %v6901 = vadd.f32 %v6854, %v6873
        %v6902 = vadd.f32 %v6856, %v6873
        %v6903 = vadd.f32 %v6858, %v6873
        %v6904 = vadd.f32 %v6860, %v6873
        %v6905 = vadd.f32 %v6862, %v6873
        %v6906 = vadd.f32 %v6864, %v6873
        %v6939 = vlaneseq
        %v6940 = vand.u32 %v6939, 127
        %v6941 = vlaneseq
        %v6942 = vshrl.u32 %v6941, 7
        %v6943 = vsub.s32 %v6940, %v6942
        %v6944 = vrot.slane %v6875, %v6943
        %v6945 = vadd.s32 %v6940, 4294967288
        %v6946 = vlaneseq
        %v6947 = vshrl.u32 %v6946, 7
        %v6948 = vsub.s32 %v6945, %v6947
        %v6949 = vrot.slane %v6876, %v6948
        %vm6950 = vcmask 130112
        %v6951 = vsel %vm6950, %v6949, %v6944
        %v6952 = vadd.s32 %v6940, 4294967280
        %v6953 = vlaneseq
        %v6954 = vshrl.u32 %v6953, 7
        %v6955 = vsub.s32 %v6952, %v6954
        %v6956 = vrot.slane %v6877, %v6955
        %vm6957 = vcmask 195712
        %v6958 = vsel %vm6957, %v6956, %v6951
        %v6959 = vadd.s32 %v6940, 4294967272
        %v6960 = vlaneseq
        %v6961 = vshrl.u32 %v6960, 7
        %v6962 = vsub.s32 %v6959, %v6961
        %v6963 = vrot.slane %v6878, %v6962
        %vm6964 = vcmask 261312
        %v6965 = vsel %vm6964, %v6963, %v6958
        %v6966 = vlaneseq
        %v6967 = vshrl.u32 %v6966, 7
        %v6968 = vsub.s32 %v6940, %v6967
        %v6969 = vrot.slane %v6879, %v6968
        %v6970 = vlaneseq
        %v6971 = vshrl.u32 %v6970, 7
        %v6972 = vsub.s32 %v6945, %v6971
        %v6973 = vrot.slane %v6880, %v6972
        %v6974 = vsel %vm6950, %v6973, %v6969
        %v6975 = vlaneseq
        %v6976 = vshrl.u32 %v6975, 7
        %v6977 = vsub.s32 %v6952, %v6976
        %v6978 = vrot.slane %v6881, %v6977
        %v6979 = vsel %vm6957, %v6978, %v6974
        %v6980 = vlaneseq
        %v6981 = vshrl.u32 %v6980, 7
        %v6982 = vsub.s32 %v6959, %v6981
        %v6983 = vrot.slane %v6882, %v6982
        %v6984 = vsel %vm6964, %v6983, %v6979
        %v6985 = vlaneseq
        %v6986 = vshrl.u32 %v6985, 7
        %v6987 = vsub.s32 %v6940, %v6986
        %v6988 = vrot.slane %v6883, %v6987
        %v6989 = vlaneseq
        %v6990 = vshrl.u32 %v6989, 7
        %v6991 = vsub.s32 %v6945, %v6990
        %v6992 = vrot.slane %v6884, %v6991
        %v6993 = vsel %vm6950, %v6992, %v6988
        %v6994 = vlaneseq
        %v6995 = vshrl.u32 %v6994, 7
        %v6996 = vsub.s32 %v6952, %v6995
        %v6997 = vrot.slane %v6885, %v6996
        %v6998 = vsel %vm6957, %v6997, %v6993
        %v6999 = vlaneseq
        %v7000 = vshrl.u32 %v6999, 7
        %v7001 = vsub.s32 %v6959, %v7000
        %v7002 = vrot.slane %v6886, %v7001
        %v7003 = vsel %vm6964, %v7002, %v6998
        %v7004 = vlaneseq
        %v7005 = vshrl.u32 %v7004, 7
        %v7006 = vsub.s32 %v6940, %v7005
        %v7007 = vrot.slane %v6887, %v7006
        %v7008 = vlaneseq
        %v7009 = vshrl.u32 %v7008, 7
        %v7010 = vsub.s32 %v6945, %v7009
        %v7011 = vrot.slane %v6888, %v7010
        %v7012 = vsel %vm6950, %v7011, %v7007
        %v7013 = vlaneseq
        %v7014 = vshrl.u32 %v7013, 7
        %v7015 = vsub.s32 %v6952, %v7014
        %v7016 = vrot.slane %v6889, %v7015
        %v7017 = vsel %vm6957, %v7016, %v7012
        %v7018 = vlaneseq
        %v7019 = vshrl.u32 %v7018, 7
        %v7020 = vsub.s32 %v6959, %v7019
        %v7021 = vrot.slane %v6890, %v7020
        %v7022 = vsel %vm6964, %v7021, %v7017
        %v7023 = vlaneseq
        %v7024 = vshrl.u32 %v7023, 7
        %v7025 = vsub.s32 %v6940, %v7024
        %v7026 = vrot.slane %v6891, %v7025
        %v7027 = vlaneseq
        %v7028 = vshrl.u32 %v7027, 7
        %v7029 = vsub.s32 %v6945, %v7028
        %v7030 = vrot.slane %v6892, %v7029
        %v7031 = vsel %vm6950, %v7030, %v7026
        %v7032 = vlaneseq
        %v7033 = vshrl.u32 %v7032, 7
        %v7034 = vsub.s32 %v6952, %v7033
        %v7035 = vrot.slane %v6893, %v7034
        %v7036 = vsel %vm6957, %v7035, %v7031
        %v7037 = vlaneseq
        %v7038 = vshrl.u32 %v7037, 7
        %v7039 = vsub.s32 %v6959, %v7038
        %v7040 = vrot.slane %v6894, %v7039
        %v7041 = vsel %vm6964, %v7040, %v7036
        %v7042 = vlaneseq
        %v7043 = vshrl.u32 %v7042, 7
        %v7044 = vsub.s32 %v6940, %v7043
        %v7045 = vrot.slane %v6895, %v7044
        %v7046 = vlaneseq
        %v7047 = vshrl.u32 %v7046, 7
        %v7048 = vsub.s32 %v6945, %v7047
        %v7049 = vrot.slane %v6896, %v7048
        %v7050 = vsel %vm6950, %v7049, %v7045
        %v7051 = vlaneseq
        %v7052 = vshrl.u32 %v7051, 7
        %v7053 = vsub.s32 %v6952, %v7052
        %v7054 = vrot.slane %v6897, %v7053
        %v7055 = vsel %vm6957, %v7054, %v7050
        %v7056 = vlaneseq
        %v7057 = vshrl.u32 %v7056, 7
        %v7058 = vsub.s32 %v6959, %v7057
        %v7059 = vrot.slane %v6898, %v7058
        %v7060 = vsel %vm6964, %v7059, %v7055
        %v7061 = vlaneseq
        %v7062 = vshrl.u32 %v7061, 7
        %v7063 = vsub.s32 %v6940, %v7062
        %v7064 = vrot.slane %v6899, %v7063
        %v7065 = vlaneseq
        %v7066 = vshrl.u32 %v7065, 7
        %v7067 = vsub.s32 %v6945, %v7066
        %v7068 = vrot.slane %v6900, %v7067
        %v7069 = vsel %vm6950, %v7068, %v7064
        %v7070 = vlaneseq
        %v7071 = vshrl.u32 %v7070, 7
        %v7072 = vsub.s32 %v6952, %v7071
        %v7073 = vrot.slane %v6901, %v7072
        %v7074 = vsel %vm6957, %v7073, %v7069
        %v7075 = vlaneseq
        %v7076 = vshrl.u32 %v7075, 7
        %v7077 = vsub.s32 %v6959, %v7076
        %v7078 = vrot.slane %v6902, %v7077
        %v7079 = vsel %vm6964, %v7078, %v7074
        %v7080 = vlaneseq
        %v7081 = vshrl.u32 %v7080, 7
        %v7082 = vsub.s32 %v6940, %v7081
        %v7083 = vrot.slane %v6903, %v7082
        %v7084 = vlaneseq
        %v7085 = vshrl.u32 %v7084, 7
        %v7086 = vsub.s32 %v6945, %v7085
        %v7087 = vrot.slane %v6904, %v7086
        %v7088 = vsel %vm6950, %v7087, %v7083
        %v7089 = vlaneseq
        %v7090 = vshrl.u32 %v7089, 7
        %v7091 = vsub.s32 %v6952, %v7090
        %v7092 = vrot.slane %v6905, %v7091
        %v7093 = vsel %vm6957, %v7092, %v7088
        %v7094 = vlaneseq
        %v7095 = vshrl.u32 %v7094, 7
        %v7096 = vsub.s32 %v6959, %v7095
        %v7097 = vrot.slane %v6906, %v7096
        %v7098 = vsel %vm6964, %v7097, %v7093
        %vm7099 = vcmask 1041409
        %v7100 = vsel %vm7099, %v6984, %v6965
        %vm7101 = vcmask 1042434
        %v7102 = vsel %vm7101, %v7003, %v7100
        %vm7103 = vcmask 1043459
        %v7104 = vsel %vm7103, %v7022, %v7102
        %vm7105 = vcmask 1044484
        %v7106 = vsel %vm7105, %v7041, %v7104
        %vm7107 = vcmask 1045509
        %v7108 = vsel %vm7107, %v7060, %v7106
        %vm7109 = vcmask 1046534
        %v7110 = vsel %vm7109, %v7079, %v7108
        %vm7111 = vcmask 1047559
        %v7112 = vsel %vm7111, %v7098, %v7110
        %vm7114 = vcmask 261120
        %v7115 = vsel %vm7114, %v7112, -inf
        %7116 = vmax.xlane.f32.xlu0 %v7115
        %v7117 = vpop.xlane.xlu0 %7116
        %v7119 = vlaneseq
        %v7120 = vshrl.u32 %v7119, 7
        %v7121 = vsub.s32 0, %v7120
        %v7122 = vrot.slane %v7117, %v7121
        %v7123 = vlaneseq
        %v7124 = vshrl.u32 %v7123, 7
        %v7125 = vsub.s32 1, %v7124
        %v7126 = vrot.slane %v7117, %v7125
        %v7127 = vlaneseq
        %v7128 = vshrl.u32 %v7127, 7
        %v7129 = vsub.s32 2, %v7128
        %v7130 = vrot.slane %v7117, %v7129
        %v7131 = vlaneseq
        %v7132 = vshrl.u32 %v7131, 7
        %v7133 = vsub.s32 3, %v7132
        %v7134 = vrot.slane %v7117, %v7133
        %v7135 = vlaneseq
        %v7136 = vshrl.u32 %v7135, 7
        %v7137 = vsub.s32 4, %v7136
        %v7138 = vrot.slane %v7117, %v7137
        %v7139 = vlaneseq
        %v7140 = vshrl.u32 %v7139, 7
        %v7141 = vsub.s32 5, %v7140
        %v7142 = vrot.slane %v7117, %v7141
        %v7143 = vlaneseq
        %v7144 = vshrl.u32 %v7143, 7
        %v7145 = vsub.s32 6, %v7144
        %v7146 = vrot.slane %v7117, %v7145
        %v7147 = vlaneseq
        %v7148 = vshrl.u32 %v7147, 7
        %v7149 = vsub.s32 7, %v7148
        %v7150 = vrot.slane %v7117, %v7149
        %v7159 = vsub.f32 %v6875, %v7122
        %v7160 = vsub.f32 %v6876, %v7122
        %v7161 = vsub.f32 %v6877, %v7122
        %v7162 = vsub.f32 %v6878, %v7122
        %v7163 = vsub.f32 %v6879, %v7126
        %v7164 = vsub.f32 %v6880, %v7126
        %v7165 = vsub.f32 %v6881, %v7126
        %v7166 = vsub.f32 %v6882, %v7126
        %v7167 = vsub.f32 %v6883, %v7130
        %v7168 = vsub.f32 %v6884, %v7130
        %v7169 = vsub.f32 %v6885, %v7130
        %v7170 = vsub.f32 %v6886, %v7130
        %v7171 = vsub.f32 %v6887, %v7134
        %v7172 = vsub.f32 %v6888, %v7134
        %v7173 = vsub.f32 %v6889, %v7134
        %v7174 = vsub.f32 %v6890, %v7134
        %v7175 = vsub.f32 %v6891, %v7138
        %v7176 = vsub.f32 %v6892, %v7138
        %v7177 = vsub.f32 %v6893, %v7138
        %v7178 = vsub.f32 %v6894, %v7138
        %v7179 = vsub.f32 %v6895, %v7142
        %v7180 = vsub.f32 %v6896, %v7142
        %v7181 = vsub.f32 %v6897, %v7142
        %v7182 = vsub.f32 %v6898, %v7142
        %v7183 = vsub.f32 %v6899, %v7146
        %v7184 = vsub.f32 %v6900, %v7146
        %v7185 = vsub.f32 %v6901, %v7146
        %v7186 = vsub.f32 %v6902, %v7146
        %v7187 = vsub.f32 %v6903, %v7150
        %v7188 = vsub.f32 %v6904, %v7150
        %v7189 = vsub.f32 %v6905, %v7150
        %v7190 = vsub.f32 %v6906, %v7150
        %v7191 = vmul.f32 %v7159, 1.442695
        %v7192 = vpow.pop %v7191
        %v7193 = vmul.f32 %v7160, 1.442695
        %v7194 = vpow.pop %v7193
        %v7195 = vmul.f32 %v7161, 1.442695
        %v7196 = vpow.pop %v7195
        %v7197 = vmul.f32 %v7162, 1.442695
        %v7198 = vpow.pop %v7197
        %v7199 = vmul.f32 %v7163, 1.442695
        %v7200 = vpow.pop %v7199
        %v7201 = vmul.f32 %v7164, 1.442695
        %v7202 = vpow.pop %v7201
        %v7203 = vmul.f32 %v7165, 1.442695
        %v7204 = vpow.pop %v7203
        %v7205 = vmul.f32 %v7166, 1.442695
        %v7206 = vpow.pop %v7205
        %v7207 = vmul.f32 %v7167, 1.442695
        %v7208 = vpow.pop %v7207
        %v7209 = vmul.f32 %v7168, 1.442695
        %v7210 = vpow.pop %v7209
        %v7211 = vmul.f32 %v7169, 1.442695
        %v7212 = vpow.pop %v7211
        %v7213 = vmul.f32 %v7170, 1.442695
        %v7214 = vpow.pop %v7213
        %v7215 = vmul.f32 %v7171, 1.442695
        %v7216 = vpow.pop %v7215
        %v7217 = vmul.f32 %v7172, 1.442695
        %v7218 = vpow.pop %v7217
        %v7219 = vmul.f32 %v7173, 1.442695
        %v7220 = vpow.pop %v7219
        %v7221 = vmul.f32 %v7174, 1.442695
        %v7222 = vpow.pop %v7221
        %v7223 = vmul.f32 %v7175, 1.442695
        %v7224 = vpow.pop %v7223
        %v7225 = vmul.f32 %v7176, 1.442695
        %v7226 = vpow.pop %v7225
        %v7227 = vmul.f32 %v7177, 1.442695
        %v7228 = vpow.pop %v7227
        %v7229 = vmul.f32 %v7178, 1.442695
        %v7230 = vpow.pop %v7229
        %v7231 = vmul.f32 %v7179, 1.442695
        %v7232 = vpow.pop %v7231
        %v7233 = vmul.f32 %v7180, 1.442695
        %v7234 = vpow.pop %v7233
        %v7235 = vmul.f32 %v7181, 1.442695
        %v7236 = vpow.pop %v7235
        %v7237 = vmul.f32 %v7182, 1.442695
        %v7238 = vpow.pop %v7237
        %v7239 = vmul.f32 %v7183, 1.442695
        %v7240 = vpow.pop %v7239
        %v7241 = vmul.f32 %v7184, 1.442695
        %v7242 = vpow.pop %v7241
        %v7243 = vmul.f32 %v7185, 1.442695
        %v7244 = vpow.pop %v7243
        %v7245 = vmul.f32 %v7186, 1.442695
        %v7246 = vpow.pop %v7245
        %v7247 = vmul.f32 %v7187, 1.442695
        %v7248 = vpow.pop %v7247
        %v7249 = vmul.f32 %v7188, 1.442695
        %v7250 = vpow.pop %v7249
        %v7251 = vmul.f32 %v7189, 1.442695
        %v7252 = vpow.pop %v7251
        %v7253 = vmul.f32 %v7190, 1.442695
        %v7254 = vpow.pop %v7253
        %v7255 = vld [vmem:[%s407] sm:$0xff]
        %v7257 = vlaneseq
        %v7258 = vshrl.u32 %v7257, 7
        %v7259 = vsub.s32 0, %v7258
        %v7260 = vrot.slane %v7255, %v7259
        %7262 = vbcast.lane.b32.xlu0 %v7260, 256
        %v7263 = vpop.permute.xlu0 %7262
        %s7265 = sor.u32 256, 8
        %7266 = vbcast.lane.b32.xlu0 %v7260, %s7265
        %v7267 = vpop.permute.xlu0 %7266
        %s7269 = sor.u32 256, 16
        %7270 = vbcast.lane.b32.xlu0 %v7260, %s7269
        %v7271 = vpop.permute.xlu0 %7270
        %s7273 = sor.u32 256, 24
        %7274 = vbcast.lane.b32.xlu0 %v7260, %s7273
        %v7275 = vpop.permute.xlu0 %7274
        %v7276 = vlaneseq
        %v7277 = vshrl.u32 %v7276, 7
        %v7278 = vsub.s32 1, %v7277
        %v7279 = vrot.slane %v7255, %v7278
        %7281 = vbcast.lane.b32.xlu0 %v7279, 256
        %v7282 = vpop.permute.xlu0 %7281
        %s7284 = sor.u32 256, 8
        %7285 = vbcast.lane.b32.xlu0 %v7279, %s7284
        %v7286 = vpop.permute.xlu0 %7285
        %s7288 = sor.u32 256, 16
        %7289 = vbcast.lane.b32.xlu0 %v7279, %s7288
        %v7290 = vpop.permute.xlu0 %7289
        %s7292 = sor.u32 256, 24
        %7293 = vbcast.lane.b32.xlu0 %v7279, %s7292
        %v7294 = vpop.permute.xlu0 %7293
        %v7295 = vlaneseq
        %v7296 = vshrl.u32 %v7295, 7
        %v7297 = vsub.s32 2, %v7296
        %v7298 = vrot.slane %v7255, %v7297
        %7300 = vbcast.lane.b32.xlu0 %v7298, 256
        %v7301 = vpop.permute.xlu0 %7300
        %s7303 = sor.u32 256, 8
        %7304 = vbcast.lane.b32.xlu0 %v7298, %s7303
        %v7305 = vpop.permute.xlu0 %7304
        %s7307 = sor.u32 256, 16
        %7308 = vbcast.lane.b32.xlu0 %v7298, %s7307
        %v7309 = vpop.permute.xlu0 %7308
        %s7311 = sor.u32 256, 24
        %7312 = vbcast.lane.b32.xlu0 %v7298, %s7311
        %v7313 = vpop.permute.xlu0 %7312
        %v7314 = vlaneseq
        %v7315 = vshrl.u32 %v7314, 7
        %v7316 = vsub.s32 3, %v7315
        %v7317 = vrot.slane %v7255, %v7316
        %7319 = vbcast.lane.b32.xlu0 %v7317, 256
        %v7320 = vpop.permute.xlu0 %7319
        %s7322 = sor.u32 256, 8
        %7323 = vbcast.lane.b32.xlu0 %v7317, %s7322
        %v7324 = vpop.permute.xlu0 %7323
        %s7326 = sor.u32 256, 16
        %7327 = vbcast.lane.b32.xlu0 %v7317, %s7326
        %v7328 = vpop.permute.xlu0 %7327
        %s7330 = sor.u32 256, 24
        %7331 = vbcast.lane.b32.xlu0 %v7317, %s7330
        %v7332 = vpop.permute.xlu0 %7331
        %v7333 = vlaneseq
        %v7334 = vshrl.u32 %v7333, 7
        %v7335 = vsub.s32 4, %v7334
        %v7336 = vrot.slane %v7255, %v7335
        %7338 = vbcast.lane.b32.xlu0 %v7336, 256
        %v7339 = vpop.permute.xlu0 %7338
        %s7341 = sor.u32 256, 8
        %7342 = vbcast.lane.b32.xlu0 %v7336, %s7341
        %v7343 = vpop.permute.xlu0 %7342
        %s7345 = sor.u32 256, 16
        %7346 = vbcast.lane.b32.xlu0 %v7336, %s7345
        %v7347 = vpop.permute.xlu0 %7346
        %s7349 = sor.u32 256, 24
        %7350 = vbcast.lane.b32.xlu0 %v7336, %s7349
        %v7351 = vpop.permute.xlu0 %7350
        %v7352 = vlaneseq
        %v7353 = vshrl.u32 %v7352, 7
        %v7354 = vsub.s32 5, %v7353
        %v7355 = vrot.slane %v7255, %v7354
        %7357 = vbcast.lane.b32.xlu0 %v7355, 256
        %v7358 = vpop.permute.xlu0 %7357
        %s7360 = sor.u32 256, 8
        %7361 = vbcast.lane.b32.xlu0 %v7355, %s7360
        %v7362 = vpop.permute.xlu0 %7361
        %s7364 = sor.u32 256, 16
        %7365 = vbcast.lane.b32.xlu0 %v7355, %s7364
        %v7366 = vpop.permute.xlu0 %7365
        %s7368 = sor.u32 256, 24
        %7369 = vbcast.lane.b32.xlu0 %v7355, %s7368
        %v7370 = vpop.permute.xlu0 %7369
        %v7371 = vlaneseq
        %v7372 = vshrl.u32 %v7371, 7
        %v7373 = vsub.s32 6, %v7372
        %v7374 = vrot.slane %v7255, %v7373
        %7376 = vbcast.lane.b32.xlu0 %v7374, 256
        %v7377 = vpop.permute.xlu0 %7376
        %s7379 = sor.u32 256, 8
        %7380 = vbcast.lane.b32.xlu0 %v7374, %s7379
        %v7381 = vpop.permute.xlu0 %7380
        %s7383 = sor.u32 256, 16
        %7384 = vbcast.lane.b32.xlu0 %v7374, %s7383
        %v7385 = vpop.permute.xlu0 %7384
        %s7387 = sor.u32 256, 24
        %7388 = vbcast.lane.b32.xlu0 %v7374, %s7387
        %v7389 = vpop.permute.xlu0 %7388
        %v7390 = vlaneseq
        %v7391 = vshrl.u32 %v7390, 7
        %v7392 = vsub.s32 7, %v7391
        %v7393 = vrot.slane %v7255, %v7392
        %7395 = vbcast.lane.b32.xlu0 %v7393, 256
        %v7396 = vpop.permute.xlu0 %7395
        %s7398 = sor.u32 256, 8
        %7399 = vbcast.lane.b32.xlu0 %v7393, %s7398
        %v7400 = vpop.permute.xlu0 %7399
        %s7402 = sor.u32 256, 16
        %7403 = vbcast.lane.b32.xlu0 %v7393, %s7402
        %v7404 = vpop.permute.xlu0 %7403
        %s7406 = sor.u32 256, 24
        %7407 = vbcast.lane.b32.xlu0 %v7393, %s7406
        %v7408 = vpop.permute.xlu0 %7407
        %v7441 = vmul.f32 %v7192, %v7263
        %v7442 = vmul.f32 %v7194, %v7267
        %v7443 = vmul.f32 %v7196, %v7271
        %v7444 = vmul.f32 %v7198, %v7275
        %v7445 = vmul.f32 %v7200, %v7282
        %v7446 = vmul.f32 %v7202, %v7286
        %v7447 = vmul.f32 %v7204, %v7290
        %v7448 = vmul.f32 %v7206, %v7294
        %v7449 = vmul.f32 %v7208, %v7301
        %v7450 = vmul.f32 %v7210, %v7305
        %v7451 = vmul.f32 %v7212, %v7309
        %v7452 = vmul.f32 %v7214, %v7313
        %v7453 = vmul.f32 %v7216, %v7320
        %v7454 = vmul.f32 %v7218, %v7324
        %v7455 = vmul.f32 %v7220, %v7328
        %v7456 = vmul.f32 %v7222, %v7332
        %v7457 = vmul.f32 %v7224, %v7339
        %v7458 = vmul.f32 %v7226, %v7343
        %v7459 = vmul.f32 %v7228, %v7347
        %v7460 = vmul.f32 %v7230, %v7351
        %v7461 = vmul.f32 %v7232, %v7358
        %v7462 = vmul.f32 %v7234, %v7362
        %v7463 = vmul.f32 %v7236, %v7366
        %v7464 = vmul.f32 %v7238, %v7370
        %v7465 = vmul.f32 %v7240, %v7377
        %v7466 = vmul.f32 %v7242, %v7381
        %v7467 = vmul.f32 %v7244, %v7385
        %v7468 = vmul.f32 %v7246, %v7389
        %v7469 = vmul.f32 %v7248, %v7396
        %v7470 = vmul.f32 %v7250, %v7400
        %v7471 = vmul.f32 %v7252, %v7404
        %v7472 = vmul.f32 %v7254, %v7408
        %7474 = vset.pattern.permute.xlu0 0
        %7475 = vperm.xlu0 %7474, %v7441
        %v7476 = vpop.permute.xlu0 %7475
        %7479 = vset.pattern.permute.xlu0 0
        %7480 = vperm.xlu0 %7479, %v7442
        %v7481 = vpop.permute.xlu0 %7480
        %7484 = vset.pattern.permute.xlu0 0
        %7485 = vperm.xlu0 %7484, %v7443
        %v7486 = vpop.permute.xlu0 %7485
        %7489 = vset.pattern.permute.xlu0 0
        %7490 = vperm.xlu0 %7489, %v7444
        %v7491 = vpop.permute.xlu0 %7490
        %7494 = vset.pattern.permute.xlu0 0
        %7495 = vperm.xlu0 %7494, %v7445
        %v7496 = vpop.permute.xlu0 %7495
        %7499 = vset.pattern.permute.xlu0 0
        %7500 = vperm.xlu0 %7499, %v7446
        %v7501 = vpop.permute.xlu0 %7500
        %7504 = vset.pattern.permute.xlu0 0
        %7505 = vperm.xlu0 %7504, %v7447
        %v7506 = vpop.permute.xlu0 %7505
        %7509 = vset.pattern.permute.xlu0 0
        %7510 = vperm.xlu0 %7509, %v7448
        %v7511 = vpop.permute.xlu0 %7510
        %7514 = vset.pattern.permute.xlu0 0
        %7515 = vperm.xlu0 %7514, %v7449
        %v7516 = vpop.permute.xlu0 %7515
        %7519 = vset.pattern.permute.xlu0 0
        %7520 = vperm.xlu0 %7519, %v7450
        %v7521 = vpop.permute.xlu0 %7520
        %7524 = vset.pattern.permute.xlu0 0
        %7525 = vperm.xlu0 %7524, %v7451
        %v7526 = vpop.permute.xlu0 %7525
        %7529 = vset.pattern.permute.xlu0 0
        %7530 = vperm.xlu0 %7529, %v7452
        %v7531 = vpop.permute.xlu0 %7530
        %7534 = vset.pattern.permute.xlu0 0
        %7535 = vperm.xlu0 %7534, %v7453
        %v7536 = vpop.permute.xlu0 %7535
        %7539 = vset.pattern.permute.xlu0 0
        %7540 = vperm.xlu0 %7539, %v7454
        %v7541 = vpop.permute.xlu0 %7540
        %7544 = vset.pattern.permute.xlu0 0
        %7545 = vperm.xlu0 %7544, %v7455
        %v7546 = vpop.permute.xlu0 %7545
        %7549 = vset.pattern.permute.xlu0 0
        %7550 = vperm.xlu0 %7549, %v7456
        %v7551 = vpop.permute.xlu0 %7550
        %7554 = vset.pattern.permute.xlu0 0
        %7555 = vperm.xlu0 %7554, %v7457
        %v7556 = vpop.permute.xlu0 %7555
        %7559 = vset.pattern.permute.xlu0 0
        %7560 = vperm.xlu0 %7559, %v7458
        %v7561 = vpop.permute.xlu0 %7560
        %7564 = vset.pattern.permute.xlu0 0
        %7565 = vperm.xlu0 %7564, %v7459
        %v7566 = vpop.permute.xlu0 %7565
        %7569 = vset.pattern.permute.xlu0 0
        %7570 = vperm.xlu0 %7569, %v7460
        %v7571 = vpop.permute.xlu0 %7570
        %7574 = vset.pattern.permute.xlu0 0
        %7575 = vperm.xlu0 %7574, %v7461
        %v7576 = vpop.permute.xlu0 %7575
        %7579 = vset.pattern.permute.xlu0 0
        %7580 = vperm.xlu0 %7579, %v7462
        %v7581 = vpop.permute.xlu0 %7580
        %7584 = vset.pattern.permute.xlu0 0
        %7585 = vperm.xlu0 %7584, %v7463
        %v7586 = vpop.permute.xlu0 %7585
        %7589 = vset.pattern.permute.xlu0 0
        %7590 = vperm.xlu0 %7589, %v7464
        %v7591 = vpop.permute.xlu0 %7590
        %7594 = vset.pattern.permute.xlu0 0
        %7595 = vperm.xlu0 %7594, %v7465
        %v7596 = vpop.permute.xlu0 %7595
        %7599 = vset.pattern.permute.xlu0 0
        %7600 = vperm.xlu0 %7599, %v7466
        %v7601 = vpop.permute.xlu0 %7600
        %7604 = vset.pattern.permute.xlu0 0
        %7605 = vperm.xlu0 %7604, %v7467
        %v7606 = vpop.permute.xlu0 %7605
        %7609 = vset.pattern.permute.xlu0 0
        %7610 = vperm.xlu0 %7609, %v7468
        %v7611 = vpop.permute.xlu0 %7610
        %7614 = vset.pattern.permute.xlu0 0
        %7615 = vperm.xlu0 %7614, %v7469
        %v7616 = vpop.permute.xlu0 %7615
        %7619 = vset.pattern.permute.xlu0 0
        %7620 = vperm.xlu0 %7619, %v7470
        %v7621 = vpop.permute.xlu0 %7620
        %7624 = vset.pattern.permute.xlu0 0
        %7625 = vperm.xlu0 %7624, %v7471
        %v7626 = vpop.permute.xlu0 %7625
        %7629 = vset.pattern.permute.xlu0 0
        %7630 = vperm.xlu0 %7629, %v7472
        %v7631 = vpop.permute.xlu0 %7630
        %v7633 = vmul.f32 %v7476, %v6730
        %v7634 = vmul.f32 %v7481, %v6731
        %v7635 = vmul.f32 %v7486, %v6732
        %v7636 = vmul.f32 %v7491, %v6733
        %v7637 = vmul.f32 %v7496, %v6734
        %v7638 = vmul.f32 %v7501, %v6735
        %v7639 = vmul.f32 %v7506, %v6736
        %v7640 = vmul.f32 %v7511, %v6737
        %v7641 = vmul.f32 %v7516, %v6738
        %v7642 = vmul.f32 %v7521, %v6739
        %v7643 = vmul.f32 %v7526, %v6740
        %v7644 = vmul.f32 %v7531, %v6741
        %v7645 = vmul.f32 %v7536, %v6742
        %v7646 = vmul.f32 %v7541, %v6743
        %v7647 = vmul.f32 %v7546, %v6744
        %v7648 = vmul.f32 %v7551, %v6745
        %v7649 = vmul.f32 %v7556, %v6746
        %v7650 = vmul.f32 %v7561, %v6747
        %v7651 = vmul.f32 %v7566, %v6748
        %v7652 = vmul.f32 %v7571, %v6749
        %v7653 = vmul.f32 %v7576, %v6750
        %v7654 = vmul.f32 %v7581, %v6751
        %v7655 = vmul.f32 %v7586, %v6752
        %v7656 = vmul.f32 %v7591, %v6753
        %v7657 = vmul.f32 %v7596, %v6754
        %v7658 = vmul.f32 %v7601, %v6755
        %v7659 = vmul.f32 %v7606, %v6756
        %v7660 = vmul.f32 %v7611, %v6757
        %v7661 = vmul.f32 %v7616, %v6758
        %v7662 = vmul.f32 %v7621, %v6759
        %v7663 = vmul.f32 %v7626, %v6760
        %v7664 = vmul.f32 %v7631, %v6761
        %v7665 = vadd.f32 %v7633, %v7634
        %v7666 = vadd.f32 %v7665, %v7635
        %v7667 = vadd.f32 %v7666, %v7636
        %v7668 = vrot.slane %v7667, 4
        %v7669 = vadd.f32 %v7667, %v7668
        %v7670 = vrot.slane %v7669, 2
        %v7671 = vadd.f32 %v7669, %v7670
        %v7672 = vrot.slane %v7671, 1
        %v7673 = vadd.f32 %v7671, %v7672
        %v7674 = vadd.f32 %v7637, %v7638
        %v7675 = vadd.f32 %v7674, %v7639
        %v7676 = vadd.f32 %v7675, %v7640
        %v7677 = vrot.slane %v7676, 4
        %v7678 = vadd.f32 %v7676, %v7677
        %v7679 = vrot.slane %v7678, 2
        %v7680 = vadd.f32 %v7678, %v7679
        %v7681 = vrot.slane %v7680, 1
        %v7682 = vadd.f32 %v7680, %v7681
        %v7683 = vadd.f32 %v7641, %v7642
        %v7684 = vadd.f32 %v7683, %v7643
        %v7685 = vadd.f32 %v7684, %v7644
        %v7686 = vrot.slane %v7685, 4
        %v7687 = vadd.f32 %v7685, %v7686
        %v7688 = vrot.slane %v7687, 2
        %v7689 = vadd.f32 %v7687, %v7688
        %v7690 = vrot.slane %v7689, 1
        %v7691 = vadd.f32 %v7689, %v7690
        %v7692 = vadd.f32 %v7645, %v7646
        %v7693 = vadd.f32 %v7692, %v7647
        %v7694 = vadd.f32 %v7693, %v7648
        %v7695 = vrot.slane %v7694, 4
        %v7696 = vadd.f32 %v7694, %v7695
        %v7697 = vrot.slane %v7696, 2
        %v7698 = vadd.f32 %v7696, %v7697
        %v7699 = vrot.slane %v7698, 1
        %v7700 = vadd.f32 %v7698, %v7699
        %v7701 = vadd.f32 %v7649, %v7650
        %v7702 = vadd.f32 %v7701, %v7651
        %v7703 = vadd.f32 %v7702, %v7652
        %v7704 = vrot.slane %v7703, 4
        %v7705 = vadd.f32 %v7703, %v7704
        %v7706 = vrot.slane %v7705, 2
        %v7707 = vadd.f32 %v7705, %v7706
        %v7708 = vrot.slane %v7707, 1
        %v7709 = vadd.f32 %v7707, %v7708
        %v7710 = vadd.f32 %v7653, %v7654
        %v7711 = vadd.f32 %v7710, %v7655
        %v7712 = vadd.f32 %v7711, %v7656
        %v7713 = vrot.slane %v7712, 4
        %v7714 = vadd.f32 %v7712, %v7713
        %v7715 = vrot.slane %v7714, 2
        %v7716 = vadd.f32 %v7714, %v7715
        %v7717 = vrot.slane %v7716, 1
        %v7718 = vadd.f32 %v7716, %v7717
        %v7719 = vadd.f32 %v7657, %v7658
        %v7720 = vadd.f32 %v7719, %v7659
        %v7721 = vadd.f32 %v7720, %v7660
        %v7722 = vrot.slane %v7721, 4
        %v7723 = vadd.f32 %v7721, %v7722
        %v7724 = vrot.slane %v7723, 2
        %v7725 = vadd.f32 %v7723, %v7724
        %v7726 = vrot.slane %v7725, 1
        %v7727 = vadd.f32 %v7725, %v7726
        %v7728 = vadd.f32 %v7661, %v7662
        %v7729 = vadd.f32 %v7728, %v7663
        %v7730 = vadd.f32 %v7729, %v7664
        %v7731 = vrot.slane %v7730, 4
        %v7732 = vadd.f32 %v7730, %v7731
        %v7733 = vrot.slane %v7732, 2
        %v7734 = vadd.f32 %v7732, %v7733
        %v7735 = vrot.slane %v7734, 1
        %v7736 = vadd.f32 %v7734, %v7735
        %v7737 = vlaneseq
        %v7738 = vshrl.u32 %v7737, 7
        %v7739 = vsub.s32 %v6940, %v7738
        %v7740 = vrot.slane %v7476, %v7739
        %v7741 = vlaneseq
        %v7742 = vshrl.u32 %v7741, 7
        %v7743 = vsub.s32 %v6945, %v7742
        %v7744 = vrot.slane %v7481, %v7743
        %v7745 = vsel %vm6950, %v7744, %v7740
        %v7746 = vlaneseq
        %v7747 = vshrl.u32 %v7746, 7
        %v7748 = vsub.s32 %v6952, %v7747
        %v7749 = vrot.slane %v7486, %v7748
        %v7750 = vsel %vm6957, %v7749, %v7745
        %v7751 = vlaneseq
        %v7752 = vshrl.u32 %v7751, 7
        %v7753 = vsub.s32 %v6959, %v7752
        %v7754 = vrot.slane %v7491, %v7753
        %v7755 = vsel %vm6964, %v7754, %v7750
        %v7756 = vlaneseq
        %v7757 = vshrl.u32 %v7756, 7
        %v7758 = vsub.s32 %v6940, %v7757
        %v7759 = vrot.slane %v7496, %v7758
        %v7760 = vlaneseq
        %v7761 = vshrl.u32 %v7760, 7
        %v7762 = vsub.s32 %v6945, %v7761
        %v7763 = vrot.slane %v7501, %v7762
        %v7764 = vsel %vm6950, %v7763, %v7759
        %v7765 = vlaneseq
        %v7766 = vshrl.u32 %v7765, 7
        %v7767 = vsub.s32 %v6952, %v7766
        %v7768 = vrot.slane %v7506, %v7767
        %v7769 = vsel %vm6957, %v7768, %v7764
        %v7770 = vlaneseq
        %v7771 = vshrl.u32 %v7770, 7
        %v7772 = vsub.s32 %v6959, %v7771
        %v7773 = vrot.slane %v7511, %v7772
        %v7774 = vsel %vm6964, %v7773, %v7769
        %v7775 = vlaneseq
        %v7776 = vshrl.u32 %v7775, 7
        %v7777 = vsub.s32 %v6940, %v7776
        %v7778 = vrot.slane %v7516, %v7777
        %v7779 = vlaneseq
        %v7780 = vshrl.u32 %v7779, 7
        %v7781 = vsub.s32 %v6945, %v7780
        %v7782 = vrot.slane %v7521, %v7781
        %v7783 = vsel %vm6950, %v7782, %v7778
        %v7784 = vlaneseq
        %v7785 = vshrl.u32 %v7784, 7
        %v7786 = vsub.s32 %v6952, %v7785
        %v7787 = vrot.slane %v7526, %v7786
        %v7788 = vsel %vm6957, %v7787, %v7783
        %v7789 = vlaneseq
        %v7790 = vshrl.u32 %v7789, 7
        %v7791 = vsub.s32 %v6959, %v7790
        %v7792 = vrot.slane %v7531, %v7791
        %v7793 = vsel %vm6964, %v7792, %v7788
        %v7794 = vlaneseq
        %v7795 = vshrl.u32 %v7794, 7
        %v7796 = vsub.s32 %v6940, %v7795
        %v7797 = vrot.slane %v7536, %v7796
        %v7798 = vlaneseq
        %v7799 = vshrl.u32 %v7798, 7
        %v7800 = vsub.s32 %v6945, %v7799
        %v7801 = vrot.slane %v7541, %v7800
        %v7802 = vsel %vm6950, %v7801, %v7797
        %v7803 = vlaneseq
        %v7804 = vshrl.u32 %v7803, 7
        %v7805 = vsub.s32 %v6952, %v7804
        %v7806 = vrot.slane %v7546, %v7805
        %v7807 = vsel %vm6957, %v7806, %v7802
        %v7808 = vlaneseq
        %v7809 = vshrl.u32 %v7808, 7
        %v7810 = vsub.s32 %v6959, %v7809
        %v7811 = vrot.slane %v7551, %v7810
        %v7812 = vsel %vm6964, %v7811, %v7807
        %v7813 = vlaneseq
        %v7814 = vshrl.u32 %v7813, 7
        %v7815 = vsub.s32 %v6940, %v7814
        %v7816 = vrot.slane %v7556, %v7815
        %v7817 = vlaneseq
        %v7818 = vshrl.u32 %v7817, 7
        %v7819 = vsub.s32 %v6945, %v7818
        %v7820 = vrot.slane %v7561, %v7819
        %v7821 = vsel %vm6950, %v7820, %v7816
        %v7822 = vlaneseq
        %v7823 = vshrl.u32 %v7822, 7
        %v7824 = vsub.s32 %v6952, %v7823
        %v7825 = vrot.slane %v7566, %v7824
        %v7826 = vsel %vm6957, %v7825, %v7821
        %v7827 = vlaneseq
        %v7828 = vshrl.u32 %v7827, 7
        %v7829 = vsub.s32 %v6959, %v7828
        %v7830 = vrot.slane %v7571, %v7829
        %v7831 = vsel %vm6964, %v7830, %v7826
        %v7832 = vlaneseq
        %v7833 = vshrl.u32 %v7832, 7
        %v7834 = vsub.s32 %v6940, %v7833
        %v7835 = vrot.slane %v7576, %v7834
        %v7836 = vlaneseq
        %v7837 = vshrl.u32 %v7836, 7
        %v7838 = vsub.s32 %v6945, %v7837
        %v7839 = vrot.slane %v7581, %v7838
        %v7840 = vsel %vm6950, %v7839, %v7835
        %v7841 = vlaneseq
        %v7842 = vshrl.u32 %v7841, 7
        %v7843 = vsub.s32 %v6952, %v7842
        %v7844 = vrot.slane %v7586, %v7843
        %v7845 = vsel %vm6957, %v7844, %v7840
        %v7846 = vlaneseq
        %v7847 = vshrl.u32 %v7846, 7
        %v7848 = vsub.s32 %v6959, %v7847
        %v7849 = vrot.slane %v7591, %v7848
        %v7850 = vsel %vm6964, %v7849, %v7845
        %v7851 = vlaneseq
        %v7852 = vshrl.u32 %v7851, 7
        %v7853 = vsub.s32 %v6940, %v7852
        %v7854 = vrot.slane %v7596, %v7853
        %v7855 = vlaneseq
        %v7856 = vshrl.u32 %v7855, 7
        %v7857 = vsub.s32 %v6945, %v7856
        %v7858 = vrot.slane %v7601, %v7857
        %v7859 = vsel %vm6950, %v7858, %v7854
        %v7860 = vlaneseq
        %v7861 = vshrl.u32 %v7860, 7
        %v7862 = vsub.s32 %v6952, %v7861
        %v7863 = vrot.slane %v7606, %v7862
        %v7864 = vsel %vm6957, %v7863, %v7859
        %v7865 = vlaneseq
        %v7866 = vshrl.u32 %v7865, 7
        %v7867 = vsub.s32 %v6959, %v7866
        %v7868 = vrot.slane %v7611, %v7867
        %v7869 = vsel %vm6964, %v7868, %v7864
        %v7870 = vlaneseq
        %v7871 = vshrl.u32 %v7870, 7
        %v7872 = vsub.s32 %v6940, %v7871
        %v7873 = vrot.slane %v7616, %v7872
        %v7874 = vlaneseq
        %v7875 = vshrl.u32 %v7874, 7
        %v7876 = vsub.s32 %v6945, %v7875
        %v7877 = vrot.slane %v7621, %v7876
        %v7878 = vsel %vm6950, %v7877, %v7873
        %v7879 = vlaneseq
        %v7880 = vshrl.u32 %v7879, 7
        %v7881 = vsub.s32 %v6952, %v7880
        %v7882 = vrot.slane %v7626, %v7881
        %v7883 = vsel %vm6957, %v7882, %v7878
        %v7884 = vlaneseq
        %v7885 = vshrl.u32 %v7884, 7
        %v7886 = vsub.s32 %v6959, %v7885
        %v7887 = vrot.slane %v7631, %v7886
        %v7888 = vsel %vm6964, %v7887, %v7883
        %v7889 = vsel %vm7099, %v7774, %v7755
        %v7890 = vsel %vm7101, %v7793, %v7889
        %v7891 = vsel %vm7103, %v7812, %v7890
        %v7892 = vsel %vm7105, %v7831, %v7891
        %v7893 = vsel %vm7107, %v7850, %v7892
        %v7894 = vsel %vm7109, %v7869, %v7893
        %v7895 = vsel %vm7111, %v7888, %v7894
        %v7897 = vsel %vm7114, %v7895, 0.0
        %7898 = vadd.xlane.f32.xlu0 %v7897
        %v7899 = vpop.xlane.xlu0 %7898
        %v7901 = vrot.slane %v7899, 1
        %v7902 = vrot.slane %v7899, 2
        %v7903 = vrot.slane %v7899, 3
        %v7904 = vrot.slane %v7899, 4
        %v7905 = vrot.slane %v7899, 5
        %v7906 = vrot.slane %v7899, 6
        %v7907 = vrot.slane %v7899, 7
        %v7916 = vrcp.pop %v7899
        %v7917 = vmul.f32 %v7673, %v7916
        %v7918 = vrcp.pop %v7901
        %v7919 = vmul.f32 %v7682, %v7918
        %v7920 = vrcp.pop %v7902
        %v7921 = vmul.f32 %v7691, %v7920
        %v7922 = vrcp.pop %v7903
        %v7923 = vmul.f32 %v7700, %v7922
        %v7924 = vrcp.pop %v7904
        %v7925 = vmul.f32 %v7709, %v7924
        %v7926 = vrcp.pop %v7905
        %v7927 = vmul.f32 %v7718, %v7926
        %v7928 = vrcp.pop %v7906
        %v7929 = vmul.f32 %v7727, %v7928
        %v7930 = vrcp.pop %v7907
        %v7931 = vmul.f32 %v7736, %v7930
        %v7940 = vrot.slane %v7919, 7
        %v7941 = vsel %vm7099, %v7940, %v7917
        %v7942 = vrot.slane %v7921, 6
        %v7943 = vsel %vm7101, %v7942, %v7941
        %v7944 = vrot.slane %v7923, 5
        %v7945 = vsel %vm7103, %v7944, %v7943
        %v7946 = vrot.slane %v7925, 4
        %v7947 = vsel %vm7105, %v7946, %v7945
        %v7948 = vrot.slane %v7927, 3
        %v7949 = vsel %vm7107, %v7948, %v7947
        %v7950 = vrot.slane %v7929, 2
        %v7951 = vsel %vm7109, %v7950, %v7949
        %v7952 = vrot.slane %v7931, 1
        %v7953 = vsel %vm7111, %v7952, %v7951
        %7955 = vst [vmem:[%s460] sm:$0xff] %v7953
        %s7956 = sand.u32 %s261, 1
        %s7957 = scalar_lea.sflag [#allocation5], %s7956
        %s7958 = sand.u32 %s261, 1
        %s7959 = smul.addr %s7958, 8
        %s7960 = scalar_lea.vmem [#allocation12], %s7959
        // Predicated region
        $region81: #{tpu_custom_call.1} parent=59 // pred_check
          %p7961 = pneg %p271
        $region82: #{tpu_custom_call.1} parent=59 // pred_check_branch
          %7963 = sbr.rel (%p7961) target = $region84
        $region83: #{tpu_custom_call.1} parent=59 // pred_region
          %s7965 = ssub.s32 128, 128
          %7966 = vsyncadd %s7957, %s7965
          %s7967 = smul.addr %s33, 128
          %s7968 = scalar_lea.hbm %s10, %s7967
          %s7970 = sshll.u32 %s7960, 4
          %s7971 = int_to_ptr.vmem [resolvable:$true] %s7970
          %7973 = dma.vmem_to_hbm [thread:$0]  %s7971, 128, %s7968, %s7957
        $region84: #{tpu_custom_call.1} parent=59 // pred_fallthru
          _
      $region60: #{tpu_custom_call.1} parent=5 // pred_fallthru
        _
      %p7974 = scmp.le.s32.totalorder 2, %s28
      // Predicated region
      $region85: #{tpu_custom_call.1} parent=5 // pred_check
        %p7975 = pneg %p7974
      $region86: #{tpu_custom_call.1} parent=5 // pred_check_branch
        %7977 = sbr.rel (%p7975) target = $region88
      $region87: #{tpu_custom_call.1} parent=5 // pred_region
        %s7978 = ssub.s32 %s28, 2
        // Predicated region
        $region89: #{tpu_custom_call.1} parent=87 // pred_check
          %p7979 = pneg %p277
        $region90: #{tpu_custom_call.1} parent=87 // pred_check_branch
          %7981 = sbr.rel (%p7979) target = $region92
        $region91: #{tpu_custom_call.1} parent=87 // pred_region
          %s7982 = sand.u32 %s262, 1
          %s7983 = scalar_lea.sflag [#allocation5], %s7982
          %s7984 = sand.u32 %s262, 1
          %s7985 = smul.addr %s7984, 8
          %s7986 = scalar_lea.vmem [#allocation12], %s7985
          %7987 = dma.done %s7983, 128
        $region92: #{tpu_custom_call.1} parent=87 // pred_fallthru
          _
      $region88: #{tpu_custom_call.1} parent=5 // pred_fallthru
        _
    $region6: #{tpu_custom_call.1} parent=1 // loop_footer
      %s32 = sadd.s32 1, %s28
    $region7: #{tpu_custom_call.1} parent=1 // loop_footer_branch
      %27 = sbr.rel target = $region3
    $region8: #{tpu_custom_call.1} parent=1 // loop_exit
      _
    %7988 = vsyncpa [#allocation4], 1
    %s7989 = scalar_lea.sflag [#allocation4], 1
    %7990 = vsyncpa %s7989, 1
    %7991 = vsyncpa [#allocation7], 1
    %s7992 = scalar_lea.sflag [#allocation7], 1
    %7993 = vsyncpa %s7992, 1
    %7994 = vsyncpa [#allocation10], 1
    %7995 = vsyncpa [#allocation5], 1
    %s7996 = scalar_lea.sflag [#allocation5], 1
    %7997 = vsyncpa %s7996, 1

</llo_original>
